<compile_context>
chip_gen: v7x
topology: tpu7x:2x2x1
jax: 0.10.0
libtpu: 0.0.40
codegen_flags: <defaults>
</compile_context>

<pallas_src>
import math
from functools import partial

import jax
import jax.numpy as jnp
from jax import lax
from jax.experimental import pallas as pl
from jax.experimental.pallas import tpu as pltpu

# ----------------------------- configuration ------------------------------
# LTAE(modalities=['aerial'], n_head=16, d_k=8, mlp=[10,32,128]+[128],
#      mlp_in=[10,32,128], T=367, in_norm=True, positional_encoding=True)
IN_CH = 4                      # modality_to_channels['aerial']
N_HEAD = 16
D_K = 8
MLP_IN = [IN_CH, 32, 128]      # mlp_in with mlp_in[0] <- in_channels
D_MODEL = MLP_IN[-1]           # 128
OUTPUT_DIM = 128
MLP_OUT = [D_MODEL, 32, 128, OUTPUT_DIM]   # mlp with mlp[0] <- d_model, + output_dim
T_PERIOD = 367
EPS = 1e-5

assert N_HEAD * D_K == D_MODEL
assert D_MODEL % N_HEAD == 0 and OUTPUT_DIM == D_MODEL


# ------------------------------- kernel -----------------------------------
def ltae_kernel(x_ref, pe_ref,
                cselT_ref, csel_ref, ging_ref, ginb_ref,
                w1bd_ref, b1bd_ref, w2bd_ref, b2bd_ref,
                wq_ref, bq_ref, aexp_ref,
                m1w_ref, m1b_ref, m2w_ref, m2b_ref, m3w_ref, m3b_ref,
                eg_ref, sg_ref, gog_ref, gob_ref,
                o_ref, *, t, nh, grp):
    f32 = jnp.float32
    bf16 = jnp.bfloat16
    d = nh * grp

    xt = x_ref[0]                               # (T*C, tp): rows=(t,c), lanes=pixels
    tp = xt.shape[-1]

    # ---- input GroupNorm: per-channel stats over time, per pixel ----------
    mu = jnp.dot(cselT_ref[...], xt, preferred_element_type=f32) * (1.0 / t)       # (C, tp)
    xc = xt - jnp.dot(csel_ref[...], mu, preferred_element_type=f32)
    var = jnp.dot(cselT_ref[...], xc * xc, preferred_element_type=f32) * (1.0 / t)
    var_b = jnp.dot(csel_ref[...], var, preferred_element_type=f32)
    xn = xc * lax.rsqrt(var_b + EPS) * ging_ref[...] + ginb_ref[...]               # (T*C, tp)

    # ---- inconv: (1x1 Conv + folded BN + ReLU) x 2, block-diagonal over time
    h = jnp.maximum(
        jnp.dot(w1bd_ref[...], xn, preferred_element_type=f32) + b1bd_ref[...],
        0.0)                                                                       # (T*32, tp)
    z = jnp.maximum(
        jnp.dot(w2bd_ref[...], h.astype(bf16), preferred_element_type=f32)
        + b2bd_ref[...], 0.0)                                                      # (T*D, tp)

    # ---- add positional encoding (per-batch, shared by all pixels) --------
    zp = z + pe_ref[0]                                                             # (T*D, tp)

    # ---- attention scores: Wk/bk/master-query folded into one linear ------
    scores = jnp.dot(wq_ref[...], zp.astype(bf16),
                     preferred_element_type=f32) + bq_ref[...]                     # (T*NH, tp)

    # ---- softmax over time (rows are t-major blocks of nh heads) ----------
    s3 = scores.reshape(t, nh, tp)
    m = jnp.max(s3, axis=0, keepdims=True)
    e = jnp.exp(s3 - m)
    den = jnp.sum(e, axis=0, keepdims=True)
    attn = (e * pl.reciprocal(den, approx=True)).reshape(t * nh, tp)
    # (attention dropout p=0.1 -> identity in eval mode)

    # ---- attention-weighted sum over time ----------------------------------
    # head -> d_model broadcast via 0/1 block-diag matmul, then a free
    # sublane-aligned reshape + leading-axis sum for the time reduction.
    attn_d = jnp.dot(aexp_ref[...], attn, preferred_element_type=f32)              # (T*D, tp)
    att_out = jnp.sum((attn_d * zp).reshape(t, d, tp), axis=0)                     # (D, tp)

    # ---- output MLP (Linear + folded BN + ReLU) x 3, dropout = identity ----
    h1 = jnp.maximum(
        jnp.dot(m1w_ref[...], att_out.astype(bf16), preferred_element_type=f32)
        + m1b_ref[...], 0.0)                                                       # (32, tp)
    h2 = jnp.maximum(
        jnp.dot(m2w_ref[...], h1.astype(bf16), preferred_element_type=f32)
        + m2b_ref[...], 0.0)                                                       # (D, tp)
    h3 = jnp.maximum(
        jnp.dot(m3w_ref[...], h2.astype(bf16), preferred_element_type=f32)
        + m3b_ref[...], 0.0)                                                       # (D, tp)

    # ---- output GroupNorm (n_head groups of `grp` channels) ----------------
    gm = jnp.dot(eg_ref[...], h3, preferred_element_type=f32) * (1.0 / grp)        # (NH, tp)
    hc = h3 - jnp.dot(sg_ref[...], gm, preferred_element_type=f32)
    gv = jnp.dot(eg_ref[...], hc * hc, preferred_element_type=f32) * (1.0 / grp)
    gv_b = jnp.dot(sg_ref[...], gv, preferred_element_type=f32)
    y = hc * lax.rsqrt(gv_b + EPS) * gog_ref[...] + gob_ref[...]                   # (D, tp)

    # ---- per-tile spatial sum (the /H*W mean happens in the wrapper) -------
    o_ref[0, 0] = jnp.sum(y, axis=1, keepdims=True)                                # (D, 1)


# ------------------------------ JAX glue -----------------------------------
def positional_encoding(dates):
    """dates: (B, T) -> sinusoidal table (B, T, D_MODEL), repeated per head."""
    d = D_MODEL // N_HEAD
    i = jnp.arange(d)
    denom = jnp.power(float(T_PERIOD), 2.0 * (i // 2).astype(jnp.float32) / d)
    table = dates.astype(jnp.float32)[:, :, None] / denom[None, None, :]
    table = jnp.where((i % 2 == 0)[None, None, :], jnp.sin(table), jnp.cos(table))
    return jnp.tile(table, (1, 1, N_HEAD))


def _folded_linear_bn(key, fan_in, fan_out):
    """Deterministic Linear/Conv1d(k=1) weights with eval-mode BatchNorm folded in."""
    k = jax.random.split(key, 6)
    w = jax.random.normal(k[0], (fan_in, fan_out), jnp.float32) / math.sqrt(fan_in)
    b = jax.random.normal(k[1], (fan_out,), jnp.float32) * 0.02
    gamma = jax.random.uniform(k[2], (fan_out,), jnp.float32, 0.5, 1.5)
    beta = jax.random.normal(k[3], (fan_out,), jnp.float32) * 0.05
    rmean = jax.random.normal(k[4], (fan_out,), jnp.float32) * 0.05
    rvar = jax.random.uniform(k[5], (fan_out,), jnp.float32, 0.5, 1.5)
    s = gamma / jnp.sqrt(rvar + EPS)
    return w * s[None, :], ((b - rmean) * s + beta)[None, :]


def init_params(key):
    ks = jax.random.split(key, 12)
    p = {}
    p["gin_g"] = jax.random.uniform(ks[0], (1, IN_CH), jnp.float32, 0.5, 1.5)
    p["gin_b"] = jax.random.normal(ks[1], (1, IN_CH), jnp.float32) * 0.05
    p["w_in1"], p["b_in1"] = _folded_linear_bn(ks[2], MLP_IN[0], MLP_IN[1])
    p["w_in2"], p["b_in2"] = _folded_linear_bn(ks[3], MLP_IN[1], MLP_IN[2])
    # master query (n_head, d_k) flattened head-major, std = sqrt(2/d_k)
    p["qf"] = (jax.random.normal(ks[4], (N_HEAD, D_K), jnp.float32)
               * math.sqrt(2.0 / D_K)).reshape(1, N_HEAD * D_K)
    p["wk"] = jax.random.normal(ks[5], (D_MODEL, N_HEAD * D_K), jnp.float32) * math.sqrt(2.0 / D_K)
    p["bk"] = jax.random.normal(ks[6], (1, N_HEAD * D_K), jnp.float32) * 0.02
    p["w1"], p["b1"] = _folded_linear_bn(ks[7], MLP_OUT[0], MLP_OUT[1])
    p["w2"], p["b2"] = _folded_linear_bn(ks[8], MLP_OUT[1], MLP_OUT[2])
    p["w3"], p["b3"] = _folded_linear_bn(ks[9], MLP_OUT[2], MLP_OUT[3])
    p["gout_g"] = jax.random.uniform(ks[10], (1, OUTPUT_DIM), jnp.float32, 0.5, 1.5)
    p["gout_b"] = jax.random.normal(ks[11], (1, OUTPUT_DIM), jnp.float32) * 0.05
    return p


def _prepare_weights(params, t):
    """Precompute the constant matrices the kernel consumes (order matters)."""
    f32, bf16 = jnp.float32, jnp.bfloat16
    c, nh, dk, d = IN_CH, N_HEAD, D_K, D_MODEL
    grp = d // nh
    eye_t = jnp.eye(t, dtype=f32)

    # channel selector (input GN) and head/group selector (attention / out GN)
    csel = jnp.tile(jnp.eye(c, dtype=f32), (t, 1))                     # (t*c, c)
    sg = jnp.repeat(jnp.eye(nh, dtype=f32), grp, axis=0)               # (d, nh)
    eg = sg.T                                                          # (nh, d)

    # fold Wk, bk and the learned master query (and 1/sqrt(d_k)) into ONE linear
    q = params["qf"].reshape(nh, dk)
    scale = 1.0 / math.sqrt(dk)
    wq_eff = jnp.einsum("dhk,hk->dh", params["wk"].reshape(d, nh, dk), q) * scale   # (d, nh)
    beff = jnp.einsum("hk,hk->h", params["bk"].reshape(nh, dk), q) * scale          # (nh,)

    def col(v):
        return v.reshape(-1, 1).astype(f32)

    return [
        csel.T,                                                        # cselT  (c, t*c)
        csel,                                                          # csel   (t*c, c)
        jnp.tile(col(params["gin_g"]), (t, 1)),                        # (t*c, 1)
        jnp.tile(col(params["gin_b"]), (t, 1)),                        # (t*c, 1)
        jnp.kron(eye_t, params["w_in1"].T),                            # (t*32, t*c)  f32
        jnp.tile(col(params["b_in1"]), (t, 1)),                        # (t*32, 1)
        jnp.kron(eye_t, params["w_in2"].T).astype(bf16),               # (t*d, t*32)  bf16
        jnp.tile(col(params["b_in2"]), (t, 1)),                        # (t*d, 1)
        jnp.kron(eye_t, wq_eff.T).astype(bf16),                        # (t*nh, t*d)  bf16
        jnp.tile(col(beff), (t, 1)),                                   # (t*nh, 1)
        jnp.kron(eye_t, sg),                                           # (t*d, t*nh)  f32
        params["w1"].T.astype(bf16), col(params["b1"]),                # (32, d), (32, 1)
        params["w2"].T.astype(bf16), col(params["b2"]),                # (d, 32), (d, 1)
        params["w3"].T.astype(bf16), col(params["b3"]),                # (d, d),  (d, 1)
        eg, sg,                                                        # (nh, d), (d, nh)
        col(params["gout_g"]), col(params["gout_b"]),                  # (d, 1) x 2
    ]


def ltae_forward(x, dates, params, *, tp=256):
    """x: (B, T, C, H, W) float32, dates: (B, T) int. Returns (B, OUTPUT_DIM)."""
    B, T, C, H, W = x.shape
    assert C == IN_CH
    HW = H * W
    tp = min(tp, HW)
    assert HW % tp == 0 and (tp % 128 == 0 or tp == HW)
    P = HW // tp

    x_flat = x.reshape(B, T * C, HW).astype(jnp.float32)   # pure reshape, no HBM transpose
    pe = positional_encoding(dates).reshape(B, T * D_MODEL, 1)
    weights = _prepare_weights(params, T)

    kernel = partial(ltae_kernel, t=T, nh=N_HEAD, grp=D_MODEL // N_HEAD)

    grid_spec = pltpu.PrefetchScalarGridSpec(
        num_scalar_prefetch=0,
        grid=(B, P),
        in_specs=[
            pl.BlockSpec((1, T * C, tp), lambda b, p: (b, 0, p)),
            pl.BlockSpec((1, T * D_MODEL, 1), lambda b, p: (b, 0, 0)),
        ] + [pl.BlockSpec(w.shape, lambda b, p: (0, 0)) for w in weights],
        out_specs=pl.BlockSpec((1, 1, OUTPUT_DIM, 1), lambda b, p: (b, p, 0, 0)),
    )

    out = pl.pallas_call(
        kernel,
        out_shape=jax.ShapeDtypeStruct((B, P, OUTPUT_DIM, 1), jnp.float32),
        grid_spec=grid_spec,
        compiler_params=pltpu.CompilerParams(
            dimension_semantics=("parallel", "parallel"),
            vmem_limit_bytes=32 * 1024 * 1024),                 # explicit VMEM budget (v7x-safe)
    )(x_flat, pe, *weights)

    # spatial mean over all H*W pixels (== torch.mean(dim=(2,3)).squeeze())
    return out.sum(axis=(1, 3)) * (1.0 / HW)


# --------------------------- pure-JAX reference ----------------------------
def ltae_reference(x, dates, prm):
    hp = lax.Precision.HIGHEST
    B, T, C, H, W = x.shape
    N = B * H * W
    grp = D_MODEL // N_HEAD
    xp = jnp.transpose(x, (0, 3, 4, 1, 2)).reshape(N, T, C)
    mu = jnp.mean(xp, axis=1, keepdims=True)
    var = jnp.mean((xp - mu) ** 2, axis=1, keepdims=True)
    xn = (xp - mu) / jnp.sqrt(var + EPS) * prm["gin_g"].reshape(1, 1, C) + prm["gin_b"].reshape(1, 1, C)
    h = jnp.maximum(jnp.einsum("ntc,ch->nth", xn, prm["w_in1"], precision=hp) + prm["b_in1"], 0.0)
    z = jnp.maximum(jnp.einsum("nth,hd->ntd", h, prm["w_in2"], precision=hp) + prm["b_in2"], 0.0)
    pe = positional_encoding(dates)
    z = z + jnp.broadcast_to(pe[:, None], (B, H * W, T, D_MODEL)).reshape(N, T, D_MODEL)
    k = jnp.einsum("ntd,de->nte", z, prm["wk"], precision=hp) + prm["bk"]
    q = prm["qf"].reshape(N_HEAD, D_K)
    scores = jnp.einsum("nthd,hd->nth", k.reshape(N, T, N_HEAD, D_K), q, precision=hp) / math.sqrt(D_K)
    attn = jax.nn.softmax(scores, axis=1)
    out = jnp.einsum("nth,nthg->nhg", attn, z.reshape(N, T, N_HEAD, grp), precision=hp).reshape(N, D_MODEL)
    h1 = jnp.maximum(jnp.dot(out, prm["w1"], precision=hp) + prm["b1"], 0.0)
    h2 = jnp.maximum(jnp.dot(h1, prm["w2"], precision=hp) + prm["b2"], 0.0)
    h3 = jnp.maximum(jnp.dot(h2, prm["w3"], precision=hp) + prm["b3"], 0.0)
    g = h3.reshape(N, N_HEAD, grp)
    gm = jnp.mean(g, axis=-1, keepdims=True)
    gv = jnp.mean(g * g, axis=-1, keepdims=True) - gm * gm
    y = ((g - gm) / jnp.sqrt(gv + EPS)).reshape(N, D_MODEL) * prm["gout_g"] + prm["gout_b"]
    return y.reshape(B, H * W, D_MODEL).mean(axis=1)


# --------------------------------- main ------------------------------------
if __name__ == "__main__":
    key = jax.random.PRNGKey(0)
    k_params, k_x, k_dates = jax.random.split(key, 3)

    B, T, H, W = 2, 8, 16, 16
    x = jax.random.normal(k_x, (B, T, IN_CH, H, W), jnp.float32)                 # x['aerial']
    dates = jnp.sort(jax.random.randint(k_dates, (B, T), 0, T_PERIOD), axis=1)   # x['aerial_dates']
    params = init_params(k_params)

    fwd = jax.jit(ltae_forward)
    out = jax.block_until_ready(fwd(x, dates, params))

    ref = ltae_reference(x, dates, params)
    rel_err = float(jnp.max(jnp.abs(out - ref)) / (jnp.max(jnp.abs(ref)) + 1e-6))

    assert out.shape == (B, OUTPUT_DIM)
    assert bool(jnp.all(jnp.isfinite(out)))
    # Tolerance sized for bf16 operands on the large MXU dots (the f32-operand
    # path of the same pipeline matches the reference far tighter).
    assert rel_err < 4e-2, f"kernel/reference mismatch: rel_err={rel_err}"
    print("KERNEL_OK")
</pallas_src>

<mosaic_0001>
module attributes {stable_mosaic.version = 11 : i64} {
  func.func @ltae_kernel(%arg0: i32, %arg1: i32, %arg2: memref<1x32x256xf32, #tpu.memory_space<vmem>>, %arg3: memref<1x1024x1xf32, #tpu.memory_space<vmem>>, %arg4: memref<4x32xf32, #tpu.memory_space<vmem>>, %arg5: memref<32x4xf32, #tpu.memory_space<vmem>>, %arg6: memref<32x1xf32, #tpu.memory_space<vmem>>, %arg7: memref<32x1xf32, #tpu.memory_space<vmem>>, %arg8: memref<256x32xf32, #tpu.memory_space<vmem>>, %arg9: memref<256x1xf32, #tpu.memory_space<vmem>>, %arg10: memref<1024x256xbf16, #tpu.memory_space<vmem>>, %arg11: memref<1024x1xf32, #tpu.memory_space<vmem>>, %arg12: memref<128x1024xbf16, #tpu.memory_space<vmem>>, %arg13: memref<128x1xf32, #tpu.memory_space<vmem>>, %arg14: memref<1024x128xf32, #tpu.memory_space<vmem>>, %arg15: memref<32x128xbf16, #tpu.memory_space<vmem>>, %arg16: memref<32x1xf32, #tpu.memory_space<vmem>>, %arg17: memref<128x32xbf16, #tpu.memory_space<vmem>>, %arg18: memref<128x1xf32, #tpu.memory_space<vmem>>, %arg19: memref<128x128xbf16, #tpu.memory_space<vmem>>, %arg20: memref<128x1xf32, #tpu.memory_space<vmem>>, %arg21: memref<16x128xf32, #tpu.memory_space<vmem>>, %arg22: memref<128x16xf32, #tpu.memory_space<vmem>>, %arg23: memref<128x1xf32, #tpu.memory_space<vmem>>, %arg24: memref<128x1xf32, #tpu.memory_space<vmem>>, %arg25: memref<1x1x128x1xf32, #tpu.memory_space<vmem>>) attributes {dimension_semantics = [#tpu.dimension_semantics<parallel>, #tpu.dimension_semantics<parallel>], iteration_bounds = array<i64: 2, 1>, scalar_prefetch = 0 : i64, scratch_operands = 0 : i64, tpu.core_type = #tpu.core_type<tc>, window_params = [{transform_indices = @transform_0, window_bounds = array<i64: 1, 32, 256>}, {transform_indices = @transform_1, window_bounds = array<i64: 1, 1024, 1>}, {pipeline_mode = #tpu.pipeline_mode<synchronous>, transform_indices = @transform_2, window_bounds = array<i64: 4, 32>}, {pipeline_mode = #tpu.pipeline_mode<synchronous>, transform_indices = @transform_3, window_bounds = array<i64: 32, 4>}, {pipeline_mode = #tpu.pipeline_mode<synchronous>, transform_indices = @transform_4, window_bounds = array<i64: 32, 1>}, {pipeline_mode = #tpu.pipeline_mode<synchronous>, transform_indices = @transform_5, window_bounds = array<i64: 32, 1>}, {pipeline_mode = #tpu.pipeline_mode<synchronous>, transform_indices = @transform_6, window_bounds = array<i64: 256, 32>}, {pipeline_mode = #tpu.pipeline_mode<synchronous>, transform_indices = @transform_7, window_bounds = array<i64: 256, 1>}, {pipeline_mode = #tpu.pipeline_mode<synchronous>, transform_indices = @transform_8, window_bounds = array<i64: 1024, 256>}, {pipeline_mode = #tpu.pipeline_mode<synchronous>, transform_indices = @transform_9, window_bounds = array<i64: 1024, 1>}, {pipeline_mode = #tpu.pipeline_mode<synchronous>, transform_indices = @transform_10, window_bounds = array<i64: 128, 1024>}, {pipeline_mode = #tpu.pipeline_mode<synchronous>, transform_indices = @transform_11, window_bounds = array<i64: 128, 1>}, {pipeline_mode = #tpu.pipeline_mode<synchronous>, transform_indices = @transform_12, window_bounds = array<i64: 1024, 128>}, {pipeline_mode = #tpu.pipeline_mode<synchronous>, transform_indices = @transform_13, window_bounds = array<i64: 32, 128>}, {pipeline_mode = #tpu.pipeline_mode<synchronous>, transform_indices = @transform_14, window_bounds = array<i64: 32, 1>}, {pipeline_mode = #tpu.pipeline_mode<synchronous>, transform_indices = @transform_15, window_bounds = array<i64: 128, 32>}, {pipeline_mode = #tpu.pipeline_mode<synchronous>, transform_indices = @transform_16, window_bounds = array<i64: 128, 1>}, {pipeline_mode = #tpu.pipeline_mode<synchronous>, transform_indices = @transform_17, window_bounds = array<i64: 128, 128>}, {pipeline_mode = #tpu.pipeline_mode<synchronous>, transform_indices = @transform_18, window_bounds = array<i64: 128, 1>}, {pipeline_mode = #tpu.pipeline_mode<synchronous>, transform_indices = @transform_19, window_bounds = array<i64: 16, 128>}, {pipeline_mode = #tpu.pipeline_mode<synchronous>, transform_indices = @transform_20, window_bounds = array<i64: 128, 16>}, {pipeline_mode = #tpu.pipeline_mode<synchronous>, transform_indices = @transform_21, window_bounds = array<i64: 128, 1>}, {pipeline_mode = #tpu.pipeline_mode<synchronous>, transform_indices = @transform_22, window_bounds = array<i64: 128, 1>}, {transform_indices = @transform_23, window_bounds = array<i64: 1, 1, 128, 1>}]} {
    %c0 = arith.constant 0 : index
    %c0_0 = arith.constant 0 : index
    %c0_1 = arith.constant 0 : index
    %0 = vector.load %arg2[%c0, %c0_0, %c0_1] : memref<1x32x256xf32, #tpu.memory_space<vmem>>, vector<1x32x256xf32>
    %1 = vector.shape_cast %0 : vector<1x32x256xf32> to vector<32x256xf32>
    %c0_2 = arith.constant 0 : index
    %c0_3 = arith.constant 0 : index
    %2 = vector.load %arg4[%c0_2, %c0_3] : memref<4x32xf32, #tpu.memory_space<vmem>>, vector<4x32xf32>
    %cst = arith.constant dense<0.000000e+00> : vector<4x256xf32>
    %3 = tpu.matmul %2, %1, %cst {dimension_numbers = #tpu.dot_dimension_numbers<[1], [0], [0], [1], [0, 0, 1, 1], [], []>} : vector<4x32xf32>, vector<32x256xf32>, vector<4x256xf32> -> vector<4x256xf32>
    %cst_4 = arith.constant 1.250000e-01 : f32
    %4 = vector.broadcast %cst_4 : f32 to vector<4x256xf32>
    %5 = arith.mulf %3, %4 : vector<4x256xf32>
    %c0_5 = arith.constant 0 : index
    %c0_6 = arith.constant 0 : index
    %6 = vector.load %arg5[%c0_5, %c0_6] : memref<32x4xf32, #tpu.memory_space<vmem>>, vector<32x4xf32>
    %cst_7 = arith.constant dense<0.000000e+00> : vector<32x256xf32>
    %7 = tpu.matmul %6, %5, %cst_7 {dimension_numbers = #tpu.dot_dimension_numbers<[1], [0], [0], [1], [0, 0, 1, 1], [], []>} : vector<32x4xf32>, vector<4x256xf32>, vector<32x256xf32> -> vector<32x256xf32>
    %8 = arith.subf %1, %7 : vector<32x256xf32>
    %c0_8 = arith.constant 0 : index
    %c0_9 = arith.constant 0 : index
    %9 = vector.load %arg4[%c0_8, %c0_9] : memref<4x32xf32, #tpu.memory_space<vmem>>, vector<4x32xf32>
    %10 = arith.mulf %8, %8 : vector<32x256xf32>
    %cst_10 = arith.constant dense<0.000000e+00> : vector<4x256xf32>
    %11 = tpu.matmul %9, %10, %cst_10 {dimension_numbers = #tpu.dot_dimension_numbers<[1], [0], [0], [1], [0, 0, 1, 1], [], []>} : vector<4x32xf32>, vector<32x256xf32>, vector<4x256xf32> -> vector<4x256xf32>
    %cst_11 = arith.constant 1.250000e-01 : f32
    %12 = vector.broadcast %cst_11 : f32 to vector<4x256xf32>
    %13 = arith.mulf %11, %12 : vector<4x256xf32>
    %c0_12 = arith.constant 0 : index
    %c0_13 = arith.constant 0 : index
    %14 = vector.load %arg5[%c0_12, %c0_13] : memref<32x4xf32, #tpu.memory_space<vmem>>, vector<32x4xf32>
    %cst_14 = arith.constant dense<0.000000e+00> : vector<32x256xf32>
    %15 = tpu.matmul %14, %13, %cst_14 {dimension_numbers = #tpu.dot_dimension_numbers<[1], [0], [0], [1], [0, 0, 1, 1], [], []>} : vector<32x4xf32>, vector<4x256xf32>, vector<32x256xf32> -> vector<32x256xf32>
    %cst_15 = arith.constant 9.99999974E-6 : f32
    %16 = vector.broadcast %cst_15 : f32 to vector<32x256xf32>
    %17 = arith.addf %15, %16 : vector<32x256xf32>
    %18 = math.rsqrt %17 : vector<32x256xf32>
    %19 = arith.mulf %8, %18 : vector<32x256xf32>
    %c0_16 = arith.constant 0 : index
    %c0_17 = arith.constant 0 : index
    %20 = vector.load %arg6[%c0_16, %c0_17] : memref<32x1xf32, #tpu.memory_space<vmem>>, vector<32x1xf32>
    %21 = vector.broadcast %20 : vector<32x1xf32> to vector<32x256xf32>
    %22 = arith.mulf %19, %21 : vector<32x256xf32>
    %c0_18 = arith.constant 0 : index
    %c0_19 = arith.constant 0 : index
    %23 = vector.load %arg7[%c0_18, %c0_19] : memref<32x1xf32, #tpu.memory_space<vmem>>, vector<32x1xf32>
    %24 = vector.broadcast %23 : vector<32x1xf32> to vector<32x256xf32>
    %25 = arith.addf %22, %24 : vector<32x256xf32>
    %c0_20 = arith.constant 0 : index
    %c0_21 = arith.constant 0 : index
    %26 = vector.load %arg8[%c0_20, %c0_21] : memref<256x32xf32, #tpu.memory_space<vmem>>, vector<256x32xf32>
    %cst_22 = arith.constant dense<0.000000e+00> : vector<256x256xf32>
    %27 = tpu.matmul %26, %25, %cst_22 {dimension_numbers = #tpu.dot_dimension_numbers<[1], [0], [0], [1], [0, 0, 1, 1], [], []>} : vector<256x32xf32>, vector<32x256xf32>, vector<256x256xf32> -> vector<256x256xf32>
    %c0_23 = arith.constant 0 : index
    %c0_24 = arith.constant 0 : index
    %28 = vector.load %arg9[%c0_23, %c0_24] : memref<256x1xf32, #tpu.memory_space<vmem>>, vector<256x1xf32>
    %29 = vector.broadcast %28 : vector<256x1xf32> to vector<256x256xf32>
    %30 = arith.addf %27, %29 : vector<256x256xf32>
    %cst_25 = arith.constant 0.000000e+00 : f32
    %31 = vector.broadcast %cst_25 : f32 to vector<256x256xf32>
    %32 = arith.maximumf %30, %31 : vector<256x256xf32>
    %c0_26 = arith.constant 0 : index
    %c0_27 = arith.constant 0 : index
    %33 = vector.load %arg10[%c0_26, %c0_27] : memref<1024x256xbf16, #tpu.memory_space<vmem>>, vector<1024x256xbf16>
    %34 = arith.truncf %32 : vector<256x256xf32> to vector<256x256xbf16>
    %cst_28 = arith.constant dense<0.000000e+00> : vector<1024x256xf32>
    %35 = tpu.matmul %33, %34, %cst_28 {dimension_numbers = #tpu.dot_dimension_numbers<[1], [0], [0], [1], [0, 0, 1, 1], [], []>} : vector<1024x256xbf16>, vector<256x256xbf16>, vector<1024x256xf32> -> vector<1024x256xf32>
    %c0_29 = arith.constant 0 : index
    %c0_30 = arith.constant 0 : index
    %36 = vector.load %arg11[%c0_29, %c0_30] : memref<1024x1xf32, #tpu.memory_space<vmem>>, vector<1024x1xf32>
    %37 = vector.broadcast %36 : vector<1024x1xf32> to vector<1024x256xf32>
    %38 = arith.addf %35, %37 : vector<1024x256xf32>
    %cst_31 = arith.constant 0.000000e+00 : f32
    %39 = vector.broadcast %cst_31 : f32 to vector<1024x256xf32>
    %40 = arith.maximumf %38, %39 : vector<1024x256xf32>
    %c0_32 = arith.constant 0 : index
    %c0_33 = arith.constant 0 : index
    %c0_34 = arith.constant 0 : index
    %41 = vector.load %arg3[%c0_32, %c0_33, %c0_34] : memref<1x1024x1xf32, #tpu.memory_space<vmem>>, vector<1x1024x1xf32>
    %42 = vector.shape_cast %41 : vector<1x1024x1xf32> to vector<1024x1xf32>
    %43 = vector.broadcast %42 : vector<1024x1xf32> to vector<1024x256xf32>
    %44 = arith.addf %40, %43 : vector<1024x256xf32>
    %c0_35 = arith.constant 0 : index
    %c0_36 = arith.constant 0 : index
    %45 = vector.load %arg12[%c0_35, %c0_36] : memref<128x1024xbf16, #tpu.memory_space<vmem>>, vector<128x1024xbf16>
    %46 = arith.truncf %44 : vector<1024x256xf32> to vector<1024x256xbf16>
    %cst_37 = arith.constant dense<0.000000e+00> : vector<128x256xf32>
    %47 = tpu.matmul %45, %46, %cst_37 {dimension_numbers = #tpu.dot_dimension_numbers<[1], [0], [0], [1], [0, 0, 1, 1], [], []>} : vector<128x1024xbf16>, vector<1024x256xbf16>, vector<128x256xf32> -> vector<128x256xf32>
    %c0_38 = arith.constant 0 : index
    %c0_39 = arith.constant 0 : index
    %48 = vector.load %arg13[%c0_38, %c0_39] : memref<128x1xf32, #tpu.memory_space<vmem>>, vector<128x1xf32>
    %49 = vector.broadcast %48 : vector<128x1xf32> to vector<128x256xf32>
    %50 = arith.addf %47, %49 : vector<128x256xf32>
    %51 = vector.shape_cast %50 : vector<128x256xf32> to vector<8x16x256xf32>
    %cst_40 = arith.constant dense<0xFF800000> : vector<16x256xf32>
    %52 = vector.multi_reduction <maximumf>, %51, %cst_40 [0] : vector<8x16x256xf32> to vector<16x256xf32>
    %53 = vector.shape_cast %52 : vector<16x256xf32> to vector<1x16x256xf32>
    %54 = vector.broadcast %53 : vector<1x16x256xf32> to vector<8x16x256xf32>
    %55 = arith.subf %51, %54 : vector<8x16x256xf32>
    %56 = math.exp %55 : vector<8x16x256xf32>
    %cst_41 = arith.constant dense<0.000000e+00> : vector<16x256xf32>
    %57 = vector.multi_reduction <add>, %56, %cst_41 [0] : vector<8x16x256xf32> to vector<16x256xf32>
    %58 = vector.shape_cast %57 : vector<16x256xf32> to vector<1x16x256xf32>
    %59 = tpu.reciprocal %58 {approx = true} : vector<1x16x256xf32> -> vector<1x16x256xf32>
    %60 = vector.broadcast %59 : vector<1x16x256xf32> to vector<8x16x256xf32>
    %61 = arith.mulf %56, %60 : vector<8x16x256xf32>
    %62 = vector.shape_cast %61 : vector<8x16x256xf32> to vector<128x256xf32>
    %c0_42 = arith.constant 0 : index
    %c0_43 = arith.constant 0 : index
    %63 = vector.load %arg14[%c0_42, %c0_43] : memref<1024x128xf32, #tpu.memory_space<vmem>>, vector<1024x128xf32>
    %cst_44 = arith.constant dense<0.000000e+00> : vector<1024x256xf32>
    %64 = tpu.matmul %63, %62, %cst_44 {dimension_numbers = #tpu.dot_dimension_numbers<[1], [0], [0], [1], [0, 0, 1, 1], [], []>} : vector<1024x128xf32>, vector<128x256xf32>, vector<1024x256xf32> -> vector<1024x256xf32>
    %65 = arith.mulf %64, %44 : vector<1024x256xf32>
    %66 = vector.shape_cast %65 : vector<1024x256xf32> to vector<8x128x256xf32>
    %cst_45 = arith.constant dense<0.000000e+00> : vector<128x256xf32>
    %67 = vector.multi_reduction <add>, %66, %cst_45 [0] : vector<8x128x256xf32> to vector<128x256xf32>
    %c0_46 = arith.constant 0 : index
    %c0_47 = arith.constant 0 : index
    %68 = vector.load %arg15[%c0_46, %c0_47] : memref<32x128xbf16, #tpu.memory_space<vmem>>, vector<32x128xbf16>
    %69 = arith.truncf %67 : vector<128x256xf32> to vector<128x256xbf16>
    %cst_48 = arith.constant dense<0.000000e+00> : vector<32x256xf32>
    %70 = tpu.matmul %68, %69, %cst_48 {dimension_numbers = #tpu.dot_dimension_numbers<[1], [0], [0], [1], [0, 0, 1, 1], [], []>} : vector<32x128xbf16>, vector<128x256xbf16>, vector<32x256xf32> -> vector<32x256xf32>
    %c0_49 = arith.constant 0 : index
    %c0_50 = arith.constant 0 : index
    %71 = vector.load %arg16[%c0_49, %c0_50] : memref<32x1xf32, #tpu.memory_space<vmem>>, vector<32x1xf32>
    %72 = vector.broadcast %71 : vector<32x1xf32> to vector<32x256xf32>
    %73 = arith.addf %70, %72 : vector<32x256xf32>
    %cst_51 = arith.constant 0.000000e+00 : f32
    %74 = vector.broadcast %cst_51 : f32 to vector<32x256xf32>
    %75 = arith.maximumf %73, %74 : vector<32x256xf32>
    %c0_52 = arith.constant 0 : index
    %c0_53 = arith.constant 0 : index
    %76 = vector.load %arg17[%c0_52, %c0_53] : memref<128x32xbf16, #tpu.memory_space<vmem>>, vector<128x32xbf16>
    %77 = arith.truncf %75 : vector<32x256xf32> to vector<32x256xbf16>
    %cst_54 = arith.constant dense<0.000000e+00> : vector<128x256xf32>
    %78 = tpu.matmul %76, %77, %cst_54 {dimension_numbers = #tpu.dot_dimension_numbers<[1], [0], [0], [1], [0, 0, 1, 1], [], []>} : vector<128x32xbf16>, vector<32x256xbf16>, vector<128x256xf32> -> vector<128x256xf32>
    %c0_55 = arith.constant 0 : index
    %c0_56 = arith.constant 0 : index
    %79 = vector.load %arg18[%c0_55, %c0_56] : memref<128x1xf32, #tpu.memory_space<vmem>>, vector<128x1xf32>
    %80 = vector.broadcast %79 : vector<128x1xf32> to vector<128x256xf32>
    %81 = arith.addf %78, %80 : vector<128x256xf32>
    %cst_57 = arith.constant 0.000000e+00 : f32
    %82 = vector.broadcast %cst_57 : f32 to vector<128x256xf32>
    %83 = arith.maximumf %81, %82 : vector<128x256xf32>
    %c0_58 = arith.constant 0 : index
    %c0_59 = arith.constant 0 : index
    %84 = vector.load %arg19[%c0_58, %c0_59] : memref<128x128xbf16, #tpu.memory_space<vmem>>, vector<128x128xbf16>
    %85 = arith.truncf %83 : vector<128x256xf32> to vector<128x256xbf16>
    %cst_60 = arith.constant dense<0.000000e+00> : vector<128x256xf32>
    %86 = tpu.matmul %84, %85, %cst_60 {dimension_numbers = #tpu.dot_dimension_numbers<[1], [0], [0], [1], [0, 0, 1, 1], [], []>} : vector<128x128xbf16>, vector<128x256xbf16>, vector<128x256xf32> -> vector<128x256xf32>
    %c0_61 = arith.constant 0 : index
    %c0_62 = arith.constant 0 : index
    %87 = vector.load %arg20[%c0_61, %c0_62] : memref<128x1xf32, #tpu.memory_space<vmem>>, vector<128x1xf32>
    %88 = vector.broadcast %87 : vector<128x1xf32> to vector<128x256xf32>
    %89 = arith.addf %86, %88 : vector<128x256xf32>
    %cst_63 = arith.constant 0.000000e+00 : f32
    %90 = vector.broadcast %cst_63 : f32 to vector<128x256xf32>
    %91 = arith.maximumf %89, %90 : vector<128x256xf32>
    %c0_64 = arith.constant 0 : index
    %c0_65 = arith.constant 0 : index
    %92 = vector.load %arg21[%c0_64, %c0_65] : memref<16x128xf32, #tpu.memory_space<vmem>>, vector<16x128xf32>
    %cst_66 = arith.constant dense<0.000000e+00> : vector<16x256xf32>
    %93 = tpu.matmul %92, %91, %cst_66 {dimension_numbers = #tpu.dot_dimension_numbers<[1], [0], [0], [1], [0, 0, 1, 1], [], []>} : vector<16x128xf32>, vector<128x256xf32>, vector<16x256xf32> -> vector<16x256xf32>
    %cst_67 = arith.constant 1.250000e-01 : f32
    %94 = vector.broadcast %cst_67 : f32 to vector<16x256xf32>
    %95 = arith.mulf %93, %94 : vector<16x256xf32>
    %c0_68 = arith.constant 0 : index
    %c0_69 = arith.constant 0 : index
    %96 = vector.load %arg22[%c0_68, %c0_69] : memref<128x16xf32, #tpu.memory_space<vmem>>, vector<128x16xf32>
    %cst_70 = arith.constant dense<0.000000e+00> : vector<128x256xf32>
    %97 = tpu.matmul %96, %95, %cst_70 {dimension_numbers = #tpu.dot_dimension_numbers<[1], [0], [0], [1], [0, 0, 1, 1], [], []>} : vector<128x16xf32>, vector<16x256xf32>, vector<128x256xf32> -> vector<128x256xf32>
    %98 = arith.subf %91, %97 : vector<128x256xf32>
    %c0_71 = arith.constant 0 : index
    %c0_72 = arith.constant 0 : index
    %99 = vector.load %arg21[%c0_71, %c0_72] : memref<16x128xf32, #tpu.memory_space<vmem>>, vector<16x128xf32>
    %100 = arith.mulf %98, %98 : vector<128x256xf32>
    %cst_73 = arith.constant dense<0.000000e+00> : vector<16x256xf32>
    %101 = tpu.matmul %99, %100, %cst_73 {dimension_numbers = #tpu.dot_dimension_numbers<[1], [0], [0], [1], [0, 0, 1, 1], [], []>} : vector<16x128xf32>, vector<128x256xf32>, vector<16x256xf32> -> vector<16x256xf32>
    %cst_74 = arith.constant 1.250000e-01 : f32
    %102 = vector.broadcast %cst_74 : f32 to vector<16x256xf32>
    %103 = arith.mulf %101, %102 : vector<16x256xf32>
    %c0_75 = arith.constant 0 : index
    %c0_76 = arith.constant 0 : index
    %104 = vector.load %arg22[%c0_75, %c0_76] : memref<128x16xf32, #tpu.memory_space<vmem>>, vector<128x16xf32>
    %cst_77 = arith.constant dense<0.000000e+00> : vector<128x256xf32>
    %105 = tpu.matmul %104, %103, %cst_77 {dimension_numbers = #tpu.dot_dimension_numbers<[1], [0], [0], [1], [0, 0, 1, 1], [], []>} : vector<128x16xf32>, vector<16x256xf32>, vector<128x256xf32> -> vector<128x256xf32>
    %cst_78 = arith.constant 9.99999974E-6 : f32
    %106 = vector.broadcast %cst_78 : f32 to vector<128x256xf32>
    %107 = arith.addf %105, %106 : vector<128x256xf32>
    %108 = math.rsqrt %107 : vector<128x256xf32>
    %109 = arith.mulf %98, %108 : vector<128x256xf32>
    %c0_79 = arith.constant 0 : index
    %c0_80 = arith.constant 0 : index
    %110 = vector.load %arg23[%c0_79, %c0_80] : memref<128x1xf32, #tpu.memory_space<vmem>>, vector<128x1xf32>
    %111 = vector.broadcast %110 : vector<128x1xf32> to vector<128x256xf32>
    %112 = arith.mulf %109, %111 : vector<128x256xf32>
    %c0_81 = arith.constant 0 : index
    %c0_82 = arith.constant 0 : index
    %113 = vector.load %arg24[%c0_81, %c0_82] : memref<128x1xf32, #tpu.memory_space<vmem>>, vector<128x1xf32>
    %114 = vector.broadcast %113 : vector<128x1xf32> to vector<128x256xf32>
    %115 = arith.addf %112, %114 : vector<128x256xf32>
    %cst_83 = arith.constant dense<0.000000e+00> : vector<128xf32>
    %116 = vector.multi_reduction <add>, %115, %cst_83 [1] : vector<128x256xf32> to vector<128xf32>
    %117 = vector.shape_cast %116 : vector<128xf32> to vector<128x1xf32>
    %c0_84 = arith.constant 0 : index
    %c0_85 = arith.constant 0 : index
    %c0_86 = arith.constant 0 : index
    %c0_87 = arith.constant 0 : index
    %118 = vector.load %arg25[%c0_84, %c0_85, %c0_86, %c0_87] : memref<1x1x128x1xf32, #tpu.memory_space<vmem>>, vector<1x1x128x1xf32>
    %119 = vector.shape_cast %118 : vector<1x1x128x1xf32> to vector<128x1xf32>
    %120 = vector.shape_cast %117 : vector<128x1xf32> to vector<1x1x128x1xf32>
    tpu.vector_store %arg25[%c0_84, %c0_85, %c0_86, %c0_87], %120 {strides = array<i32>} : memref<1x1x128x1xf32, #tpu.memory_space<vmem>>, vector<1x1x128x1xf32>,
    return
  }
  func.func @transform_0(%arg0: i32, %arg1: i32) -> (i32, i32, i32) {
    %c0_i32 = arith.constant 0 : i32
    %c0_i32_0 = arith.constant 0 : i32
    return %arg0, %c0_i32, %arg1 : i32, i32, i32
  }
  func.func @transform_1(%arg0: i32, %arg1: i32) -> (i32, i32, i32) {
    %c0_i32 = arith.constant 0 : i32
    %c0_i32_0 = arith.constant 0 : i32
    %c0_i32_1 = arith.constant 0 : i32
    return %arg0, %c0_i32, %c0_i32_0 : i32, i32, i32
  }
  func.func @transform_2(%arg0: i32, %arg1: i32) -> (i32, i32) {
    %c0_i32 = arith.constant 0 : i32
    %c0_i32_0 = arith.constant 0 : i32
    %c0_i32_1 = arith.constant 0 : i32
    return %c0_i32, %c0_i32_0 : i32, i32
  }
  func.func @transform_3(%arg0: i32, %arg1: i32) -> (i32, i32) {
    %c0_i32 = arith.constant 0 : i32
    %c0_i32_0 = arith.constant 0 : i32
    %c0_i32_1 = arith.constant 0 : i32
    return %c0_i32, %c0_i32_0 : i32, i32
  }
  func.func @transform_4(%arg0: i32, %arg1: i32) -> (i32, i32) {
    %c0_i32 = arith.constant 0 : i32
    %c0_i32_0 = arith.constant 0 : i32
    %c0_i32_1 = arith.constant 0 : i32
    return %c0_i32, %c0_i32_0 : i32, i32
  }
  func.func @transform_5(%arg0: i32, %arg1: i32) -> (i32, i32) {
    %c0_i32 = arith.constant 0 : i32
    %c0_i32_0 = arith.constant 0 : i32
    %c0_i32_1 = arith.constant 0 : i32
    return %c0_i32, %c0_i32_0 : i32, i32
  }
  func.func @transform_6(%arg0: i32, %arg1: i32) -> (i32, i32) {
    %c0_i32 = arith.constant 0 : i32
    %c0_i32_0 = arith.constant 0 : i32
    %c0_i32_1 = arith.constant 0 : i32
    return %c0_i32, %c0_i32_0 : i32, i32
  }
  func.func @transform_7(%arg0: i32, %arg1: i32) -> (i32, i32) {
    %c0_i32 = arith.constant 0 : i32
    %c0_i32_0 = arith.constant 0 : i32
    %c0_i32_1 = arith.constant 0 : i32
    return %c0_i32, %c0_i32_0 : i32, i32
  }
  func.func @transform_8(%arg0: i32, %arg1: i32) -> (i32, i32) {
    %c0_i32 = arith.constant 0 : i32
    %c0_i32_0 = arith.constant 0 : i32
    %c0_i32_1 = arith.constant 0 : i32
    return %c0_i32, %c0_i32_0 : i32, i32
  }
  func.func @transform_9(%arg0: i32, %arg1: i32) -> (i32, i32) {
    %c0_i32 = arith.constant 0 : i32
    %c0_i32_0 = arith.constant 0 : i32
    %c0_i32_1 = arith.constant 0 : i32
    return %c0_i32, %c0_i32_0 : i32, i32
  }
  func.func @transform_10(%arg0: i32, %arg1: i32) -> (i32, i32) {
    %c0_i32 = arith.constant 0 : i32
    %c0_i32_0 = arith.constant 0 : i32
    %c0_i32_1 = arith.constant 0 : i32
    return %c0_i32, %c0_i32_0 : i32, i32
  }
  func.func @transform_11(%arg0: i32, %arg1: i32) -> (i32, i32) {
    %c0_i32 = arith.constant 0 : i32
    %c0_i32_0 = arith.constant 0 : i32
    %c0_i32_1 = arith.constant 0 : i32
    return %c0_i32, %c0_i32_0 : i32, i32
  }
  func.func @transform_12(%arg0: i32, %arg1: i32) -> (i32, i32) {
    %c0_i32 = arith.constant 0 : i32
    %c0_i32_0 = arith.constant 0 : i32
    %c0_i32_1 = arith.constant 0 : i32
    return %c0_i32, %c0_i32_0 : i32, i32
  }
  func.func @transform_13(%arg0: i32, %arg1: i32) -> (i32, i32) {
    %c0_i32 = arith.constant 0 : i32
    %c0_i32_0 = arith.constant 0 : i32
    %c0_i32_1 = arith.constant 0 : i32
    return %c0_i32, %c0_i32_0 : i32, i32
  }
  func.func @transform_14(%arg0: i32, %arg1: i32) -> (i32, i32) {
    %c0_i32 = arith.constant 0 : i32
    %c0_i32_0 = arith.constant 0 : i32
    %c0_i32_1 = arith.constant 0 : i32
    return %c0_i32, %c0_i32_0 : i32, i32
  }
  func.func @transform_15(%arg0: i32, %arg1: i32) -> (i32, i32) {
    %c0_i32 = arith.constant 0 : i32
    %c0_i32_0 = arith.constant 0 : i32
    %c0_i32_1 = arith.constant 0 : i32
    return %c0_i32, %c0_i32_0 : i32, i32
  }
  func.func @transform_16(%arg0: i32, %arg1: i32) -> (i32, i32) {
    %c0_i32 = arith.constant 0 : i32
    %c0_i32_0 = arith.constant 0 : i32
    %c0_i32_1 = arith.constant 0 : i32
    return %c0_i32, %c0_i32_0 : i32, i32
  }
  func.func @transform_17(%arg0: i32, %arg1: i32) -> (i32, i32) {
    %c0_i32 = arith.constant 0 : i32
    %c0_i32_0 = arith.constant 0 : i32
    %c0_i32_1 = arith.constant 0 : i32
    return %c0_i32, %c0_i32_0 : i32, i32
  }
  func.func @transform_18(%arg0: i32, %arg1: i32) -> (i32, i32) {
    %c0_i32 = arith.constant 0 : i32
    %c0_i32_0 = arith.constant 0 : i32
    %c0_i32_1 = arith.constant 0 : i32
    return %c0_i32, %c0_i32_0 : i32, i32
  }
  func.func @transform_19(%arg0: i32, %arg1: i32) -> (i32, i32) {
    %c0_i32 = arith.constant 0 : i32
    %c0_i32_0 = arith.constant 0 : i32
    %c0_i32_1 = arith.constant 0 : i32
    return %c0_i32, %c0_i32_0 : i32, i32
  }
  func.func @transform_20(%arg0: i32, %arg1: i32) -> (i32, i32) {
    %c0_i32 = arith.constant 0 : i32
    %c0_i32_0 = arith.constant 0 : i32
    %c0_i32_1 = arith.constant 0 : i32
    return %c0_i32, %c0_i32_0 : i32, i32
  }
  func.func @transform_21(%arg0: i32, %arg1: i32) -> (i32, i32) {
    %c0_i32 = arith.constant 0 : i32
    %c0_i32_0 = arith.constant 0 : i32
    %c0_i32_1 = arith.constant 0 : i32
    return %c0_i32, %c0_i32_0 : i32, i32
  }
  func.func @transform_22(%arg0: i32, %arg1: i32) -> (i32, i32) {
    %c0_i32 = arith.constant 0 : i32
    %c0_i32_0 = arith.constant 0 : i32
    %c0_i32_1 = arith.constant 0 : i32
    return %c0_i32, %c0_i32_0 : i32, i32
  }
  func.func @transform_23(%arg0: i32, %arg1: i32) -> (i32, i32, i32, i32) {
    %c0_i32 = arith.constant 0 : i32
    %c0_i32_0 = arith.constant 0 : i32
    %c0_i32_1 = arith.constant 0 : i32
    return %arg0, %arg1, %c0_i32, %c0_i32_0 : i32, i32, i32, i32
  }
}

</mosaic_0001>

<llo_original>
// kernel: tile.39
$region0: #{tile.39}
  %s0 = inlined_call_operand.vmem [shape: f32[8,4,4], index: 0, kind: input, shape index: {}]
  %s1 = inlined_call_operand.vmem [shape: f32[32,4], index: 1, kind: output, shape index: {}]
  $region1: #{tile.39} parent=0
    #allocation0 [shape = 'u8[4096]{0}', space=vmem, size = 0x1000, scoped, tag = 'scoped mem for output reshape']
    %v2 = vld [vmem:[%s0] ss:$8 sm:$0xf]
    %vm3 = vcmask 31744
    %4 = vst.msk [vmem:[#allocation0] sm:$0xf] %vm3, %v2
    %s5 = scalar_lea.vmem %s0, 7
    %v6 = vld [vmem:[%s5] ss:$8 sm:$0xf]
    %7 = vrot.lane.b32.xlu0 %v6, 28
    %v8 = vpop.permute.xlu0 %7
    %vm9 = vcmask 261344
    %10 = vst.msk [vmem:[#allocation0] sm:$0xf] %vm9, %v8
    %s11 = scalar_lea.vmem %s0, 6
    %v12 = vld [vmem:[%s11] ss:$8 sm:$0xf]
    %13 = vrot.lane.b32.xlu0 %v12, 24
    %v14 = vpop.permute.xlu0 %13
    %vm15 = vcmask 228544
    %16 = vst.msk [vmem:[#allocation0] sm:$0xf] %vm15, %v14
    %s17 = scalar_lea.vmem %s0, 5
    %v18 = vld [vmem:[%s17] ss:$8 sm:$0xf]
    %19 = vrot.lane.b32.xlu0 %v18, 20
    %v20 = vpop.permute.xlu0 %19
    %vm21 = vcmask 195744
    %22 = vst.msk [vmem:[#allocation0] sm:$0xf] %vm21, %v20
    %s23 = scalar_lea.vmem %s0, 4
    %v24 = vld [vmem:[%s23] ss:$8 sm:$0xf]
    %25 = vrot.lane.b32.xlu0 %v24, 16
    %v26 = vpop.permute.xlu0 %25
    %vm27 = vcmask 162944
    %28 = vst.msk [vmem:[#allocation0] sm:$0xf] %vm27, %v26
    %s29 = scalar_lea.vmem %s0, 3
    %v30 = vld [vmem:[%s29] ss:$8 sm:$0xf]
    %31 = vrot.lane.b32.xlu0 %v30, 12
    %v32 = vpop.permute.xlu0 %31
    %vm33 = vcmask 130144
    %34 = vst.msk [vmem:[#allocation0] sm:$0xf] %vm33, %v32
    %s35 = scalar_lea.vmem %s0, 2
    %v36 = vld [vmem:[%s35] ss:$8 sm:$0xf]
    %37 = vrot.lane.b32.xlu0 %v36, 8
    %v38 = vpop.permute.xlu0 %37
    %vm39 = vcmask 97344
    %40 = vst.msk [vmem:[#allocation0] sm:$0xf] %vm39, %v38
    %s41 = scalar_lea.vmem %s0, 1
    %v42 = vld [vmem:[%s41] ss:$8 sm:$0xf]
    %43 = vrot.lane.b32.xlu0 %v42, 4
    %v44 = vpop.permute.xlu0 %43
    %vm45 = vcmask 64544
    %46 = vst.msk [vmem:[#allocation0] sm:$0xf] %vm45, %v44
    %s48 = sshllo.u32 0, 4
    %v50 = vld [vmem:[#allocation0] sm:%s48]
    %s51 = sshllo.u32 0, 4
    %52 = vst [vmem:[%s1] sm:%s51] %v50

// kernel: ltae_forward.1
$region0: #{ltae_forward.1}
  #allocation0 [shape = 'u32[]', space=smem, size = 0x4, offset = 0x4, fixed_abs, tag = 'smem constant byte address 0x4 - core index']
  #allocation1 [shape = 'u32[144,128]{1,0:T(1,128)}', space=vmem, size = 0x12000, scoped, tag = 'internal scratch']
  %s0 = inlined_call_operand.vmem [shape: f32[2,32,256], index: 0, kind: input, shape index: {}]
  %s1 = inlined_call_operand.vmem [shape: f32[2,1024,1], index: 1, kind: input, shape index: {}]
  %s2 = inlined_call_operand.vmem [shape: f32[4,32], index: 2, kind: input, shape index: {}]
  %s3 = inlined_call_operand.vmem [shape: f32[32,4], index: 3, kind: input, shape index: {}]
  %s4 = inlined_call_operand.vmem [shape: f32[32,1], index: 4, kind: input, shape index: {}]
  %s5 = inlined_call_operand.vmem [shape: f32[32,1], index: 5, kind: input, shape index: {}]
  %s6 = inlined_call_operand.vmem [shape: f32[256,32], index: 6, kind: input, shape index: {}]
  %s7 = inlined_call_operand.vmem [shape: f32[256,1], index: 7, kind: input, shape index: {}]
  %s8 = inlined_call_operand.vmem [shape: bf16[1024,256], index: 8, kind: input, shape index: {}]
  %s9 = inlined_call_operand.vmem [shape: f32[1024,1], index: 9, kind: input, shape index: {}]
  %s10 = inlined_call_operand.vmem [shape: bf16[128,1024], index: 10, kind: input, shape index: {}]
  %s11 = inlined_call_operand.vmem [shape: f32[128,1], index: 11, kind: input, shape index: {}]
  %s12 = inlined_call_operand.vmem [shape: f32[1024,128], index: 12, kind: input, shape index: {}]
  %s13 = inlined_call_operand.vmem [shape: bf16[32,128], index: 13, kind: input, shape index: {}]
  %s14 = inlined_call_operand.vmem [shape: f32[32,1], index: 14, kind: input, shape index: {}]
  %s15 = inlined_call_operand.vmem [shape: bf16[128,32], index: 15, kind: input, shape index: {}]
  %s16 = inlined_call_operand.vmem [shape: f32[128,1], index: 16, kind: input, shape index: {}]
  %s17 = inlined_call_operand.vmem [shape: bf16[128,128], index: 17, kind: input, shape index: {}]
  %s18 = inlined_call_operand.vmem [shape: f32[128,1], index: 18, kind: input, shape index: {}]
  %s19 = inlined_call_operand.vmem [shape: f32[16,128], index: 19, kind: input, shape index: {}]
  %s20 = inlined_call_operand.vmem [shape: f32[128,16], index: 20, kind: input, shape index: {}]
  %s21 = inlined_call_operand.vmem [shape: f32[128,1], index: 21, kind: input, shape index: {}]
  %s22 = inlined_call_operand.vmem [shape: f32[128,1], index: 22, kind: input, shape index: {}]
  %s23 = inlined_call_operand.vmem [shape: f32[2,1,128,1], index: 23, kind: output, shape index: {}]
  %s24 = sld [smem:[#allocation0]]
  $region125: #{ltae_forward.1} parent=0
    _
  %s26 = ssub.s32 1, %s24
  %s27 = scalar_select 0, %s26, %s24
  loop: start=0, step=1, limit=4
  $region2: #{ltae_forward.1} parent=0 // loop_pre_header
    _
  $region3: #{ltae_forward.1} parent=0 // loop_header
    %s29 = sphi 0, %s33
    %p30 = scmp.ge.s32.totalorder %s29, 4
    %s36 = sphi 0, %s48
    %s37 = sphi 0, %s44
    %s38 = sphi 0, %s36
    %s39 = sphi 0, %s37
    %s40 = sphi 0, %s38
    %s41 = sphi 0, %s39
    %s53 = sphi 0, %s55
    %s56 = sphi 0, %s53
    %s57 = sphi 0, %s56
    %s73 = sphi 0, %s57
    %s79 = sphi 0, %s81
    %s82 = sphi 0, %s79
    %s83 = sphi 0, %s82
    %s99 = sphi 0, %s83
    %s103 = sphi 0, %s103
    %s105 = sphi 0, %s103
    %s106 = sphi 0, %s105
    %s120 = sphi 0, %s106
    %s124 = sphi 0, %s124
    %s126 = sphi 0, %s124
    %s127 = sphi 0, %s126
    %s141 = sphi 0, %s127
    %s145 = sphi 0, %s145
    %s147 = sphi 0, %s145
    %s148 = sphi 0, %s147
    %s162 = sphi 0, %s148
    %s166 = sphi 0, %s166
    %s168 = sphi 0, %s166
    %s169 = sphi 0, %s168
    %s183 = sphi 0, %s169
    %s187 = sphi 0, %s187
    %s189 = sphi 0, %s187
    %s190 = sphi 0, %s189
    %s204 = sphi 0, %s190
    %s208 = sphi 0, %s208
    %s210 = sphi 0, %s208
    %s211 = sphi 0, %s210
    %s225 = sphi 0, %s211
    %s229 = sphi 0, %s229
    %s231 = sphi 0, %s229
    %s232 = sphi 0, %s231
    %s246 = sphi 0, %s232
    %s250 = sphi 0, %s250
    %s252 = sphi 0, %s250
    %s253 = sphi 0, %s252
    %s267 = sphi 0, %s253
    %s271 = sphi 0, %s271
    %s273 = sphi 0, %s271
    %s274 = sphi 0, %s273
    %s288 = sphi 0, %s274
    %s292 = sphi 0, %s292
    %s294 = sphi 0, %s292
    %s295 = sphi 0, %s294
    %s309 = sphi 0, %s295
    %s313 = sphi 0, %s313
    %s315 = sphi 0, %s313
    %s316 = sphi 0, %s315
    %s330 = sphi 0, %s316
    %s334 = sphi 0, %s334
    %s336 = sphi 0, %s334
    %s337 = sphi 0, %s336
    %s351 = sphi 0, %s337
    %s355 = sphi 0, %s355
    %s357 = sphi 0, %s355
    %s358 = sphi 0, %s357
    %s372 = sphi 0, %s358
    %s376 = sphi 0, %s376
    %s378 = sphi 0, %s376
    %s379 = sphi 0, %s378
    %s393 = sphi 0, %s379
    %s397 = sphi 0, %s397
    %s399 = sphi 0, %s397
    %s400 = sphi 0, %s399
    %s414 = sphi 0, %s400
    %s418 = sphi 0, %s418
    %s420 = sphi 0, %s418
    %s421 = sphi 0, %s420
    %s435 = sphi 0, %s421
    %s439 = sphi 0, %s439
    %s441 = sphi 0, %s439
    %s442 = sphi 0, %s441
    %s456 = sphi 0, %s442
    %s460 = sphi 0, %s460
    %s462 = sphi 0, %s460
    %s463 = sphi 0, %s462
    %s477 = sphi 0, %s463
    %s481 = sphi 0, %s481
    %s483 = sphi 0, %s481
    %s484 = sphi 0, %s483
    %s498 = sphi 0, %s484
    %s502 = sphi 0, %s502
    %s504 = sphi 0, %s502
    %s505 = sphi 0, %s504
    %s519 = sphi 0, %s505
    %s523 = sphi 0, %s523
    %s525 = sphi 0, %s523
    %s526 = sphi 0, %s525
    %s540 = sphi 0, %s526
    %s548 = sphi 0, %s550
    %s551 = sphi 0, %s548
    %s552 = sphi 0, %s551
    %s568 = sphi 0, %s552
  $region4: #{ltae_forward.1} parent=0 // loop_header_branch
    %32 = sbr.rel (%p30) target = $region8
  $region5: #{ltae_forward.1} parent=0 // loop_body
    %s34 = ssub.s32 %s29, 1
    %s35 = ssub.s32 %s29, 2
    %s42 = sadd.s32 1, %s37
    %p43 = scmp.ge.s32.totalorder %s42, 1
    %s44 = scalar_select %p43, 0, %s42
    %s45 = sadd.s32 1, %s36
    %s46 = scalar_select %p43, %s45, %s36
    %p47 = scmp.ge.s32.totalorder %s46, 2
    %s48 = scalar_select %p47, 0, %s46
    %s49 = ssub.s32 %s36, %s48
    %s50 = ssub.s32 %s37, %s44
    %s51 = sor.u32 %s49, %s50
    %p52 = scmp.eq.s32.totalorder %s51, 0
    %s54 = sadd.s32 %s53, 1
    %s55 = scalar_select %p52, %s53, %s54
    %p58 = pneg %p52
    %p59 = scmp.eq.s32.totalorder %s29, 1
    %p60 = por %p58, %p59
    %p61 = scmp.ne.s32.totalorder %s53, %s56
    %p62 = scmp.eq.s32.totalorder %s29, 0
    %p63 = por %p61, %p62
    %p64 = scmp.ne.s32.totalorder %s53, %s56
    %p65 = scmp.eq.s32.totalorder %s34, 1
    %p66 = por %p64, %p65
    %p67 = scmp.ne.s32.totalorder %s56, %s57
    %p68 = scmp.eq.s32.totalorder %s34, 0
    %p69 = por %p67, %p68
    %p70 = scmp.ne.s32.totalorder %s56, %s57
    %p71 = scmp.eq.s32.totalorder %s35, 1
    %p72 = por %p70, %p71
    %p74 = scmp.ne.s32.totalorder %s57, %s73
    %p75 = scmp.eq.s32.totalorder %s35, 0
    %p76 = por %p74, %p75
    %s77 = ssub.s32 %s36, %s48
    %p78 = scmp.eq.s32.totalorder %s77, 0
    %s80 = sadd.s32 %s79, 1
    %s81 = scalar_select %p78, %s79, %s80
    %p84 = pneg %p78
    %p85 = scmp.eq.s32.totalorder %s29, 1
    %p86 = por %p84, %p85
    %p87 = scmp.ne.s32.totalorder %s79, %s82
    %p88 = scmp.eq.s32.totalorder %s29, 0
    %p89 = por %p87, %p88
    %p90 = scmp.ne.s32.totalorder %s79, %s82
    %p91 = scmp.eq.s32.totalorder %s34, 1
    %p92 = por %p90, %p91
    %p93 = scmp.ne.s32.totalorder %s82, %s83
    %p94 = scmp.eq.s32.totalorder %s34, 0
    %p95 = por %p93, %p94
    %p96 = scmp.ne.s32.totalorder %s82, %s83
    %p97 = scmp.eq.s32.totalorder %s35, 1
    %p98 = por %p96, %p97
    %p100 = scmp.ne.s32.totalorder %s83, %s99
    %p101 = scmp.eq.s32.totalorder %s35, 0
    %p102 = por %p100, %p101
    %s104 = sadd.s32 %s103, 1
    %p107 = scmp.eq.s32.totalorder %s29, 1
    %p108 = scmp.ne.s32.totalorder %s103, %s105
    %p109 = scmp.eq.s32.totalorder %s29, 0
    %p110 = por %p108, %p109
    %p111 = scmp.ne.s32.totalorder %s103, %s105
    %p112 = scmp.eq.s32.totalorder %s34, 1
    %p113 = por %p111, %p112
    %p114 = scmp.ne.s32.totalorder %s105, %s106
    %p115 = scmp.eq.s32.totalorder %s34, 0
    %p116 = por %p114, %p115
    %p117 = scmp.ne.s32.totalorder %s105, %s106
    %p118 = scmp.eq.s32.totalorder %s35, 1
    %p119 = por %p117, %p118
    %p121 = scmp.ne.s32.totalorder %s106, %s120
    %p122 = scmp.eq.s32.totalorder %s35, 0
    %p123 = por %p121, %p122
    %s125 = sadd.s32 %s124, 1
    %p128 = scmp.eq.s32.totalorder %s29, 1
    %p129 = scmp.ne.s32.totalorder %s124, %s126
    %p130 = scmp.eq.s32.totalorder %s29, 0
    %p131 = por %p129, %p130
    %p132 = scmp.ne.s32.totalorder %s124, %s126
    %p133 = scmp.eq.s32.totalorder %s34, 1
    %p134 = por %p132, %p133
    %p135 = scmp.ne.s32.totalorder %s126, %s127
    %p136 = scmp.eq.s32.totalorder %s34, 0
    %p137 = por %p135, %p136
    %p138 = scmp.ne.s32.totalorder %s126, %s127
    %p139 = scmp.eq.s32.totalorder %s35, 1
    %p140 = por %p138, %p139
    %p142 = scmp.ne.s32.totalorder %s127, %s141
    %p143 = scmp.eq.s32.totalorder %s35, 0
    %p144 = por %p142, %p143
    %s146 = sadd.s32 %s145, 1
    %p149 = scmp.eq.s32.totalorder %s29, 1
    %p150 = scmp.ne.s32.totalorder %s145, %s147
    %p151 = scmp.eq.s32.totalorder %s29, 0
    %p152 = por %p150, %p151
    %p153 = scmp.ne.s32.totalorder %s145, %s147
    %p154 = scmp.eq.s32.totalorder %s34, 1
    %p155 = por %p153, %p154
    %p156 = scmp.ne.s32.totalorder %s147, %s148
    %p157 = scmp.eq.s32.totalorder %s34, 0
    %p158 = por %p156, %p157
    %p159 = scmp.ne.s32.totalorder %s147, %s148
    %p160 = scmp.eq.s32.totalorder %s35, 1
    %p161 = por %p159, %p160
    %p163 = scmp.ne.s32.totalorder %s148, %s162
    %p164 = scmp.eq.s32.totalorder %s35, 0
    %p165 = por %p163, %p164
    %s167 = sadd.s32 %s166, 1
    %p170 = scmp.eq.s32.totalorder %s29, 1
    %p171 = scmp.ne.s32.totalorder %s166, %s168
    %p172 = scmp.eq.s32.totalorder %s29, 0
    %p173 = por %p171, %p172
    %p174 = scmp.ne.s32.totalorder %s166, %s168
    %p175 = scmp.eq.s32.totalorder %s34, 1
    %p176 = por %p174, %p175
    %p177 = scmp.ne.s32.totalorder %s168, %s169
    %p178 = scmp.eq.s32.totalorder %s34, 0
    %p179 = por %p177, %p178
    %p180 = scmp.ne.s32.totalorder %s168, %s169
    %p181 = scmp.eq.s32.totalorder %s35, 1
    %p182 = por %p180, %p181
    %p184 = scmp.ne.s32.totalorder %s169, %s183
    %p185 = scmp.eq.s32.totalorder %s35, 0
    %p186 = por %p184, %p185
    %s188 = sadd.s32 %s187, 1
    %p191 = scmp.eq.s32.totalorder %s29, 1
    %p192 = scmp.ne.s32.totalorder %s187, %s189
    %p193 = scmp.eq.s32.totalorder %s29, 0
    %p194 = por %p192, %p193
    %p195 = scmp.ne.s32.totalorder %s187, %s189
    %p196 = scmp.eq.s32.totalorder %s34, 1
    %p197 = por %p195, %p196
    %p198 = scmp.ne.s32.totalorder %s189, %s190
    %p199 = scmp.eq.s32.totalorder %s34, 0
    %p200 = por %p198, %p199
    %p201 = scmp.ne.s32.totalorder %s189, %s190
    %p202 = scmp.eq.s32.totalorder %s35, 1
    %p203 = por %p201, %p202
    %p205 = scmp.ne.s32.totalorder %s190, %s204
    %p206 = scmp.eq.s32.totalorder %s35, 0
    %p207 = por %p205, %p206
    %s209 = sadd.s32 %s208, 1
    %p212 = scmp.eq.s32.totalorder %s29, 1
    %p213 = scmp.ne.s32.totalorder %s208, %s210
    %p214 = scmp.eq.s32.totalorder %s29, 0
    %p215 = por %p213, %p214
    %p216 = scmp.ne.s32.totalorder %s208, %s210
    %p217 = scmp.eq.s32.totalorder %s34, 1
    %p218 = por %p216, %p217
    %p219 = scmp.ne.s32.totalorder %s210, %s211
    %p220 = scmp.eq.s32.totalorder %s34, 0
    %p221 = por %p219, %p220
    %p222 = scmp.ne.s32.totalorder %s210, %s211
    %p223 = scmp.eq.s32.totalorder %s35, 1
    %p224 = por %p222, %p223
    %p226 = scmp.ne.s32.totalorder %s211, %s225
    %p227 = scmp.eq.s32.totalorder %s35, 0
    %p228 = por %p226, %p227
    %s230 = sadd.s32 %s229, 1
    %p233 = scmp.eq.s32.totalorder %s29, 1
    %p234 = scmp.ne.s32.totalorder %s229, %s231
    %p235 = scmp.eq.s32.totalorder %s29, 0
    %p236 = por %p234, %p235
    %p237 = scmp.ne.s32.totalorder %s229, %s231
    %p238 = scmp.eq.s32.totalorder %s34, 1
    %p239 = por %p237, %p238
    %p240 = scmp.ne.s32.totalorder %s231, %s232
    %p241 = scmp.eq.s32.totalorder %s34, 0
    %p242 = por %p240, %p241
    %p243 = scmp.ne.s32.totalorder %s231, %s232
    %p244 = scmp.eq.s32.totalorder %s35, 1
    %p245 = por %p243, %p244
    %p247 = scmp.ne.s32.totalorder %s232, %s246
    %p248 = scmp.eq.s32.totalorder %s35, 0
    %p249 = por %p247, %p248
    %s251 = sadd.s32 %s250, 1
    %p254 = scmp.eq.s32.totalorder %s29, 1
    %p255 = scmp.ne.s32.totalorder %s250, %s252
    %p256 = scmp.eq.s32.totalorder %s29, 0
    %p257 = por %p255, %p256
    %p258 = scmp.ne.s32.totalorder %s250, %s252
    %p259 = scmp.eq.s32.totalorder %s34, 1
    %p260 = por %p258, %p259
    %p261 = scmp.ne.s32.totalorder %s252, %s253
    %p262 = scmp.eq.s32.totalorder %s34, 0
    %p263 = por %p261, %p262
    %p264 = scmp.ne.s32.totalorder %s252, %s253
    %p265 = scmp.eq.s32.totalorder %s35, 1
    %p266 = por %p264, %p265
    %p268 = scmp.ne.s32.totalorder %s253, %s267
    %p269 = scmp.eq.s32.totalorder %s35, 0
    %p270 = por %p268, %p269
    %s272 = sadd.s32 %s271, 1
    %p275 = scmp.eq.s32.totalorder %s29, 1
    %p276 = scmp.ne.s32.totalorder %s271, %s273
    %p277 = scmp.eq.s32.totalorder %s29, 0
    %p278 = por %p276, %p277
    %p279 = scmp.ne.s32.totalorder %s271, %s273
    %p280 = scmp.eq.s32.totalorder %s34, 1
    %p281 = por %p279, %p280
    %p282 = scmp.ne.s32.totalorder %s273, %s274
    %p283 = scmp.eq.s32.totalorder %s34, 0
    %p284 = por %p282, %p283
    %p285 = scmp.ne.s32.totalorder %s273, %s274
    %p286 = scmp.eq.s32.totalorder %s35, 1
    %p287 = por %p285, %p286
    %p289 = scmp.ne.s32.totalorder %s274, %s288
    %p290 = scmp.eq.s32.totalorder %s35, 0
    %p291 = por %p289, %p290
    %s293 = sadd.s32 %s292, 1
    %p296 = scmp.eq.s32.totalorder %s29, 1
    %p297 = scmp.ne.s32.totalorder %s292, %s294
    %p298 = scmp.eq.s32.totalorder %s29, 0
    %p299 = por %p297, %p298
    %p300 = scmp.ne.s32.totalorder %s292, %s294
    %p301 = scmp.eq.s32.totalorder %s34, 1
    %p302 = por %p300, %p301
    %p303 = scmp.ne.s32.totalorder %s294, %s295
    %p304 = scmp.eq.s32.totalorder %s34, 0
    %p305 = por %p303, %p304
    %p306 = scmp.ne.s32.totalorder %s294, %s295
    %p307 = scmp.eq.s32.totalorder %s35, 1
    %p308 = por %p306, %p307
    %p310 = scmp.ne.s32.totalorder %s295, %s309
    %p311 = scmp.eq.s32.totalorder %s35, 0
    %p312 = por %p310, %p311
    %s314 = sadd.s32 %s313, 1
    %p317 = scmp.eq.s32.totalorder %s29, 1
    %p318 = scmp.ne.s32.totalorder %s313, %s315
    %p319 = scmp.eq.s32.totalorder %s29, 0
    %p320 = por %p318, %p319
    %p321 = scmp.ne.s32.totalorder %s313, %s315
    %p322 = scmp.eq.s32.totalorder %s34, 1
    %p323 = por %p321, %p322
    %p324 = scmp.ne.s32.totalorder %s315, %s316
    %p325 = scmp.eq.s32.totalorder %s34, 0
    %p326 = por %p324, %p325
    %p327 = scmp.ne.s32.totalorder %s315, %s316
    %p328 = scmp.eq.s32.totalorder %s35, 1
    %p329 = por %p327, %p328
    %p331 = scmp.ne.s32.totalorder %s316, %s330
    %p332 = scmp.eq.s32.totalorder %s35, 0
    %p333 = por %p331, %p332
    %s335 = sadd.s32 %s334, 1
    %p338 = scmp.eq.s32.totalorder %s29, 1
    %p339 = scmp.ne.s32.totalorder %s334, %s336
    %p340 = scmp.eq.s32.totalorder %s29, 0
    %p341 = por %p339, %p340
    %p342 = scmp.ne.s32.totalorder %s334, %s336
    %p343 = scmp.eq.s32.totalorder %s34, 1
    %p344 = por %p342, %p343
    %p345 = scmp.ne.s32.totalorder %s336, %s337
    %p346 = scmp.eq.s32.totalorder %s34, 0
    %p347 = por %p345, %p346
    %p348 = scmp.ne.s32.totalorder %s336, %s337
    %p349 = scmp.eq.s32.totalorder %s35, 1
    %p350 = por %p348, %p349
    %p352 = scmp.ne.s32.totalorder %s337, %s351
    %p353 = scmp.eq.s32.totalorder %s35, 0
    %p354 = por %p352, %p353
    %s356 = sadd.s32 %s355, 1
    %p359 = scmp.eq.s32.totalorder %s29, 1
    %p360 = scmp.ne.s32.totalorder %s355, %s357
    %p361 = scmp.eq.s32.totalorder %s29, 0
    %p362 = por %p360, %p361
    %p363 = scmp.ne.s32.totalorder %s355, %s357
    %p364 = scmp.eq.s32.totalorder %s34, 1
    %p365 = por %p363, %p364
    %p366 = scmp.ne.s32.totalorder %s357, %s358
    %p367 = scmp.eq.s32.totalorder %s34, 0
    %p368 = por %p366, %p367
    %p369 = scmp.ne.s32.totalorder %s357, %s358
    %p370 = scmp.eq.s32.totalorder %s35, 1
    %p371 = por %p369, %p370
    %p373 = scmp.ne.s32.totalorder %s358, %s372
    %p374 = scmp.eq.s32.totalorder %s35, 0
    %p375 = por %p373, %p374
    %s377 = sadd.s32 %s376, 1
    %p380 = scmp.eq.s32.totalorder %s29, 1
    %p381 = scmp.ne.s32.totalorder %s376, %s378
    %p382 = scmp.eq.s32.totalorder %s29, 0
    %p383 = por %p381, %p382
    %p384 = scmp.ne.s32.totalorder %s376, %s378
    %p385 = scmp.eq.s32.totalorder %s34, 1
    %p386 = por %p384, %p385
    %p387 = scmp.ne.s32.totalorder %s378, %s379
    %p388 = scmp.eq.s32.totalorder %s34, 0
    %p389 = por %p387, %p388
    %p390 = scmp.ne.s32.totalorder %s378, %s379
    %p391 = scmp.eq.s32.totalorder %s35, 1
    %p392 = por %p390, %p391
    %p394 = scmp.ne.s32.totalorder %s379, %s393
    %p395 = scmp.eq.s32.totalorder %s35, 0
    %p396 = por %p394, %p395
    %s398 = sadd.s32 %s397, 1
    %p401 = scmp.eq.s32.totalorder %s29, 1
    %p402 = scmp.ne.s32.totalorder %s397, %s399
    %p403 = scmp.eq.s32.totalorder %s29, 0
    %p404 = por %p402, %p403
    %p405 = scmp.ne.s32.totalorder %s397, %s399
    %p406 = scmp.eq.s32.totalorder %s34, 1
    %p407 = por %p405, %p406
    %p408 = scmp.ne.s32.totalorder %s399, %s400
    %p409 = scmp.eq.s32.totalorder %s34, 0
    %p410 = por %p408, %p409
    %p411 = scmp.ne.s32.totalorder %s399, %s400
    %p412 = scmp.eq.s32.totalorder %s35, 1
    %p413 = por %p411, %p412
    %p415 = scmp.ne.s32.totalorder %s400, %s414
    %p416 = scmp.eq.s32.totalorder %s35, 0
    %p417 = por %p415, %p416
    %s419 = sadd.s32 %s418, 1
    %p422 = scmp.eq.s32.totalorder %s29, 1
    %p423 = scmp.ne.s32.totalorder %s418, %s420
    %p424 = scmp.eq.s32.totalorder %s29, 0
    %p425 = por %p423, %p424
    %p426 = scmp.ne.s32.totalorder %s418, %s420
    %p427 = scmp.eq.s32.totalorder %s34, 1
    %p428 = por %p426, %p427
    %p429 = scmp.ne.s32.totalorder %s420, %s421
    %p430 = scmp.eq.s32.totalorder %s34, 0
    %p431 = por %p429, %p430
    %p432 = scmp.ne.s32.totalorder %s420, %s421
    %p433 = scmp.eq.s32.totalorder %s35, 1
    %p434 = por %p432, %p433
    %p436 = scmp.ne.s32.totalorder %s421, %s435
    %p437 = scmp.eq.s32.totalorder %s35, 0
    %p438 = por %p436, %p437
    %s440 = sadd.s32 %s439, 1
    %p443 = scmp.eq.s32.totalorder %s29, 1
    %p444 = scmp.ne.s32.totalorder %s439, %s441
    %p445 = scmp.eq.s32.totalorder %s29, 0
    %p446 = por %p444, %p445
    %p447 = scmp.ne.s32.totalorder %s439, %s441
    %p448 = scmp.eq.s32.totalorder %s34, 1
    %p449 = por %p447, %p448
    %p450 = scmp.ne.s32.totalorder %s441, %s442
    %p451 = scmp.eq.s32.totalorder %s34, 0
    %p452 = por %p450, %p451
    %p453 = scmp.ne.s32.totalorder %s441, %s442
    %p454 = scmp.eq.s32.totalorder %s35, 1
    %p455 = por %p453, %p454
    %p457 = scmp.ne.s32.totalorder %s442, %s456
    %p458 = scmp.eq.s32.totalorder %s35, 0
    %p459 = por %p457, %p458
    %s461 = sadd.s32 %s460, 1
    %p464 = scmp.eq.s32.totalorder %s29, 1
    %p465 = scmp.ne.s32.totalorder %s460, %s462
    %p466 = scmp.eq.s32.totalorder %s29, 0
    %p467 = por %p465, %p466
    %p468 = scmp.ne.s32.totalorder %s460, %s462
    %p469 = scmp.eq.s32.totalorder %s34, 1
    %p470 = por %p468, %p469
    %p471 = scmp.ne.s32.totalorder %s462, %s463
    %p472 = scmp.eq.s32.totalorder %s34, 0
    %p473 = por %p471, %p472
    %p474 = scmp.ne.s32.totalorder %s462, %s463
    %p475 = scmp.eq.s32.totalorder %s35, 1
    %p476 = por %p474, %p475
    %p478 = scmp.ne.s32.totalorder %s463, %s477
    %p479 = scmp.eq.s32.totalorder %s35, 0
    %p480 = por %p478, %p479
    %s482 = sadd.s32 %s481, 1
    %p485 = scmp.eq.s32.totalorder %s29, 1
    %p486 = scmp.ne.s32.totalorder %s481, %s483
    %p487 = scmp.eq.s32.totalorder %s29, 0
    %p488 = por %p486, %p487
    %p489 = scmp.ne.s32.totalorder %s481, %s483
    %p490 = scmp.eq.s32.totalorder %s34, 1
    %p491 = por %p489, %p490
    %p492 = scmp.ne.s32.totalorder %s483, %s484
    %p493 = scmp.eq.s32.totalorder %s34, 0
    %p494 = por %p492, %p493
    %p495 = scmp.ne.s32.totalorder %s483, %s484
    %p496 = scmp.eq.s32.totalorder %s35, 1
    %p497 = por %p495, %p496
    %p499 = scmp.ne.s32.totalorder %s484, %s498
    %p500 = scmp.eq.s32.totalorder %s35, 0
    %p501 = por %p499, %p500
    %s503 = sadd.s32 %s502, 1
    %p506 = scmp.eq.s32.totalorder %s29, 1
    %p507 = scmp.ne.s32.totalorder %s502, %s504
    %p508 = scmp.eq.s32.totalorder %s29, 0
    %p509 = por %p507, %p508
    %p510 = scmp.ne.s32.totalorder %s502, %s504
    %p511 = scmp.eq.s32.totalorder %s34, 1
    %p512 = por %p510, %p511
    %p513 = scmp.ne.s32.totalorder %s504, %s505
    %p514 = scmp.eq.s32.totalorder %s34, 0
    %p515 = por %p513, %p514
    %p516 = scmp.ne.s32.totalorder %s504, %s505
    %p517 = scmp.eq.s32.totalorder %s35, 1
    %p518 = por %p516, %p517
    %p520 = scmp.ne.s32.totalorder %s505, %s519
    %p521 = scmp.eq.s32.totalorder %s35, 0
    %p522 = por %p520, %p521
    %s524 = sadd.s32 %s523, 1
    %p527 = scmp.eq.s32.totalorder %s29, 1
    %p528 = scmp.ne.s32.totalorder %s523, %s525
    %p529 = scmp.eq.s32.totalorder %s29, 0
    %p530 = por %p528, %p529
    %p531 = scmp.ne.s32.totalorder %s523, %s525
    %p532 = scmp.eq.s32.totalorder %s34, 1
    %p533 = por %p531, %p532
    %p534 = scmp.ne.s32.totalorder %s525, %s526
    %p535 = scmp.eq.s32.totalorder %s34, 0
    %p536 = por %p534, %p535
    %p537 = scmp.ne.s32.totalorder %s525, %s526
    %p538 = scmp.eq.s32.totalorder %s35, 1
    %p539 = por %p537, %p538
    %p541 = scmp.ne.s32.totalorder %s526, %s540
    %p542 = scmp.eq.s32.totalorder %s35, 0
    %p543 = por %p541, %p542
    %s544 = ssub.s32 %s36, %s48
    %s545 = ssub.s32 %s37, %s44
    %s546 = sor.u32 %s544, %s545
    %p547 = scmp.eq.s32.totalorder %s546, 0
    %s549 = sadd.s32 %s548, 1
    %s550 = scalar_select %p547, %s548, %s549
    %p553 = pneg %p547
    %p554 = scmp.eq.s32.totalorder %s29, 1
    %p555 = por %p553, %p554
    %p556 = scmp.ne.s32.totalorder %s548, %s551
    %p557 = scmp.eq.s32.totalorder %s29, 0
    %p558 = por %p556, %p557
    %p559 = scmp.ne.s32.totalorder %s548, %s551
    %p560 = scmp.eq.s32.totalorder %s34, 1
    %p561 = por %p559, %p560
    %p562 = scmp.ne.s32.totalorder %s551, %s552
    %p563 = scmp.eq.s32.totalorder %s34, 0
    %p564 = por %p562, %p563
    %p565 = scmp.ne.s32.totalorder %s551, %s552
    %p566 = scmp.eq.s32.totalorder %s35, 1
    %p567 = por %p565, %p566
    %p569 = scmp.ne.s32.totalorder %s552, %s568
    %p570 = scmp.eq.s32.totalorder %s35, 0
    %p571 = por %p569, %p570
    %p572 = scmp.le.s32.totalorder 1, %s29
    %p573 = scmp.lt.s32.totalorder %s29, 3
    %p574 = pnand %p572, %p573
    %p575 = pneg %p574
    // Predicated region
    $region9: #{ltae_forward.1} parent=5 // pred_check
      _
    $region10: #{ltae_forward.1} parent=5 // pred_check_branch
      %577 = sbr.rel (%p574) target = $region12
    $region11: #{ltae_forward.1} parent=5 // pred_region
      %s578 = ssub.s32 %s29, 1
      // Predicated region
      $region13: #{ltae_forward.1} parent=11 // pred_check
        %p579 = pneg %p116
      $region14: #{ltae_forward.1} parent=11 // pred_check_branch
        %581 = sbr.rel (%p579) target = $region16
      $region15: #{ltae_forward.1} parent=11 // pred_region
        _
      $region16: #{ltae_forward.1} parent=11 // pred_fallthru
        _
      // Predicated region
      $region17: #{ltae_forward.1} parent=11 // pred_check
        %p582 = pneg %p137
      $region18: #{ltae_forward.1} parent=11 // pred_check_branch
        %584 = sbr.rel (%p582) target = $region20
      $region19: #{ltae_forward.1} parent=11 // pred_region
        _
      $region20: #{ltae_forward.1} parent=11 // pred_fallthru
        _
      // Predicated region
      $region21: #{ltae_forward.1} parent=11 // pred_check
        %p585 = pneg %p158
      $region22: #{ltae_forward.1} parent=11 // pred_check_branch
        %587 = sbr.rel (%p585) target = $region24
      $region23: #{ltae_forward.1} parent=11 // pred_region
        _
      $region24: #{ltae_forward.1} parent=11 // pred_fallthru
        _
      // Predicated region
      $region25: #{ltae_forward.1} parent=11 // pred_check
        %p588 = pneg %p179
      $region26: #{ltae_forward.1} parent=11 // pred_check_branch
        %590 = sbr.rel (%p588) target = $region28
      $region27: #{ltae_forward.1} parent=11 // pred_region
        _
      $region28: #{ltae_forward.1} parent=11 // pred_fallthru
        _
      // Predicated region
      $region29: #{ltae_forward.1} parent=11 // pred_check
        %p591 = pneg %p200
      $region30: #{ltae_forward.1} parent=11 // pred_check_branch
        %593 = sbr.rel (%p591) target = $region32
      $region31: #{ltae_forward.1} parent=11 // pred_region
        _
      $region32: #{ltae_forward.1} parent=11 // pred_fallthru
        _
      // Predicated region
      $region33: #{ltae_forward.1} parent=11 // pred_check
        %p594 = pneg %p221
      $region34: #{ltae_forward.1} parent=11 // pred_check_branch
        %596 = sbr.rel (%p594) target = $region36
      $region35: #{ltae_forward.1} parent=11 // pred_region
        _
      $region36: #{ltae_forward.1} parent=11 // pred_fallthru
        _
      // Predicated region
      $region37: #{ltae_forward.1} parent=11 // pred_check
        %p597 = pneg %p242
      $region38: #{ltae_forward.1} parent=11 // pred_check_branch
        %599 = sbr.rel (%p597) target = $region40
      $region39: #{ltae_forward.1} parent=11 // pred_region
        _
      $region40: #{ltae_forward.1} parent=11 // pred_fallthru
        _
      // Predicated region
      $region41: #{ltae_forward.1} parent=11 // pred_check
        %p600 = pneg %p263
      $region42: #{ltae_forward.1} parent=11 // pred_check_branch
        %602 = sbr.rel (%p600) target = $region44
      $region43: #{ltae_forward.1} parent=11 // pred_region
        _
      $region44: #{ltae_forward.1} parent=11 // pred_fallthru
        _
      // Predicated region
      $region45: #{ltae_forward.1} parent=11 // pred_check
        %p603 = pneg %p284
      $region46: #{ltae_forward.1} parent=11 // pred_check_branch
        %605 = sbr.rel (%p603) target = $region48
      $region47: #{ltae_forward.1} parent=11 // pred_region
        _
      $region48: #{ltae_forward.1} parent=11 // pred_fallthru
        _
      // Predicated region
      $region49: #{ltae_forward.1} parent=11 // pred_check
        %p606 = pneg %p305
      $region50: #{ltae_forward.1} parent=11 // pred_check_branch
        %608 = sbr.rel (%p606) target = $region52
      $region51: #{ltae_forward.1} parent=11 // pred_region
        _
      $region52: #{ltae_forward.1} parent=11 // pred_fallthru
        _
      // Predicated region
      $region53: #{ltae_forward.1} parent=11 // pred_check
        %p609 = pneg %p326
      $region54: #{ltae_forward.1} parent=11 // pred_check_branch
        %611 = sbr.rel (%p609) target = $region56
      $region55: #{ltae_forward.1} parent=11 // pred_region
        _
      $region56: #{ltae_forward.1} parent=11 // pred_fallthru
        _
      // Predicated region
      $region57: #{ltae_forward.1} parent=11 // pred_check
        %p612 = pneg %p347
      $region58: #{ltae_forward.1} parent=11 // pred_check_branch
        %614 = sbr.rel (%p612) target = $region60
      $region59: #{ltae_forward.1} parent=11 // pred_region
        _
      $region60: #{ltae_forward.1} parent=11 // pred_fallthru
        _
      // Predicated region
      $region61: #{ltae_forward.1} parent=11 // pred_check
        %p615 = pneg %p368
      $region62: #{ltae_forward.1} parent=11 // pred_check_branch
        %617 = sbr.rel (%p615) target = $region64
      $region63: #{ltae_forward.1} parent=11 // pred_region
        _
      $region64: #{ltae_forward.1} parent=11 // pred_fallthru
        _
      // Predicated region
      $region65: #{ltae_forward.1} parent=11 // pred_check
        %p618 = pneg %p389
      $region66: #{ltae_forward.1} parent=11 // pred_check_branch
        %620 = sbr.rel (%p618) target = $region68
      $region67: #{ltae_forward.1} parent=11 // pred_region
        _
      $region68: #{ltae_forward.1} parent=11 // pred_fallthru
        _
      // Predicated region
      $region69: #{ltae_forward.1} parent=11 // pred_check
        %p621 = pneg %p410
      $region70: #{ltae_forward.1} parent=11 // pred_check_branch
        %623 = sbr.rel (%p621) target = $region72
      $region71: #{ltae_forward.1} parent=11 // pred_region
        _
      $region72: #{ltae_forward.1} parent=11 // pred_fallthru
        _
      // Predicated region
      $region73: #{ltae_forward.1} parent=11 // pred_check
        %p624 = pneg %p431
      $region74: #{ltae_forward.1} parent=11 // pred_check_branch
        %626 = sbr.rel (%p624) target = $region76
      $region75: #{ltae_forward.1} parent=11 // pred_region
        _
      $region76: #{ltae_forward.1} parent=11 // pred_fallthru
        _
      // Predicated region
      $region77: #{ltae_forward.1} parent=11 // pred_check
        %p627 = pneg %p452
      $region78: #{ltae_forward.1} parent=11 // pred_check_branch
        %629 = sbr.rel (%p627) target = $region80
      $region79: #{ltae_forward.1} parent=11 // pred_region
        _
      $region80: #{ltae_forward.1} parent=11 // pred_fallthru
        _
      // Predicated region
      $region81: #{ltae_forward.1} parent=11 // pred_check
        %p630 = pneg %p473
      $region82: #{ltae_forward.1} parent=11 // pred_check_branch
        %632 = sbr.rel (%p630) target = $region84
      $region83: #{ltae_forward.1} parent=11 // pred_region
        _
      $region84: #{ltae_forward.1} parent=11 // pred_fallthru
        _
      // Predicated region
      $region85: #{ltae_forward.1} parent=11 // pred_check
        %p633 = pneg %p494
      $region86: #{ltae_forward.1} parent=11 // pred_check_branch
        %635 = sbr.rel (%p633) target = $region88
      $region87: #{ltae_forward.1} parent=11 // pred_region
        _
      $region88: #{ltae_forward.1} parent=11 // pred_fallthru
        _
      // Predicated region
      $region89: #{ltae_forward.1} parent=11 // pred_check
        %p636 = pneg %p515
      $region90: #{ltae_forward.1} parent=11 // pred_check_branch
        %638 = sbr.rel (%p636) target = $region92
      $region91: #{ltae_forward.1} parent=11 // pred_region
        _
      $region92: #{ltae_forward.1} parent=11 // pred_fallthru
        _
      // Predicated region
      $region93: #{ltae_forward.1} parent=11 // pred_check
        %p639 = pneg %p536
      $region94: #{ltae_forward.1} parent=11 // pred_check_branch
        %641 = sbr.rel (%p639) target = $region96
      $region95: #{ltae_forward.1} parent=11 // pred_region
        _
      $region96: #{ltae_forward.1} parent=11 // pred_fallthru
        _
    $region12: #{ltae_forward.1} parent=5 // pred_fallthru
      _
    %p642 = scmp.lt.s32.totalorder %s29, 2
    // Predicated region
    $region97: #{ltae_forward.1} parent=5 // pred_check
      %p643 = pneg %p642
    $region98: #{ltae_forward.1} parent=5 // pred_check_branch
      %645 = sbr.rel (%p643) target = $region100
    $region99: #{ltae_forward.1} parent=5 // pred_region
      // Predicated region
      $region101: #{ltae_forward.1} parent=99 // pred_check
        %p646 = pneg %p63
      $region102: #{ltae_forward.1} parent=99 // pred_check_branch
        %648 = sbr.rel (%p646) target = $region104
      $region103: #{ltae_forward.1} parent=99 // pred_region
        %s649 = smul.u32 2, %s37
        %p650 = scmp.lt.s32.totalorder %s36, 1
        %s651 = scalar_select %p650, %s36, 1
        %p652 = scmp.lt.s32.totalorder %s649, 1
        %s653 = scalar_select %p652, %s649, 1
        %s654 = smul.addr %s651, 8
        %s655 = sadd.s32 %s653, %s654
        %s656 = smul.addr %s655, 8
        %s657 = scalar_lea.vmem %s0, %s656
        %s658 = smul.u32 2, %s37
      $region104: #{ltae_forward.1} parent=99 // pred_fallthru
        _
      // Predicated region
      $region105: #{ltae_forward.1} parent=99 // pred_check
        %p659 = pneg %p89
      $region106: #{ltae_forward.1} parent=99 // pred_check_branch
        %661 = sbr.rel (%p659) target = $region108
      $region107: #{ltae_forward.1} parent=99 // pred_region
        %p662 = scmp.lt.s32.totalorder %s36, 1
        %s663 = scalar_select %p662, %s36, 1
        %s664 = smul.addr %s663, 128
        %s665 = smul.addr %s664, 8
        %s666 = scalar_lea.vmem %s1, %s665
      $region108: #{ltae_forward.1} parent=99 // pred_fallthru
        _
    $region100: #{ltae_forward.1} parent=5 // pred_fallthru
      _
    %p667 = scmp.le.s32.totalorder 1, %s29
    %p668 = scmp.lt.s32.totalorder %s29, 3
    %p669 = pnand %p667, %p668
    %p670 = pneg %p669
    // Predicated region
    $region109: #{ltae_forward.1} parent=5 // pred_check
      _
    $region110: #{ltae_forward.1} parent=5 // pred_check_branch
      %672 = sbr.rel (%p669) target = $region112
    $region111: #{ltae_forward.1} parent=5 // pred_region
      %s673 = ssub.s32 %s29, 1
      %s674 = smul.u32 2, %s39
      %p675 = scmp.lt.s32.totalorder %s38, 1
      %s676 = scalar_select %p675, %s38, 1
      %p677 = scmp.lt.s32.totalorder %s674, 1
      %s678 = scalar_select %p677, %s674, 1
      %s679 = smul.addr %s676, 8
      %s680 = sadd.s32 %s678, %s679
      %s681 = smul.addr %s680, 8
      %s682 = scalar_lea.vmem %s0, %s681
      %p683 = pneg %p69
      %p684 = pneg %p66
      %p685 = scmp.lt.s32.totalorder %s38, 1
      %s686 = scalar_select %p685, %s38, 1
      %s687 = smul.addr %s686, 128
      %s688 = smul.addr %s687, 8
      %s689 = scalar_lea.vmem %s1, %s688
      %p690 = pneg %p95
      %p691 = pneg %p92
      %p692 = pneg %p116
      %p693 = pneg %p113
      %p694 = pneg %p137
      %p695 = pneg %p134
      %p696 = pneg %p158
      %p697 = pneg %p155
      %p698 = pneg %p179
      %p699 = pneg %p176
      %p700 = pneg %p200
      %p701 = pneg %p197
      %p702 = pneg %p221
      %p703 = pneg %p218
      %p704 = pneg %p242
      %p705 = pneg %p239
      %p706 = pneg %p263
      %p707 = pneg %p260
      %p708 = pneg %p284
      %p709 = pneg %p281
      %p710 = pneg %p305
      %p711 = pneg %p302
      %p712 = pneg %p326
      %p713 = pneg %p323
      %p714 = pneg %p347
      %p715 = pneg %p344
      %p716 = pneg %p368
      %p717 = pneg %p365
      %p718 = pneg %p389
      %p719 = pneg %p386
      %p720 = pneg %p410
      %p721 = pneg %p407
      %p722 = pneg %p431
      %p723 = pneg %p428
      %p724 = pneg %p452
      %p725 = pneg %p449
      %p726 = pneg %p473
      %p727 = pneg %p470
      %p728 = pneg %p494
      %p729 = pneg %p491
      %p730 = pneg %p515
      %p731 = pneg %p512
      %p732 = pneg %p536
      %p733 = pneg %p533
      %p734 = pneg %p564
      %p735 = pneg %p561
      %p736 = scmp.lt.s32.totalorder %s38, 1
      %s737 = scalar_select %p736, %s38, 1
      %p738 = scmp.lt.s32.totalorder %s39, 0
      %s739 = scalar_select %p738, %s39, 0
      %s740 = smul.addr %s739, 16
      %s741 = smul.addr %s737, 16
      %s742 = sadd.s32 %s740, %s741
      %s743 = smul.addr %s742, 8
      %s744 = scalar_lea.vmem %s23, %s743
      %s745 = smul.u32 2, %s39
      %p746 = scmp.lt.s32.totalorder %s38, 1
      %s747 = scalar_select %p746, %s38, 1
      %p748 = scmp.lt.s32.totalorder %s745, 1
      %s749 = scalar_select %p748, %s745, 1
      %s750 = smul.addr %s747, 8
      %s751 = sadd.s32 %s749, %s750
      %s752 = smul.addr %s751, 8
      %s753 = scalar_lea.vmem %s0, %s752
      %s754 = smul.u32 2, %s39
      %p755 = scmp.lt.s32.totalorder %s38, 1
      %s756 = scalar_select %p755, %s38, 1
      %s757 = smul.addr %s756, 128
      %s758 = smul.addr %s757, 8
      %s759 = scalar_lea.vmem %s1, %s758
      %p760 = scmp.lt.s32.totalorder %s38, 1
      %s761 = scalar_select %p760, %s38, 1
      %p762 = scmp.lt.s32.totalorder %s39, 0
      %s763 = scalar_select %p762, %s39, 0
      %s764 = smul.addr %s763, 16
      %s765 = smul.addr %s761, 16
      %s766 = sadd.s32 %s764, %s765
      %s767 = smul.addr %s766, 8
      %s768 = scalar_lea.vmem %s23, %s767
      %v770 = vld [vmem:[%s753] sm:$0xff]
      %v771 = vld [vmem:[%s753 + $0x8] sm:$0xff]
      %v772 = vld [vmem:[%s753 + $0x10] sm:$0xff]
      %v773 = vld [vmem:[%s753 + $0x18] sm:$0xff]
      %v774 = vld [vmem:[%s753 + $0x20] sm:$0xff]
      %v775 = vld [vmem:[%s753 + $0x28] sm:$0xff]
      %v776 = vld [vmem:[%s753 + $0x30] sm:$0xff]
      %v777 = vld [vmem:[%s753 + $0x38] sm:$0xff]
      %v778 = vld [vmem:[%s2] sm:$0xf]
      %vm779 = vcmask 261120
      %v781 = vsel %vm779, %v778, 0
      %783 = vmatprep.subr.mxu0 %v771
      %784 = vmatpush1.msra.mxu0 %v770
      %785 = vmatprep.subr.mxu0 %v773
      %786 = vmatpush1.msra.mxu0 %v772
      %787 = vmatprep.subr.mxu0 %v775
      %788 = vmatpush1.msra.mxu0 %v774
      %789 = vmatprep.subr.mxu0 %v777
      %790 = vmatpush1.msra.mxu0 %v776
      %791 = vmatprep.subr.mxu0 0.0
      %792 = vmatpush1.msra.mxu0 0.0
      %793 = vmatprep.subr.mxu0 0.0
      %794 = vmatpush1.msra.mxu0 0.0
      %795 = vmatprep.subr.mxu0 0.0
      %796 = vmatpush1.msra.mxu0 0.0
      %797 = vmatprep.subr.mxu0 0.0
      %798 = vmatpush1.msra.mxu0 0.0
      %799 = vmatprep.subr.mxu0 0.0
      %800 = vmatpush1.msra.mxu0 0.0
      %801 = vmatprep.subr.mxu0 0.0
      %802 = vmatpush1.msra.mxu0 0.0
      %803 = vmatprep.subr.mxu0 0.0
      %804 = vmatpush1.msra.mxu0 0.0
      %805 = vmatprep.subr.mxu0 0.0
      %806 = vmatpush1.msra.mxu0 0.0
      %807 = vmatprep.subr.mxu0 0.0
      %808 = vmatpush1.msra.mxu0 0.0
      %809 = vmatprep.subr.mxu0 0.0
      %810 = vmatpush1.msra.mxu0 0.0
      %811 = vmatprep.subr.mxu0 0.0
      %812 = vmatpush1.msra.mxu0 0.0
      %813 = vmatprep.subr.mxu0 0.0
      %814 = vmatpush1.msra.mxu0 0.0
      %815 = vmatprep.subr.mxu0 0.0
      %816 = vmatpush1.msra.mxu0 0.0
      %817 = vmatprep.subr.mxu0 0.0
      %818 = vmatpush1.msra.mxu0 0.0
      %819 = vmatprep.subr.mxu0 0.0
      %820 = vmatpush1.msra.mxu0 0.0
      %821 = vmatprep.subr.mxu0 0.0
      %822 = vmatpush1.msra.mxu0 0.0
      %823 = vmatprep.subr.mxu0 0.0
      %824 = vmatpush1.msra.mxu0 0.0
      %825 = vmatprep.subr.mxu0 0.0
      %826 = vmatpush1.msra.mxu0 0.0
      %827 = vmatprep.subr.mxu0 0.0
      %828 = vmatpush1.msra.mxu0 0.0
      %829 = vmatprep.subr.mxu0 0.0
      %830 = vmatpush1.msra.mxu0 0.0
      %831 = vmatprep.subr.mxu0 0.0
      %832 = vmatpush1.msra.mxu0 0.0
      %833 = vmatprep.subr.mxu0 0.0
      %834 = vmatpush1.msra.mxu0 0.0
      %835 = vmatprep.subr.mxu0 0.0
      %836 = vmatpush1.msra.mxu0 0.0
      %837 = vmatprep.subr.mxu0 0.0
      %838 = vmatpush1.msra.mxu0 0.0
      %839 = vmatprep.subr.mxu0 0.0
      %840 = vmatpush1.msra.mxu0 0.0
      %841 = vmatprep.subr.mxu0 0.0
      %842 = vmatpush1.msra.mxu0 0.0
      %843 = vmatprep.subr.mxu0 0.0
      %844 = vmatpush1.msra.mxu0 0.0
      %845 = vmatprep.subr.mxu0 0.0
      %846 = vmatpush1.msra.mxu0 0.0
      %847 = vmatprep.mubr.f32.mxu0 0.0
      %848 = vmatmul.mubr.f32.gmra.mrb[0].mxu0 %v781
      %v849 = vpop.f32.mrb[0].mxu0
      %v850 = vadd.f32 0.0, %v849
      %v851 = vpop.f32.mrb[0].mxu0
      %v852 = vadd.f32 0.0, %v851
      %853 = vdwg.mxu0
      %v854 = vmul.f32 %v850, 0.125
      %v855 = vmul.f32 %v852, 0.125
      %v856 = vld [vmem:[%s3] sm:$0xff]
      %v857 = vld [vmem:[%s3 + $0x8] sm:$0xff]
      %v858 = vld [vmem:[%s3 + $0x10] sm:$0xff]
      %v859 = vld [vmem:[%s3 + $0x18] sm:$0xff]
      %vm860 = vcmask 31744
      %v862 = vsel %vm860, %v856, 0
      %v865 = vsel %vm860, %v857, 0
      %v868 = vsel %vm860, %v858, 0
      %v871 = vsel %vm860, %v859, 0
      %vm873 = vcmask 1043456
      %v875 = vsel %vm873, %v854, 0
      %v878 = vsel %vm873, %v855, 0
      %880 = vmatprep.subr.mxu0 %v878
      %881 = vmatpush1.msra.mxu0 %v875
      %882 = vmatprep.subr.mxu0 0.0
      %883 = vmatpush1.msra.mxu0 0.0
      %884 = vmatprep.subr.mxu0 0.0
      %885 = vmatpush1.msra.mxu0 0.0
      %886 = vmatprep.subr.mxu0 0.0
      %887 = vmatpush1.msra.mxu0 0.0
      %888 = vmatprep.subr.mxu0 0.0
      %889 = vmatpush1.msra.mxu0 0.0
      %890 = vmatprep.subr.mxu0 0.0
      %891 = vmatpush1.msra.mxu0 0.0
      %892 = vmatprep.subr.mxu0 0.0
      %893 = vmatpush1.msra.mxu0 0.0
      %894 = vmatprep.subr.mxu0 0.0
      %895 = vmatpush1.msra.mxu0 0.0
      %896 = vmatprep.subr.mxu0 0.0
      %897 = vmatpush1.msra.mxu0 0.0
      %898 = vmatprep.subr.mxu0 0.0
      %899 = vmatpush1.msra.mxu0 0.0
      %900 = vmatprep.subr.mxu0 0.0
      %901 = vmatpush1.msra.mxu0 0.0
      %902 = vmatprep.subr.mxu0 0.0
      %903 = vmatpush1.msra.mxu0 0.0
      %904 = vmatprep.subr.mxu0 0.0
      %905 = vmatpush1.msra.mxu0 0.0
      %906 = vmatprep.subr.mxu0 0.0
      %907 = vmatpush1.msra.mxu0 0.0
      %908 = vmatprep.subr.mxu0 0.0
      %909 = vmatpush1.msra.mxu0 0.0
      %910 = vmatprep.subr.mxu0 0.0
      %911 = vmatpush1.msra.mxu0 0.0
      %912 = vmatprep.subr.mxu0 0.0
      %913 = vmatpush1.msra.mxu0 0.0
      %914 = vmatprep.subr.mxu0 0.0
      %915 = vmatpush1.msra.mxu0 0.0
      %916 = vmatprep.subr.mxu0 0.0
      %917 = vmatpush1.msra.mxu0 0.0
      %918 = vmatprep.subr.mxu0 0.0
      %919 = vmatpush1.msra.mxu0 0.0
      %920 = vmatprep.subr.mxu0 0.0
      %921 = vmatpush1.msra.mxu0 0.0
      %922 = vmatprep.subr.mxu0 0.0
      %923 = vmatpush1.msra.mxu0 0.0
      %924 = vmatprep.subr.mxu0 0.0
      %925 = vmatpush1.msra.mxu0 0.0
      %926 = vmatprep.subr.mxu0 0.0
      %927 = vmatpush1.msra.mxu0 0.0
      %928 = vmatprep.subr.mxu0 0.0
      %929 = vmatpush1.msra.mxu0 0.0
      %930 = vmatprep.subr.mxu0 0.0
      %931 = vmatpush1.msra.mxu0 0.0
      %932 = vmatprep.subr.mxu0 0.0
      %933 = vmatpush1.msra.mxu0 0.0
      %934 = vmatprep.subr.mxu0 0.0
      %935 = vmatpush1.msra.mxu0 0.0
      %936 = vmatprep.subr.mxu0 0.0
      %937 = vmatpush1.msra.mxu0 0.0
      %938 = vmatprep.subr.mxu0 0.0
      %939 = vmatpush1.msra.mxu0 0.0
      %940 = vmatprep.subr.mxu0 0.0
      %941 = vmatpush1.msra.mxu0 0.0
      %942 = vmatprep.subr.mxu0 0.0
      %943 = vmatpush1.msra.mxu0 0.0
      %944 = vmatprep.mubr.f32.mxu0 0.0
      %945 = vmatmul.mubr.f32.gmra.mrb[0].mxu0 %v862
      %v946 = vpop.f32.mrb[0].mxu0
      %v947 = vadd.f32 0.0, %v946
      %v948 = vpop.f32.mrb[0].mxu0
      %v949 = vadd.f32 0.0, %v948
      %950 = vmatprep.mubr.f32.mxu0 0.0
      %951 = vmatmul.mubr.f32.gmra.mrb[0].mxu0 %v865
      %v952 = vpop.f32.mrb[0].mxu0
      %v953 = vadd.f32 0.0, %v952
      %v954 = vpop.f32.mrb[0].mxu0
      %v955 = vadd.f32 0.0, %v954
      %956 = vmatprep.mubr.f32.mxu0 0.0
      %957 = vmatmul.mubr.f32.gmra.mrb[0].mxu0 %v868
      %v958 = vpop.f32.mrb[0].mxu0
      %v959 = vadd.f32 0.0, %v958
      %v960 = vpop.f32.mrb[0].mxu0
      %v961 = vadd.f32 0.0, %v960
      %962 = vmatprep.mubr.f32.mxu0 0.0
      %963 = vmatmul.mubr.f32.gmra.mrb[0].mxu0 %v871
      %v964 = vpop.f32.mrb[0].mxu0
      %v965 = vadd.f32 0.0, %v964
      %v966 = vpop.f32.mrb[0].mxu0
      %v967 = vadd.f32 0.0, %v966
      %968 = vdwg.mxu0
      %v969 = vsub.f32 %v770, %v947
      %v970 = vsub.f32 %v771, %v949
      %v971 = vsub.f32 %v772, %v953
      %v972 = vsub.f32 %v773, %v955
      %v973 = vsub.f32 %v774, %v959
      %v974 = vsub.f32 %v775, %v961
      %v975 = vsub.f32 %v776, %v965
      %v976 = vsub.f32 %v777, %v967
      %v977 = vmul.f32 %v969, %v969
      %v978 = vmul.f32 %v970, %v970
      %v979 = vmul.f32 %v971, %v971
      %v980 = vmul.f32 %v972, %v972
      %v981 = vmul.f32 %v973, %v973
      %v982 = vmul.f32 %v974, %v974
      %v983 = vmul.f32 %v975, %v975
      %v984 = vmul.f32 %v976, %v976
      %985 = vmatprep.subr.mxu0 %v978
      %986 = vmatpush1.msra.mxu0 %v977
      %987 = vmatprep.subr.mxu0 %v980
      %988 = vmatpush1.msra.mxu0 %v979
      %989 = vmatprep.subr.mxu0 %v982
      %990 = vmatpush1.msra.mxu0 %v981
      %991 = vmatprep.subr.mxu0 %v984
      %992 = vmatpush1.msra.mxu0 %v983
      %993 = vmatprep.subr.mxu0 0.0
      %994 = vmatpush1.msra.mxu0 0.0
      %995 = vmatprep.subr.mxu0 0.0
      %996 = vmatpush1.msra.mxu0 0.0
      %997 = vmatprep.subr.mxu0 0.0
      %998 = vmatpush1.msra.mxu0 0.0
      %999 = vmatprep.subr.mxu0 0.0
      %1000 = vmatpush1.msra.mxu0 0.0
      %1001 = vmatprep.subr.mxu0 0.0
      %1002 = vmatpush1.msra.mxu0 0.0
      %1003 = vmatprep.subr.mxu0 0.0
      %1004 = vmatpush1.msra.mxu0 0.0
      %1005 = vmatprep.subr.mxu0 0.0
      %1006 = vmatpush1.msra.mxu0 0.0
      %1007 = vmatprep.subr.mxu0 0.0
      %1008 = vmatpush1.msra.mxu0 0.0
      %1009 = vmatprep.subr.mxu0 0.0
      %1010 = vmatpush1.msra.mxu0 0.0
      %1011 = vmatprep.subr.mxu0 0.0
      %1012 = vmatpush1.msra.mxu0 0.0
      %1013 = vmatprep.subr.mxu0 0.0
      %1014 = vmatpush1.msra.mxu0 0.0
      %1015 = vmatprep.subr.mxu0 0.0
      %1016 = vmatpush1.msra.mxu0 0.0
      %1017 = vmatprep.subr.mxu0 0.0
      %1018 = vmatpush1.msra.mxu0 0.0
      %1019 = vmatprep.subr.mxu0 0.0
      %1020 = vmatpush1.msra.mxu0 0.0
      %1021 = vmatprep.subr.mxu0 0.0
      %1022 = vmatpush1.msra.mxu0 0.0
      %1023 = vmatprep.subr.mxu0 0.0
      %1024 = vmatpush1.msra.mxu0 0.0
      %1025 = vmatprep.subr.mxu0 0.0
      %1026 = vmatpush1.msra.mxu0 0.0
      %1027 = vmatprep.subr.mxu0 0.0
      %1028 = vmatpush1.msra.mxu0 0.0
      %1029 = vmatprep.subr.mxu0 0.0
      %1030 = vmatpush1.msra.mxu0 0.0
      %1031 = vmatprep.subr.mxu0 0.0
      %1032 = vmatpush1.msra.mxu0 0.0
      %1033 = vmatprep.subr.mxu0 0.0
      %1034 = vmatpush1.msra.mxu0 0.0
      %1035 = vmatprep.subr.mxu0 0.0
      %1036 = vmatpush1.msra.mxu0 0.0
      %1037 = vmatprep.subr.mxu0 0.0
      %1038 = vmatpush1.msra.mxu0 0.0
      %1039 = vmatprep.subr.mxu0 0.0
      %1040 = vmatpush1.msra.mxu0 0.0
      %1041 = vmatprep.subr.mxu0 0.0
      %1042 = vmatpush1.msra.mxu0 0.0
      %1043 = vmatprep.subr.mxu0 0.0
      %1044 = vmatpush1.msra.mxu0 0.0
      %1045 = vmatprep.subr.mxu0 0.0
      %1046 = vmatpush1.msra.mxu0 0.0
      %1047 = vmatprep.subr.mxu0 0.0
      %1048 = vmatpush1.msra.mxu0 0.0
      %1049 = vmatprep.mubr.f32.mxu0 0.0
      %1050 = vmatmul.mubr.f32.gmra.mrb[0].mxu0 %v781
      %v1051 = vpop.f32.mrb[0].mxu0
      %v1052 = vadd.f32 0.0, %v1051
      %v1053 = vpop.f32.mrb[0].mxu0
      %v1054 = vadd.f32 0.0, %v1053
      %1055 = vdwg.mxu0
      %v1056 = vmul.f32 %v1052, 0.125
      %v1057 = vmul.f32 %v1054, 0.125
      %v1059 = vsel %vm873, %v1056, 0
      %v1062 = vsel %vm873, %v1057, 0
      %1064 = vmatprep.subr.mxu0 %v1062
      %1065 = vmatpush1.msra.mxu0 %v1059
      %1066 = vmatprep.subr.mxu0 0.0
      %1067 = vmatpush1.msra.mxu0 0.0
      %1068 = vmatprep.subr.mxu0 0.0
      %1069 = vmatpush1.msra.mxu0 0.0
      %1070 = vmatprep.subr.mxu0 0.0
      %1071 = vmatpush1.msra.mxu0 0.0
      %1072 = vmatprep.subr.mxu0 0.0
      %1073 = vmatpush1.msra.mxu0 0.0
      %1074 = vmatprep.subr.mxu0 0.0
      %1075 = vmatpush1.msra.mxu0 0.0
      %1076 = vmatprep.subr.mxu0 0.0
      %1077 = vmatpush1.msra.mxu0 0.0
      %1078 = vmatprep.subr.mxu0 0.0
      %1079 = vmatpush1.msra.mxu0 0.0
      %1080 = vmatprep.subr.mxu0 0.0
      %1081 = vmatpush1.msra.mxu0 0.0
      %1082 = vmatprep.subr.mxu0 0.0
      %1083 = vmatpush1.msra.mxu0 0.0
      %1084 = vmatprep.subr.mxu0 0.0
      %1085 = vmatpush1.msra.mxu0 0.0
      %1086 = vmatprep.subr.mxu0 0.0
      %1087 = vmatpush1.msra.mxu0 0.0
      %1088 = vmatprep.subr.mxu0 0.0
      %1089 = vmatpush1.msra.mxu0 0.0
      %1090 = vmatprep.subr.mxu0 0.0
      %1091 = vmatpush1.msra.mxu0 0.0
      %1092 = vmatprep.subr.mxu0 0.0
      %1093 = vmatpush1.msra.mxu0 0.0
      %1094 = vmatprep.subr.mxu0 0.0
      %1095 = vmatpush1.msra.mxu0 0.0
      %1096 = vmatprep.subr.mxu0 0.0
      %1097 = vmatpush1.msra.mxu0 0.0
      %1098 = vmatprep.subr.mxu0 0.0
      %1099 = vmatpush1.msra.mxu0 0.0
      %1100 = vmatprep.subr.mxu0 0.0
      %1101 = vmatpush1.msra.mxu0 0.0
      %1102 = vmatprep.subr.mxu0 0.0
      %1103 = vmatpush1.msra.mxu0 0.0
      %1104 = vmatprep.subr.mxu0 0.0
      %1105 = vmatpush1.msra.mxu0 0.0
      %1106 = vmatprep.subr.mxu0 0.0
      %1107 = vmatpush1.msra.mxu0 0.0
      %1108 = vmatprep.subr.mxu0 0.0
      %1109 = vmatpush1.msra.mxu0 0.0
      %1110 = vmatprep.subr.mxu0 0.0
      %1111 = vmatpush1.msra.mxu0 0.0
      %1112 = vmatprep.subr.mxu0 0.0
      %1113 = vmatpush1.msra.mxu0 0.0
      %1114 = vmatprep.subr.mxu0 0.0
      %1115 = vmatpush1.msra.mxu0 0.0
      %1116 = vmatprep.subr.mxu0 0.0
      %1117 = vmatpush1.msra.mxu0 0.0
      %1118 = vmatprep.subr.mxu0 0.0
      %1119 = vmatpush1.msra.mxu0 0.0
      %1120 = vmatprep.subr.mxu0 0.0
      %1121 = vmatpush1.msra.mxu0 0.0
      %1122 = vmatprep.subr.mxu0 0.0
      %1123 = vmatpush1.msra.mxu0 0.0
      %1124 = vmatprep.subr.mxu0 0.0
      %1125 = vmatpush1.msra.mxu0 0.0
      %1126 = vmatprep.subr.mxu0 0.0
      %1127 = vmatpush1.msra.mxu0 0.0
      %1128 = vmatprep.mubr.f32.mxu0 0.0
      %1129 = vmatmul.mubr.f32.gmra.mrb[0].mxu0 %v862
      %v1130 = vpop.f32.mrb[0].mxu0
      %v1131 = vadd.f32 1e-05, %v1130
      %v1132 = vpop.f32.mrb[0].mxu0
      %v1133 = vadd.f32 1e-05, %v1132
      %1134 = vmatprep.mubr.f32.mxu0 0.0
      %1135 = vmatmul.mubr.f32.gmra.mrb[0].mxu0 %v865
      %v1136 = vpop.f32.mrb[0].mxu0
      %v1137 = vadd.f32 1e-05, %v1136
      %v1138 = vpop.f32.mrb[0].mxu0
      %v1139 = vadd.f32 1e-05, %v1138
      %1140 = vmatprep.mubr.f32.mxu0 0.0
      %1141 = vmatmul.mubr.f32.gmra.mrb[0].mxu0 %v868
      %v1142 = vpop.f32.mrb[0].mxu0
      %v1143 = vadd.f32 1e-05, %v1142
      %v1144 = vpop.f32.mrb[0].mxu0
      %v1145 = vadd.f32 1e-05, %v1144
      %1146 = vmatprep.mubr.f32.mxu0 0.0
      %1147 = vmatmul.mubr.f32.gmra.mrb[0].mxu0 %v871
      %v1148 = vpop.f32.mrb[0].mxu0
      %v1149 = vadd.f32 1e-05, %v1148
      %v1150 = vpop.f32.mrb[0].mxu0
      %v1151 = vadd.f32 1e-05, %v1150
      %1152 = vdwg.mxu0
      %v1153 = vrsqrt.pop %v1131
      %v1154 = vrsqrt.pop %v1133
      %v1155 = vrsqrt.pop %v1137
      %v1156 = vrsqrt.pop %v1139
      %v1157 = vrsqrt.pop %v1143
      %v1158 = vrsqrt.pop %v1145
      %v1159 = vrsqrt.pop %v1149
      %v1160 = vrsqrt.pop %v1151
      %v1161 = vmul.f32 %v969, %v1153
      %v1162 = vmul.f32 %v970, %v1154
      %v1163 = vmul.f32 %v971, %v1155
      %v1164 = vmul.f32 %v972, %v1156
      %v1165 = vmul.f32 %v973, %v1157
      %v1166 = vmul.f32 %v974, %v1158
      %v1167 = vmul.f32 %v975, %v1159
      %v1168 = vmul.f32 %v976, %v1160
      %v1169 = vld [vmem:[%s4] sm:$0xff]
      %v1170 = vld [vmem:[%s4 + $0x8] sm:$0xff]
      %v1171 = vld [vmem:[%s4 + $0x10] sm:$0xff]
      %v1172 = vld [vmem:[%s4 + $0x18] sm:$0xff]
      %1174 = vset.pattern.permute.xlu0 0
      %1175 = vperm.xlu0 %1174, %v1169
      %v1176 = vpop.permute.xlu0 %1175
      %1179 = vset.pattern.permute.xlu0 0
      %1180 = vperm.xlu0 %1179, %v1170
      %v1181 = vpop.permute.xlu0 %1180
      %1184 = vset.pattern.permute.xlu0 0
      %1185 = vperm.xlu0 %1184, %v1171
      %v1186 = vpop.permute.xlu0 %1185
      %1189 = vset.pattern.permute.xlu0 0
      %1190 = vperm.xlu0 %1189, %v1172
      %v1191 = vpop.permute.xlu0 %1190
      %v1193 = vmul.f32 %v1161, %v1176
      %v1194 = vmul.f32 %v1162, %v1176
      %v1195 = vmul.f32 %v1163, %v1181
      %v1196 = vmul.f32 %v1164, %v1181
      %v1197 = vmul.f32 %v1165, %v1186
      %v1198 = vmul.f32 %v1166, %v1186
      %v1199 = vmul.f32 %v1167, %v1191
      %v1200 = vmul.f32 %v1168, %v1191
      %v1201 = vld [vmem:[%s5] sm:$0xff]
      %v1202 = vld [vmem:[%s5 + $0x8] sm:$0xff]
      %v1203 = vld [vmem:[%s5 + $0x10] sm:$0xff]
      %v1204 = vld [vmem:[%s5 + $0x18] sm:$0xff]
      %1206 = vset.pattern.permute.xlu0 0
      %1207 = vperm.xlu0 %1206, %v1201
      %v1208 = vpop.permute.xlu0 %1207
      %1211 = vset.pattern.permute.xlu0 0
      %1212 = vperm.xlu0 %1211, %v1202
      %v1213 = vpop.permute.xlu0 %1212
      %1216 = vset.pattern.permute.xlu0 0
      %1217 = vperm.xlu0 %1216, %v1203
      %v1218 = vpop.permute.xlu0 %1217
      %1221 = vset.pattern.permute.xlu0 0
      %1222 = vperm.xlu0 %1221, %v1204
      %v1223 = vpop.permute.xlu0 %1222
      %v1225 = vadd.f32 %v1193, %v1208
      %v1226 = vadd.f32 %v1194, %v1208
      %v1227 = vadd.f32 %v1195, %v1213
      %v1228 = vadd.f32 %v1196, %v1213
      %v1229 = vadd.f32 %v1197, %v1218
      %v1230 = vadd.f32 %v1198, %v1218
      %v1231 = vadd.f32 %v1199, %v1223
      %v1232 = vadd.f32 %v1200, %v1223
      %v1233 = vld [vmem:[%s6] sm:$0xff]
      %v1234 = vld [vmem:[%s6 + $0x8] sm:$0xff]
      %v1235 = vld [vmem:[%s6 + $0x10] sm:$0xff]
      %v1236 = vld [vmem:[%s6 + $0x18] sm:$0xff]
      %v1237 = vld [vmem:[%s6 + $0x20] sm:$0xff]
      %v1238 = vld [vmem:[%s6 + $0x28] sm:$0xff]
      %v1239 = vld [vmem:[%s6 + $0x30] sm:$0xff]
      %v1240 = vld [vmem:[%s6 + $0x38] sm:$0xff]
      %v1241 = vld [vmem:[%s6 + $0x40] sm:$0xff]
      %v1242 = vld [vmem:[%s6 + $0x48] sm:$0xff]
      %v1243 = vld [vmem:[%s6 + $0x50] sm:$0xff]
      %v1244 = vld [vmem:[%s6 + $0x58] sm:$0xff]
      %v1245 = vld [vmem:[%s6 + $0x60] sm:$0xff]
      %v1246 = vld [vmem:[%s6 + $0x68] sm:$0xff]
      %v1247 = vld [vmem:[%s6 + $0x70] sm:$0xff]
      %v1248 = vld [vmem:[%s6 + $0x78] sm:$0xff]
      %v1249 = vld [vmem:[%s6 + $0x80] sm:$0xff]
      %v1250 = vld [vmem:[%s6 + $0x88] sm:$0xff]
      %v1251 = vld [vmem:[%s6 + $0x90] sm:$0xff]
      %v1252 = vld [vmem:[%s6 + $0x98] sm:$0xff]
      %v1253 = vld [vmem:[%s6 + $0xa0] sm:$0xff]
      %v1254 = vld [vmem:[%s6 + $0xa8] sm:$0xff]
      %v1255 = vld [vmem:[%s6 + $0xb0] sm:$0xff]
      %v1256 = vld [vmem:[%s6 + $0xb8] sm:$0xff]
      %v1257 = vld [vmem:[%s6 + $0xc0] sm:$0xff]
      %v1258 = vld [vmem:[%s6 + $0xc8] sm:$0xff]
      %v1259 = vld [vmem:[%s6 + $0xd0] sm:$0xff]
      %v1260 = vld [vmem:[%s6 + $0xd8] sm:$0xff]
      %v1261 = vld [vmem:[%s6 + $0xe0] sm:$0xff]
      %v1262 = vld [vmem:[%s6 + $0xe8] sm:$0xff]
      %v1263 = vld [vmem:[%s6 + $0xf0] sm:$0xff]
      %v1264 = vld [vmem:[%s6 + $0xf8] sm:$0xff]
      %v1265 = vld [vmem:[%s7] sm:$0xff]
      %v1266 = vld [vmem:[%s7 + $0x8] sm:$0xff]
      %v1267 = vld [vmem:[%s7 + $0x10] sm:$0xff]
      %v1268 = vld [vmem:[%s7 + $0x18] sm:$0xff]
      %v1269 = vld [vmem:[%s7 + $0x20] sm:$0xff]
      %v1270 = vld [vmem:[%s7 + $0x28] sm:$0xff]
      %v1271 = vld [vmem:[%s7 + $0x30] sm:$0xff]
      %v1272 = vld [vmem:[%s7 + $0x38] sm:$0xff]
      %v1273 = vld [vmem:[%s7 + $0x40] sm:$0xff]
      %v1274 = vld [vmem:[%s7 + $0x48] sm:$0xff]
      %v1275 = vld [vmem:[%s7 + $0x50] sm:$0xff]
      %v1276 = vld [vmem:[%s7 + $0x58] sm:$0xff]
      %v1277 = vld [vmem:[%s7 + $0x60] sm:$0xff]
      %v1278 = vld [vmem:[%s7 + $0x68] sm:$0xff]
      %v1279 = vld [vmem:[%s7 + $0x70] sm:$0xff]
      %v1280 = vld [vmem:[%s7 + $0x78] sm:$0xff]
      %v1281 = vld [vmem:[%s7 + $0x80] sm:$0xff]
      %v1282 = vld [vmem:[%s7 + $0x88] sm:$0xff]
      %v1283 = vld [vmem:[%s7 + $0x90] sm:$0xff]
      %v1284 = vld [vmem:[%s7 + $0x98] sm:$0xff]
      %v1285 = vld [vmem:[%s7 + $0xa0] sm:$0xff]
      %v1286 = vld [vmem:[%s7 + $0xa8] sm:$0xff]
      %v1287 = vld [vmem:[%s7 + $0xb0] sm:$0xff]
      %v1288 = vld [vmem:[%s7 + $0xb8] sm:$0xff]
      %v1289 = vld [vmem:[%s7 + $0xc0] sm:$0xff]
      %v1290 = vld [vmem:[%s7 + $0xc8] sm:$0xff]
      %v1291 = vld [vmem:[%s7 + $0xd0] sm:$0xff]
      %v1292 = vld [vmem:[%s7 + $0xd8] sm:$0xff]
      %v1293 = vld [vmem:[%s7 + $0xe0] sm:$0xff]
      %v1294 = vld [vmem:[%s7 + $0xe8] sm:$0xff]
      %v1295 = vld [vmem:[%s7 + $0xf0] sm:$0xff]
      %v1296 = vld [vmem:[%s7 + $0xf8] sm:$0xff]
      %1298 = vset.pattern.permute.xlu0 0
      %1299 = vperm.xlu0 %1298, %v1265
      %v1300 = vpop.permute.xlu0 %1299
      %1303 = vset.pattern.permute.xlu0 0
      %1304 = vperm.xlu0 %1303, %v1266
      %v1305 = vpop.permute.xlu0 %1304
      %1308 = vset.pattern.permute.xlu0 0
      %1309 = vperm.xlu0 %1308, %v1267
      %v1310 = vpop.permute.xlu0 %1309
      %1313 = vset.pattern.permute.xlu0 0
      %1314 = vperm.xlu0 %1313, %v1268
      %v1315 = vpop.permute.xlu0 %1314
      %1318 = vset.pattern.permute.xlu0 0
      %1319 = vperm.xlu0 %1318, %v1269
      %v1320 = vpop.permute.xlu0 %1319
      %1323 = vset.pattern.permute.xlu0 0
      %1324 = vperm.xlu0 %1323, %v1270
      %v1325 = vpop.permute.xlu0 %1324
      %1328 = vset.pattern.permute.xlu0 0
      %1329 = vperm.xlu0 %1328, %v1271
      %v1330 = vpop.permute.xlu0 %1329
      %1333 = vset.pattern.permute.xlu0 0
      %1334 = vperm.xlu0 %1333, %v1272
      %v1335 = vpop.permute.xlu0 %1334
      %1338 = vset.pattern.permute.xlu0 0
      %1339 = vperm.xlu0 %1338, %v1273
      %v1340 = vpop.permute.xlu0 %1339
      %1343 = vset.pattern.permute.xlu0 0
      %1344 = vperm.xlu0 %1343, %v1274
      %v1345 = vpop.permute.xlu0 %1344
      %1348 = vset.pattern.permute.xlu0 0
      %1349 = vperm.xlu0 %1348, %v1275
      %v1350 = vpop.permute.xlu0 %1349
      %1353 = vset.pattern.permute.xlu0 0
      %1354 = vperm.xlu0 %1353, %v1276
      %v1355 = vpop.permute.xlu0 %1354
      %1358 = vset.pattern.permute.xlu0 0
      %1359 = vperm.xlu0 %1358, %v1277
      %v1360 = vpop.permute.xlu0 %1359
      %1363 = vset.pattern.permute.xlu0 0
      %1364 = vperm.xlu0 %1363, %v1278
      %v1365 = vpop.permute.xlu0 %1364
      %1368 = vset.pattern.permute.xlu0 0
      %1369 = vperm.xlu0 %1368, %v1279
      %v1370 = vpop.permute.xlu0 %1369
      %1373 = vset.pattern.permute.xlu0 0
      %1374 = vperm.xlu0 %1373, %v1280
      %v1375 = vpop.permute.xlu0 %1374
      %1378 = vset.pattern.permute.xlu0 0
      %1379 = vperm.xlu0 %1378, %v1281
      %v1380 = vpop.permute.xlu0 %1379
      %1383 = vset.pattern.permute.xlu0 0
      %1384 = vperm.xlu0 %1383, %v1282
      %v1385 = vpop.permute.xlu0 %1384
      %1388 = vset.pattern.permute.xlu0 0
      %1389 = vperm.xlu0 %1388, %v1283
      %v1390 = vpop.permute.xlu0 %1389
      %1393 = vset.pattern.permute.xlu0 0
      %1394 = vperm.xlu0 %1393, %v1284
      %v1395 = vpop.permute.xlu0 %1394
      %1398 = vset.pattern.permute.xlu0 0
      %1399 = vperm.xlu0 %1398, %v1285
      %v1400 = vpop.permute.xlu0 %1399
      %1403 = vset.pattern.permute.xlu0 0
      %1404 = vperm.xlu0 %1403, %v1286
      %v1405 = vpop.permute.xlu0 %1404
      %1408 = vset.pattern.permute.xlu0 0
      %1409 = vperm.xlu0 %1408, %v1287
      %v1410 = vpop.permute.xlu0 %1409
      %1413 = vset.pattern.permute.xlu0 0
      %1414 = vperm.xlu0 %1413, %v1288
      %v1415 = vpop.permute.xlu0 %1414
      %1418 = vset.pattern.permute.xlu0 0
      %1419 = vperm.xlu0 %1418, %v1289
      %v1420 = vpop.permute.xlu0 %1419
      %1423 = vset.pattern.permute.xlu0 0
      %1424 = vperm.xlu0 %1423, %v1290
      %v1425 = vpop.permute.xlu0 %1424
      %1428 = vset.pattern.permute.xlu0 0
      %1429 = vperm.xlu0 %1428, %v1291
      %v1430 = vpop.permute.xlu0 %1429
      %1433 = vset.pattern.permute.xlu0 0
      %1434 = vperm.xlu0 %1433, %v1292
      %v1435 = vpop.permute.xlu0 %1434
      %1438 = vset.pattern.permute.xlu0 0
      %1439 = vperm.xlu0 %1438, %v1293
      %v1440 = vpop.permute.xlu0 %1439
      %1443 = vset.pattern.permute.xlu0 0
      %1444 = vperm.xlu0 %1443, %v1294
      %v1445 = vpop.permute.xlu0 %1444
      %1448 = vset.pattern.permute.xlu0 0
      %1449 = vperm.xlu0 %1448, %v1295
      %v1450 = vpop.permute.xlu0 %1449
      %1453 = vset.pattern.permute.xlu0 0
      %1454 = vperm.xlu0 %1453, %v1296
      %v1455 = vpop.permute.xlu0 %1454
      %v1458 = vsel %vm779, %v1233, 0
      %v1461 = vsel %vm779, %v1234, 0
      %v1464 = vsel %vm779, %v1235, 0
      %v1467 = vsel %vm779, %v1236, 0
      %v1470 = vsel %vm779, %v1237, 0
      %v1473 = vsel %vm779, %v1238, 0
      %v1476 = vsel %vm779, %v1239, 0
      %v1479 = vsel %vm779, %v1240, 0
      %v1482 = vsel %vm779, %v1241, 0
      %v1485 = vsel %vm779, %v1242, 0
      %v1488 = vsel %vm779, %v1243, 0
      %v1491 = vsel %vm779, %v1244, 0
      %v1494 = vsel %vm779, %v1245, 0
      %v1497 = vsel %vm779, %v1246, 0
      %v1500 = vsel %vm779, %v1247, 0
      %v1503 = vsel %vm779, %v1248, 0
      %v1506 = vsel %vm779, %v1249, 0
      %v1509 = vsel %vm779, %v1250, 0
      %v1512 = vsel %vm779, %v1251, 0
      %v1515 = vsel %vm779, %v1252, 0
      %v1518 = vsel %vm779, %v1253, 0
      %v1521 = vsel %vm779, %v1254, 0
      %v1524 = vsel %vm779, %v1255, 0
      %v1527 = vsel %vm779, %v1256, 0
      %v1530 = vsel %vm779, %v1257, 0
      %v1533 = vsel %vm779, %v1258, 0
      %v1536 = vsel %vm779, %v1259, 0
      %v1539 = vsel %vm779, %v1260, 0
      %v1542 = vsel %vm779, %v1261, 0
      %v1545 = vsel %vm779, %v1262, 0
      %v1548 = vsel %vm779, %v1263, 0
      %v1551 = vsel %vm779, %v1264, 0
      %1553 = vmatprep.subr.mxu0 %v1226
      %1554 = vmatpush1.msra.mxu0 %v1225
      %1555 = vmatprep.subr.mxu0 %v1228
      %1556 = vmatpush1.msra.mxu0 %v1227
      %1557 = vmatprep.subr.mxu0 %v1230
      %1558 = vmatpush1.msra.mxu0 %v1229
      %1559 = vmatprep.subr.mxu0 %v1232
      %1560 = vmatpush1.msra.mxu0 %v1231
      %1561 = vmatprep.subr.mxu0 0.0
      %1562 = vmatpush1.msra.mxu0 0.0
      %1563 = vmatprep.subr.mxu0 0.0
      %1564 = vmatpush1.msra.mxu0 0.0
      %1565 = vmatprep.subr.mxu0 0.0
      %1566 = vmatpush1.msra.mxu0 0.0
      %1567 = vmatprep.subr.mxu0 0.0
      %1568 = vmatpush1.msra.mxu0 0.0
      %1569 = vmatprep.subr.mxu0 0.0
      %1570 = vmatpush1.msra.mxu0 0.0
      %1571 = vmatprep.subr.mxu0 0.0
      %1572 = vmatpush1.msra.mxu0 0.0
      %1573 = vmatprep.subr.mxu0 0.0
      %1574 = vmatpush1.msra.mxu0 0.0
      %1575 = vmatprep.subr.mxu0 0.0
      %1576 = vmatpush1.msra.mxu0 0.0
      %1577 = vmatprep.subr.mxu0 0.0
      %1578 = vmatpush1.msra.mxu0 0.0
      %1579 = vmatprep.subr.mxu0 0.0
      %1580 = vmatpush1.msra.mxu0 0.0
      %1581 = vmatprep.subr.mxu0 0.0
      %1582 = vmatpush1.msra.mxu0 0.0
      %1583 = vmatprep.subr.mxu0 0.0
      %1584 = vmatpush1.msra.mxu0 0.0
      %1585 = vmatprep.subr.mxu0 0.0
      %1586 = vmatpush1.msra.mxu0 0.0
      %1587 = vmatprep.subr.mxu0 0.0
      %1588 = vmatpush1.msra.mxu0 0.0
      %1589 = vmatprep.subr.mxu0 0.0
      %1590 = vmatpush1.msra.mxu0 0.0
      %1591 = vmatprep.subr.mxu0 0.0
      %1592 = vmatpush1.msra.mxu0 0.0
      %1593 = vmatprep.subr.mxu0 0.0
      %1594 = vmatpush1.msra.mxu0 0.0
      %1595 = vmatprep.subr.mxu0 0.0
      %1596 = vmatpush1.msra.mxu0 0.0
      %1597 = vmatprep.subr.mxu0 0.0
      %1598 = vmatpush1.msra.mxu0 0.0
      %1599 = vmatprep.subr.mxu0 0.0
      %1600 = vmatpush1.msra.mxu0 0.0
      %1601 = vmatprep.subr.mxu0 0.0
      %1602 = vmatpush1.msra.mxu0 0.0
      %1603 = vmatprep.subr.mxu0 0.0
      %1604 = vmatpush1.msra.mxu0 0.0
      %1605 = vmatprep.subr.mxu0 0.0
      %1606 = vmatpush1.msra.mxu0 0.0
      %1607 = vmatprep.subr.mxu0 0.0
      %1608 = vmatpush1.msra.mxu0 0.0
      %1609 = vmatprep.subr.mxu0 0.0
      %1610 = vmatpush1.msra.mxu0 0.0
      %1611 = vmatprep.subr.mxu0 0.0
      %1612 = vmatpush1.msra.mxu0 0.0
      %1613 = vmatprep.subr.mxu0 0.0
      %1614 = vmatpush1.msra.mxu0 0.0
      %1615 = vmatprep.subr.mxu0 0.0
      %1616 = vmatpush1.msra.mxu0 0.0
      %1617 = vmatprep.mubr.f32.mxu0 0.0
      %1618 = vmatmul.mubr.f32.gmra.mrb[0].mxu0 %v1458
      %v1619 = vpop.f32.mrb[0].mxu0
      %v1620 = vadd.f32 %v1300, %v1619
      %v1621 = vpop.f32.mrb[0].mxu0
      %v1622 = vadd.f32 %v1300, %v1621
      %1623 = vmatprep.mubr.f32.mxu0 0.0
      %1624 = vmatmul.mubr.f32.gmra.mrb[0].mxu0 %v1461
      %v1625 = vpop.f32.mrb[0].mxu0
      %v1626 = vadd.f32 %v1305, %v1625
      %v1627 = vpop.f32.mrb[0].mxu0
      %v1628 = vadd.f32 %v1305, %v1627
      %1629 = vmatprep.mubr.f32.mxu0 0.0
      %1630 = vmatmul.mubr.f32.gmra.mrb[0].mxu0 %v1464
      %v1631 = vpop.f32.mrb[0].mxu0
      %v1632 = vadd.f32 %v1310, %v1631
      %v1633 = vpop.f32.mrb[0].mxu0
      %v1634 = vadd.f32 %v1310, %v1633
      %1635 = vmatprep.mubr.f32.mxu0 0.0
      %1636 = vmatmul.mubr.f32.gmra.mrb[0].mxu0 %v1467
      %v1637 = vpop.f32.mrb[0].mxu0
      %v1638 = vadd.f32 %v1315, %v1637
      %v1639 = vpop.f32.mrb[0].mxu0
      %v1640 = vadd.f32 %v1315, %v1639
      %1641 = vmatprep.mubr.f32.mxu0 0.0
      %1642 = vmatmul.mubr.f32.gmra.mrb[0].mxu0 %v1470
      %v1643 = vpop.f32.mrb[0].mxu0
      %v1644 = vadd.f32 %v1320, %v1643
      %v1645 = vpop.f32.mrb[0].mxu0
      %v1646 = vadd.f32 %v1320, %v1645
      %1647 = vmatprep.mubr.f32.mxu0 0.0
      %1648 = vmatmul.mubr.f32.gmra.mrb[0].mxu0 %v1473
      %v1649 = vpop.f32.mrb[0].mxu0
      %v1650 = vadd.f32 %v1325, %v1649
      %v1651 = vpop.f32.mrb[0].mxu0
      %v1652 = vadd.f32 %v1325, %v1651
      %1653 = vmatprep.mubr.f32.mxu0 0.0
      %1654 = vmatmul.mubr.f32.gmra.mrb[0].mxu0 %v1476
      %v1655 = vpop.f32.mrb[0].mxu0
      %v1656 = vadd.f32 %v1330, %v1655
      %v1657 = vpop.f32.mrb[0].mxu0
      %v1658 = vadd.f32 %v1330, %v1657
      %1659 = vmatprep.mubr.f32.mxu0 0.0
      %1660 = vmatmul.mubr.f32.gmra.mrb[0].mxu0 %v1479
      %v1661 = vpop.f32.mrb[0].mxu0
      %v1662 = vadd.f32 %v1335, %v1661
      %v1663 = vpop.f32.mrb[0].mxu0
      %v1664 = vadd.f32 %v1335, %v1663
      %1665 = vmatprep.mubr.f32.mxu0 0.0
      %1666 = vmatmul.mubr.f32.gmra.mrb[0].mxu0 %v1482
      %v1667 = vpop.f32.mrb[0].mxu0
      %v1668 = vadd.f32 %v1340, %v1667
      %v1669 = vpop.f32.mrb[0].mxu0
      %v1670 = vadd.f32 %v1340, %v1669
      %1671 = vmatprep.mubr.f32.mxu0 0.0
      %1672 = vmatmul.mubr.f32.gmra.mrb[0].mxu0 %v1485
      %v1673 = vpop.f32.mrb[0].mxu0
      %v1674 = vadd.f32 %v1345, %v1673
      %v1675 = vpop.f32.mrb[0].mxu0
      %v1676 = vadd.f32 %v1345, %v1675
      %1677 = vmatprep.mubr.f32.mxu0 0.0
      %1678 = vmatmul.mubr.f32.gmra.mrb[0].mxu0 %v1488
      %v1679 = vpop.f32.mrb[0].mxu0
      %v1680 = vadd.f32 %v1350, %v1679
      %v1681 = vpop.f32.mrb[0].mxu0
      %v1682 = vadd.f32 %v1350, %v1681
      %1683 = vmatprep.mubr.f32.mxu0 0.0
      %1684 = vmatmul.mubr.f32.gmra.mrb[0].mxu0 %v1491
      %v1685 = vpop.f32.mrb[0].mxu0
      %v1686 = vadd.f32 %v1355, %v1685
      %v1687 = vpop.f32.mrb[0].mxu0
      %v1688 = vadd.f32 %v1355, %v1687
      %1689 = vmatprep.mubr.f32.mxu0 0.0
      %1690 = vmatmul.mubr.f32.gmra.mrb[0].mxu0 %v1494
      %v1691 = vpop.f32.mrb[0].mxu0
      %v1692 = vadd.f32 %v1360, %v1691
      %v1693 = vpop.f32.mrb[0].mxu0
      %v1694 = vadd.f32 %v1360, %v1693
      %1695 = vmatprep.mubr.f32.mxu0 0.0
      %1696 = vmatmul.mubr.f32.gmra.mrb[0].mxu0 %v1497
      %v1697 = vpop.f32.mrb[0].mxu0
      %v1698 = vadd.f32 %v1365, %v1697
      %v1699 = vpop.f32.mrb[0].mxu0
      %v1700 = vadd.f32 %v1365, %v1699
      %1701 = vmatprep.mubr.f32.mxu0 0.0
      %1702 = vmatmul.mubr.f32.gmra.mrb[0].mxu0 %v1500
      %v1703 = vpop.f32.mrb[0].mxu0
      %v1704 = vadd.f32 %v1370, %v1703
      %v1705 = vpop.f32.mrb[0].mxu0
      %v1706 = vadd.f32 %v1370, %v1705
      %1707 = vmatprep.mubr.f32.mxu0 0.0
      %1708 = vmatmul.mubr.f32.gmra.mrb[0].mxu0 %v1503
      %v1709 = vpop.f32.mrb[0].mxu0
      %v1710 = vadd.f32 %v1375, %v1709
      %v1711 = vpop.f32.mrb[0].mxu0
      %v1712 = vadd.f32 %v1375, %v1711
      %1713 = vmatprep.mubr.f32.mxu0 0.0
      %1714 = vmatmul.mubr.f32.gmra.mrb[0].mxu0 %v1506
      %v1715 = vpop.f32.mrb[0].mxu0
      %v1716 = vadd.f32 %v1380, %v1715
      %v1717 = vpop.f32.mrb[0].mxu0
      %v1718 = vadd.f32 %v1380, %v1717
      %1719 = vmatprep.mubr.f32.mxu0 0.0
      %1720 = vmatmul.mubr.f32.gmra.mrb[0].mxu0 %v1509
      %v1721 = vpop.f32.mrb[0].mxu0
      %v1722 = vadd.f32 %v1385, %v1721
      %v1723 = vpop.f32.mrb[0].mxu0
      %v1724 = vadd.f32 %v1385, %v1723
      %1725 = vmatprep.mubr.f32.mxu0 0.0
      %1726 = vmatmul.mubr.f32.gmra.mrb[0].mxu0 %v1512
      %v1727 = vpop.f32.mrb[0].mxu0
      %v1728 = vadd.f32 %v1390, %v1727
      %v1729 = vpop.f32.mrb[0].mxu0
      %v1730 = vadd.f32 %v1390, %v1729
      %1731 = vmatprep.mubr.f32.mxu0 0.0
      %1732 = vmatmul.mubr.f32.gmra.mrb[0].mxu0 %v1515
      %v1733 = vpop.f32.mrb[0].mxu0
      %v1734 = vadd.f32 %v1395, %v1733
      %v1735 = vpop.f32.mrb[0].mxu0
      %v1736 = vadd.f32 %v1395, %v1735
      %1737 = vmatprep.mubr.f32.mxu0 0.0
      %1738 = vmatmul.mubr.f32.gmra.mrb[0].mxu0 %v1518
      %v1739 = vpop.f32.mrb[0].mxu0
      %v1740 = vadd.f32 %v1400, %v1739
      %v1741 = vpop.f32.mrb[0].mxu0
      %v1742 = vadd.f32 %v1400, %v1741
      %1743 = vmatprep.mubr.f32.mxu0 0.0
      %1744 = vmatmul.mubr.f32.gmra.mrb[0].mxu0 %v1521
      %v1745 = vpop.f32.mrb[0].mxu0
      %v1746 = vadd.f32 %v1405, %v1745
      %v1747 = vpop.f32.mrb[0].mxu0
      %v1748 = vadd.f32 %v1405, %v1747
      %1749 = vmatprep.mubr.f32.mxu0 0.0
      %1750 = vmatmul.mubr.f32.gmra.mrb[0].mxu0 %v1524
      %v1751 = vpop.f32.mrb[0].mxu0
      %v1752 = vadd.f32 %v1410, %v1751
      %v1753 = vpop.f32.mrb[0].mxu0
      %v1754 = vadd.f32 %v1410, %v1753
      %1755 = vmatprep.mubr.f32.mxu0 0.0
      %1756 = vmatmul.mubr.f32.gmra.mrb[0].mxu0 %v1527
      %v1757 = vpop.f32.mrb[0].mxu0
      %v1758 = vadd.f32 %v1415, %v1757
      %v1759 = vpop.f32.mrb[0].mxu0
      %v1760 = vadd.f32 %v1415, %v1759
      %1761 = vmatprep.mubr.f32.mxu0 0.0
      %1762 = vmatmul.mubr.f32.gmra.mrb[0].mxu0 %v1530
      %v1763 = vpop.f32.mrb[0].mxu0
      %v1764 = vadd.f32 %v1420, %v1763
      %v1765 = vpop.f32.mrb[0].mxu0
      %v1766 = vadd.f32 %v1420, %v1765
      %1767 = vmatprep.mubr.f32.mxu0 0.0
      %1768 = vmatmul.mubr.f32.gmra.mrb[0].mxu0 %v1533
      %v1769 = vpop.f32.mrb[0].mxu0
      %v1770 = vadd.f32 %v1425, %v1769
      %v1771 = vpop.f32.mrb[0].mxu0
      %v1772 = vadd.f32 %v1425, %v1771
      %1773 = vmatprep.mubr.f32.mxu0 0.0
      %1774 = vmatmul.mubr.f32.gmra.mrb[0].mxu0 %v1536
      %v1775 = vpop.f32.mrb[0].mxu0
      %v1776 = vadd.f32 %v1430, %v1775
      %v1777 = vpop.f32.mrb[0].mxu0
      %v1778 = vadd.f32 %v1430, %v1777
      %1779 = vmatprep.mubr.f32.mxu0 0.0
      %1780 = vmatmul.mubr.f32.gmra.mrb[0].mxu0 %v1539
      %v1781 = vpop.f32.mrb[0].mxu0
      %v1782 = vadd.f32 %v1435, %v1781
      %v1783 = vpop.f32.mrb[0].mxu0
      %v1784 = vadd.f32 %v1435, %v1783
      %1785 = vmatprep.mubr.f32.mxu0 0.0
      %1786 = vmatmul.mubr.f32.gmra.mrb[0].mxu0 %v1542
      %v1787 = vpop.f32.mrb[0].mxu0
      %v1788 = vadd.f32 %v1440, %v1787
      %v1789 = vpop.f32.mrb[0].mxu0
      %v1790 = vadd.f32 %v1440, %v1789
      %1791 = vmatprep.mubr.f32.mxu0 0.0
      %1792 = vmatmul.mubr.f32.gmra.mrb[0].mxu0 %v1545
      %v1793 = vpop.f32.mrb[0].mxu0
      %v1794 = vadd.f32 %v1445, %v1793
      %v1795 = vpop.f32.mrb[0].mxu0
      %v1796 = vadd.f32 %v1445, %v1795
      %1797 = vmatprep.mubr.f32.mxu0 0.0
      %1798 = vmatmul.mubr.f32.gmra.mrb[0].mxu0 %v1548
      %v1799 = vpop.f32.mrb[0].mxu0
      %v1800 = vadd.f32 %v1450, %v1799
      %v1801 = vpop.f32.mrb[0].mxu0
      %v1802 = vadd.f32 %v1450, %v1801
      %1803 = vmatprep.mubr.f32.mxu0 0.0
      %1804 = vmatmul.mubr.f32.gmra.mrb[0].mxu0 %v1551
      %v1805 = vpop.f32.mrb[0].mxu0
      %v1806 = vadd.f32 %v1455, %v1805
      %v1807 = vpop.f32.mrb[0].mxu0
      %v1808 = vadd.f32 %v1455, %v1807
      %1809 = vdwg.mxu0
      %v1810 = vmax.f32 %v1620, 0.0
      %v1811 = vmax.f32 %v1622, 0.0
      %v1812 = vmax.f32 %v1626, 0.0
      %v1813 = vmax.f32 %v1628, 0.0
      %v1814 = vmax.f32 %v1632, 0.0
      %v1815 = vmax.f32 %v1634, 0.0
      %v1816 = vmax.f32 %v1638, 0.0
      %v1817 = vmax.f32 %v1640, 0.0
      %v1818 = vmax.f32 %v1644, 0.0
      %v1819 = vmax.f32 %v1646, 0.0
      %v1820 = vmax.f32 %v1650, 0.0
      %v1821 = vmax.f32 %v1652, 0.0
      %v1822 = vmax.f32 %v1656, 0.0
      %v1823 = vmax.f32 %v1658, 0.0
      %v1824 = vmax.f32 %v1662, 0.0
      %v1825 = vmax.f32 %v1664, 0.0
      %v1826 = vmax.f32 %v1668, 0.0
      %v1827 = vmax.f32 %v1670, 0.0
      %v1828 = vmax.f32 %v1674, 0.0
      %v1829 = vmax.f32 %v1676, 0.0
      %v1830 = vmax.f32 %v1680, 0.0
      %v1831 = vmax.f32 %v1682, 0.0
      %v1832 = vmax.f32 %v1686, 0.0
      %v1833 = vmax.f32 %v1688, 0.0
      %v1834 = vmax.f32 %v1692, 0.0
      %v1835 = vmax.f32 %v1694, 0.0
      %v1836 = vmax.f32 %v1698, 0.0
      %v1837 = vmax.f32 %v1700, 0.0
      %v1838 = vmax.f32 %v1704, 0.0
      %v1839 = vmax.f32 %v1706, 0.0
      %v1840 = vmax.f32 %v1710, 0.0
      %v1841 = vmax.f32 %v1712, 0.0
      %v1842 = vmax.f32 %v1716, 0.0
      %v1843 = vmax.f32 %v1718, 0.0
      %v1844 = vmax.f32 %v1722, 0.0
      %v1845 = vmax.f32 %v1724, 0.0
      %v1846 = vmax.f32 %v1728, 0.0
      %v1847 = vmax.f32 %v1730, 0.0
      %v1848 = vmax.f32 %v1734, 0.0
      %v1849 = vmax.f32 %v1736, 0.0
      %v1850 = vmax.f32 %v1740, 0.0
      %v1851 = vmax.f32 %v1742, 0.0
      %v1852 = vmax.f32 %v1746, 0.0
      %v1853 = vmax.f32 %v1748, 0.0
      %v1854 = vmax.f32 %v1752, 0.0
      %v1855 = vmax.f32 %v1754, 0.0
      %v1856 = vmax.f32 %v1758, 0.0
      %v1857 = vmax.f32 %v1760, 0.0
      %v1858 = vmax.f32 %v1764, 0.0
      %v1859 = vmax.f32 %v1766, 0.0
      %v1860 = vmax.f32 %v1770, 0.0
      %v1861 = vmax.f32 %v1772, 0.0
      %v1862 = vmax.f32 %v1776, 0.0
      %v1863 = vmax.f32 %v1778, 0.0
      %v1864 = vmax.f32 %v1782, 0.0
      %v1865 = vmax.f32 %v1784, 0.0
      %v1866 = vmax.f32 %v1788, 0.0
      %v1867 = vmax.f32 %v1790, 0.0
      %v1868 = vmax.f32 %v1794, 0.0
      %v1869 = vmax.f32 %v1796, 0.0
      %v1870 = vmax.f32 %v1800, 0.0
      %v1871 = vmax.f32 %v1802, 0.0
      %v1872 = vmax.f32 %v1806, 0.0
      %v1873 = vmax.f32 %v1808, 0.0
      %v1874 = vld [vmem:[%s8] sm:$0xff]
      %v1875 = vld [vmem:[%s8 + $0x8] sm:$0xff]
      %v1876 = vld [vmem:[%s8 + $0x10] sm:$0xff]
      %v1877 = vld [vmem:[%s8 + $0x18] sm:$0xff]
      %v1878 = vld [vmem:[%s8 + $0x20] sm:$0xff]
      %v1879 = vld [vmem:[%s8 + $0x28] sm:$0xff]
      %v1880 = vld [vmem:[%s8 + $0x30] sm:$0xff]
      %v1881 = vld [vmem:[%s8 + $0x38] sm:$0xff]
      %v1882 = vld [vmem:[%s8 + $0x40] sm:$0xff]
      %v1883 = vld [vmem:[%s8 + $0x48] sm:$0xff]
      %v1884 = vld [vmem:[%s8 + $0x50] sm:$0xff]
      %v1885 = vld [vmem:[%s8 + $0x58] sm:$0xff]
      %v1886 = vld [vmem:[%s8 + $0x60] sm:$0xff]
      %v1887 = vld [vmem:[%s8 + $0x68] sm:$0xff]
      %v1888 = vld [vmem:[%s8 + $0x70] sm:$0xff]
      %v1889 = vld [vmem:[%s8 + $0x78] sm:$0xff]
      %v1890 = vld [vmem:[%s8 + $0x80] sm:$0xff]
      %v1891 = vld [vmem:[%s8 + $0x88] sm:$0xff]
      %v1892 = vld [vmem:[%s8 + $0x90] sm:$0xff]
      %v1893 = vld [vmem:[%s8 + $0x98] sm:$0xff]
      %v1894 = vld [vmem:[%s8 + $0xa0] sm:$0xff]
      %v1895 = vld [vmem:[%s8 + $0xa8] sm:$0xff]
      %v1896 = vld [vmem:[%s8 + $0xb0] sm:$0xff]
      %v1897 = vld [vmem:[%s8 + $0xb8] sm:$0xff]
      %v1898 = vld [vmem:[%s8 + $0xc0] sm:$0xff]
      %v1899 = vld [vmem:[%s8 + $0xc8] sm:$0xff]
      %v1900 = vld [vmem:[%s8 + $0xd0] sm:$0xff]
      %v1901 = vld [vmem:[%s8 + $0xd8] sm:$0xff]
      %v1902 = vld [vmem:[%s8 + $0xe0] sm:$0xff]
      %v1903 = vld [vmem:[%s8 + $0xe8] sm:$0xff]
      %v1904 = vld [vmem:[%s8 + $0xf0] sm:$0xff]
      %v1905 = vld [vmem:[%s8 + $0xf8] sm:$0xff]
      %v1906 = vld [vmem:[%s8 + $0x100] sm:$0xff]
      %v1907 = vld [vmem:[%s8 + $0x108] sm:$0xff]
      %v1908 = vld [vmem:[%s8 + $0x110] sm:$0xff]
      %v1909 = vld [vmem:[%s8 + $0x118] sm:$0xff]
      %v1910 = vld [vmem:[%s8 + $0x120] sm:$0xff]
      %v1911 = vld [vmem:[%s8 + $0x128] sm:$0xff]
      %v1912 = vld [vmem:[%s8 + $0x130] sm:$0xff]
      %v1913 = vld [vmem:[%s8 + $0x138] sm:$0xff]
      %v1914 = vld [vmem:[%s8 + $0x140] sm:$0xff]
      %v1915 = vld [vmem:[%s8 + $0x148] sm:$0xff]
      %v1916 = vld [vmem:[%s8 + $0x150] sm:$0xff]
      %v1917 = vld [vmem:[%s8 + $0x158] sm:$0xff]
      %v1918 = vld [vmem:[%s8 + $0x160] sm:$0xff]
      %v1919 = vld [vmem:[%s8 + $0x168] sm:$0xff]
      %v1920 = vld [vmem:[%s8 + $0x170] sm:$0xff]
      %v1921 = vld [vmem:[%s8 + $0x178] sm:$0xff]
      %v1922 = vld [vmem:[%s8 + $0x180] sm:$0xff]
      %v1923 = vld [vmem:[%s8 + $0x188] sm:$0xff]
      %v1924 = vld [vmem:[%s8 + $0x190] sm:$0xff]
      %v1925 = vld [vmem:[%s8 + $0x198] sm:$0xff]
      %v1926 = vld [vmem:[%s8 + $0x1a0] sm:$0xff]
      %v1927 = vld [vmem:[%s8 + $0x1a8] sm:$0xff]
      %v1928 = vld [vmem:[%s8 + $0x1b0] sm:$0xff]
      %v1929 = vld [vmem:[%s8 + $0x1b8] sm:$0xff]
      %v1930 = vld [vmem:[%s8 + $0x1c0] sm:$0xff]
      %v1931 = vld [vmem:[%s8 + $0x1c8] sm:$0xff]
      %v1932 = vld [vmem:[%s8 + $0x1d0] sm:$0xff]
      %v1933 = vld [vmem:[%s8 + $0x1d8] sm:$0xff]
      %v1934 = vld [vmem:[%s8 + $0x1e0] sm:$0xff]
      %v1935 = vld [vmem:[%s8 + $0x1e8] sm:$0xff]
      %v1936 = vld [vmem:[%s8 + $0x1f0] sm:$0xff]
      %v1937 = vld [vmem:[%s8 + $0x1f8] sm:$0xff]
      %v1938 = vld [vmem:[%s8 + $0x200] sm:$0xff]
      %v1939 = vld [vmem:[%s8 + $0x208] sm:$0xff]
      %v1940 = vld [vmem:[%s8 + $0x210] sm:$0xff]
      %v1941 = vld [vmem:[%s8 + $0x218] sm:$0xff]
      %v1942 = vld [vmem:[%s8 + $0x220] sm:$0xff]
      %v1943 = vld [vmem:[%s8 + $0x228] sm:$0xff]
      %v1944 = vld [vmem:[%s8 + $0x230] sm:$0xff]
      %v1945 = vld [vmem:[%s8 + $0x238] sm:$0xff]
      %v1946 = vld [vmem:[%s8 + $0x240] sm:$0xff]
      %v1947 = vld [vmem:[%s8 + $0x248] sm:$0xff]
      %v1948 = vld [vmem:[%s8 + $0x250] sm:$0xff]
      %v1949 = vld [vmem:[%s8 + $0x258] sm:$0xff]
      %v1950 = vld [vmem:[%s8 + $0x260] sm:$0xff]
      %v1951 = vld [vmem:[%s8 + $0x268] sm:$0xff]
      %v1952 = vld [vmem:[%s8 + $0x270] sm:$0xff]
      %v1953 = vld [vmem:[%s8 + $0x278] sm:$0xff]
      %v1954 = vld [vmem:[%s8 + $0x280] sm:$0xff]
      %v1955 = vld [vmem:[%s8 + $0x288] sm:$0xff]
      %v1956 = vld [vmem:[%s8 + $0x290] sm:$0xff]
      %v1957 = vld [vmem:[%s8 + $0x298] sm:$0xff]
      %v1958 = vld [vmem:[%s8 + $0x2a0] sm:$0xff]
      %v1959 = vld [vmem:[%s8 + $0x2a8] sm:$0xff]
      %v1960 = vld [vmem:[%s8 + $0x2b0] sm:$0xff]
      %v1961 = vld [vmem:[%s8 + $0x2b8] sm:$0xff]
      %v1962 = vld [vmem:[%s8 + $0x2c0] sm:$0xff]
      %v1963 = vld [vmem:[%s8 + $0x2c8] sm:$0xff]
      %v1964 = vld [vmem:[%s8 + $0x2d0] sm:$0xff]
      %v1965 = vld [vmem:[%s8 + $0x2d8] sm:$0xff]
      %v1966 = vld [vmem:[%s8 + $0x2e0] sm:$0xff]
      %v1967 = vld [vmem:[%s8 + $0x2e8] sm:$0xff]
      %v1968 = vld [vmem:[%s8 + $0x2f0] sm:$0xff]
      %v1969 = vld [vmem:[%s8 + $0x2f8] sm:$0xff]
      %v1970 = vld [vmem:[%s8 + $0x300] sm:$0xff]
      %v1971 = vld [vmem:[%s8 + $0x308] sm:$0xff]
      %v1972 = vld [vmem:[%s8 + $0x310] sm:$0xff]
      %v1973 = vld [vmem:[%s8 + $0x318] sm:$0xff]
      %v1974 = vld [vmem:[%s8 + $0x320] sm:$0xff]
      %v1975 = vld [vmem:[%s8 + $0x328] sm:$0xff]
      %v1976 = vld [vmem:[%s8 + $0x330] sm:$0xff]
      %v1977 = vld [vmem:[%s8 + $0x338] sm:$0xff]
      %v1978 = vld [vmem:[%s8 + $0x340] sm:$0xff]
      %v1979 = vld [vmem:[%s8 + $0x348] sm:$0xff]
      %v1980 = vld [vmem:[%s8 + $0x350] sm:$0xff]
      %v1981 = vld [vmem:[%s8 + $0x358] sm:$0xff]
      %v1982 = vld [vmem:[%s8 + $0x360] sm:$0xff]
      %v1983 = vld [vmem:[%s8 + $0x368] sm:$0xff]
      %v1984 = vld [vmem:[%s8 + $0x370] sm:$0xff]
      %v1985 = vld [vmem:[%s8 + $0x378] sm:$0xff]
      %v1986 = vld [vmem:[%s8 + $0x380] sm:$0xff]
      %v1987 = vld [vmem:[%s8 + $0x388] sm:$0xff]
      %v1988 = vld [vmem:[%s8 + $0x390] sm:$0xff]
      %v1989 = vld [vmem:[%s8 + $0x398] sm:$0xff]
      %v1990 = vld [vmem:[%s8 + $0x3a0] sm:$0xff]
      %v1991 = vld [vmem:[%s8 + $0x3a8] sm:$0xff]
      %v1992 = vld [vmem:[%s8 + $0x3b0] sm:$0xff]
      %v1993 = vld [vmem:[%s8 + $0x3b8] sm:$0xff]
      %v1994 = vld [vmem:[%s8 + $0x3c0] sm:$0xff]
      %v1995 = vld [vmem:[%s8 + $0x3c8] sm:$0xff]
      %v1996 = vld [vmem:[%s8 + $0x3d0] sm:$0xff]
      %v1997 = vld [vmem:[%s8 + $0x3d8] sm:$0xff]
      %v1998 = vld [vmem:[%s8 + $0x3e0] sm:$0xff]
      %v1999 = vld [vmem:[%s8 + $0x3e8] sm:$0xff]
      %v2000 = vld [vmem:[%s8 + $0x3f0] sm:$0xff]
      %v2001 = vld [vmem:[%s8 + $0x3f8] sm:$0xff]
      %v2002 = vpack.c.bf16 %v1812, %v1810
      %v2003 = vpack.c.bf16 %v1813, %v1811
      %v2004 = vpack.c.bf16 %v1816, %v1814
      %v2005 = vpack.c.bf16 %v1817, %v1815
      %v2006 = vpack.c.bf16 %v1820, %v1818
      %v2007 = vpack.c.bf16 %v1821, %v1819
      %v2008 = vpack.c.bf16 %v1824, %v1822
      %v2009 = vpack.c.bf16 %v1825, %v1823
      %v2010 = vpack.c.bf16 %v1828, %v1826
      %v2011 = vpack.c.bf16 %v1829, %v1827
      %v2012 = vpack.c.bf16 %v1832, %v1830
      %v2013 = vpack.c.bf16 %v1833, %v1831
      %v2014 = vpack.c.bf16 %v1836, %v1834
      %v2015 = vpack.c.bf16 %v1837, %v1835
      %v2016 = vpack.c.bf16 %v1840, %v1838
      %v2017 = vpack.c.bf16 %v1841, %v1839
      %v2018 = vpack.c.bf16 %v1844, %v1842
      %v2019 = vpack.c.bf16 %v1845, %v1843
      %v2020 = vpack.c.bf16 %v1848, %v1846
      %v2021 = vpack.c.bf16 %v1849, %v1847
      %v2022 = vpack.c.bf16 %v1852, %v1850
      %v2023 = vpack.c.bf16 %v1853, %v1851
      %v2024 = vpack.c.bf16 %v1856, %v1854
      %v2025 = vpack.c.bf16 %v1857, %v1855
      %v2026 = vpack.c.bf16 %v1860, %v1858
      %v2027 = vpack.c.bf16 %v1861, %v1859
      %v2028 = vpack.c.bf16 %v1864, %v1862
      %v2029 = vpack.c.bf16 %v1865, %v1863
      %v2030 = vpack.c.bf16 %v1868, %v1866
      %v2031 = vpack.c.bf16 %v1869, %v1867
      %v2032 = vpack.c.bf16 %v1872, %v1870
      %v2033 = vpack.c.bf16 %v1873, %v1871
      %v2034 = vld [vmem:[%s9] sm:$0xff]
      %v2035 = vld [vmem:[%s9 + $0x8] sm:$0xff]
      %v2036 = vld [vmem:[%s9 + $0x10] sm:$0xff]
      %v2037 = vld [vmem:[%s9 + $0x18] sm:$0xff]
      %v2038 = vld [vmem:[%s9 + $0x20] sm:$0xff]
      %v2039 = vld [vmem:[%s9 + $0x28] sm:$0xff]
      %v2040 = vld [vmem:[%s9 + $0x30] sm:$0xff]
      %v2041 = vld [vmem:[%s9 + $0x38] sm:$0xff]
      %v2042 = vld [vmem:[%s9 + $0x40] sm:$0xff]
      %v2043 = vld [vmem:[%s9 + $0x48] sm:$0xff]
      %v2044 = vld [vmem:[%s9 + $0x50] sm:$0xff]
      %v2045 = vld [vmem:[%s9 + $0x58] sm:$0xff]
      %v2046 = vld [vmem:[%s9 + $0x60] sm:$0xff]
      %v2047 = vld [vmem:[%s9 + $0x68] sm:$0xff]
      %v2048 = vld [vmem:[%s9 + $0x70] sm:$0xff]
      %v2049 = vld [vmem:[%s9 + $0x78] sm:$0xff]
      %v2050 = vld [vmem:[%s9 + $0x80] sm:$0xff]
      %v2051 = vld [vmem:[%s9 + $0x88] sm:$0xff]
      %v2052 = vld [vmem:[%s9 + $0x90] sm:$0xff]
      %v2053 = vld [vmem:[%s9 + $0x98] sm:$0xff]
      %v2054 = vld [vmem:[%s9 + $0xa0] sm:$0xff]
      %v2055 = vld [vmem:[%s9 + $0xa8] sm:$0xff]
      %v2056 = vld [vmem:[%s9 + $0xb0] sm:$0xff]
      %v2057 = vld [vmem:[%s9 + $0xb8] sm:$0xff]
      %v2058 = vld [vmem:[%s9 + $0xc0] sm:$0xff]
      %v2059 = vld [vmem:[%s9 + $0xc8] sm:$0xff]
      %v2060 = vld [vmem:[%s9 + $0xd0] sm:$0xff]
      %v2061 = vld [vmem:[%s9 + $0xd8] sm:$0xff]
      %v2062 = vld [vmem:[%s9 + $0xe0] sm:$0xff]
      %v2063 = vld [vmem:[%s9 + $0xe8] sm:$0xff]
      %v2064 = vld [vmem:[%s9 + $0xf0] sm:$0xff]
      %v2065 = vld [vmem:[%s9 + $0xf8] sm:$0xff]
      %v2066 = vld [vmem:[%s9 + $0x100] sm:$0xff]
      %v2067 = vld [vmem:[%s9 + $0x108] sm:$0xff]
      %v2068 = vld [vmem:[%s9 + $0x110] sm:$0xff]
      %v2069 = vld [vmem:[%s9 + $0x118] sm:$0xff]
      %v2070 = vld [vmem:[%s9 + $0x120] sm:$0xff]
      %v2071 = vld [vmem:[%s9 + $0x128] sm:$0xff]
      %v2072 = vld [vmem:[%s9 + $0x130] sm:$0xff]
      %v2073 = vld [vmem:[%s9 + $0x138] sm:$0xff]
      %v2074 = vld [vmem:[%s9 + $0x140] sm:$0xff]
      %v2075 = vld [vmem:[%s9 + $0x148] sm:$0xff]
      %v2076 = vld [vmem:[%s9 + $0x150] sm:$0xff]
      %v2077 = vld [vmem:[%s9 + $0x158] sm:$0xff]
      %v2078 = vld [vmem:[%s9 + $0x160] sm:$0xff]
      %v2079 = vld [vmem:[%s9 + $0x168] sm:$0xff]
      %v2080 = vld [vmem:[%s9 + $0x170] sm:$0xff]
      %v2081 = vld [vmem:[%s9 + $0x178] sm:$0xff]
      %v2082 = vld [vmem:[%s9 + $0x180] sm:$0xff]
      %v2083 = vld [vmem:[%s9 + $0x188] sm:$0xff]
      %v2084 = vld [vmem:[%s9 + $0x190] sm:$0xff]
      %v2085 = vld [vmem:[%s9 + $0x198] sm:$0xff]
      %v2086 = vld [vmem:[%s9 + $0x1a0] sm:$0xff]
      %v2087 = vld [vmem:[%s9 + $0x1a8] sm:$0xff]
      %v2088 = vld [vmem:[%s9 + $0x1b0] sm:$0xff]
      %v2089 = vld [vmem:[%s9 + $0x1b8] sm:$0xff]
      %v2090 = vld [vmem:[%s9 + $0x1c0] sm:$0xff]
      %v2091 = vld [vmem:[%s9 + $0x1c8] sm:$0xff]
      %v2092 = vld [vmem:[%s9 + $0x1d0] sm:$0xff]
      %v2093 = vld [vmem:[%s9 + $0x1d8] sm:$0xff]
      %v2094 = vld [vmem:[%s9 + $0x1e0] sm:$0xff]
      %v2095 = vld [vmem:[%s9 + $0x1e8] sm:$0xff]
      %v2096 = vld [vmem:[%s9 + $0x1f0] sm:$0xff]
      %v2097 = vld [vmem:[%s9 + $0x1f8] sm:$0xff]
      %v2098 = vld [vmem:[%s9 + $0x200] sm:$0xff]
      %v2099 = vld [vmem:[%s9 + $0x208] sm:$0xff]
      %v2100 = vld [vmem:[%s9 + $0x210] sm:$0xff]
      %v2101 = vld [vmem:[%s9 + $0x218] sm:$0xff]
      %v2102 = vld [vmem:[%s9 + $0x220] sm:$0xff]
      %v2103 = vld [vmem:[%s9 + $0x228] sm:$0xff]
      %v2104 = vld [vmem:[%s9 + $0x230] sm:$0xff]
      %v2105 = vld [vmem:[%s9 + $0x238] sm:$0xff]
      %v2106 = vld [vmem:[%s9 + $0x240] sm:$0xff]
      %v2107 = vld [vmem:[%s9 + $0x248] sm:$0xff]
      %v2108 = vld [vmem:[%s9 + $0x250] sm:$0xff]
      %v2109 = vld [vmem:[%s9 + $0x258] sm:$0xff]
      %v2110 = vld [vmem:[%s9 + $0x260] sm:$0xff]
      %v2111 = vld [vmem:[%s9 + $0x268] sm:$0xff]
      %v2112 = vld [vmem:[%s9 + $0x270] sm:$0xff]
      %v2113 = vld [vmem:[%s9 + $0x278] sm:$0xff]
      %v2114 = vld [vmem:[%s9 + $0x280] sm:$0xff]
      %v2115 = vld [vmem:[%s9 + $0x288] sm:$0xff]
      %v2116 = vld [vmem:[%s9 + $0x290] sm:$0xff]
      %v2117 = vld [vmem:[%s9 + $0x298] sm:$0xff]
      %v2118 = vld [vmem:[%s9 + $0x2a0] sm:$0xff]
      %v2119 = vld [vmem:[%s9 + $0x2a8] sm:$0xff]
      %v2120 = vld [vmem:[%s9 + $0x2b0] sm:$0xff]
      %v2121 = vld [vmem:[%s9 + $0x2b8] sm:$0xff]
      %v2122 = vld [vmem:[%s9 + $0x2c0] sm:$0xff]
      %v2123 = vld [vmem:[%s9 + $0x2c8] sm:$0xff]
      %v2124 = vld [vmem:[%s9 + $0x2d0] sm:$0xff]
      %v2125 = vld [vmem:[%s9 + $0x2d8] sm:$0xff]
      %v2126 = vld [vmem:[%s9 + $0x2e0] sm:$0xff]
      %v2127 = vld [vmem:[%s9 + $0x2e8] sm:$0xff]
      %v2128 = vld [vmem:[%s9 + $0x2f0] sm:$0xff]
      %v2129 = vld [vmem:[%s9 + $0x2f8] sm:$0xff]
      %v2130 = vld [vmem:[%s9 + $0x300] sm:$0xff]
      %v2131 = vld [vmem:[%s9 + $0x308] sm:$0xff]
      %v2132 = vld [vmem:[%s9 + $0x310] sm:$0xff]
      %v2133 = vld [vmem:[%s9 + $0x318] sm:$0xff]
      %v2134 = vld [vmem:[%s9 + $0x320] sm:$0xff]
      %v2135 = vld [vmem:[%s9 + $0x328] sm:$0xff]
      %v2136 = vld [vmem:[%s9 + $0x330] sm:$0xff]
      %v2137 = vld [vmem:[%s9 + $0x338] sm:$0xff]
      %v2138 = vld [vmem:[%s9 + $0x340] sm:$0xff]
      %v2139 = vld [vmem:[%s9 + $0x348] sm:$0xff]
      %v2140 = vld [vmem:[%s9 + $0x350] sm:$0xff]
      %v2141 = vld [vmem:[%s9 + $0x358] sm:$0xff]
      %v2142 = vld [vmem:[%s9 + $0x360] sm:$0xff]
      %v2143 = vld [vmem:[%s9 + $0x368] sm:$0xff]
      %v2144 = vld [vmem:[%s9 + $0x370] sm:$0xff]
      %v2145 = vld [vmem:[%s9 + $0x378] sm:$0xff]
      %v2146 = vld [vmem:[%s9 + $0x380] sm:$0xff]
      %v2147 = vld [vmem:[%s9 + $0x388] sm:$0xff]
      %v2148 = vld [vmem:[%s9 + $0x390] sm:$0xff]
      %v2149 = vld [vmem:[%s9 + $0x398] sm:$0xff]
      %v2150 = vld [vmem:[%s9 + $0x3a0] sm:$0xff]
      %v2151 = vld [vmem:[%s9 + $0x3a8] sm:$0xff]
      %v2152 = vld [vmem:[%s9 + $0x3b0] sm:$0xff]
      %v2153 = vld [vmem:[%s9 + $0x3b8] sm:$0xff]
      %v2154 = vld [vmem:[%s9 + $0x3c0] sm:$0xff]
      %v2155 = vld [vmem:[%s9 + $0x3c8] sm:$0xff]
      %v2156 = vld [vmem:[%s9 + $0x3d0] sm:$0xff]
      %v2157 = vld [vmem:[%s9 + $0x3d8] sm:$0xff]
      %v2158 = vld [vmem:[%s9 + $0x3e0] sm:$0xff]
      %v2159 = vld [vmem:[%s9 + $0x3e8] sm:$0xff]
      %v2160 = vld [vmem:[%s9 + $0x3f0] sm:$0xff]
      %v2161 = vld [vmem:[%s9 + $0x3f8] sm:$0xff]
      %2163 = vset.pattern.permute.xlu0 0
      %2164 = vperm.xlu0 %2163, %v2034
      %v2165 = vpop.permute.xlu0 %2164
      %2168 = vset.pattern.permute.xlu0 0
      %2169 = vperm.xlu0 %2168, %v2035
      %v2170 = vpop.permute.xlu0 %2169
      %2173 = vset.pattern.permute.xlu0 0
      %2174 = vperm.xlu0 %2173, %v2036
      %v2175 = vpop.permute.xlu0 %2174
      %2178 = vset.pattern.permute.xlu0 0
      %2179 = vperm.xlu0 %2178, %v2037
      %v2180 = vpop.permute.xlu0 %2179
      %2183 = vset.pattern.permute.xlu0 0
      %2184 = vperm.xlu0 %2183, %v2038
      %v2185 = vpop.permute.xlu0 %2184
      %2188 = vset.pattern.permute.xlu0 0
      %2189 = vperm.xlu0 %2188, %v2039
      %v2190 = vpop.permute.xlu0 %2189
      %2193 = vset.pattern.permute.xlu0 0
      %2194 = vperm.xlu0 %2193, %v2040
      %v2195 = vpop.permute.xlu0 %2194
      %2198 = vset.pattern.permute.xlu0 0
      %2199 = vperm.xlu0 %2198, %v2041
      %v2200 = vpop.permute.xlu0 %2199
      %2203 = vset.pattern.permute.xlu0 0
      %2204 = vperm.xlu0 %2203, %v2042
      %v2205 = vpop.permute.xlu0 %2204
      %2208 = vset.pattern.permute.xlu0 0
      %2209 = vperm.xlu0 %2208, %v2043
      %v2210 = vpop.permute.xlu0 %2209
      %2213 = vset.pattern.permute.xlu0 0
      %2214 = vperm.xlu0 %2213, %v2044
      %v2215 = vpop.permute.xlu0 %2214
      %2218 = vset.pattern.permute.xlu0 0
      %2219 = vperm.xlu0 %2218, %v2045
      %v2220 = vpop.permute.xlu0 %2219
      %2223 = vset.pattern.permute.xlu0 0
      %2224 = vperm.xlu0 %2223, %v2046
      %v2225 = vpop.permute.xlu0 %2224
      %2228 = vset.pattern.permute.xlu0 0
      %2229 = vperm.xlu0 %2228, %v2047
      %v2230 = vpop.permute.xlu0 %2229
      %2233 = vset.pattern.permute.xlu0 0
      %2234 = vperm.xlu0 %2233, %v2048
      %v2235 = vpop.permute.xlu0 %2234
      %2238 = vset.pattern.permute.xlu0 0
      %2239 = vperm.xlu0 %2238, %v2049
      %v2240 = vpop.permute.xlu0 %2239
      %2243 = vset.pattern.permute.xlu0 0
      %2244 = vperm.xlu0 %2243, %v2050
      %v2245 = vpop.permute.xlu0 %2244
      %2248 = vset.pattern.permute.xlu0 0
      %2249 = vperm.xlu0 %2248, %v2051
      %v2250 = vpop.permute.xlu0 %2249
      %2253 = vset.pattern.permute.xlu0 0
      %2254 = vperm.xlu0 %2253, %v2052
      %v2255 = vpop.permute.xlu0 %2254
      %2258 = vset.pattern.permute.xlu0 0
      %2259 = vperm.xlu0 %2258, %v2053
      %v2260 = vpop.permute.xlu0 %2259
      %2263 = vset.pattern.permute.xlu0 0
      %2264 = vperm.xlu0 %2263, %v2054
      %v2265 = vpop.permute.xlu0 %2264
      %2268 = vset.pattern.permute.xlu0 0
      %2269 = vperm.xlu0 %2268, %v2055
      %v2270 = vpop.permute.xlu0 %2269
      %2273 = vset.pattern.permute.xlu0 0
      %2274 = vperm.xlu0 %2273, %v2056
      %v2275 = vpop.permute.xlu0 %2274
      %2278 = vset.pattern.permute.xlu0 0
      %2279 = vperm.xlu0 %2278, %v2057
      %v2280 = vpop.permute.xlu0 %2279
      %2283 = vset.pattern.permute.xlu0 0
      %2284 = vperm.xlu0 %2283, %v2058
      %v2285 = vpop.permute.xlu0 %2284
      %2288 = vset.pattern.permute.xlu0 0
      %2289 = vperm.xlu0 %2288, %v2059
      %v2290 = vpop.permute.xlu0 %2289
      %2293 = vset.pattern.permute.xlu0 0
      %2294 = vperm.xlu0 %2293, %v2060
      %v2295 = vpop.permute.xlu0 %2294
      %2298 = vset.pattern.permute.xlu0 0
      %2299 = vperm.xlu0 %2298, %v2061
      %v2300 = vpop.permute.xlu0 %2299
      %2303 = vset.pattern.permute.xlu0 0
      %2304 = vperm.xlu0 %2303, %v2062
      %v2305 = vpop.permute.xlu0 %2304
      %2308 = vset.pattern.permute.xlu0 0
      %2309 = vperm.xlu0 %2308, %v2063
      %v2310 = vpop.permute.xlu0 %2309
      %2313 = vset.pattern.permute.xlu0 0
      %2314 = vperm.xlu0 %2313, %v2064
      %v2315 = vpop.permute.xlu0 %2314
      %2318 = vset.pattern.permute.xlu0 0
      %2319 = vperm.xlu0 %2318, %v2065
      %v2320 = vpop.permute.xlu0 %2319
      %2323 = vset.pattern.permute.xlu0 0
      %2324 = vperm.xlu0 %2323, %v2066
      %v2325 = vpop.permute.xlu0 %2324
      %2328 = vset.pattern.permute.xlu0 0
      %2329 = vperm.xlu0 %2328, %v2067
      %v2330 = vpop.permute.xlu0 %2329
      %2333 = vset.pattern.permute.xlu0 0
      %2334 = vperm.xlu0 %2333, %v2068
      %v2335 = vpop.permute.xlu0 %2334
      %2338 = vset.pattern.permute.xlu0 0
      %2339 = vperm.xlu0 %2338, %v2069
      %v2340 = vpop.permute.xlu0 %2339
      %2343 = vset.pattern.permute.xlu0 0
      %2344 = vperm.xlu0 %2343, %v2070
      %v2345 = vpop.permute.xlu0 %2344
      %2348 = vset.pattern.permute.xlu0 0
      %2349 = vperm.xlu0 %2348, %v2071
      %v2350 = vpop.permute.xlu0 %2349
      %2353 = vset.pattern.permute.xlu0 0
      %2354 = vperm.xlu0 %2353, %v2072
      %v2355 = vpop.permute.xlu0 %2354
      %2358 = vset.pattern.permute.xlu0 0
      %2359 = vperm.xlu0 %2358, %v2073
      %v2360 = vpop.permute.xlu0 %2359
      %2363 = vset.pattern.permute.xlu0 0
      %2364 = vperm.xlu0 %2363, %v2074
      %v2365 = vpop.permute.xlu0 %2364
      %2368 = vset.pattern.permute.xlu0 0
      %2369 = vperm.xlu0 %2368, %v2075
      %v2370 = vpop.permute.xlu0 %2369
      %2373 = vset.pattern.permute.xlu0 0
      %2374 = vperm.xlu0 %2373, %v2076
      %v2375 = vpop.permute.xlu0 %2374
      %2378 = vset.pattern.permute.xlu0 0
      %2379 = vperm.xlu0 %2378, %v2077
      %v2380 = vpop.permute.xlu0 %2379
      %2383 = vset.pattern.permute.xlu0 0
      %2384 = vperm.xlu0 %2383, %v2078
      %v2385 = vpop.permute.xlu0 %2384
      %2388 = vset.pattern.permute.xlu0 0
      %2389 = vperm.xlu0 %2388, %v2079
      %v2390 = vpop.permute.xlu0 %2389
      %2393 = vset.pattern.permute.xlu0 0
      %2394 = vperm.xlu0 %2393, %v2080
      %v2395 = vpop.permute.xlu0 %2394
      %2398 = vset.pattern.permute.xlu0 0
      %2399 = vperm.xlu0 %2398, %v2081
      %v2400 = vpop.permute.xlu0 %2399
      %2403 = vset.pattern.permute.xlu0 0
      %2404 = vperm.xlu0 %2403, %v2082
      %v2405 = vpop.permute.xlu0 %2404
      %2408 = vset.pattern.permute.xlu0 0
      %2409 = vperm.xlu0 %2408, %v2083
      %v2410 = vpop.permute.xlu0 %2409
      %2413 = vset.pattern.permute.xlu0 0
      %2414 = vperm.xlu0 %2413, %v2084
      %v2415 = vpop.permute.xlu0 %2414
      %2418 = vset.pattern.permute.xlu0 0
      %2419 = vperm.xlu0 %2418, %v2085
      %v2420 = vpop.permute.xlu0 %2419
      %2423 = vset.pattern.permute.xlu0 0
      %2424 = vperm.xlu0 %2423, %v2086
      %v2425 = vpop.permute.xlu0 %2424
      %2428 = vset.pattern.permute.xlu0 0
      %2429 = vperm.xlu0 %2428, %v2087
      %v2430 = vpop.permute.xlu0 %2429
      %2433 = vset.pattern.permute.xlu0 0
      %2434 = vperm.xlu0 %2433, %v2088
      %v2435 = vpop.permute.xlu0 %2434
      %2438 = vset.pattern.permute.xlu0 0
      %2439 = vperm.xlu0 %2438, %v2089
      %v2440 = vpop.permute.xlu0 %2439
      %2443 = vset.pattern.permute.xlu0 0
      %2444 = vperm.xlu0 %2443, %v2090
      %v2445 = vpop.permute.xlu0 %2444
      %2448 = vset.pattern.permute.xlu0 0
      %2449 = vperm.xlu0 %2448, %v2091
      %v2450 = vpop.permute.xlu0 %2449
      %2453 = vset.pattern.permute.xlu0 0
      %2454 = vperm.xlu0 %2453, %v2092
      %v2455 = vpop.permute.xlu0 %2454
      %2458 = vset.pattern.permute.xlu0 0
      %2459 = vperm.xlu0 %2458, %v2093
      %v2460 = vpop.permute.xlu0 %2459
      %2463 = vset.pattern.permute.xlu0 0
      %2464 = vperm.xlu0 %2463, %v2094
      %v2465 = vpop.permute.xlu0 %2464
      %2468 = vset.pattern.permute.xlu0 0
      %2469 = vperm.xlu0 %2468, %v2095
      %v2470 = vpop.permute.xlu0 %2469
      %2473 = vset.pattern.permute.xlu0 0
      %2474 = vperm.xlu0 %2473, %v2096
      %v2475 = vpop.permute.xlu0 %2474
      %2478 = vset.pattern.permute.xlu0 0
      %2479 = vperm.xlu0 %2478, %v2097
      %v2480 = vpop.permute.xlu0 %2479
      %2483 = vset.pattern.permute.xlu0 0
      %2484 = vperm.xlu0 %2483, %v2098
      %v2485 = vpop.permute.xlu0 %2484
      %2488 = vset.pattern.permute.xlu0 0
      %2489 = vperm.xlu0 %2488, %v2099
      %v2490 = vpop.permute.xlu0 %2489
      %2493 = vset.pattern.permute.xlu0 0
      %2494 = vperm.xlu0 %2493, %v2100
      %v2495 = vpop.permute.xlu0 %2494
      %2498 = vset.pattern.permute.xlu0 0
      %2499 = vperm.xlu0 %2498, %v2101
      %v2500 = vpop.permute.xlu0 %2499
      %2503 = vset.pattern.permute.xlu0 0
      %2504 = vperm.xlu0 %2503, %v2102
      %v2505 = vpop.permute.xlu0 %2504
      %2508 = vset.pattern.permute.xlu0 0
      %2509 = vperm.xlu0 %2508, %v2103
      %v2510 = vpop.permute.xlu0 %2509
      %2513 = vset.pattern.permute.xlu0 0
      %2514 = vperm.xlu0 %2513, %v2104
      %v2515 = vpop.permute.xlu0 %2514
      %2518 = vset.pattern.permute.xlu0 0
      %2519 = vperm.xlu0 %2518, %v2105
      %v2520 = vpop.permute.xlu0 %2519
      %2523 = vset.pattern.permute.xlu0 0
      %2524 = vperm.xlu0 %2523, %v2106
      %v2525 = vpop.permute.xlu0 %2524
      %2528 = vset.pattern.permute.xlu0 0
      %2529 = vperm.xlu0 %2528, %v2107
      %v2530 = vpop.permute.xlu0 %2529
      %2533 = vset.pattern.permute.xlu0 0
      %2534 = vperm.xlu0 %2533, %v2108
      %v2535 = vpop.permute.xlu0 %2534
      %2538 = vset.pattern.permute.xlu0 0
      %2539 = vperm.xlu0 %2538, %v2109
      %v2540 = vpop.permute.xlu0 %2539
      %2543 = vset.pattern.permute.xlu0 0
      %2544 = vperm.xlu0 %2543, %v2110
      %v2545 = vpop.permute.xlu0 %2544
      %2548 = vset.pattern.permute.xlu0 0
      %2549 = vperm.xlu0 %2548, %v2111
      %v2550 = vpop.permute.xlu0 %2549
      %2553 = vset.pattern.permute.xlu0 0
      %2554 = vperm.xlu0 %2553, %v2112
      %v2555 = vpop.permute.xlu0 %2554
      %2558 = vset.pattern.permute.xlu0 0
      %2559 = vperm.xlu0 %2558, %v2113
      %v2560 = vpop.permute.xlu0 %2559
      %2563 = vset.pattern.permute.xlu0 0
      %2564 = vperm.xlu0 %2563, %v2114
      %v2565 = vpop.permute.xlu0 %2564
      %2568 = vset.pattern.permute.xlu0 0
      %2569 = vperm.xlu0 %2568, %v2115
      %v2570 = vpop.permute.xlu0 %2569
      %2573 = vset.pattern.permute.xlu0 0
      %2574 = vperm.xlu0 %2573, %v2116
      %v2575 = vpop.permute.xlu0 %2574
      %2578 = vset.pattern.permute.xlu0 0
      %2579 = vperm.xlu0 %2578, %v2117
      %v2580 = vpop.permute.xlu0 %2579
      %2583 = vset.pattern.permute.xlu0 0
      %2584 = vperm.xlu0 %2583, %v2118
      %v2585 = vpop.permute.xlu0 %2584
      %2588 = vset.pattern.permute.xlu0 0
      %2589 = vperm.xlu0 %2588, %v2119
      %v2590 = vpop.permute.xlu0 %2589
      %2593 = vset.pattern.permute.xlu0 0
      %2594 = vperm.xlu0 %2593, %v2120
      %v2595 = vpop.permute.xlu0 %2594
      %2598 = vset.pattern.permute.xlu0 0
      %2599 = vperm.xlu0 %2598, %v2121
      %v2600 = vpop.permute.xlu0 %2599
      %2603 = vset.pattern.permute.xlu0 0
      %2604 = vperm.xlu0 %2603, %v2122
      %v2605 = vpop.permute.xlu0 %2604
      %2608 = vset.pattern.permute.xlu0 0
      %2609 = vperm.xlu0 %2608, %v2123
      %v2610 = vpop.permute.xlu0 %2609
      %2613 = vset.pattern.permute.xlu0 0
      %2614 = vperm.xlu0 %2613, %v2124
      %v2615 = vpop.permute.xlu0 %2614
      %2618 = vset.pattern.permute.xlu0 0
      %2619 = vperm.xlu0 %2618, %v2125
      %v2620 = vpop.permute.xlu0 %2619
      %2623 = vset.pattern.permute.xlu0 0
      %2624 = vperm.xlu0 %2623, %v2126
      %v2625 = vpop.permute.xlu0 %2624
      %2628 = vset.pattern.permute.xlu0 0
      %2629 = vperm.xlu0 %2628, %v2127
      %v2630 = vpop.permute.xlu0 %2629
      %2633 = vset.pattern.permute.xlu0 0
      %2634 = vperm.xlu0 %2633, %v2128
      %v2635 = vpop.permute.xlu0 %2634
      %2638 = vset.pattern.permute.xlu0 0
      %2639 = vperm.xlu0 %2638, %v2129
      %v2640 = vpop.permute.xlu0 %2639
      %2643 = vset.pattern.permute.xlu0 0
      %2644 = vperm.xlu0 %2643, %v2130
      %v2645 = vpop.permute.xlu0 %2644
      %2648 = vset.pattern.permute.xlu0 0
      %2649 = vperm.xlu0 %2648, %v2131
      %v2650 = vpop.permute.xlu0 %2649
      %2653 = vset.pattern.permute.xlu0 0
      %2654 = vperm.xlu0 %2653, %v2132
      %v2655 = vpop.permute.xlu0 %2654
      %2658 = vset.pattern.permute.xlu0 0
      %2659 = vperm.xlu0 %2658, %v2133
      %v2660 = vpop.permute.xlu0 %2659
      %2663 = vset.pattern.permute.xlu0 0
      %2664 = vperm.xlu0 %2663, %v2134
      %v2665 = vpop.permute.xlu0 %2664
      %2668 = vset.pattern.permute.xlu0 0
      %2669 = vperm.xlu0 %2668, %v2135
      %v2670 = vpop.permute.xlu0 %2669
      %2673 = vset.pattern.permute.xlu0 0
      %2674 = vperm.xlu0 %2673, %v2136
      %v2675 = vpop.permute.xlu0 %2674
      %2678 = vset.pattern.permute.xlu0 0
      %2679 = vperm.xlu0 %2678, %v2137
      %v2680 = vpop.permute.xlu0 %2679
      %2683 = vset.pattern.permute.xlu0 0
      %2684 = vperm.xlu0 %2683, %v2138
      %v2685 = vpop.permute.xlu0 %2684
      %2688 = vset.pattern.permute.xlu0 0
      %2689 = vperm.xlu0 %2688, %v2139
      %v2690 = vpop.permute.xlu0 %2689
      %2693 = vset.pattern.permute.xlu0 0
      %2694 = vperm.xlu0 %2693, %v2140
      %v2695 = vpop.permute.xlu0 %2694
      %2698 = vset.pattern.permute.xlu0 0
      %2699 = vperm.xlu0 %2698, %v2141
      %v2700 = vpop.permute.xlu0 %2699
      %2703 = vset.pattern.permute.xlu0 0
      %2704 = vperm.xlu0 %2703, %v2142
      %v2705 = vpop.permute.xlu0 %2704
      %2708 = vset.pattern.permute.xlu0 0
      %2709 = vperm.xlu0 %2708, %v2143
      %v2710 = vpop.permute.xlu0 %2709
      %2713 = vset.pattern.permute.xlu0 0
      %2714 = vperm.xlu0 %2713, %v2144
      %v2715 = vpop.permute.xlu0 %2714
      %2718 = vset.pattern.permute.xlu0 0
      %2719 = vperm.xlu0 %2718, %v2145
      %v2720 = vpop.permute.xlu0 %2719
      %2723 = vset.pattern.permute.xlu0 0
      %2724 = vperm.xlu0 %2723, %v2146
      %v2725 = vpop.permute.xlu0 %2724
      %2728 = vset.pattern.permute.xlu0 0
      %2729 = vperm.xlu0 %2728, %v2147
      %v2730 = vpop.permute.xlu0 %2729
      %2733 = vset.pattern.permute.xlu0 0
      %2734 = vperm.xlu0 %2733, %v2148
      %v2735 = vpop.permute.xlu0 %2734
      %2738 = vset.pattern.permute.xlu0 0
      %2739 = vperm.xlu0 %2738, %v2149
      %v2740 = vpop.permute.xlu0 %2739
      %2743 = vset.pattern.permute.xlu0 0
      %2744 = vperm.xlu0 %2743, %v2150
      %v2745 = vpop.permute.xlu0 %2744
      %2748 = vset.pattern.permute.xlu0 0
      %2749 = vperm.xlu0 %2748, %v2151
      %v2750 = vpop.permute.xlu0 %2749
      %2753 = vset.pattern.permute.xlu0 0
      %2754 = vperm.xlu0 %2753, %v2152
      %v2755 = vpop.permute.xlu0 %2754
      %2758 = vset.pattern.permute.xlu0 0
      %2759 = vperm.xlu0 %2758, %v2153
      %v2760 = vpop.permute.xlu0 %2759
      %2763 = vset.pattern.permute.xlu0 0
      %2764 = vperm.xlu0 %2763, %v2154
      %v2765 = vpop.permute.xlu0 %2764
      %2768 = vset.pattern.permute.xlu0 0
      %2769 = vperm.xlu0 %2768, %v2155
      %v2770 = vpop.permute.xlu0 %2769
      %2773 = vset.pattern.permute.xlu0 0
      %2774 = vperm.xlu0 %2773, %v2156
      %v2775 = vpop.permute.xlu0 %2774
      %2778 = vset.pattern.permute.xlu0 0
      %2779 = vperm.xlu0 %2778, %v2157
      %v2780 = vpop.permute.xlu0 %2779
      %2783 = vset.pattern.permute.xlu0 0
      %2784 = vperm.xlu0 %2783, %v2158
      %v2785 = vpop.permute.xlu0 %2784
      %2788 = vset.pattern.permute.xlu0 0
      %2789 = vperm.xlu0 %2788, %v2159
      %v2790 = vpop.permute.xlu0 %2789
      %2793 = vset.pattern.permute.xlu0 0
      %2794 = vperm.xlu0 %2793, %v2160
      %v2795 = vpop.permute.xlu0 %2794
      %2798 = vset.pattern.permute.xlu0 0
      %2799 = vperm.xlu0 %2798, %v2161
      %v2800 = vpop.permute.xlu0 %2799
      %v2930 = vunpack.c.l.b16 %v1874
      %v2931 = vunpack.c.h.b16 %v1874
      %v2932 = vunpack.c.l.b16 %v1875
      %v2933 = vunpack.c.h.b16 %v1875
      %v2934 = vunpack.c.l.b16 %v1876
      %v2935 = vunpack.c.h.b16 %v1876
      %v2936 = vunpack.c.l.b16 %v1877
      %v2937 = vunpack.c.h.b16 %v1877
      %v2938 = vunpack.c.l.b16 %v1878
      %v2939 = vunpack.c.h.b16 %v1878
      %v2940 = vunpack.c.l.b16 %v1879
      %v2941 = vunpack.c.h.b16 %v1879
      %v2942 = vunpack.c.l.b16 %v1880
      %v2943 = vunpack.c.h.b16 %v1880
      %v2944 = vunpack.c.l.b16 %v1881
      %v2945 = vunpack.c.h.b16 %v1881
      %v2946 = vunpack.c.l.b16 %v1882
      %v2947 = vunpack.c.h.b16 %v1882
      %v2948 = vunpack.c.l.b16 %v1883
      %v2949 = vunpack.c.h.b16 %v1883
      %v2950 = vunpack.c.l.b16 %v1884
      %v2951 = vunpack.c.h.b16 %v1884
      %v2952 = vunpack.c.l.b16 %v1885
      %v2953 = vunpack.c.h.b16 %v1885
      %v2954 = vunpack.c.l.b16 %v1886
      %v2955 = vunpack.c.h.b16 %v1886
      %v2956 = vunpack.c.l.b16 %v1887
      %v2957 = vunpack.c.h.b16 %v1887
      %v2958 = vunpack.c.l.b16 %v1888
      %v2959 = vunpack.c.h.b16 %v1888
      %v2960 = vunpack.c.l.b16 %v1889
      %v2961 = vunpack.c.h.b16 %v1889
      %v2962 = vunpack.c.l.b16 %v1890
      %v2963 = vunpack.c.h.b16 %v1890
      %v2964 = vunpack.c.l.b16 %v1891
      %v2965 = vunpack.c.h.b16 %v1891
      %v2966 = vunpack.c.l.b16 %v1892
      %v2967 = vunpack.c.h.b16 %v1892
      %v2968 = vunpack.c.l.b16 %v1893
      %v2969 = vunpack.c.h.b16 %v1893
      %v2970 = vunpack.c.l.b16 %v1894
      %v2971 = vunpack.c.h.b16 %v1894
      %v2972 = vunpack.c.l.b16 %v1895
      %v2973 = vunpack.c.h.b16 %v1895
      %v2974 = vunpack.c.l.b16 %v1896
      %v2975 = vunpack.c.h.b16 %v1896
      %v2976 = vunpack.c.l.b16 %v1897
      %v2977 = vunpack.c.h.b16 %v1897
      %v2978 = vunpack.c.l.b16 %v1898
      %v2979 = vunpack.c.h.b16 %v1898
      %v2980 = vunpack.c.l.b16 %v1899
      %v2981 = vunpack.c.h.b16 %v1899
      %v2982 = vunpack.c.l.b16 %v1900
      %v2983 = vunpack.c.h.b16 %v1900
      %v2984 = vunpack.c.l.b16 %v1901
      %v2985 = vunpack.c.h.b16 %v1901
      %v2986 = vunpack.c.l.b16 %v1902
      %v2987 = vunpack.c.h.b16 %v1902
      %v2988 = vunpack.c.l.b16 %v1903
      %v2989 = vunpack.c.h.b16 %v1903
      %v2990 = vunpack.c.l.b16 %v1904
      %v2991 = vunpack.c.h.b16 %v1904
      %v2992 = vunpack.c.l.b16 %v1905
      %v2993 = vunpack.c.h.b16 %v1905
      %v2994 = vunpack.c.l.b16 %v1906
      %v2995 = vunpack.c.h.b16 %v1906
      %v2996 = vunpack.c.l.b16 %v1907
      %v2997 = vunpack.c.h.b16 %v1907
      %v2998 = vunpack.c.l.b16 %v1908
      %v2999 = vunpack.c.h.b16 %v1908
      %v3000 = vunpack.c.l.b16 %v1909
      %v3001 = vunpack.c.h.b16 %v1909
      %v3002 = vunpack.c.l.b16 %v1910
      %v3003 = vunpack.c.h.b16 %v1910
      %v3004 = vunpack.c.l.b16 %v1911
      %v3005 = vunpack.c.h.b16 %v1911
      %v3006 = vunpack.c.l.b16 %v1912
      %v3007 = vunpack.c.h.b16 %v1912
      %v3008 = vunpack.c.l.b16 %v1913
      %v3009 = vunpack.c.h.b16 %v1913
      %v3010 = vunpack.c.l.b16 %v1914
      %v3011 = vunpack.c.h.b16 %v1914
      %v3012 = vunpack.c.l.b16 %v1915
      %v3013 = vunpack.c.h.b16 %v1915
      %v3014 = vunpack.c.l.b16 %v1916
      %v3015 = vunpack.c.h.b16 %v1916
      %v3016 = vunpack.c.l.b16 %v1917
      %v3017 = vunpack.c.h.b16 %v1917
      %v3018 = vunpack.c.l.b16 %v1918
      %v3019 = vunpack.c.h.b16 %v1918
      %v3020 = vunpack.c.l.b16 %v1919
      %v3021 = vunpack.c.h.b16 %v1919
      %v3022 = vunpack.c.l.b16 %v1920
      %v3023 = vunpack.c.h.b16 %v1920
      %v3024 = vunpack.c.l.b16 %v1921
      %v3025 = vunpack.c.h.b16 %v1921
      %v3026 = vunpack.c.l.b16 %v1922
      %v3027 = vunpack.c.h.b16 %v1922
      %v3028 = vunpack.c.l.b16 %v1923
      %v3029 = vunpack.c.h.b16 %v1923
      %v3030 = vunpack.c.l.b16 %v1924
      %v3031 = vunpack.c.h.b16 %v1924
      %v3032 = vunpack.c.l.b16 %v1925
      %v3033 = vunpack.c.h.b16 %v1925
      %v3034 = vunpack.c.l.b16 %v1926
      %v3035 = vunpack.c.h.b16 %v1926
      %v3036 = vunpack.c.l.b16 %v1927
      %v3037 = vunpack.c.h.b16 %v1927
      %v3038 = vunpack.c.l.b16 %v1928
      %v3039 = vunpack.c.h.b16 %v1928
      %v3040 = vunpack.c.l.b16 %v1929
      %v3041 = vunpack.c.h.b16 %v1929
      %v3042 = vunpack.c.l.b16 %v1930
      %v3043 = vunpack.c.h.b16 %v1930
      %v3044 = vunpack.c.l.b16 %v1931
      %v3045 = vunpack.c.h.b16 %v1931
      %v3046 = vunpack.c.l.b16 %v1932
      %v3047 = vunpack.c.h.b16 %v1932
      %v3048 = vunpack.c.l.b16 %v1933
      %v3049 = vunpack.c.h.b16 %v1933
      %v3050 = vunpack.c.l.b16 %v1934
      %v3051 = vunpack.c.h.b16 %v1934
      %v3052 = vunpack.c.l.b16 %v1935
      %v3053 = vunpack.c.h.b16 %v1935
      %v3054 = vunpack.c.l.b16 %v1936
      %v3055 = vunpack.c.h.b16 %v1936
      %v3056 = vunpack.c.l.b16 %v1937
      %v3057 = vunpack.c.h.b16 %v1937
      %v3058 = vunpack.c.l.b16 %v1938
      %v3059 = vunpack.c.h.b16 %v1938
      %v3060 = vunpack.c.l.b16 %v1939
      %v3061 = vunpack.c.h.b16 %v1939
      %v3062 = vunpack.c.l.b16 %v1940
      %v3063 = vunpack.c.h.b16 %v1940
      %v3064 = vunpack.c.l.b16 %v1941
      %v3065 = vunpack.c.h.b16 %v1941
      %v3066 = vunpack.c.l.b16 %v1942
      %v3067 = vunpack.c.h.b16 %v1942
      %v3068 = vunpack.c.l.b16 %v1943
      %v3069 = vunpack.c.h.b16 %v1943
      %v3070 = vunpack.c.l.b16 %v1944
      %v3071 = vunpack.c.h.b16 %v1944
      %v3072 = vunpack.c.l.b16 %v1945
      %v3073 = vunpack.c.h.b16 %v1945
      %v3074 = vunpack.c.l.b16 %v1946
      %v3075 = vunpack.c.h.b16 %v1946
      %v3076 = vunpack.c.l.b16 %v1947
      %v3077 = vunpack.c.h.b16 %v1947
      %v3078 = vunpack.c.l.b16 %v1948
      %v3079 = vunpack.c.h.b16 %v1948
      %v3080 = vunpack.c.l.b16 %v1949
      %v3081 = vunpack.c.h.b16 %v1949
      %v3082 = vunpack.c.l.b16 %v1950
      %v3083 = vunpack.c.h.b16 %v1950
      %v3084 = vunpack.c.l.b16 %v1951
      %v3085 = vunpack.c.h.b16 %v1951
      %v3086 = vunpack.c.l.b16 %v1952
      %v3087 = vunpack.c.h.b16 %v1952
      %v3088 = vunpack.c.l.b16 %v1953
      %v3089 = vunpack.c.h.b16 %v1953
      %v3090 = vunpack.c.l.b16 %v1954
      %v3091 = vunpack.c.h.b16 %v1954
      %v3092 = vunpack.c.l.b16 %v1955
      %v3093 = vunpack.c.h.b16 %v1955
      %v3094 = vunpack.c.l.b16 %v1956
      %v3095 = vunpack.c.h.b16 %v1956
      %v3096 = vunpack.c.l.b16 %v1957
      %v3097 = vunpack.c.h.b16 %v1957
      %v3098 = vunpack.c.l.b16 %v1958
      %v3099 = vunpack.c.h.b16 %v1958
      %v3100 = vunpack.c.l.b16 %v1959
      %v3101 = vunpack.c.h.b16 %v1959
      %v3102 = vunpack.c.l.b16 %v1960
      %v3103 = vunpack.c.h.b16 %v1960
      %v3104 = vunpack.c.l.b16 %v1961
      %v3105 = vunpack.c.h.b16 %v1961
      %v3106 = vunpack.c.l.b16 %v1962
      %v3107 = vunpack.c.h.b16 %v1962
      %v3108 = vunpack.c.l.b16 %v1963
      %v3109 = vunpack.c.h.b16 %v1963
      %v3110 = vunpack.c.l.b16 %v1964
      %v3111 = vunpack.c.h.b16 %v1964
      %v3112 = vunpack.c.l.b16 %v1965
      %v3113 = vunpack.c.h.b16 %v1965
      %v3114 = vunpack.c.l.b16 %v1966
      %v3115 = vunpack.c.h.b16 %v1966
      %v3116 = vunpack.c.l.b16 %v1967
      %v3117 = vunpack.c.h.b16 %v1967
      %v3118 = vunpack.c.l.b16 %v1968
      %v3119 = vunpack.c.h.b16 %v1968
      %v3120 = vunpack.c.l.b16 %v1969
      %v3121 = vunpack.c.h.b16 %v1969
      %v3122 = vunpack.c.l.b16 %v1970
      %v3123 = vunpack.c.h.b16 %v1970
      %v3124 = vunpack.c.l.b16 %v1971
      %v3125 = vunpack.c.h.b16 %v1971
      %v3126 = vunpack.c.l.b16 %v1972
      %v3127 = vunpack.c.h.b16 %v1972
      %v3128 = vunpack.c.l.b16 %v1973
      %v3129 = vunpack.c.h.b16 %v1973
      %v3130 = vunpack.c.l.b16 %v1974
      %v3131 = vunpack.c.h.b16 %v1974
      %v3132 = vunpack.c.l.b16 %v1975
      %v3133 = vunpack.c.h.b16 %v1975
      %v3134 = vunpack.c.l.b16 %v1976
      %v3135 = vunpack.c.h.b16 %v1976
      %v3136 = vunpack.c.l.b16 %v1977
      %v3137 = vunpack.c.h.b16 %v1977
      %v3138 = vunpack.c.l.b16 %v1978
      %v3139 = vunpack.c.h.b16 %v1978
      %v3140 = vunpack.c.l.b16 %v1979
      %v3141 = vunpack.c.h.b16 %v1979
      %v3142 = vunpack.c.l.b16 %v1980
      %v3143 = vunpack.c.h.b16 %v1980
      %v3144 = vunpack.c.l.b16 %v1981
      %v3145 = vunpack.c.h.b16 %v1981
      %v3146 = vunpack.c.l.b16 %v1982
      %v3147 = vunpack.c.h.b16 %v1982
      %v3148 = vunpack.c.l.b16 %v1983
      %v3149 = vunpack.c.h.b16 %v1983
      %v3150 = vunpack.c.l.b16 %v1984
      %v3151 = vunpack.c.h.b16 %v1984
      %v3152 = vunpack.c.l.b16 %v1985
      %v3153 = vunpack.c.h.b16 %v1985
      %v3154 = vunpack.c.l.b16 %v1986
      %v3155 = vunpack.c.h.b16 %v1986
      %v3156 = vunpack.c.l.b16 %v1987
      %v3157 = vunpack.c.h.b16 %v1987
      %v3158 = vunpack.c.l.b16 %v1988
      %v3159 = vunpack.c.h.b16 %v1988
      %v3160 = vunpack.c.l.b16 %v1989
      %v3161 = vunpack.c.h.b16 %v1989
      %v3162 = vunpack.c.l.b16 %v1990
      %v3163 = vunpack.c.h.b16 %v1990
      %v3164 = vunpack.c.l.b16 %v1991
      %v3165 = vunpack.c.h.b16 %v1991
      %v3166 = vunpack.c.l.b16 %v1992
      %v3167 = vunpack.c.h.b16 %v1992
      %v3168 = vunpack.c.l.b16 %v1993
      %v3169 = vunpack.c.h.b16 %v1993
      %v3170 = vunpack.c.l.b16 %v1994
      %v3171 = vunpack.c.h.b16 %v1994
      %v3172 = vunpack.c.l.b16 %v1995
      %v3173 = vunpack.c.h.b16 %v1995
      %v3174 = vunpack.c.l.b16 %v1996
      %v3175 = vunpack.c.h.b16 %v1996
      %v3176 = vunpack.c.l.b16 %v1997
      %v3177 = vunpack.c.h.b16 %v1997
      %v3178 = vunpack.c.l.b16 %v1998
      %v3179 = vunpack.c.h.b16 %v1998
      %v3180 = vunpack.c.l.b16 %v1999
      %v3181 = vunpack.c.h.b16 %v1999
      %v3182 = vunpack.c.l.b16 %v2000
      %v3183 = vunpack.c.h.b16 %v2000
      %v3184 = vunpack.c.l.b16 %v2001
      %v3185 = vunpack.c.h.b16 %v2001
      %v3186 = vpack.c.b16 %v2932, %v2930
      %v3187 = vpack.c.b16 %v2933, %v2931
      %v3188 = vpack.c.b16 %v2936, %v2934
      %v3189 = vpack.c.b16 %v2937, %v2935
      %v3190 = vpack.c.b16 %v2940, %v2938
      %v3191 = vpack.c.b16 %v2941, %v2939
      %v3192 = vpack.c.b16 %v2944, %v2942
      %v3193 = vpack.c.b16 %v2945, %v2943
      %v3194 = vpack.c.b16 %v2948, %v2946
      %v3195 = vpack.c.b16 %v2949, %v2947
      %v3196 = vpack.c.b16 %v2952, %v2950
      %v3197 = vpack.c.b16 %v2953, %v2951
      %v3198 = vpack.c.b16 %v2956, %v2954
      %v3199 = vpack.c.b16 %v2957, %v2955
      %v3200 = vpack.c.b16 %v2960, %v2958
      %v3201 = vpack.c.b16 %v2961, %v2959
      %v3202 = vpack.c.b16 %v2964, %v2962
      %v3203 = vpack.c.b16 %v2965, %v2963
      %v3204 = vpack.c.b16 %v2968, %v2966
      %v3205 = vpack.c.b16 %v2969, %v2967
      %v3206 = vpack.c.b16 %v2972, %v2970
      %v3207 = vpack.c.b16 %v2973, %v2971
      %v3208 = vpack.c.b16 %v2976, %v2974
      %v3209 = vpack.c.b16 %v2977, %v2975
      %v3210 = vpack.c.b16 %v2980, %v2978
      %v3211 = vpack.c.b16 %v2981, %v2979
      %v3212 = vpack.c.b16 %v2984, %v2982
      %v3213 = vpack.c.b16 %v2985, %v2983
      %v3214 = vpack.c.b16 %v2988, %v2986
      %v3215 = vpack.c.b16 %v2989, %v2987
      %v3216 = vpack.c.b16 %v2992, %v2990
      %v3217 = vpack.c.b16 %v2993, %v2991
      %v3218 = vpack.c.b16 %v2996, %v2994
      %v3219 = vpack.c.b16 %v2997, %v2995
      %v3220 = vpack.c.b16 %v3000, %v2998
      %v3221 = vpack.c.b16 %v3001, %v2999
      %v3222 = vpack.c.b16 %v3004, %v3002
      %v3223 = vpack.c.b16 %v3005, %v3003
      %v3224 = vpack.c.b16 %v3008, %v3006
      %v3225 = vpack.c.b16 %v3009, %v3007
      %v3226 = vpack.c.b16 %v3012, %v3010
      %v3227 = vpack.c.b16 %v3013, %v3011
      %v3228 = vpack.c.b16 %v3016, %v3014
      %v3229 = vpack.c.b16 %v3017, %v3015
      %v3230 = vpack.c.b16 %v3020, %v3018
      %v3231 = vpack.c.b16 %v3021, %v3019
      %v3232 = vpack.c.b16 %v3024, %v3022
      %v3233 = vpack.c.b16 %v3025, %v3023
      %v3234 = vpack.c.b16 %v3028, %v3026
      %v3235 = vpack.c.b16 %v3029, %v3027
      %v3236 = vpack.c.b16 %v3032, %v3030
      %v3237 = vpack.c.b16 %v3033, %v3031
      %v3238 = vpack.c.b16 %v3036, %v3034
      %v3239 = vpack.c.b16 %v3037, %v3035
      %v3240 = vpack.c.b16 %v3040, %v3038
      %v3241 = vpack.c.b16 %v3041, %v3039
      %v3242 = vpack.c.b16 %v3044, %v3042
      %v3243 = vpack.c.b16 %v3045, %v3043
      %v3244 = vpack.c.b16 %v3048, %v3046
      %v3245 = vpack.c.b16 %v3049, %v3047
      %v3246 = vpack.c.b16 %v3052, %v3050
      %v3247 = vpack.c.b16 %v3053, %v3051
      %v3248 = vpack.c.b16 %v3056, %v3054
      %v3249 = vpack.c.b16 %v3057, %v3055
      %v3250 = vpack.c.b16 %v3060, %v3058
      %v3251 = vpack.c.b16 %v3061, %v3059
      %v3252 = vpack.c.b16 %v3064, %v3062
      %v3253 = vpack.c.b16 %v3065, %v3063
      %v3254 = vpack.c.b16 %v3068, %v3066
      %v3255 = vpack.c.b16 %v3069, %v3067
      %v3256 = vpack.c.b16 %v3072, %v3070
      %v3257 = vpack.c.b16 %v3073, %v3071
      %v3258 = vpack.c.b16 %v3076, %v3074
      %v3259 = vpack.c.b16 %v3077, %v3075
      %v3260 = vpack.c.b16 %v3080, %v3078
      %v3261 = vpack.c.b16 %v3081, %v3079
      %v3262 = vpack.c.b16 %v3084, %v3082
      %v3263 = vpack.c.b16 %v3085, %v3083
      %v3264 = vpack.c.b16 %v3088, %v3086
      %v3265 = vpack.c.b16 %v3089, %v3087
      %v3266 = vpack.c.b16 %v3092, %v3090
      %v3267 = vpack.c.b16 %v3093, %v3091
      %v3268 = vpack.c.b16 %v3096, %v3094
      %v3269 = vpack.c.b16 %v3097, %v3095
      %v3270 = vpack.c.b16 %v3100, %v3098
      %v3271 = vpack.c.b16 %v3101, %v3099
      %v3272 = vpack.c.b16 %v3104, %v3102
      %v3273 = vpack.c.b16 %v3105, %v3103
      %v3274 = vpack.c.b16 %v3108, %v3106
      %v3275 = vpack.c.b16 %v3109, %v3107
      %v3276 = vpack.c.b16 %v3112, %v3110
      %v3277 = vpack.c.b16 %v3113, %v3111
      %v3278 = vpack.c.b16 %v3116, %v3114
      %v3279 = vpack.c.b16 %v3117, %v3115
      %v3280 = vpack.c.b16 %v3120, %v3118
      %v3281 = vpack.c.b16 %v3121, %v3119
      %v3282 = vpack.c.b16 %v3124, %v3122
      %v3283 = vpack.c.b16 %v3125, %v3123
      %v3284 = vpack.c.b16 %v3128, %v3126
      %v3285 = vpack.c.b16 %v3129, %v3127
      %v3286 = vpack.c.b16 %v3132, %v3130
      %v3287 = vpack.c.b16 %v3133, %v3131
      %v3288 = vpack.c.b16 %v3136, %v3134
      %v3289 = vpack.c.b16 %v3137, %v3135
      %v3290 = vpack.c.b16 %v3140, %v3138
      %v3291 = vpack.c.b16 %v3141, %v3139
      %v3292 = vpack.c.b16 %v3144, %v3142
      %v3293 = vpack.c.b16 %v3145, %v3143
      %v3294 = vpack.c.b16 %v3148, %v3146
      %v3295 = vpack.c.b16 %v3149, %v3147
      %v3296 = vpack.c.b16 %v3152, %v3150
      %v3297 = vpack.c.b16 %v3153, %v3151
      %v3298 = vpack.c.b16 %v3156, %v3154
      %v3299 = vpack.c.b16 %v3157, %v3155
      %v3300 = vpack.c.b16 %v3160, %v3158
      %v3301 = vpack.c.b16 %v3161, %v3159
      %v3302 = vpack.c.b16 %v3164, %v3162
      %v3303 = vpack.c.b16 %v3165, %v3163
      %v3304 = vpack.c.b16 %v3168, %v3166
      %v3305 = vpack.c.b16 %v3169, %v3167
      %v3306 = vpack.c.b16 %v3172, %v3170
      %v3307 = vpack.c.b16 %v3173, %v3171
      %v3308 = vpack.c.b16 %v3176, %v3174
      %v3309 = vpack.c.b16 %v3177, %v3175
      %v3310 = vpack.c.b16 %v3180, %v3178
      %v3311 = vpack.c.b16 %v3181, %v3179
      %v3312 = vpack.c.b16 %v3184, %v3182
      %v3313 = vpack.c.b16 %v3185, %v3183
      %3442 = vmatprep.subr.bf16.mxu0 %v2003
      %3443 = vmatpush1.bf16.msra.mxu0 %v2002
      %3444 = vmatprep.subr.bf16.mxu0 %v2005
      %3445 = vmatpush1.bf16.msra.mxu0 %v2004
      %3446 = vmatprep.subr.bf16.mxu0 %v2007
      %3447 = vmatpush1.bf16.msra.mxu0 %v2006
      %3448 = vmatprep.subr.bf16.mxu0 %v2009
      %3449 = vmatpush1.bf16.msra.mxu0 %v2008
      %3450 = vmatprep.subr.bf16.mxu0 %v2011
      %3451 = vmatpush1.bf16.msra.mxu0 %v2010
      %3452 = vmatprep.subr.bf16.mxu0 %v2013
      %3453 = vmatpush1.bf16.msra.mxu0 %v2012
      %3454 = vmatprep.subr.bf16.mxu0 %v2015
      %3455 = vmatpush1.bf16.msra.mxu0 %v2014
      %3456 = vmatprep.subr.bf16.mxu0 %v2017
      %3457 = vmatpush1.bf16.msra.mxu0 %v2016
      %3458 = vmatprep.subr.bf16.mxu0 %v2019
      %3459 = vmatpush1.bf16.msra.mxu0 %v2018
      %3460 = vmatprep.subr.bf16.mxu0 %v2021
      %3461 = vmatpush1.bf16.msra.mxu0 %v2020
      %3462 = vmatprep.subr.bf16.mxu0 %v2023
      %3463 = vmatpush1.bf16.msra.mxu0 %v2022
      %3464 = vmatprep.subr.bf16.mxu0 %v2025
      %3465 = vmatpush1.bf16.msra.mxu0 %v2024
      %3466 = vmatprep.subr.bf16.mxu0 %v2027
      %3467 = vmatpush1.bf16.msra.mxu0 %v2026
      %3468 = vmatprep.subr.bf16.mxu0 %v2029
      %3469 = vmatpush1.bf16.msra.mxu0 %v2028
      %3470 = vmatprep.subr.bf16.mxu0 %v2031
      %3471 = vmatpush1.bf16.msra.mxu0 %v2030
      %3472 = vmatprep.subr.bf16.mxu0 %v2033
      %3473 = vmatpush1.bf16.msra.mxu0 %v2032
      %3474 = vmatprep.mubr.bf16.mxu0 %v3187
      %3475 = vmatmul.mubr.bf16.gmra.mrb[0].mxu0 %v3186
      %v3476 = vpop.f32.mrb[0].mxu0
      %v3477 = vadd.f32 %v2165, %v3476
      %v3478 = vpop.f32.mrb[0].mxu0
      %v3479 = vadd.f32 %v2165, %v3478
      %v3480 = vpop.f32.mrb[0].mxu0
      %v3481 = vadd.f32 %v2170, %v3480
      %v3482 = vpop.f32.mrb[0].mxu0
      %v3483 = vadd.f32 %v2170, %v3482
      %3484 = vmatprep.mubr.bf16.mxu0 %v3189
      %3485 = vmatmul.mubr.bf16.gmra.mrb[0].mxu0 %v3188
      %v3486 = vpop.f32.mrb[0].mxu0
      %v3487 = vadd.f32 %v2175, %v3486
      %v3488 = vpop.f32.mrb[0].mxu0
      %v3489 = vadd.f32 %v2175, %v3488
      %v3490 = vpop.f32.mrb[0].mxu0
      %v3491 = vadd.f32 %v2180, %v3490
      %v3492 = vpop.f32.mrb[0].mxu0
      %v3493 = vadd.f32 %v2180, %v3492
      %3494 = vmatprep.mubr.bf16.mxu0 %v3191
      %3495 = vmatmul.mubr.bf16.gmra.mrb[0].mxu0 %v3190
      %v3496 = vpop.f32.mrb[0].mxu0
      %v3497 = vadd.f32 %v2185, %v3496
      %v3498 = vpop.f32.mrb[0].mxu0
      %v3499 = vadd.f32 %v2185, %v3498
      %v3500 = vpop.f32.mrb[0].mxu0
      %v3501 = vadd.f32 %v2190, %v3500
      %v3502 = vpop.f32.mrb[0].mxu0
      %v3503 = vadd.f32 %v2190, %v3502
      %3504 = vmatprep.mubr.bf16.mxu0 %v3193
      %3505 = vmatmul.mubr.bf16.gmra.mrb[0].mxu0 %v3192
      %v3506 = vpop.f32.mrb[0].mxu0
      %v3507 = vadd.f32 %v2195, %v3506
      %v3508 = vpop.f32.mrb[0].mxu0
      %v3509 = vadd.f32 %v2195, %v3508
      %v3510 = vpop.f32.mrb[0].mxu0
      %v3511 = vadd.f32 %v2200, %v3510
      %v3512 = vpop.f32.mrb[0].mxu0
      %v3513 = vadd.f32 %v2200, %v3512
      %3514 = vmatprep.mubr.bf16.mxu0 %v3195
      %3515 = vmatmul.mubr.bf16.gmra.mrb[0].mxu0 %v3194
      %v3516 = vpop.f32.mrb[0].mxu0
      %v3517 = vadd.f32 %v2205, %v3516
      %v3518 = vpop.f32.mrb[0].mxu0
      %v3519 = vadd.f32 %v2205, %v3518
      %v3520 = vpop.f32.mrb[0].mxu0
      %v3521 = vadd.f32 %v2210, %v3520
      %v3522 = vpop.f32.mrb[0].mxu0
      %v3523 = vadd.f32 %v2210, %v3522
      %3524 = vmatprep.mubr.bf16.mxu0 %v3197
      %3525 = vmatmul.mubr.bf16.gmra.mrb[0].mxu0 %v3196
      %v3526 = vpop.f32.mrb[0].mxu0
      %v3527 = vadd.f32 %v2215, %v3526
      %v3528 = vpop.f32.mrb[0].mxu0
      %v3529 = vadd.f32 %v2215, %v3528
      %v3530 = vpop.f32.mrb[0].mxu0
      %v3531 = vadd.f32 %v2220, %v3530
      %v3532 = vpop.f32.mrb[0].mxu0
      %v3533 = vadd.f32 %v2220, %v3532
      %3534 = vmatprep.mubr.bf16.mxu0 %v3199
      %3535 = vmatmul.mubr.bf16.gmra.mrb[0].mxu0 %v3198
      %v3536 = vpop.f32.mrb[0].mxu0
      %v3537 = vadd.f32 %v2225, %v3536
      %v3538 = vpop.f32.mrb[0].mxu0
      %v3539 = vadd.f32 %v2225, %v3538
      %v3540 = vpop.f32.mrb[0].mxu0
      %v3541 = vadd.f32 %v2230, %v3540
      %v3542 = vpop.f32.mrb[0].mxu0
      %v3543 = vadd.f32 %v2230, %v3542
      %3544 = vmatprep.mubr.bf16.mxu0 %v3201
      %3545 = vmatmul.mubr.bf16.gmra.mrb[0].mxu0 %v3200
      %v3546 = vpop.f32.mrb[0].mxu0
      %v3547 = vadd.f32 %v2235, %v3546
      %v3548 = vpop.f32.mrb[0].mxu0
      %v3549 = vadd.f32 %v2235, %v3548
      %v3550 = vpop.f32.mrb[0].mxu0
      %v3551 = vadd.f32 %v2240, %v3550
      %v3552 = vpop.f32.mrb[0].mxu0
      %v3553 = vadd.f32 %v2240, %v3552
      %3554 = vmatprep.mubr.bf16.mxu0 %v3203
      %3555 = vmatmul.mubr.bf16.gmra.mrb[0].mxu0 %v3202
      %v3556 = vpop.f32.mrb[0].mxu0
      %v3557 = vadd.f32 %v2245, %v3556
      %v3558 = vpop.f32.mrb[0].mxu0
      %v3559 = vadd.f32 %v2245, %v3558
      %v3560 = vpop.f32.mrb[0].mxu0
      %v3561 = vadd.f32 %v2250, %v3560
      %v3562 = vpop.f32.mrb[0].mxu0
      %v3563 = vadd.f32 %v2250, %v3562
      %3564 = vmatprep.mubr.bf16.mxu0 %v3205
      %3565 = vmatmul.mubr.bf16.gmra.mrb[0].mxu0 %v3204
      %v3566 = vpop.f32.mrb[0].mxu0
      %v3567 = vadd.f32 %v2255, %v3566
      %v3568 = vpop.f32.mrb[0].mxu0
      %v3569 = vadd.f32 %v2255, %v3568
      %v3570 = vpop.f32.mrb[0].mxu0
      %v3571 = vadd.f32 %v2260, %v3570
      %v3572 = vpop.f32.mrb[0].mxu0
      %v3573 = vadd.f32 %v2260, %v3572
      %3574 = vmatprep.mubr.bf16.mxu0 %v3207
      %3575 = vmatmul.mubr.bf16.gmra.mrb[0].mxu0 %v3206
      %v3576 = vpop.f32.mrb[0].mxu0
      %v3577 = vadd.f32 %v2265, %v3576
      %v3578 = vpop.f32.mrb[0].mxu0
      %v3579 = vadd.f32 %v2265, %v3578
      %v3580 = vpop.f32.mrb[0].mxu0
      %v3581 = vadd.f32 %v2270, %v3580
      %v3582 = vpop.f32.mrb[0].mxu0
      %v3583 = vadd.f32 %v2270, %v3582
      %3584 = vmatprep.mubr.bf16.mxu0 %v3209
      %3585 = vmatmul.mubr.bf16.gmra.mrb[0].mxu0 %v3208
      %v3586 = vpop.f32.mrb[0].mxu0
      %v3587 = vadd.f32 %v2275, %v3586
      %v3588 = vpop.f32.mrb[0].mxu0
      %v3589 = vadd.f32 %v2275, %v3588
      %v3590 = vpop.f32.mrb[0].mxu0
      %v3591 = vadd.f32 %v2280, %v3590
      %v3592 = vpop.f32.mrb[0].mxu0
      %v3593 = vadd.f32 %v2280, %v3592
      %3594 = vmatprep.mubr.bf16.mxu0 %v3211
      %3595 = vmatmul.mubr.bf16.gmra.mrb[0].mxu0 %v3210
      %v3596 = vpop.f32.mrb[0].mxu0
      %v3597 = vadd.f32 %v2285, %v3596
      %v3598 = vpop.f32.mrb[0].mxu0
      %v3599 = vadd.f32 %v2285, %v3598
      %v3600 = vpop.f32.mrb[0].mxu0
      %v3601 = vadd.f32 %v2290, %v3600
      %v3602 = vpop.f32.mrb[0].mxu0
      %v3603 = vadd.f32 %v2290, %v3602
      %3604 = vmatprep.mubr.bf16.mxu0 %v3213
      %3605 = vmatmul.mubr.bf16.gmra.mrb[0].mxu0 %v3212
      %v3606 = vpop.f32.mrb[0].mxu0
      %v3607 = vadd.f32 %v2295, %v3606
      %v3608 = vpop.f32.mrb[0].mxu0
      %v3609 = vadd.f32 %v2295, %v3608
      %v3610 = vpop.f32.mrb[0].mxu0
      %v3611 = vadd.f32 %v2300, %v3610
      %v3612 = vpop.f32.mrb[0].mxu0
      %v3613 = vadd.f32 %v2300, %v3612
      %3614 = vmatprep.mubr.bf16.mxu0 %v3215
      %3615 = vmatmul.mubr.bf16.gmra.mrb[0].mxu0 %v3214
      %v3616 = vpop.f32.mrb[0].mxu0
      %v3617 = vadd.f32 %v2305, %v3616
      %v3618 = vpop.f32.mrb[0].mxu0
      %v3619 = vadd.f32 %v2305, %v3618
      %v3620 = vpop.f32.mrb[0].mxu0
      %v3621 = vadd.f32 %v2310, %v3620
      %v3622 = vpop.f32.mrb[0].mxu0
      %v3623 = vadd.f32 %v2310, %v3622
      %3624 = vmatprep.mubr.bf16.mxu0 %v3217
      %3625 = vmatmul.mubr.bf16.gmra.mrb[0].mxu0 %v3216
      %v3626 = vpop.f32.mrb[0].mxu0
      %v3627 = vadd.f32 %v2315, %v3626
      %v3628 = vpop.f32.mrb[0].mxu0
      %v3629 = vadd.f32 %v2315, %v3628
      %v3630 = vpop.f32.mrb[0].mxu0
      %v3631 = vadd.f32 %v2320, %v3630
      %v3632 = vpop.f32.mrb[0].mxu0
      %v3633 = vadd.f32 %v2320, %v3632
      %3634 = vmatprep.mubr.bf16.mxu0 %v3219
      %3635 = vmatmul.mubr.bf16.gmra.mrb[0].mxu0 %v3218
      %v3636 = vpop.f32.mrb[0].mxu0
      %v3637 = vadd.f32 %v2325, %v3636
      %v3638 = vpop.f32.mrb[0].mxu0
      %v3639 = vadd.f32 %v2325, %v3638
      %v3640 = vpop.f32.mrb[0].mxu0
      %v3641 = vadd.f32 %v2330, %v3640
      %v3642 = vpop.f32.mrb[0].mxu0
      %v3643 = vadd.f32 %v2330, %v3642
      %3644 = vmatprep.mubr.bf16.mxu0 %v3221
      %3645 = vmatmul.mubr.bf16.gmra.mrb[0].mxu0 %v3220
      %v3646 = vpop.f32.mrb[0].mxu0
      %v3647 = vadd.f32 %v2335, %v3646
      %v3648 = vpop.f32.mrb[0].mxu0
      %v3649 = vadd.f32 %v2335, %v3648
      %v3650 = vpop.f32.mrb[0].mxu0
      %v3651 = vadd.f32 %v2340, %v3650
      %v3652 = vpop.f32.mrb[0].mxu0
      %v3653 = vadd.f32 %v2340, %v3652
      %3654 = vmatprep.mubr.bf16.mxu0 %v3223
      %3655 = vmatmul.mubr.bf16.gmra.mrb[0].mxu0 %v3222
      %v3656 = vpop.f32.mrb[0].mxu0
      %v3657 = vadd.f32 %v2345, %v3656
      %v3658 = vpop.f32.mrb[0].mxu0
      %v3659 = vadd.f32 %v2345, %v3658
      %v3660 = vpop.f32.mrb[0].mxu0
      %v3661 = vadd.f32 %v2350, %v3660
      %v3662 = vpop.f32.mrb[0].mxu0
      %v3663 = vadd.f32 %v2350, %v3662
      %3664 = vmatprep.mubr.bf16.mxu0 %v3225
      %3665 = vmatmul.mubr.bf16.gmra.mrb[0].mxu0 %v3224
      %v3666 = vpop.f32.mrb[0].mxu0
      %v3667 = vadd.f32 %v2355, %v3666
      %v3668 = vpop.f32.mrb[0].mxu0
      %v3669 = vadd.f32 %v2355, %v3668
      %v3670 = vpop.f32.mrb[0].mxu0
      %v3671 = vadd.f32 %v2360, %v3670
      %v3672 = vpop.f32.mrb[0].mxu0
      %v3673 = vadd.f32 %v2360, %v3672
      %3674 = vmatprep.mubr.bf16.mxu0 %v3227
      %3675 = vmatmul.mubr.bf16.gmra.mrb[0].mxu0 %v3226
      %v3676 = vpop.f32.mrb[0].mxu0
      %v3677 = vadd.f32 %v2365, %v3676
      %v3678 = vpop.f32.mrb[0].mxu0
      %v3679 = vadd.f32 %v2365, %v3678
      %v3680 = vpop.f32.mrb[0].mxu0
      %v3681 = vadd.f32 %v2370, %v3680
      %v3682 = vpop.f32.mrb[0].mxu0
      %v3683 = vadd.f32 %v2370, %v3682
      %3684 = vmatprep.mubr.bf16.mxu0 %v3229
      %3685 = vmatmul.mubr.bf16.gmra.mrb[0].mxu0 %v3228
      %v3686 = vpop.f32.mrb[0].mxu0
      %v3687 = vadd.f32 %v2375, %v3686
      %v3688 = vpop.f32.mrb[0].mxu0
      %v3689 = vadd.f32 %v2375, %v3688
      %v3690 = vpop.f32.mrb[0].mxu0
      %v3691 = vadd.f32 %v2380, %v3690
      %v3692 = vpop.f32.mrb[0].mxu0
      %v3693 = vadd.f32 %v2380, %v3692
      %3694 = vmatprep.mubr.bf16.mxu0 %v3231
      %3695 = vmatmul.mubr.bf16.gmra.mrb[0].mxu0 %v3230
      %v3696 = vpop.f32.mrb[0].mxu0
      %v3697 = vadd.f32 %v2385, %v3696
      %v3698 = vpop.f32.mrb[0].mxu0
      %v3699 = vadd.f32 %v2385, %v3698
      %v3700 = vpop.f32.mrb[0].mxu0
      %v3701 = vadd.f32 %v2390, %v3700
      %v3702 = vpop.f32.mrb[0].mxu0
      %v3703 = vadd.f32 %v2390, %v3702
      %3704 = vmatprep.mubr.bf16.mxu0 %v3233
      %3705 = vmatmul.mubr.bf16.gmra.mrb[0].mxu0 %v3232
      %v3706 = vpop.f32.mrb[0].mxu0
      %v3707 = vadd.f32 %v2395, %v3706
      %v3708 = vpop.f32.mrb[0].mxu0
      %v3709 = vadd.f32 %v2395, %v3708
      %v3710 = vpop.f32.mrb[0].mxu0
      %v3711 = vadd.f32 %v2400, %v3710
      %v3712 = vpop.f32.mrb[0].mxu0
      %v3713 = vadd.f32 %v2400, %v3712
      %3714 = vmatprep.mubr.bf16.mxu0 %v3235
      %3715 = vmatmul.mubr.bf16.gmra.mrb[0].mxu0 %v3234
      %v3716 = vpop.f32.mrb[0].mxu0
      %v3717 = vadd.f32 %v2405, %v3716
      %v3718 = vpop.f32.mrb[0].mxu0
      %v3719 = vadd.f32 %v2405, %v3718
      %v3720 = vpop.f32.mrb[0].mxu0
      %v3721 = vadd.f32 %v2410, %v3720
      %v3722 = vpop.f32.mrb[0].mxu0
      %v3723 = vadd.f32 %v2410, %v3722
      %3724 = vmatprep.mubr.bf16.mxu0 %v3237
      %3725 = vmatmul.mubr.bf16.gmra.mrb[0].mxu0 %v3236
      %v3726 = vpop.f32.mrb[0].mxu0
      %v3727 = vadd.f32 %v2415, %v3726
      %v3728 = vpop.f32.mrb[0].mxu0
      %v3729 = vadd.f32 %v2415, %v3728
      %v3730 = vpop.f32.mrb[0].mxu0
      %v3731 = vadd.f32 %v2420, %v3730
      %v3732 = vpop.f32.mrb[0].mxu0
      %v3733 = vadd.f32 %v2420, %v3732
      %3734 = vmatprep.mubr.bf16.mxu0 %v3239
      %3735 = vmatmul.mubr.bf16.gmra.mrb[0].mxu0 %v3238
      %v3736 = vpop.f32.mrb[0].mxu0
      %v3737 = vadd.f32 %v2425, %v3736
      %v3738 = vpop.f32.mrb[0].mxu0
      %v3739 = vadd.f32 %v2425, %v3738
      %v3740 = vpop.f32.mrb[0].mxu0
      %v3741 = vadd.f32 %v2430, %v3740
      %v3742 = vpop.f32.mrb[0].mxu0
      %v3743 = vadd.f32 %v2430, %v3742
      %3744 = vmatprep.mubr.bf16.mxu0 %v3241
      %3745 = vmatmul.mubr.bf16.gmra.mrb[0].mxu0 %v3240
      %v3746 = vpop.f32.mrb[0].mxu0
      %v3747 = vadd.f32 %v2435, %v3746
      %v3748 = vpop.f32.mrb[0].mxu0
      %v3749 = vadd.f32 %v2435, %v3748
      %v3750 = vpop.f32.mrb[0].mxu0
      %v3751 = vadd.f32 %v2440, %v3750
      %v3752 = vpop.f32.mrb[0].mxu0
      %v3753 = vadd.f32 %v2440, %v3752
      %3754 = vmatprep.mubr.bf16.mxu0 %v3243
      %3755 = vmatmul.mubr.bf16.gmra.mrb[0].mxu0 %v3242
      %v3756 = vpop.f32.mrb[0].mxu0
      %v3757 = vadd.f32 %v2445, %v3756
      %v3758 = vpop.f32.mrb[0].mxu0
      %v3759 = vadd.f32 %v2445, %v3758
      %v3760 = vpop.f32.mrb[0].mxu0
      %v3761 = vadd.f32 %v2450, %v3760
      %v3762 = vpop.f32.mrb[0].mxu0
      %v3763 = vadd.f32 %v2450, %v3762
      %3764 = vmatprep.mubr.bf16.mxu0 %v3245
      %3765 = vmatmul.mubr.bf16.gmra.mrb[0].mxu0 %v3244
      %v3766 = vpop.f32.mrb[0].mxu0
      %v3767 = vadd.f32 %v2455, %v3766
      %v3768 = vpop.f32.mrb[0].mxu0
      %v3769 = vadd.f32 %v2455, %v3768
      %v3770 = vpop.f32.mrb[0].mxu0
      %v3771 = vadd.f32 %v2460, %v3770
      %v3772 = vpop.f32.mrb[0].mxu0
      %v3773 = vadd.f32 %v2460, %v3772
      %3774 = vmatprep.mubr.bf16.mxu0 %v3247
      %3775 = vmatmul.mubr.bf16.gmra.mrb[0].mxu0 %v3246
      %v3776 = vpop.f32.mrb[0].mxu0
      %v3777 = vadd.f32 %v2465, %v3776
      %v3778 = vpop.f32.mrb[0].mxu0
      %v3779 = vadd.f32 %v2465, %v3778
      %v3780 = vpop.f32.mrb[0].mxu0
      %v3781 = vadd.f32 %v2470, %v3780
      %v3782 = vpop.f32.mrb[0].mxu0
      %v3783 = vadd.f32 %v2470, %v3782
      %3784 = vmatprep.mubr.bf16.mxu0 %v3249
      %3785 = vmatmul.mubr.bf16.gmra.mrb[0].mxu0 %v3248
      %v3786 = vpop.f32.mrb[0].mxu0
      %v3787 = vadd.f32 %v2475, %v3786
      %v3788 = vpop.f32.mrb[0].mxu0
      %v3789 = vadd.f32 %v2475, %v3788
      %v3790 = vpop.f32.mrb[0].mxu0
      %v3791 = vadd.f32 %v2480, %v3790
      %v3792 = vpop.f32.mrb[0].mxu0
      %v3793 = vadd.f32 %v2480, %v3792
      %3794 = vmatprep.mubr.bf16.mxu0 %v3251
      %3795 = vmatmul.mubr.bf16.gmra.mrb[0].mxu0 %v3250
      %v3796 = vpop.f32.mrb[0].mxu0
      %v3797 = vadd.f32 %v2485, %v3796
      %v3798 = vpop.f32.mrb[0].mxu0
      %v3799 = vadd.f32 %v2485, %v3798
      %v3800 = vpop.f32.mrb[0].mxu0
      %v3801 = vadd.f32 %v2490, %v3800
      %v3802 = vpop.f32.mrb[0].mxu0
      %v3803 = vadd.f32 %v2490, %v3802
      %3804 = vmatprep.mubr.bf16.mxu0 %v3253
      %3805 = vmatmul.mubr.bf16.gmra.mrb[0].mxu0 %v3252
      %v3806 = vpop.f32.mrb[0].mxu0
      %v3807 = vadd.f32 %v2495, %v3806
      %v3808 = vpop.f32.mrb[0].mxu0
      %v3809 = vadd.f32 %v2495, %v3808
      %v3810 = vpop.f32.mrb[0].mxu0
      %v3811 = vadd.f32 %v2500, %v3810
      %v3812 = vpop.f32.mrb[0].mxu0
      %v3813 = vadd.f32 %v2500, %v3812
      %3814 = vmatprep.mubr.bf16.mxu0 %v3255
      %3815 = vmatmul.mubr.bf16.gmra.mrb[0].mxu0 %v3254
      %v3816 = vpop.f32.mrb[0].mxu0
      %v3817 = vadd.f32 %v2505, %v3816
      %v3818 = vpop.f32.mrb[0].mxu0
      %v3819 = vadd.f32 %v2505, %v3818
      %v3820 = vpop.f32.mrb[0].mxu0
      %v3821 = vadd.f32 %v2510, %v3820
      %v3822 = vpop.f32.mrb[0].mxu0
      %v3823 = vadd.f32 %v2510, %v3822
      %3824 = vmatprep.mubr.bf16.mxu0 %v3257
      %3825 = vmatmul.mubr.bf16.gmra.mrb[0].mxu0 %v3256
      %v3826 = vpop.f32.mrb[0].mxu0
      %v3827 = vadd.f32 %v2515, %v3826
      %v3828 = vpop.f32.mrb[0].mxu0
      %v3829 = vadd.f32 %v2515, %v3828
      %v3830 = vpop.f32.mrb[0].mxu0
      %v3831 = vadd.f32 %v2520, %v3830
      %v3832 = vpop.f32.mrb[0].mxu0
      %v3833 = vadd.f32 %v2520, %v3832
      %3834 = vmatprep.mubr.bf16.mxu0 %v3259
      %3835 = vmatmul.mubr.bf16.gmra.mrb[0].mxu0 %v3258
      %v3836 = vpop.f32.mrb[0].mxu0
      %v3837 = vadd.f32 %v2525, %v3836
      %v3838 = vpop.f32.mrb[0].mxu0
      %v3839 = vadd.f32 %v2525, %v3838
      %v3840 = vpop.f32.mrb[0].mxu0
      %v3841 = vadd.f32 %v2530, %v3840
      %v3842 = vpop.f32.mrb[0].mxu0
      %v3843 = vadd.f32 %v2530, %v3842
      %3844 = vmatprep.mubr.bf16.mxu0 %v3261
      %3845 = vmatmul.mubr.bf16.gmra.mrb[0].mxu0 %v3260
      %v3846 = vpop.f32.mrb[0].mxu0
      %v3847 = vadd.f32 %v2535, %v3846
      %v3848 = vpop.f32.mrb[0].mxu0
      %v3849 = vadd.f32 %v2535, %v3848
      %v3850 = vpop.f32.mrb[0].mxu0
      %v3851 = vadd.f32 %v2540, %v3850
      %v3852 = vpop.f32.mrb[0].mxu0
      %v3853 = vadd.f32 %v2540, %v3852
      %3854 = vmatprep.mubr.bf16.mxu0 %v3263
      %3855 = vmatmul.mubr.bf16.gmra.mrb[0].mxu0 %v3262
      %v3856 = vpop.f32.mrb[0].mxu0
      %v3857 = vadd.f32 %v2545, %v3856
      %v3858 = vpop.f32.mrb[0].mxu0
      %v3859 = vadd.f32 %v2545, %v3858
      %v3860 = vpop.f32.mrb[0].mxu0
      %v3861 = vadd.f32 %v2550, %v3860
      %v3862 = vpop.f32.mrb[0].mxu0
      %v3863 = vadd.f32 %v2550, %v3862
      %3864 = vmatprep.mubr.bf16.mxu0 %v3265
      %3865 = vmatmul.mubr.bf16.gmra.mrb[0].mxu0 %v3264
      %v3866 = vpop.f32.mrb[0].mxu0
      %v3867 = vadd.f32 %v2555, %v3866
      %v3868 = vpop.f32.mrb[0].mxu0
      %v3869 = vadd.f32 %v2555, %v3868
      %v3870 = vpop.f32.mrb[0].mxu0
      %v3871 = vadd.f32 %v2560, %v3870
      %v3872 = vpop.f32.mrb[0].mxu0
      %v3873 = vadd.f32 %v2560, %v3872
      %3874 = vmatprep.mubr.bf16.mxu0 %v3267
      %3875 = vmatmul.mubr.bf16.gmra.mrb[0].mxu0 %v3266
      %v3876 = vpop.f32.mrb[0].mxu0
      %v3877 = vadd.f32 %v2565, %v3876
      %v3878 = vpop.f32.mrb[0].mxu0
      %v3879 = vadd.f32 %v2565, %v3878
      %v3880 = vpop.f32.mrb[0].mxu0
      %v3881 = vadd.f32 %v2570, %v3880
      %v3882 = vpop.f32.mrb[0].mxu0
      %v3883 = vadd.f32 %v2570, %v3882
      %3884 = vmatprep.mubr.bf16.mxu0 %v3269
      %3885 = vmatmul.mubr.bf16.gmra.mrb[0].mxu0 %v3268
      %v3886 = vpop.f32.mrb[0].mxu0
      %v3887 = vadd.f32 %v2575, %v3886
      %v3888 = vpop.f32.mrb[0].mxu0
      %v3889 = vadd.f32 %v2575, %v3888
      %v3890 = vpop.f32.mrb[0].mxu0
      %v3891 = vadd.f32 %v2580, %v3890
      %v3892 = vpop.f32.mrb[0].mxu0
      %v3893 = vadd.f32 %v2580, %v3892
      %3894 = vmatprep.mubr.bf16.mxu0 %v3271
      %3895 = vmatmul.mubr.bf16.gmra.mrb[0].mxu0 %v3270
      %v3896 = vpop.f32.mrb[0].mxu0
      %v3897 = vadd.f32 %v2585, %v3896
      %v3898 = vpop.f32.mrb[0].mxu0
      %v3899 = vadd.f32 %v2585, %v3898
      %v3900 = vpop.f32.mrb[0].mxu0
      %v3901 = vadd.f32 %v2590, %v3900
      %v3902 = vpop.f32.mrb[0].mxu0
      %v3903 = vadd.f32 %v2590, %v3902
      %3904 = vmatprep.mubr.bf16.mxu0 %v3273
      %3905 = vmatmul.mubr.bf16.gmra.mrb[0].mxu0 %v3272
      %v3906 = vpop.f32.mrb[0].mxu0
      %v3907 = vadd.f32 %v2595, %v3906
      %v3908 = vpop.f32.mrb[0].mxu0
      %v3909 = vadd.f32 %v2595, %v3908
      %v3910 = vpop.f32.mrb[0].mxu0
      %v3911 = vadd.f32 %v2600, %v3910
      %v3912 = vpop.f32.mrb[0].mxu0
      %v3913 = vadd.f32 %v2600, %v3912
      %3914 = vmatprep.mubr.bf16.mxu0 %v3275
      %3915 = vmatmul.mubr.bf16.gmra.mrb[0].mxu0 %v3274
      %v3916 = vpop.f32.mrb[0].mxu0
      %v3917 = vadd.f32 %v2605, %v3916
      %v3918 = vpop.f32.mrb[0].mxu0
      %v3919 = vadd.f32 %v2605, %v3918
      %v3920 = vpop.f32.mrb[0].mxu0
      %v3921 = vadd.f32 %v2610, %v3920
      %v3922 = vpop.f32.mrb[0].mxu0
      %v3923 = vadd.f32 %v2610, %v3922
      %3924 = vmatprep.mubr.bf16.mxu0 %v3277
      %3925 = vmatmul.mubr.bf16.gmra.mrb[0].mxu0 %v3276
      %v3926 = vpop.f32.mrb[0].mxu0
      %v3927 = vadd.f32 %v2615, %v3926
      %v3928 = vpop.f32.mrb[0].mxu0
      %v3929 = vadd.f32 %v2615, %v3928
      %v3930 = vpop.f32.mrb[0].mxu0
      %v3931 = vadd.f32 %v2620, %v3930
      %v3932 = vpop.f32.mrb[0].mxu0
      %v3933 = vadd.f32 %v2620, %v3932
      %3934 = vmatprep.mubr.bf16.mxu0 %v3279
      %3935 = vmatmul.mubr.bf16.gmra.mrb[0].mxu0 %v3278
      %v3936 = vpop.f32.mrb[0].mxu0
      %v3937 = vadd.f32 %v2625, %v3936
      %v3938 = vpop.f32.mrb[0].mxu0
      %v3939 = vadd.f32 %v2625, %v3938
      %v3940 = vpop.f32.mrb[0].mxu0
      %v3941 = vadd.f32 %v2630, %v3940
      %v3942 = vpop.f32.mrb[0].mxu0
      %v3943 = vadd.f32 %v2630, %v3942
      %3944 = vmatprep.mubr.bf16.mxu0 %v3281
      %3945 = vmatmul.mubr.bf16.gmra.mrb[0].mxu0 %v3280
      %v3946 = vpop.f32.mrb[0].mxu0
      %v3947 = vadd.f32 %v2635, %v3946
      %v3948 = vpop.f32.mrb[0].mxu0
      %v3949 = vadd.f32 %v2635, %v3948
      %v3950 = vpop.f32.mrb[0].mxu0
      %v3951 = vadd.f32 %v2640, %v3950
      %v3952 = vpop.f32.mrb[0].mxu0
      %v3953 = vadd.f32 %v2640, %v3952
      %3954 = vmatprep.mubr.bf16.mxu0 %v3283
      %3955 = vmatmul.mubr.bf16.gmra.mrb[0].mxu0 %v3282
      %v3956 = vpop.f32.mrb[0].mxu0
      %v3957 = vadd.f32 %v2645, %v3956
      %v3958 = vpop.f32.mrb[0].mxu0
      %v3959 = vadd.f32 %v2645, %v3958
      %v3960 = vpop.f32.mrb[0].mxu0
      %v3961 = vadd.f32 %v2650, %v3960
      %v3962 = vpop.f32.mrb[0].mxu0
      %v3963 = vadd.f32 %v2650, %v3962
      %3964 = vmatprep.mubr.bf16.mxu0 %v3285
      %3965 = vmatmul.mubr.bf16.gmra.mrb[0].mxu0 %v3284
      %v3966 = vpop.f32.mrb[0].mxu0
      %v3967 = vadd.f32 %v2655, %v3966
      %v3968 = vpop.f32.mrb[0].mxu0
      %v3969 = vadd.f32 %v2655, %v3968
      %v3970 = vpop.f32.mrb[0].mxu0
      %v3971 = vadd.f32 %v2660, %v3970
      %v3972 = vpop.f32.mrb[0].mxu0
      %v3973 = vadd.f32 %v2660, %v3972
      %3974 = vmatprep.mubr.bf16.mxu0 %v3287
      %3975 = vmatmul.mubr.bf16.gmra.mrb[0].mxu0 %v3286
      %v3976 = vpop.f32.mrb[0].mxu0
      %v3977 = vadd.f32 %v2665, %v3976
      %v3978 = vpop.f32.mrb[0].mxu0
      %v3979 = vadd.f32 %v2665, %v3978
      %v3980 = vpop.f32.mrb[0].mxu0
      %v3981 = vadd.f32 %v2670, %v3980
      %v3982 = vpop.f32.mrb[0].mxu0
      %v3983 = vadd.f32 %v2670, %v3982
      %3984 = vmatprep.mubr.bf16.mxu0 %v3289
      %3985 = vmatmul.mubr.bf16.gmra.mrb[0].mxu0 %v3288
      %v3986 = vpop.f32.mrb[0].mxu0
      %v3987 = vadd.f32 %v2675, %v3986
      %v3988 = vpop.f32.mrb[0].mxu0
      %v3989 = vadd.f32 %v2675, %v3988
      %v3990 = vpop.f32.mrb[0].mxu0
      %v3991 = vadd.f32 %v2680, %v3990
      %v3992 = vpop.f32.mrb[0].mxu0
      %v3993 = vadd.f32 %v2680, %v3992
      %3994 = vmatprep.mubr.bf16.mxu0 %v3291
      %3995 = vmatmul.mubr.bf16.gmra.mrb[0].mxu0 %v3290
      %v3996 = vpop.f32.mrb[0].mxu0
      %v3997 = vadd.f32 %v2685, %v3996
      %v3998 = vpop.f32.mrb[0].mxu0
      %v3999 = vadd.f32 %v2685, %v3998
      %v4000 = vpop.f32.mrb[0].mxu0
      %v4001 = vadd.f32 %v2690, %v4000
      %v4002 = vpop.f32.mrb[0].mxu0
      %v4003 = vadd.f32 %v2690, %v4002
      %4004 = vmatprep.mubr.bf16.mxu0 %v3293
      %4005 = vmatmul.mubr.bf16.gmra.mrb[0].mxu0 %v3292
      %v4006 = vpop.f32.mrb[0].mxu0
      %v4007 = vadd.f32 %v2695, %v4006
      %v4008 = vpop.f32.mrb[0].mxu0
      %v4009 = vadd.f32 %v2695, %v4008
      %v4010 = vpop.f32.mrb[0].mxu0
      %v4011 = vadd.f32 %v2700, %v4010
      %v4012 = vpop.f32.mrb[0].mxu0
      %v4013 = vadd.f32 %v2700, %v4012
      %4014 = vmatprep.mubr.bf16.mxu0 %v3295
      %4015 = vmatmul.mubr.bf16.gmra.mrb[0].mxu0 %v3294
      %v4016 = vpop.f32.mrb[0].mxu0
      %v4017 = vadd.f32 %v2705, %v4016
      %v4018 = vpop.f32.mrb[0].mxu0
      %v4019 = vadd.f32 %v2705, %v4018
      %v4020 = vpop.f32.mrb[0].mxu0
      %v4021 = vadd.f32 %v2710, %v4020
      %v4022 = vpop.f32.mrb[0].mxu0
      %v4023 = vadd.f32 %v2710, %v4022
      %4024 = vmatprep.mubr.bf16.mxu0 %v3297
      %4025 = vmatmul.mubr.bf16.gmra.mrb[0].mxu0 %v3296
      %v4026 = vpop.f32.mrb[0].mxu0
      %v4027 = vadd.f32 %v2715, %v4026
      %v4028 = vpop.f32.mrb[0].mxu0
      %v4029 = vadd.f32 %v2715, %v4028
      %v4030 = vpop.f32.mrb[0].mxu0
      %v4031 = vadd.f32 %v2720, %v4030
      %v4032 = vpop.f32.mrb[0].mxu0
      %v4033 = vadd.f32 %v2720, %v4032
      %4034 = vmatprep.mubr.bf16.mxu0 %v3299
      %4035 = vmatmul.mubr.bf16.gmra.mrb[0].mxu0 %v3298
      %v4036 = vpop.f32.mrb[0].mxu0
      %v4037 = vadd.f32 %v2725, %v4036
      %v4038 = vpop.f32.mrb[0].mxu0
      %v4039 = vadd.f32 %v2725, %v4038
      %v4040 = vpop.f32.mrb[0].mxu0
      %v4041 = vadd.f32 %v2730, %v4040
      %v4042 = vpop.f32.mrb[0].mxu0
      %v4043 = vadd.f32 %v2730, %v4042
      %4044 = vmatprep.mubr.bf16.mxu0 %v3301
      %4045 = vmatmul.mubr.bf16.gmra.mrb[0].mxu0 %v3300
      %v4046 = vpop.f32.mrb[0].mxu0
      %v4047 = vadd.f32 %v2735, %v4046
      %v4048 = vpop.f32.mrb[0].mxu0
      %v4049 = vadd.f32 %v2735, %v4048
      %v4050 = vpop.f32.mrb[0].mxu0
      %v4051 = vadd.f32 %v2740, %v4050
      %v4052 = vpop.f32.mrb[0].mxu0
      %v4053 = vadd.f32 %v2740, %v4052
      %4054 = vmatprep.mubr.bf16.mxu0 %v3303
      %4055 = vmatmul.mubr.bf16.gmra.mrb[0].mxu0 %v3302
      %v4056 = vpop.f32.mrb[0].mxu0
      %v4057 = vadd.f32 %v2745, %v4056
      %v4058 = vpop.f32.mrb[0].mxu0
      %v4059 = vadd.f32 %v2745, %v4058
      %v4060 = vpop.f32.mrb[0].mxu0
      %v4061 = vadd.f32 %v2750, %v4060
      %v4062 = vpop.f32.mrb[0].mxu0
      %v4063 = vadd.f32 %v2750, %v4062
      %4064 = vmatprep.mubr.bf16.mxu0 %v3305
      %4065 = vmatmul.mubr.bf16.gmra.mrb[0].mxu0 %v3304
      %v4066 = vpop.f32.mrb[0].mxu0
      %v4067 = vadd.f32 %v2755, %v4066
      %v4068 = vpop.f32.mrb[0].mxu0
      %v4069 = vadd.f32 %v2755, %v4068
      %v4070 = vpop.f32.mrb[0].mxu0
      %v4071 = vadd.f32 %v2760, %v4070
      %v4072 = vpop.f32.mrb[0].mxu0
      %v4073 = vadd.f32 %v2760, %v4072
      %4074 = vmatprep.mubr.bf16.mxu0 %v3307
      %4075 = vmatmul.mubr.bf16.gmra.mrb[0].mxu0 %v3306
      %v4076 = vpop.f32.mrb[0].mxu0
      %v4077 = vadd.f32 %v2765, %v4076
      %v4078 = vpop.f32.mrb[0].mxu0
      %v4079 = vadd.f32 %v2765, %v4078
      %v4080 = vpop.f32.mrb[0].mxu0
      %v4081 = vadd.f32 %v2770, %v4080
      %v4082 = vpop.f32.mrb[0].mxu0
      %v4083 = vadd.f32 %v2770, %v4082
      %4084 = vmatprep.mubr.bf16.mxu0 %v3309
      %4085 = vmatmul.mubr.bf16.gmra.mrb[0].mxu0 %v3308
      %v4086 = vpop.f32.mrb[0].mxu0
      %v4087 = vadd.f32 %v2775, %v4086
      %v4088 = vpop.f32.mrb[0].mxu0
      %v4089 = vadd.f32 %v2775, %v4088
      %v4090 = vpop.f32.mrb[0].mxu0
      %v4091 = vadd.f32 %v2780, %v4090
      %v4092 = vpop.f32.mrb[0].mxu0
      %v4093 = vadd.f32 %v2780, %v4092
      %4094 = vmatprep.mubr.bf16.mxu0 %v3311
      %4095 = vmatmul.mubr.bf16.gmra.mrb[0].mxu0 %v3310
      %v4096 = vpop.f32.mrb[0].mxu0
      %v4097 = vadd.f32 %v2785, %v4096
      %v4098 = vpop.f32.mrb[0].mxu0
      %v4099 = vadd.f32 %v2785, %v4098
      %v4100 = vpop.f32.mrb[0].mxu0
      %v4101 = vadd.f32 %v2790, %v4100
      %v4102 = vpop.f32.mrb[0].mxu0
      %v4103 = vadd.f32 %v2790, %v4102
      %4104 = vmatprep.mubr.bf16.mxu0 %v3313
      %4105 = vmatmul.mubr.bf16.gmra.mrb[0].mxu0 %v3312
      %v4106 = vpop.f32.mrb[0].mxu0
      %v4107 = vadd.f32 %v2795, %v4106
      %v4108 = vpop.f32.mrb[0].mxu0
      %v4109 = vadd.f32 %v2795, %v4108
      %v4110 = vpop.f32.mrb[0].mxu0
      %v4111 = vadd.f32 %v2800, %v4110
      %v4112 = vpop.f32.mrb[0].mxu0
      %v4113 = vadd.f32 %v2800, %v4112
      %4114 = vdwg.mxu0
      %v4115 = vmax.f32 %v3477, 0.0
      %v4116 = vmax.f32 %v3479, 0.0
      %v4117 = vmax.f32 %v3481, 0.0
      %v4118 = vmax.f32 %v3483, 0.0
      %v4119 = vmax.f32 %v3487, 0.0
      %v4120 = vmax.f32 %v3489, 0.0
      %v4121 = vmax.f32 %v3491, 0.0
      %v4122 = vmax.f32 %v3493, 0.0
      %v4123 = vmax.f32 %v3497, 0.0
      %v4124 = vmax.f32 %v3499, 0.0
      %v4125 = vmax.f32 %v3501, 0.0
      %v4126 = vmax.f32 %v3503, 0.0
      %v4127 = vmax.f32 %v3507, 0.0
      %v4128 = vmax.f32 %v3509, 0.0
      %v4129 = vmax.f32 %v3511, 0.0
      %v4130 = vmax.f32 %v3513, 0.0
      %v4131 = vmax.f32 %v3517, 0.0
      %v4132 = vmax.f32 %v3519, 0.0
      %v4133 = vmax.f32 %v3521, 0.0
      %v4134 = vmax.f32 %v3523, 0.0
      %v4135 = vmax.f32 %v3527, 0.0
      %v4136 = vmax.f32 %v3529, 0.0
      %v4137 = vmax.f32 %v3531, 0.0
      %v4138 = vmax.f32 %v3533, 0.0
      %v4139 = vmax.f32 %v3537, 0.0
      %v4140 = vmax.f32 %v3539, 0.0
      %v4141 = vmax.f32 %v3541, 0.0
      %v4142 = vmax.f32 %v3543, 0.0
      %v4143 = vmax.f32 %v3547, 0.0
      %v4144 = vmax.f32 %v3549, 0.0
      %v4145 = vmax.f32 %v3551, 0.0
      %v4146 = vmax.f32 %v3553, 0.0
      %v4147 = vmax.f32 %v3557, 0.0
      %v4148 = vmax.f32 %v3559, 0.0
      %v4149 = vmax.f32 %v3561, 0.0
      %v4150 = vmax.f32 %v3563, 0.0
      %v4151 = vmax.f32 %v3567, 0.0
      %v4152 = vmax.f32 %v3569, 0.0
      %v4153 = vmax.f32 %v3571, 0.0
      %v4154 = vmax.f32 %v3573, 0.0
      %v4155 = vmax.f32 %v3577, 0.0
      %v4156 = vmax.f32 %v3579, 0.0
      %v4157 = vmax.f32 %v3581, 0.0
      %v4158 = vmax.f32 %v3583, 0.0
      %v4159 = vmax.f32 %v3587, 0.0
      %v4160 = vmax.f32 %v3589, 0.0
      %v4161 = vmax.f32 %v3591, 0.0
      %v4162 = vmax.f32 %v3593, 0.0
      %v4163 = vmax.f32 %v3597, 0.0
      %v4164 = vmax.f32 %v3599, 0.0
      %v4165 = vmax.f32 %v3601, 0.0
      %v4166 = vmax.f32 %v3603, 0.0
      %v4167 = vmax.f32 %v3607, 0.0
      %v4168 = vmax.f32 %v3609, 0.0
      %v4169 = vmax.f32 %v3611, 0.0
      %v4170 = vmax.f32 %v3613, 0.0
      %v4171 = vmax.f32 %v3617, 0.0
      %v4172 = vmax.f32 %v3619, 0.0
      %v4173 = vmax.f32 %v3621, 0.0
      %v4174 = vmax.f32 %v3623, 0.0
      %v4175 = vmax.f32 %v3627, 0.0
      %v4176 = vmax.f32 %v3629, 0.0
      %v4177 = vmax.f32 %v3631, 0.0
      %v4178 = vmax.f32 %v3633, 0.0
      %v4179 = vmax.f32 %v3637, 0.0
      %v4180 = vmax.f32 %v3639, 0.0
      %v4181 = vmax.f32 %v3641, 0.0
      %v4182 = vmax.f32 %v3643, 0.0
      %v4183 = vmax.f32 %v3647, 0.0
      %v4184 = vmax.f32 %v3649, 0.0
      %v4185 = vmax.f32 %v3651, 0.0
      %v4186 = vmax.f32 %v3653, 0.0
      %v4187 = vmax.f32 %v3657, 0.0
      %v4188 = vmax.f32 %v3659, 0.0
      %v4189 = vmax.f32 %v3661, 0.0
      %v4190 = vmax.f32 %v3663, 0.0
      %v4191 = vmax.f32 %v3667, 0.0
      %v4192 = vmax.f32 %v3669, 0.0
      %v4193 = vmax.f32 %v3671, 0.0
      %v4194 = vmax.f32 %v3673, 0.0
      %v4195 = vmax.f32 %v3677, 0.0
      %v4196 = vmax.f32 %v3679, 0.0
      %v4197 = vmax.f32 %v3681, 0.0
      %v4198 = vmax.f32 %v3683, 0.0
      %v4199 = vmax.f32 %v3687, 0.0
      %v4200 = vmax.f32 %v3689, 0.0
      %v4201 = vmax.f32 %v3691, 0.0
      %v4202 = vmax.f32 %v3693, 0.0
      %v4203 = vmax.f32 %v3697, 0.0
      %v4204 = vmax.f32 %v3699, 0.0
      %v4205 = vmax.f32 %v3701, 0.0
      %v4206 = vmax.f32 %v3703, 0.0
      %v4207 = vmax.f32 %v3707, 0.0
      %v4208 = vmax.f32 %v3709, 0.0
      %v4209 = vmax.f32 %v3711, 0.0
      %v4210 = vmax.f32 %v3713, 0.0
      %v4211 = vmax.f32 %v3717, 0.0
      %v4212 = vmax.f32 %v3719, 0.0
      %v4213 = vmax.f32 %v3721, 0.0
      %v4214 = vmax.f32 %v3723, 0.0
      %v4215 = vmax.f32 %v3727, 0.0
      %v4216 = vmax.f32 %v3729, 0.0
      %v4217 = vmax.f32 %v3731, 0.0
      %v4218 = vmax.f32 %v3733, 0.0
      %v4219 = vmax.f32 %v3737, 0.0
      %v4220 = vmax.f32 %v3739, 0.0
      %v4221 = vmax.f32 %v3741, 0.0
      %v4222 = vmax.f32 %v3743, 0.0
      %v4223 = vmax.f32 %v3747, 0.0
      %v4224 = vmax.f32 %v3749, 0.0
      %v4225 = vmax.f32 %v3751, 0.0
      %v4226 = vmax.f32 %v3753, 0.0
      %v4227 = vmax.f32 %v3757, 0.0
      %v4228 = vmax.f32 %v3759, 0.0
      %v4229 = vmax.f32 %v3761, 0.0
      %v4230 = vmax.f32 %v3763, 0.0
      %v4231 = vmax.f32 %v3767, 0.0
      %v4232 = vmax.f32 %v3769, 0.0
      %v4233 = vmax.f32 %v3771, 0.0
      %v4234 = vmax.f32 %v3773, 0.0
      %v4235 = vmax.f32 %v3777, 0.0
      %v4236 = vmax.f32 %v3779, 0.0
      %v4237 = vmax.f32 %v3781, 0.0
      %v4238 = vmax.f32 %v3783, 0.0
      %v4239 = vmax.f32 %v3787, 0.0
      %v4240 = vmax.f32 %v3789, 0.0
      %v4241 = vmax.f32 %v3791, 0.0
      %v4242 = vmax.f32 %v3793, 0.0
      %v4243 = vmax.f32 %v3797, 0.0
      %v4244 = vmax.f32 %v3799, 0.0
      %v4245 = vmax.f32 %v3801, 0.0
      %v4246 = vmax.f32 %v3803, 0.0
      %v4247 = vmax.f32 %v3807, 0.0
      %v4248 = vmax.f32 %v3809, 0.0
      %v4249 = vmax.f32 %v3811, 0.0
      %v4250 = vmax.f32 %v3813, 0.0
      %v4251 = vmax.f32 %v3817, 0.0
      %v4252 = vmax.f32 %v3819, 0.0
      %v4253 = vmax.f32 %v3821, 0.0
      %v4254 = vmax.f32 %v3823, 0.0
      %v4255 = vmax.f32 %v3827, 0.0
      %v4256 = vmax.f32 %v3829, 0.0
      %v4257 = vmax.f32 %v3831, 0.0
      %v4258 = vmax.f32 %v3833, 0.0
      %v4259 = vmax.f32 %v3837, 0.0
      %v4260 = vmax.f32 %v3839, 0.0
      %v4261 = vmax.f32 %v3841, 0.0
      %v4262 = vmax.f32 %v3843, 0.0
      %v4263 = vmax.f32 %v3847, 0.0
      %v4264 = vmax.f32 %v3849, 0.0
      %v4265 = vmax.f32 %v3851, 0.0
      %v4266 = vmax.f32 %v3853, 0.0
      %v4267 = vmax.f32 %v3857, 0.0
      %v4268 = vmax.f32 %v3859, 0.0
      %v4269 = vmax.f32 %v3861, 0.0
      %v4270 = vmax.f32 %v3863, 0.0
      %v4271 = vmax.f32 %v3867, 0.0
      %v4272 = vmax.f32 %v3869, 0.0
      %v4273 = vmax.f32 %v3871, 0.0
      %v4274 = vmax.f32 %v3873, 0.0
      %v4275 = vmax.f32 %v3877, 0.0
      %v4276 = vmax.f32 %v3879, 0.0
      %v4277 = vmax.f32 %v3881, 0.0
      %v4278 = vmax.f32 %v3883, 0.0
      %v4279 = vmax.f32 %v3887, 0.0
      %v4280 = vmax.f32 %v3889, 0.0
      %v4281 = vmax.f32 %v3891, 0.0
      %v4282 = vmax.f32 %v3893, 0.0
      %v4283 = vmax.f32 %v3897, 0.0
      %v4284 = vmax.f32 %v3899, 0.0
      %v4285 = vmax.f32 %v3901, 0.0
      %v4286 = vmax.f32 %v3903, 0.0
      %v4287 = vmax.f32 %v3907, 0.0
      %v4288 = vmax.f32 %v3909, 0.0
      %v4289 = vmax.f32 %v3911, 0.0
      %v4290 = vmax.f32 %v3913, 0.0
      %v4291 = vmax.f32 %v3917, 0.0
      %v4292 = vmax.f32 %v3919, 0.0
      %v4293 = vmax.f32 %v3921, 0.0
      %v4294 = vmax.f32 %v3923, 0.0
      %v4295 = vmax.f32 %v3927, 0.0
      %v4296 = vmax.f32 %v3929, 0.0
      %v4297 = vmax.f32 %v3931, 0.0
      %v4298 = vmax.f32 %v3933, 0.0
      %v4299 = vmax.f32 %v3937, 0.0
      %v4300 = vmax.f32 %v3939, 0.0
      %v4301 = vmax.f32 %v3941, 0.0
      %v4302 = vmax.f32 %v3943, 0.0
      %v4303 = vmax.f32 %v3947, 0.0
      %v4304 = vmax.f32 %v3949, 0.0
      %v4305 = vmax.f32 %v3951, 0.0
      %v4306 = vmax.f32 %v3953, 0.0
      %v4307 = vmax.f32 %v3957, 0.0
      %v4308 = vmax.f32 %v3959, 0.0
      %v4309 = vmax.f32 %v3961, 0.0
      %v4310 = vmax.f32 %v3963, 0.0
      %v4311 = vmax.f32 %v3967, 0.0
      %v4312 = vmax.f32 %v3969, 0.0
      %v4313 = vmax.f32 %v3971, 0.0
      %v4314 = vmax.f32 %v3973, 0.0
      %v4315 = vmax.f32 %v3977, 0.0
      %v4316 = vmax.f32 %v3979, 0.0
      %v4317 = vmax.f32 %v3981, 0.0
      %v4318 = vmax.f32 %v3983, 0.0
      %v4319 = vmax.f32 %v3987, 0.0
      %v4320 = vmax.f32 %v3989, 0.0
      %v4321 = vmax.f32 %v3991, 0.0
      %v4322 = vmax.f32 %v3993, 0.0
      %v4323 = vmax.f32 %v3997, 0.0
      %v4324 = vmax.f32 %v3999, 0.0
      %v4325 = vmax.f32 %v4001, 0.0
      %v4326 = vmax.f32 %v4003, 0.0
      %v4327 = vmax.f32 %v4007, 0.0
      %v4328 = vmax.f32 %v4009, 0.0
      %v4329 = vmax.f32 %v4011, 0.0
      %v4330 = vmax.f32 %v4013, 0.0
      %v4331 = vmax.f32 %v4017, 0.0
      %v4332 = vmax.f32 %v4019, 0.0
      %v4333 = vmax.f32 %v4021, 0.0
      %v4334 = vmax.f32 %v4023, 0.0
      %v4335 = vmax.f32 %v4027, 0.0
      %v4336 = vmax.f32 %v4029, 0.0
      %v4337 = vmax.f32 %v4031, 0.0
      %v4338 = vmax.f32 %v4033, 0.0
      %v4339 = vmax.f32 %v4037, 0.0
      %v4340 = vmax.f32 %v4039, 0.0
      %v4341 = vmax.f32 %v4041, 0.0
      %v4342 = vmax.f32 %v4043, 0.0
      %v4343 = vmax.f32 %v4047, 0.0
      %v4344 = vmax.f32 %v4049, 0.0
      %v4345 = vmax.f32 %v4051, 0.0
      %v4346 = vmax.f32 %v4053, 0.0
      %v4347 = vmax.f32 %v4057, 0.0
      %v4348 = vmax.f32 %v4059, 0.0
      %v4349 = vmax.f32 %v4061, 0.0
      %v4350 = vmax.f32 %v4063, 0.0
      %v4351 = vmax.f32 %v4067, 0.0
      %v4352 = vmax.f32 %v4069, 0.0
      %v4353 = vmax.f32 %v4071, 0.0
      %v4354 = vmax.f32 %v4073, 0.0
      %v4355 = vmax.f32 %v4077, 0.0
      %v4356 = vmax.f32 %v4079, 0.0
      %v4357 = vmax.f32 %v4081, 0.0
      %v4358 = vmax.f32 %v4083, 0.0
      %v4359 = vmax.f32 %v4087, 0.0
      %v4360 = vmax.f32 %v4089, 0.0
      %v4361 = vmax.f32 %v4091, 0.0
      %v4362 = vmax.f32 %v4093, 0.0
      %v4363 = vmax.f32 %v4097, 0.0
      %v4364 = vmax.f32 %v4099, 0.0
      %v4365 = vmax.f32 %v4101, 0.0
      %v4366 = vmax.f32 %v4103, 0.0
      %v4367 = vmax.f32 %v4107, 0.0
      %v4368 = vmax.f32 %v4109, 0.0
      %v4369 = vmax.f32 %v4111, 0.0
      %v4370 = vmax.f32 %v4113, 0.0
      %v4371 = vld [vmem:[%s759] sm:$0xff]
      %v4372 = vld [vmem:[%s759 + $0x8] sm:$0xff]
      %v4373 = vld [vmem:[%s759 + $0x10] sm:$0xff]
      %v4374 = vld [vmem:[%s759 + $0x18] sm:$0xff]
      %v4375 = vld [vmem:[%s759 + $0x20] sm:$0xff]
      %v4376 = vld [vmem:[%s759 + $0x28] sm:$0xff]
      %v4377 = vld [vmem:[%s759 + $0x30] sm:$0xff]
      %v4378 = vld [vmem:[%s759 + $0x38] sm:$0xff]
      %v4379 = vld [vmem:[%s759 + $0x40] sm:$0xff]
      %v4380 = vld [vmem:[%s759 + $0x48] sm:$0xff]
      %v4381 = vld [vmem:[%s759 + $0x50] sm:$0xff]
      %v4382 = vld [vmem:[%s759 + $0x58] sm:$0xff]
      %v4383 = vld [vmem:[%s759 + $0x60] sm:$0xff]
      %v4384 = vld [vmem:[%s759 + $0x68] sm:$0xff]
      %v4385 = vld [vmem:[%s759 + $0x70] sm:$0xff]
      %v4386 = vld [vmem:[%s759 + $0x78] sm:$0xff]
      %v4387 = vld [vmem:[%s759 + $0x80] sm:$0xff]
      %v4388 = vld [vmem:[%s759 + $0x88] sm:$0xff]
      %v4389 = vld [vmem:[%s759 + $0x90] sm:$0xff]
      %v4390 = vld [vmem:[%s759 + $0x98] sm:$0xff]
      %v4391 = vld [vmem:[%s759 + $0xa0] sm:$0xff]
      %v4392 = vld [vmem:[%s759 + $0xa8] sm:$0xff]
      %v4393 = vld [vmem:[%s759 + $0xb0] sm:$0xff]
      %v4394 = vld [vmem:[%s759 + $0xb8] sm:$0xff]
      %v4395 = vld [vmem:[%s759 + $0xc0] sm:$0xff]
      %v4396 = vld [vmem:[%s759 + $0xc8] sm:$0xff]
      %v4397 = vld [vmem:[%s759 + $0xd0] sm:$0xff]
      %v4398 = vld [vmem:[%s759 + $0xd8] sm:$0xff]
      %v4399 = vld [vmem:[%s759 + $0xe0] sm:$0xff]
      %v4400 = vld [vmem:[%s759 + $0xe8] sm:$0xff]
      %v4401 = vld [vmem:[%s759 + $0xf0] sm:$0xff]
      %v4402 = vld [vmem:[%s759 + $0xf8] sm:$0xff]
      %v4403 = vld [vmem:[%s759 + $0x100] sm:$0xff]
      %v4404 = vld [vmem:[%s759 + $0x108] sm:$0xff]
      %v4405 = vld [vmem:[%s759 + $0x110] sm:$0xff]
      %v4406 = vld [vmem:[%s759 + $0x118] sm:$0xff]
      %v4407 = vld [vmem:[%s759 + $0x120] sm:$0xff]
      %v4408 = vld [vmem:[%s759 + $0x128] sm:$0xff]
      %v4409 = vld [vmem:[%s759 + $0x130] sm:$0xff]
      %v4410 = vld [vmem:[%s759 + $0x138] sm:$0xff]
      %v4411 = vld [vmem:[%s759 + $0x140] sm:$0xff]
      %v4412 = vld [vmem:[%s759 + $0x148] sm:$0xff]
      %v4413 = vld [vmem:[%s759 + $0x150] sm:$0xff]
      %v4414 = vld [vmem:[%s759 + $0x158] sm:$0xff]
      %v4415 = vld [vmem:[%s759 + $0x160] sm:$0xff]
      %v4416 = vld [vmem:[%s759 + $0x168] sm:$0xff]
      %v4417 = vld [vmem:[%s759 + $0x170] sm:$0xff]
      %v4418 = vld [vmem:[%s759 + $0x178] sm:$0xff]
      %v4419 = vld [vmem:[%s759 + $0x180] sm:$0xff]
      %v4420 = vld [vmem:[%s759 + $0x188] sm:$0xff]
      %v4421 = vld [vmem:[%s759 + $0x190] sm:$0xff]
      %v4422 = vld [vmem:[%s759 + $0x198] sm:$0xff]
      %v4423 = vld [vmem:[%s759 + $0x1a0] sm:$0xff]
      %v4424 = vld [vmem:[%s759 + $0x1a8] sm:$0xff]
      %v4425 = vld [vmem:[%s759 + $0x1b0] sm:$0xff]
      %v4426 = vld [vmem:[%s759 + $0x1b8] sm:$0xff]
      %v4427 = vld [vmem:[%s759 + $0x1c0] sm:$0xff]
      %v4428 = vld [vmem:[%s759 + $0x1c8] sm:$0xff]
      %v4429 = vld [vmem:[%s759 + $0x1d0] sm:$0xff]
      %v4430 = vld [vmem:[%s759 + $0x1d8] sm:$0xff]
      %v4431 = vld [vmem:[%s759 + $0x1e0] sm:$0xff]
      %v4432 = vld [vmem:[%s759 + $0x1e8] sm:$0xff]
      %v4433 = vld [vmem:[%s759 + $0x1f0] sm:$0xff]
      %v4434 = vld [vmem:[%s759 + $0x1f8] sm:$0xff]
      %v4435 = vld [vmem:[%s759 + $0x200] sm:$0xff]
      %v4436 = vld [vmem:[%s759 + $0x208] sm:$0xff]
      %v4437 = vld [vmem:[%s759 + $0x210] sm:$0xff]
      %v4438 = vld [vmem:[%s759 + $0x218] sm:$0xff]
      %v4439 = vld [vmem:[%s759 + $0x220] sm:$0xff]
      %v4440 = vld [vmem:[%s759 + $0x228] sm:$0xff]
      %v4441 = vld [vmem:[%s759 + $0x230] sm:$0xff]
      %v4442 = vld [vmem:[%s759 + $0x238] sm:$0xff]
      %v4443 = vld [vmem:[%s759 + $0x240] sm:$0xff]
      %v4444 = vld [vmem:[%s759 + $0x248] sm:$0xff]
      %v4445 = vld [vmem:[%s759 + $0x250] sm:$0xff]
      %v4446 = vld [vmem:[%s759 + $0x258] sm:$0xff]
      %v4447 = vld [vmem:[%s759 + $0x260] sm:$0xff]
      %v4448 = vld [vmem:[%s759 + $0x268] sm:$0xff]
      %v4449 = vld [vmem:[%s759 + $0x270] sm:$0xff]
      %v4450 = vld [vmem:[%s759 + $0x278] sm:$0xff]
      %v4451 = vld [vmem:[%s759 + $0x280] sm:$0xff]
      %v4452 = vld [vmem:[%s759 + $0x288] sm:$0xff]
      %v4453 = vld [vmem:[%s759 + $0x290] sm:$0xff]
      %v4454 = vld [vmem:[%s759 + $0x298] sm:$0xff]
      %v4455 = vld [vmem:[%s759 + $0x2a0] sm:$0xff]
      %v4456 = vld [vmem:[%s759 + $0x2a8] sm:$0xff]
      %v4457 = vld [vmem:[%s759 + $0x2b0] sm:$0xff]
      %v4458 = vld [vmem:[%s759 + $0x2b8] sm:$0xff]
      %v4459 = vld [vmem:[%s759 + $0x2c0] sm:$0xff]
      %v4460 = vld [vmem:[%s759 + $0x2c8] sm:$0xff]
      %v4461 = vld [vmem:[%s759 + $0x2d0] sm:$0xff]
      %v4462 = vld [vmem:[%s759 + $0x2d8] sm:$0xff]
      %v4463 = vld [vmem:[%s759 + $0x2e0] sm:$0xff]
      %v4464 = vld [vmem:[%s759 + $0x2e8] sm:$0xff]
      %v4465 = vld [vmem:[%s759 + $0x2f0] sm:$0xff]
      %v4466 = vld [vmem:[%s759 + $0x2f8] sm:$0xff]
      %v4467 = vld [vmem:[%s759 + $0x300] sm:$0xff]
      %v4468 = vld [vmem:[%s759 + $0x308] sm:$0xff]
      %v4469 = vld [vmem:[%s759 + $0x310] sm:$0xff]
      %v4470 = vld [vmem:[%s759 + $0x318] sm:$0xff]
      %v4471 = vld [vmem:[%s759 + $0x320] sm:$0xff]
      %v4472 = vld [vmem:[%s759 + $0x328] sm:$0xff]
      %v4473 = vld [vmem:[%s759 + $0x330] sm:$0xff]
      %v4474 = vld [vmem:[%s759 + $0x338] sm:$0xff]
      %v4475 = vld [vmem:[%s759 + $0x340] sm:$0xff]
      %v4476 = vld [vmem:[%s759 + $0x348] sm:$0xff]
      %v4477 = vld [vmem:[%s759 + $0x350] sm:$0xff]
      %v4478 = vld [vmem:[%s759 + $0x358] sm:$0xff]
      %v4479 = vld [vmem:[%s759 + $0x360] sm:$0xff]
      %v4480 = vld [vmem:[%s759 + $0x368] sm:$0xff]
      %v4481 = vld [vmem:[%s759 + $0x370] sm:$0xff]
      %v4482 = vld [vmem:[%s759 + $0x378] sm:$0xff]
      %v4483 = vld [vmem:[%s759 + $0x380] sm:$0xff]
      %v4484 = vld [vmem:[%s759 + $0x388] sm:$0xff]
      %v4485 = vld [vmem:[%s759 + $0x390] sm:$0xff]
      %v4486 = vld [vmem:[%s759 + $0x398] sm:$0xff]
      %v4487 = vld [vmem:[%s759 + $0x3a0] sm:$0xff]
      %v4488 = vld [vmem:[%s759 + $0x3a8] sm:$0xff]
      %v4489 = vld [vmem:[%s759 + $0x3b0] sm:$0xff]
      %v4490 = vld [vmem:[%s759 + $0x3b8] sm:$0xff]
      %v4491 = vld [vmem:[%s759 + $0x3c0] sm:$0xff]
      %v4492 = vld [vmem:[%s759 + $0x3c8] sm:$0xff]
      %v4493 = vld [vmem:[%s759 + $0x3d0] sm:$0xff]
      %v4494 = vld [vmem:[%s759 + $0x3d8] sm:$0xff]
      %v4495 = vld [vmem:[%s759 + $0x3e0] sm:$0xff]
      %v4496 = vld [vmem:[%s759 + $0x3e8] sm:$0xff]
      %v4497 = vld [vmem:[%s759 + $0x3f0] sm:$0xff]
      %v4498 = vld [vmem:[%s759 + $0x3f8] sm:$0xff]
      %4500 = vset.pattern.permute.xlu0 0
      %4501 = vperm.xlu0 %4500, %v4371
      %v4502 = vpop.permute.xlu0 %4501
      %4505 = vset.pattern.permute.xlu0 0
      %4506 = vperm.xlu0 %4505, %v4372
      %v4507 = vpop.permute.xlu0 %4506
      %4510 = vset.pattern.permute.xlu0 0
      %4511 = vperm.xlu0 %4510, %v4373
      %v4512 = vpop.permute.xlu0 %4511
      %4515 = vset.pattern.permute.xlu0 0
      %4516 = vperm.xlu0 %4515, %v4374
      %v4517 = vpop.permute.xlu0 %4516
      %4520 = vset.pattern.permute.xlu0 0
      %4521 = vperm.xlu0 %4520, %v4375
      %v4522 = vpop.permute.xlu0 %4521
      %4525 = vset.pattern.permute.xlu0 0
      %4526 = vperm.xlu0 %4525, %v4376
      %v4527 = vpop.permute.xlu0 %4526
      %4530 = vset.pattern.permute.xlu0 0
      %4531 = vperm.xlu0 %4530, %v4377
      %v4532 = vpop.permute.xlu0 %4531
      %4535 = vset.pattern.permute.xlu0 0
      %4536 = vperm.xlu0 %4535, %v4378
      %v4537 = vpop.permute.xlu0 %4536
      %4540 = vset.pattern.permute.xlu0 0
      %4541 = vperm.xlu0 %4540, %v4379
      %v4542 = vpop.permute.xlu0 %4541
      %4545 = vset.pattern.permute.xlu0 0
      %4546 = vperm.xlu0 %4545, %v4380
      %v4547 = vpop.permute.xlu0 %4546
      %4550 = vset.pattern.permute.xlu0 0
      %4551 = vperm.xlu0 %4550, %v4381
      %v4552 = vpop.permute.xlu0 %4551
      %4555 = vset.pattern.permute.xlu0 0
      %4556 = vperm.xlu0 %4555, %v4382
      %v4557 = vpop.permute.xlu0 %4556
      %4560 = vset.pattern.permute.xlu0 0
      %4561 = vperm.xlu0 %4560, %v4383
      %v4562 = vpop.permute.xlu0 %4561
      %4565 = vset.pattern.permute.xlu0 0
      %4566 = vperm.xlu0 %4565, %v4384
      %v4567 = vpop.permute.xlu0 %4566
      %4570 = vset.pattern.permute.xlu0 0
      %4571 = vperm.xlu0 %4570, %v4385
      %v4572 = vpop.permute.xlu0 %4571
      %4575 = vset.pattern.permute.xlu0 0
      %4576 = vperm.xlu0 %4575, %v4386
      %v4577 = vpop.permute.xlu0 %4576
      %4580 = vset.pattern.permute.xlu0 0
      %4581 = vperm.xlu0 %4580, %v4387
      %v4582 = vpop.permute.xlu0 %4581
      %4585 = vset.pattern.permute.xlu0 0
      %4586 = vperm.xlu0 %4585, %v4388
      %v4587 = vpop.permute.xlu0 %4586
      %4590 = vset.pattern.permute.xlu0 0
      %4591 = vperm.xlu0 %4590, %v4389
      %v4592 = vpop.permute.xlu0 %4591
      %4595 = vset.pattern.permute.xlu0 0
      %4596 = vperm.xlu0 %4595, %v4390
      %v4597 = vpop.permute.xlu0 %4596
      %4600 = vset.pattern.permute.xlu0 0
      %4601 = vperm.xlu0 %4600, %v4391
      %v4602 = vpop.permute.xlu0 %4601
      %4605 = vset.pattern.permute.xlu0 0
      %4606 = vperm.xlu0 %4605, %v4392
      %v4607 = vpop.permute.xlu0 %4606
      %4610 = vset.pattern.permute.xlu0 0
      %4611 = vperm.xlu0 %4610, %v4393
      %v4612 = vpop.permute.xlu0 %4611
      %4615 = vset.pattern.permute.xlu0 0
      %4616 = vperm.xlu0 %4615, %v4394
      %v4617 = vpop.permute.xlu0 %4616
      %4620 = vset.pattern.permute.xlu0 0
      %4621 = vperm.xlu0 %4620, %v4395
      %v4622 = vpop.permute.xlu0 %4621
      %4625 = vset.pattern.permute.xlu0 0
      %4626 = vperm.xlu0 %4625, %v4396
      %v4627 = vpop.permute.xlu0 %4626
      %4630 = vset.pattern.permute.xlu0 0
      %4631 = vperm.xlu0 %4630, %v4397
      %v4632 = vpop.permute.xlu0 %4631
      %4635 = vset.pattern.permute.xlu0 0
      %4636 = vperm.xlu0 %4635, %v4398
      %v4637 = vpop.permute.xlu0 %4636
      %4640 = vset.pattern.permute.xlu0 0
      %4641 = vperm.xlu0 %4640, %v4399
      %v4642 = vpop.permute.xlu0 %4641
      %4645 = vset.pattern.permute.xlu0 0
      %4646 = vperm.xlu0 %4645, %v4400
      %v4647 = vpop.permute.xlu0 %4646
      %4650 = vset.pattern.permute.xlu0 0
      %4651 = vperm.xlu0 %4650, %v4401
      %v4652 = vpop.permute.xlu0 %4651
      %4655 = vset.pattern.permute.xlu0 0
      %4656 = vperm.xlu0 %4655, %v4402
      %v4657 = vpop.permute.xlu0 %4656
      %4660 = vset.pattern.permute.xlu0 0
      %4661 = vperm.xlu0 %4660, %v4403
      %v4662 = vpop.permute.xlu0 %4661
      %4665 = vset.pattern.permute.xlu0 0
      %4666 = vperm.xlu0 %4665, %v4404
      %v4667 = vpop.permute.xlu0 %4666
      %4670 = vset.pattern.permute.xlu0 0
      %4671 = vperm.xlu0 %4670, %v4405
      %v4672 = vpop.permute.xlu0 %4671
      %4675 = vset.pattern.permute.xlu0 0
      %4676 = vperm.xlu0 %4675, %v4406
      %v4677 = vpop.permute.xlu0 %4676
      %4680 = vset.pattern.permute.xlu0 0
      %4681 = vperm.xlu0 %4680, %v4407
      %v4682 = vpop.permute.xlu0 %4681
      %4685 = vset.pattern.permute.xlu0 0
      %4686 = vperm.xlu0 %4685, %v4408
      %v4687 = vpop.permute.xlu0 %4686
      %4690 = vset.pattern.permute.xlu0 0
      %4691 = vperm.xlu0 %4690, %v4409
      %v4692 = vpop.permute.xlu0 %4691
      %4695 = vset.pattern.permute.xlu0 0
      %4696 = vperm.xlu0 %4695, %v4410
      %v4697 = vpop.permute.xlu0 %4696
      %4700 = vset.pattern.permute.xlu0 0
      %4701 = vperm.xlu0 %4700, %v4411
      %v4702 = vpop.permute.xlu0 %4701
      %4705 = vset.pattern.permute.xlu0 0
      %4706 = vperm.xlu0 %4705, %v4412
      %v4707 = vpop.permute.xlu0 %4706
      %4710 = vset.pattern.permute.xlu0 0
      %4711 = vperm.xlu0 %4710, %v4413
      %v4712 = vpop.permute.xlu0 %4711
      %4715 = vset.pattern.permute.xlu0 0
      %4716 = vperm.xlu0 %4715, %v4414
      %v4717 = vpop.permute.xlu0 %4716
      %4720 = vset.pattern.permute.xlu0 0
      %4721 = vperm.xlu0 %4720, %v4415
      %v4722 = vpop.permute.xlu0 %4721
      %4725 = vset.pattern.permute.xlu0 0
      %4726 = vperm.xlu0 %4725, %v4416
      %v4727 = vpop.permute.xlu0 %4726
      %4730 = vset.pattern.permute.xlu0 0
      %4731 = vperm.xlu0 %4730, %v4417
      %v4732 = vpop.permute.xlu0 %4731
      %4735 = vset.pattern.permute.xlu0 0
      %4736 = vperm.xlu0 %4735, %v4418
      %v4737 = vpop.permute.xlu0 %4736
      %4740 = vset.pattern.permute.xlu0 0
      %4741 = vperm.xlu0 %4740, %v4419
      %v4742 = vpop.permute.xlu0 %4741
      %4745 = vset.pattern.permute.xlu0 0
      %4746 = vperm.xlu0 %4745, %v4420
      %v4747 = vpop.permute.xlu0 %4746
      %4750 = vset.pattern.permute.xlu0 0
      %4751 = vperm.xlu0 %4750, %v4421
      %v4752 = vpop.permute.xlu0 %4751
      %4755 = vset.pattern.permute.xlu0 0
      %4756 = vperm.xlu0 %4755, %v4422
      %v4757 = vpop.permute.xlu0 %4756
      %4760 = vset.pattern.permute.xlu0 0
      %4761 = vperm.xlu0 %4760, %v4423
      %v4762 = vpop.permute.xlu0 %4761
      %4765 = vset.pattern.permute.xlu0 0
      %4766 = vperm.xlu0 %4765, %v4424
      %v4767 = vpop.permute.xlu0 %4766
      %4770 = vset.pattern.permute.xlu0 0
      %4771 = vperm.xlu0 %4770, %v4425
      %v4772 = vpop.permute.xlu0 %4771
      %4775 = vset.pattern.permute.xlu0 0
      %4776 = vperm.xlu0 %4775, %v4426
      %v4777 = vpop.permute.xlu0 %4776
      %4780 = vset.pattern.permute.xlu0 0
      %4781 = vperm.xlu0 %4780, %v4427
      %v4782 = vpop.permute.xlu0 %4781
      %4785 = vset.pattern.permute.xlu0 0
      %4786 = vperm.xlu0 %4785, %v4428
      %v4787 = vpop.permute.xlu0 %4786
      %4790 = vset.pattern.permute.xlu0 0
      %4791 = vperm.xlu0 %4790, %v4429
      %v4792 = vpop.permute.xlu0 %4791
      %4795 = vset.pattern.permute.xlu0 0
      %4796 = vperm.xlu0 %4795, %v4430
      %v4797 = vpop.permute.xlu0 %4796
      %4800 = vset.pattern.permute.xlu0 0
      %4801 = vperm.xlu0 %4800, %v4431
      %v4802 = vpop.permute.xlu0 %4801
      %4805 = vset.pattern.permute.xlu0 0
      %4806 = vperm.xlu0 %4805, %v4432
      %v4807 = vpop.permute.xlu0 %4806
      %4810 = vset.pattern.permute.xlu0 0
      %4811 = vperm.xlu0 %4810, %v4433
      %v4812 = vpop.permute.xlu0 %4811
      %4815 = vset.pattern.permute.xlu0 0
      %4816 = vperm.xlu0 %4815, %v4434
      %v4817 = vpop.permute.xlu0 %4816
      %4820 = vset.pattern.permute.xlu0 0
      %4821 = vperm.xlu0 %4820, %v4435
      %v4822 = vpop.permute.xlu0 %4821
      %4825 = vset.pattern.permute.xlu0 0
      %4826 = vperm.xlu0 %4825, %v4436
      %v4827 = vpop.permute.xlu0 %4826
      %4830 = vset.pattern.permute.xlu0 0
      %4831 = vperm.xlu0 %4830, %v4437
      %v4832 = vpop.permute.xlu0 %4831
      %4835 = vset.pattern.permute.xlu0 0
      %4836 = vperm.xlu0 %4835, %v4438
      %v4837 = vpop.permute.xlu0 %4836
      %4840 = vset.pattern.permute.xlu0 0
      %4841 = vperm.xlu0 %4840, %v4439
      %v4842 = vpop.permute.xlu0 %4841
      %4845 = vset.pattern.permute.xlu0 0
      %4846 = vperm.xlu0 %4845, %v4440
      %v4847 = vpop.permute.xlu0 %4846
      %4850 = vset.pattern.permute.xlu0 0
      %4851 = vperm.xlu0 %4850, %v4441
      %v4852 = vpop.permute.xlu0 %4851
      %4855 = vset.pattern.permute.xlu0 0
      %4856 = vperm.xlu0 %4855, %v4442
      %v4857 = vpop.permute.xlu0 %4856
      %4860 = vset.pattern.permute.xlu0 0
      %4861 = vperm.xlu0 %4860, %v4443
      %v4862 = vpop.permute.xlu0 %4861
      %4865 = vset.pattern.permute.xlu0 0
      %4866 = vperm.xlu0 %4865, %v4444
      %v4867 = vpop.permute.xlu0 %4866
      %4870 = vset.pattern.permute.xlu0 0
      %4871 = vperm.xlu0 %4870, %v4445
      %v4872 = vpop.permute.xlu0 %4871
      %4875 = vset.pattern.permute.xlu0 0
      %4876 = vperm.xlu0 %4875, %v4446
      %v4877 = vpop.permute.xlu0 %4876
      %4880 = vset.pattern.permute.xlu0 0
      %4881 = vperm.xlu0 %4880, %v4447
      %v4882 = vpop.permute.xlu0 %4881
      %4885 = vset.pattern.permute.xlu0 0
      %4886 = vperm.xlu0 %4885, %v4448
      %v4887 = vpop.permute.xlu0 %4886
      %4890 = vset.pattern.permute.xlu0 0
      %4891 = vperm.xlu0 %4890, %v4449
      %v4892 = vpop.permute.xlu0 %4891
      %4895 = vset.pattern.permute.xlu0 0
      %4896 = vperm.xlu0 %4895, %v4450
      %v4897 = vpop.permute.xlu0 %4896
      %4900 = vset.pattern.permute.xlu0 0
      %4901 = vperm.xlu0 %4900, %v4451
      %v4902 = vpop.permute.xlu0 %4901
      %4905 = vset.pattern.permute.xlu0 0
      %4906 = vperm.xlu0 %4905, %v4452
      %v4907 = vpop.permute.xlu0 %4906
      %4910 = vset.pattern.permute.xlu0 0
      %4911 = vperm.xlu0 %4910, %v4453
      %v4912 = vpop.permute.xlu0 %4911
      %4915 = vset.pattern.permute.xlu0 0
      %4916 = vperm.xlu0 %4915, %v4454
      %v4917 = vpop.permute.xlu0 %4916
      %4920 = vset.pattern.permute.xlu0 0
      %4921 = vperm.xlu0 %4920, %v4455
      %v4922 = vpop.permute.xlu0 %4921
      %4925 = vset.pattern.permute.xlu0 0
      %4926 = vperm.xlu0 %4925, %v4456
      %v4927 = vpop.permute.xlu0 %4926
      %4930 = vset.pattern.permute.xlu0 0
      %4931 = vperm.xlu0 %4930, %v4457
      %v4932 = vpop.permute.xlu0 %4931
      %4935 = vset.pattern.permute.xlu0 0
      %4936 = vperm.xlu0 %4935, %v4458
      %v4937 = vpop.permute.xlu0 %4936
      %4940 = vset.pattern.permute.xlu0 0
      %4941 = vperm.xlu0 %4940, %v4459
      %v4942 = vpop.permute.xlu0 %4941
      %4945 = vset.pattern.permute.xlu0 0
      %4946 = vperm.xlu0 %4945, %v4460
      %v4947 = vpop.permute.xlu0 %4946
      %4950 = vset.pattern.permute.xlu0 0
      %4951 = vperm.xlu0 %4950, %v4461
      %v4952 = vpop.permute.xlu0 %4951
      %4955 = vset.pattern.permute.xlu0 0
      %4956 = vperm.xlu0 %4955, %v4462
      %v4957 = vpop.permute.xlu0 %4956
      %4960 = vset.pattern.permute.xlu0 0
      %4961 = vperm.xlu0 %4960, %v4463
      %v4962 = vpop.permute.xlu0 %4961
      %4965 = vset.pattern.permute.xlu0 0
      %4966 = vperm.xlu0 %4965, %v4464
      %v4967 = vpop.permute.xlu0 %4966
      %4970 = vset.pattern.permute.xlu0 0
      %4971 = vperm.xlu0 %4970, %v4465
      %v4972 = vpop.permute.xlu0 %4971
      %4975 = vset.pattern.permute.xlu0 0
      %4976 = vperm.xlu0 %4975, %v4466
      %v4977 = vpop.permute.xlu0 %4976
      %4980 = vset.pattern.permute.xlu0 0
      %4981 = vperm.xlu0 %4980, %v4467
      %v4982 = vpop.permute.xlu0 %4981
      %4985 = vset.pattern.permute.xlu0 0
      %4986 = vperm.xlu0 %4985, %v4468
      %v4987 = vpop.permute.xlu0 %4986
      %4990 = vset.pattern.permute.xlu0 0
      %4991 = vperm.xlu0 %4990, %v4469
      %v4992 = vpop.permute.xlu0 %4991
      %4995 = vset.pattern.permute.xlu0 0
      %4996 = vperm.xlu0 %4995, %v4470
      %v4997 = vpop.permute.xlu0 %4996
      %5000 = vset.pattern.permute.xlu0 0
      %5001 = vperm.xlu0 %5000, %v4471
      %v5002 = vpop.permute.xlu0 %5001
      %5005 = vset.pattern.permute.xlu0 0
      %5006 = vperm.xlu0 %5005, %v4472
      %v5007 = vpop.permute.xlu0 %5006
      %5010 = vset.pattern.permute.xlu0 0
      %5011 = vperm.xlu0 %5010, %v4473
      %v5012 = vpop.permute.xlu0 %5011
      %5015 = vset.pattern.permute.xlu0 0
      %5016 = vperm.xlu0 %5015, %v4474
      %v5017 = vpop.permute.xlu0 %5016
      %5020 = vset.pattern.permute.xlu0 0
      %5021 = vperm.xlu0 %5020, %v4475
      %v5022 = vpop.permute.xlu0 %5021
      %5025 = vset.pattern.permute.xlu0 0
      %5026 = vperm.xlu0 %5025, %v4476
      %v5027 = vpop.permute.xlu0 %5026
      %5030 = vset.pattern.permute.xlu0 0
      %5031 = vperm.xlu0 %5030, %v4477
      %v5032 = vpop.permute.xlu0 %5031
      %5035 = vset.pattern.permute.xlu0 0
      %5036 = vperm.xlu0 %5035, %v4478
      %v5037 = vpop.permute.xlu0 %5036
      %5040 = vset.pattern.permute.xlu0 0
      %5041 = vperm.xlu0 %5040, %v4479
      %v5042 = vpop.permute.xlu0 %5041
      %5045 = vset.pattern.permute.xlu0 0
      %5046 = vperm.xlu0 %5045, %v4480
      %v5047 = vpop.permute.xlu0 %5046
      %5050 = vset.pattern.permute.xlu0 0
      %5051 = vperm.xlu0 %5050, %v4481
      %v5052 = vpop.permute.xlu0 %5051
      %5055 = vset.pattern.permute.xlu0 0
      %5056 = vperm.xlu0 %5055, %v4482
      %v5057 = vpop.permute.xlu0 %5056
      %5060 = vset.pattern.permute.xlu0 0
      %5061 = vperm.xlu0 %5060, %v4483
      %v5062 = vpop.permute.xlu0 %5061
      %5065 = vset.pattern.permute.xlu0 0
      %5066 = vperm.xlu0 %5065, %v4484
      %v5067 = vpop.permute.xlu0 %5066
      %5070 = vset.pattern.permute.xlu0 0
      %5071 = vperm.xlu0 %5070, %v4485
      %v5072 = vpop.permute.xlu0 %5071
      %5075 = vset.pattern.permute.xlu0 0
      %5076 = vperm.xlu0 %5075, %v4486
      %v5077 = vpop.permute.xlu0 %5076
      %5080 = vset.pattern.permute.xlu0 0
      %5081 = vperm.xlu0 %5080, %v4487
      %v5082 = vpop.permute.xlu0 %5081
      %5085 = vset.pattern.permute.xlu0 0
      %5086 = vperm.xlu0 %5085, %v4488
      %v5087 = vpop.permute.xlu0 %5086
      %5090 = vset.pattern.permute.xlu0 0
      %5091 = vperm.xlu0 %5090, %v4489
      %v5092 = vpop.permute.xlu0 %5091
      %5095 = vset.pattern.permute.xlu0 0
      %5096 = vperm.xlu0 %5095, %v4490
      %v5097 = vpop.permute.xlu0 %5096
      %5100 = vset.pattern.permute.xlu0 0
      %5101 = vperm.xlu0 %5100, %v4491
      %v5102 = vpop.permute.xlu0 %5101
      %5105 = vset.pattern.permute.xlu0 0
      %5106 = vperm.xlu0 %5105, %v4492
      %v5107 = vpop.permute.xlu0 %5106
      %5110 = vset.pattern.permute.xlu0 0
      %5111 = vperm.xlu0 %5110, %v4493
      %v5112 = vpop.permute.xlu0 %5111
      %5115 = vset.pattern.permute.xlu0 0
      %5116 = vperm.xlu0 %5115, %v4494
      %v5117 = vpop.permute.xlu0 %5116
      %5120 = vset.pattern.permute.xlu0 0
      %5121 = vperm.xlu0 %5120, %v4495
      %v5122 = vpop.permute.xlu0 %5121
      %5125 = vset.pattern.permute.xlu0 0
      %5126 = vperm.xlu0 %5125, %v4496
      %v5127 = vpop.permute.xlu0 %5126
      %5130 = vset.pattern.permute.xlu0 0
      %5131 = vperm.xlu0 %5130, %v4497
      %v5132 = vpop.permute.xlu0 %5131
      %5135 = vset.pattern.permute.xlu0 0
      %5136 = vperm.xlu0 %5135, %v4498
      %v5137 = vpop.permute.xlu0 %5136
      %v5139 = vadd.f32 %v4115, %v4502
      %v5140 = vadd.f32 %v4116, %v4502
      %v5141 = vadd.f32 %v4117, %v4507
      %v5142 = vadd.f32 %v4118, %v4507
      %v5143 = vadd.f32 %v4119, %v4512
      %v5144 = vadd.f32 %v4120, %v4512
      %v5145 = vadd.f32 %v4121, %v4517
      %v5146 = vadd.f32 %v4122, %v4517
      %v5147 = vadd.f32 %v4123, %v4522
      %v5148 = vadd.f32 %v4124, %v4522
      %v5149 = vadd.f32 %v4125, %v4527
      %v5150 = vadd.f32 %v4126, %v4527
      %v5151 = vadd.f32 %v4127, %v4532
      %v5152 = vadd.f32 %v4128, %v4532
      %v5153 = vadd.f32 %v4129, %v4537
      %v5154 = vadd.f32 %v4130, %v4537
      %v5155 = vadd.f32 %v4131, %v4542
      %v5156 = vadd.f32 %v4132, %v4542
      %v5157 = vadd.f32 %v4133, %v4547
      %v5158 = vadd.f32 %v4134, %v4547
      %v5159 = vadd.f32 %v4135, %v4552
      %v5160 = vadd.f32 %v4136, %v4552
      %v5161 = vadd.f32 %v4137, %v4557
      %v5162 = vadd.f32 %v4138, %v4557
      %v5163 = vadd.f32 %v4139, %v4562
      %v5164 = vadd.f32 %v4140, %v4562
      %v5165 = vadd.f32 %v4141, %v4567
      %v5166 = vadd.f32 %v4142, %v4567
      %v5167 = vadd.f32 %v4143, %v4572
      %v5168 = vadd.f32 %v4144, %v4572
      %v5169 = vadd.f32 %v4145, %v4577
      %v5170 = vadd.f32 %v4146, %v4577
      %v5171 = vadd.f32 %v4147, %v4582
      %v5172 = vadd.f32 %v4148, %v4582
      %v5173 = vadd.f32 %v4149, %v4587
      %v5174 = vadd.f32 %v4150, %v4587
      %v5175 = vadd.f32 %v4151, %v4592
      %v5176 = vadd.f32 %v4152, %v4592
      %v5177 = vadd.f32 %v4153, %v4597
      %v5178 = vadd.f32 %v4154, %v4597
      %v5179 = vadd.f32 %v4155, %v4602
      %v5180 = vadd.f32 %v4156, %v4602
      %v5181 = vadd.f32 %v4157, %v4607
      %v5182 = vadd.f32 %v4158, %v4607
      %v5183 = vadd.f32 %v4159, %v4612
      %v5184 = vadd.f32 %v4160, %v4612
      %v5185 = vadd.f32 %v4161, %v4617
      %v5186 = vadd.f32 %v4162, %v4617
      %v5187 = vadd.f32 %v4163, %v4622
      %v5188 = vadd.f32 %v4164, %v4622
      %v5189 = vadd.f32 %v4165, %v4627
      %v5190 = vadd.f32 %v4166, %v4627
      %v5191 = vadd.f32 %v4167, %v4632
      %v5192 = vadd.f32 %v4168, %v4632
      %v5193 = vadd.f32 %v4169, %v4637
      %v5194 = vadd.f32 %v4170, %v4637
      %v5195 = vadd.f32 %v4171, %v4642
      %v5196 = vadd.f32 %v4172, %v4642
      %v5197 = vadd.f32 %v4173, %v4647
      %v5198 = vadd.f32 %v4174, %v4647
      %v5199 = vadd.f32 %v4175, %v4652
      %v5200 = vadd.f32 %v4176, %v4652
      %v5201 = vadd.f32 %v4177, %v4657
      %v5202 = vadd.f32 %v4178, %v4657
      %v5203 = vadd.f32 %v4179, %v4662
      %v5204 = vadd.f32 %v4180, %v4662
      %v5205 = vadd.f32 %v4181, %v4667
      %v5206 = vadd.f32 %v4182, %v4667
      %v5207 = vadd.f32 %v4183, %v4672
      %v5208 = vadd.f32 %v4184, %v4672
      %v5209 = vadd.f32 %v4185, %v4677
      %v5210 = vadd.f32 %v4186, %v4677
      %v5211 = vadd.f32 %v4187, %v4682
      %v5212 = vadd.f32 %v4188, %v4682
      %v5213 = vadd.f32 %v4189, %v4687
      %v5214 = vadd.f32 %v4190, %v4687
      %v5215 = vadd.f32 %v4191, %v4692
      %v5216 = vadd.f32 %v4192, %v4692
      %v5217 = vadd.f32 %v4193, %v4697
      %v5218 = vadd.f32 %v4194, %v4697
      %v5219 = vadd.f32 %v4195, %v4702
      %v5220 = vadd.f32 %v4196, %v4702
      %v5221 = vadd.f32 %v4197, %v4707
      %v5222 = vadd.f32 %v4198, %v4707
      %v5223 = vadd.f32 %v4199, %v4712
      %v5224 = vadd.f32 %v4200, %v4712
      %v5225 = vadd.f32 %v4201, %v4717
      %v5226 = vadd.f32 %v4202, %v4717
      %v5227 = vadd.f32 %v4203, %v4722
      %v5228 = vadd.f32 %v4204, %v4722
      %v5229 = vadd.f32 %v4205, %v4727
      %v5230 = vadd.f32 %v4206, %v4727
      %v5231 = vadd.f32 %v4207, %v4732
      %v5232 = vadd.f32 %v4208, %v4732
      %v5233 = vadd.f32 %v4209, %v4737
      %v5234 = vadd.f32 %v4210, %v4737
      %v5235 = vadd.f32 %v4211, %v4742
      %v5236 = vadd.f32 %v4212, %v4742
      %v5237 = vadd.f32 %v4213, %v4747
      %v5238 = vadd.f32 %v4214, %v4747
      %v5239 = vadd.f32 %v4215, %v4752
      %v5240 = vadd.f32 %v4216, %v4752
      %v5241 = vadd.f32 %v4217, %v4757
      %v5242 = vadd.f32 %v4218, %v4757
      %v5243 = vadd.f32 %v4219, %v4762
      %v5244 = vadd.f32 %v4220, %v4762
      %v5245 = vadd.f32 %v4221, %v4767
      %v5246 = vadd.f32 %v4222, %v4767
      %v5247 = vadd.f32 %v4223, %v4772
      %v5248 = vadd.f32 %v4224, %v4772
      %v5249 = vadd.f32 %v4225, %v4777
      %v5250 = vadd.f32 %v4226, %v4777
      %v5251 = vadd.f32 %v4227, %v4782
      %v5252 = vadd.f32 %v4228, %v4782
      %v5253 = vadd.f32 %v4229, %v4787
      %v5254 = vadd.f32 %v4230, %v4787
      %v5255 = vadd.f32 %v4231, %v4792
      %v5256 = vadd.f32 %v4232, %v4792
      %v5257 = vadd.f32 %v4233, %v4797
      %v5258 = vadd.f32 %v4234, %v4797
      %v5259 = vadd.f32 %v4235, %v4802
      %v5260 = vadd.f32 %v4236, %v4802
      %v5261 = vadd.f32 %v4237, %v4807
      %v5262 = vadd.f32 %v4238, %v4807
      %v5263 = vadd.f32 %v4239, %v4812
      %v5264 = vadd.f32 %v4240, %v4812
      %v5265 = vadd.f32 %v4241, %v4817
      %v5266 = vadd.f32 %v4242, %v4817
      %v5267 = vadd.f32 %v4243, %v4822
      %v5268 = vadd.f32 %v4244, %v4822
      %v5269 = vadd.f32 %v4245, %v4827
      %v5270 = vadd.f32 %v4246, %v4827
      %v5271 = vadd.f32 %v4247, %v4832
      %v5272 = vadd.f32 %v4248, %v4832
      %v5273 = vadd.f32 %v4249, %v4837
      %v5274 = vadd.f32 %v4250, %v4837
      %v5275 = vadd.f32 %v4251, %v4842
      %v5276 = vadd.f32 %v4252, %v4842
      %v5277 = vadd.f32 %v4253, %v4847
      %v5278 = vadd.f32 %v4254, %v4847
      %v5279 = vadd.f32 %v4255, %v4852
      %v5280 = vadd.f32 %v4256, %v4852
      %v5281 = vadd.f32 %v4257, %v4857
      %v5282 = vadd.f32 %v4258, %v4857
      %v5283 = vadd.f32 %v4259, %v4862
      %v5284 = vadd.f32 %v4260, %v4862
      %v5285 = vadd.f32 %v4261, %v4867
      %v5286 = vadd.f32 %v4262, %v4867
      %v5287 = vadd.f32 %v4263, %v4872
      %v5288 = vadd.f32 %v4264, %v4872
      %v5289 = vadd.f32 %v4265, %v4877
      %v5290 = vadd.f32 %v4266, %v4877
      %v5291 = vadd.f32 %v4267, %v4882
      %v5292 = vadd.f32 %v4268, %v4882
      %v5293 = vadd.f32 %v4269, %v4887
      %v5294 = vadd.f32 %v4270, %v4887
      %v5295 = vadd.f32 %v4271, %v4892
      %v5296 = vadd.f32 %v4272, %v4892
      %v5297 = vadd.f32 %v4273, %v4897
      %v5298 = vadd.f32 %v4274, %v4897
      %v5299 = vadd.f32 %v4275, %v4902
      %v5300 = vadd.f32 %v4276, %v4902
      %v5301 = vadd.f32 %v4277, %v4907
      %v5302 = vadd.f32 %v4278, %v4907
      %v5303 = vadd.f32 %v4279, %v4912
      %v5304 = vadd.f32 %v4280, %v4912
      %v5305 = vadd.f32 %v4281, %v4917
      %v5306 = vadd.f32 %v4282, %v4917
      %v5307 = vadd.f32 %v4283, %v4922
      %v5308 = vadd.f32 %v4284, %v4922
      %v5309 = vadd.f32 %v4285, %v4927
      %v5310 = vadd.f32 %v4286, %v4927
      %v5311 = vadd.f32 %v4287, %v4932
      %v5312 = vadd.f32 %v4288, %v4932
      %v5313 = vadd.f32 %v4289, %v4937
      %v5314 = vadd.f32 %v4290, %v4937
      %v5315 = vadd.f32 %v4291, %v4942
      %v5316 = vadd.f32 %v4292, %v4942
      %v5317 = vadd.f32 %v4293, %v4947
      %v5318 = vadd.f32 %v4294, %v4947
      %v5319 = vadd.f32 %v4295, %v4952
      %v5320 = vadd.f32 %v4296, %v4952
      %v5321 = vadd.f32 %v4297, %v4957
      %v5322 = vadd.f32 %v4298, %v4957
      %v5323 = vadd.f32 %v4299, %v4962
      %v5324 = vadd.f32 %v4300, %v4962
      %v5325 = vadd.f32 %v4301, %v4967
      %v5326 = vadd.f32 %v4302, %v4967
      %v5327 = vadd.f32 %v4303, %v4972
      %v5328 = vadd.f32 %v4304, %v4972
      %v5329 = vadd.f32 %v4305, %v4977
      %v5330 = vadd.f32 %v4306, %v4977
      %v5331 = vadd.f32 %v4307, %v4982
      %v5332 = vadd.f32 %v4308, %v4982
      %v5333 = vadd.f32 %v4309, %v4987
      %v5334 = vadd.f32 %v4310, %v4987
      %v5335 = vadd.f32 %v4311, %v4992
      %v5336 = vadd.f32 %v4312, %v4992
      %v5337 = vadd.f32 %v4313, %v4997
      %v5338 = vadd.f32 %v4314, %v4997
      %v5339 = vadd.f32 %v4315, %v5002
      %v5340 = vadd.f32 %v4316, %v5002
      %v5341 = vadd.f32 %v4317, %v5007
      %v5342 = vadd.f32 %v4318, %v5007
      %v5343 = vadd.f32 %v4319, %v5012
      %v5344 = vadd.f32 %v4320, %v5012
      %v5345 = vadd.f32 %v4321, %v5017
      %v5346 = vadd.f32 %v4322, %v5017
      %v5347 = vadd.f32 %v4323, %v5022
      %v5348 = vadd.f32 %v4324, %v5022
      %v5349 = vadd.f32 %v4325, %v5027
      %v5350 = vadd.f32 %v4326, %v5027
      %v5351 = vadd.f32 %v4327, %v5032
      %v5352 = vadd.f32 %v4328, %v5032
      %v5353 = vadd.f32 %v4329, %v5037
      %v5354 = vadd.f32 %v4330, %v5037
      %v5355 = vadd.f32 %v4331, %v5042
      %v5356 = vadd.f32 %v4332, %v5042
      %v5357 = vadd.f32 %v4333, %v5047
      %v5358 = vadd.f32 %v4334, %v5047
      %v5359 = vadd.f32 %v4335, %v5052
      %v5360 = vadd.f32 %v4336, %v5052
      %v5361 = vadd.f32 %v4337, %v5057
      %v5362 = vadd.f32 %v4338, %v5057
      %v5363 = vadd.f32 %v4339, %v5062
      %v5364 = vadd.f32 %v4340, %v5062
      %v5365 = vadd.f32 %v4341, %v5067
      %v5366 = vadd.f32 %v4342, %v5067
      %v5367 = vadd.f32 %v4343, %v5072
      %v5368 = vadd.f32 %v4344, %v5072
      %v5369 = vadd.f32 %v4345, %v5077
      %v5370 = vadd.f32 %v4346, %v5077
      %v5371 = vadd.f32 %v4347, %v5082
      %v5372 = vadd.f32 %v4348, %v5082
      %v5373 = vadd.f32 %v4349, %v5087
      %v5374 = vadd.f32 %v4350, %v5087
      %v5375 = vadd.f32 %v4351, %v5092
      %v5376 = vadd.f32 %v4352, %v5092
      %v5377 = vadd.f32 %v4353, %v5097
      %v5378 = vadd.f32 %v4354, %v5097
      %v5379 = vadd.f32 %v4355, %v5102
      %v5380 = vadd.f32 %v4356, %v5102
      %v5381 = vadd.f32 %v4357, %v5107
      %v5382 = vadd.f32 %v4358, %v5107
      %v5383 = vadd.f32 %v4359, %v5112
      %v5384 = vadd.f32 %v4360, %v5112
      %v5385 = vadd.f32 %v4361, %v5117
      %v5386 = vadd.f32 %v4362, %v5117
      %v5387 = vadd.f32 %v4363, %v5122
      %v5388 = vadd.f32 %v4364, %v5122
      %v5389 = vadd.f32 %v4365, %v5127
      %v5390 = vadd.f32 %v4366, %v5127
      %v5391 = vadd.f32 %v4367, %v5132
      %v5392 = vadd.f32 %v4368, %v5132
      %v5393 = vadd.f32 %v4369, %v5137
      %v5394 = vadd.f32 %v4370, %v5137
      %v5395 = vld [vmem:[%s10] sm:$0xff]
      %v5396 = vld [vmem:[%s10 + $0x8] sm:$0xff]
      %v5397 = vld [vmem:[%s10 + $0x10] sm:$0xff]
      %v5398 = vld [vmem:[%s10 + $0x18] sm:$0xff]
      %v5399 = vld [vmem:[%s10 + $0x20] sm:$0xff]
      %v5400 = vld [vmem:[%s10 + $0x28] sm:$0xff]
      %v5401 = vld [vmem:[%s10 + $0x30] sm:$0xff]
      %v5402 = vld [vmem:[%s10 + $0x38] sm:$0xff]
      %v5403 = vld [vmem:[%s10 + $0x40] sm:$0xff]
      %v5404 = vld [vmem:[%s10 + $0x48] sm:$0xff]
      %v5405 = vld [vmem:[%s10 + $0x50] sm:$0xff]
      %v5406 = vld [vmem:[%s10 + $0x58] sm:$0xff]
      %v5407 = vld [vmem:[%s10 + $0x60] sm:$0xff]
      %v5408 = vld [vmem:[%s10 + $0x68] sm:$0xff]
      %v5409 = vld [vmem:[%s10 + $0x70] sm:$0xff]
      %v5410 = vld [vmem:[%s10 + $0x78] sm:$0xff]
      %v5411 = vld [vmem:[%s10 + $0x80] sm:$0xff]
      %v5412 = vld [vmem:[%s10 + $0x88] sm:$0xff]
      %v5413 = vld [vmem:[%s10 + $0x90] sm:$0xff]
      %v5414 = vld [vmem:[%s10 + $0x98] sm:$0xff]
      %v5415 = vld [vmem:[%s10 + $0xa0] sm:$0xff]
      %v5416 = vld [vmem:[%s10 + $0xa8] sm:$0xff]
      %v5417 = vld [vmem:[%s10 + $0xb0] sm:$0xff]
      %v5418 = vld [vmem:[%s10 + $0xb8] sm:$0xff]
      %v5419 = vld [vmem:[%s10 + $0xc0] sm:$0xff]
      %v5420 = vld [vmem:[%s10 + $0xc8] sm:$0xff]
      %v5421 = vld [vmem:[%s10 + $0xd0] sm:$0xff]
      %v5422 = vld [vmem:[%s10 + $0xd8] sm:$0xff]
      %v5423 = vld [vmem:[%s10 + $0xe0] sm:$0xff]
      %v5424 = vld [vmem:[%s10 + $0xe8] sm:$0xff]
      %v5425 = vld [vmem:[%s10 + $0xf0] sm:$0xff]
      %v5426 = vld [vmem:[%s10 + $0xf8] sm:$0xff]
      %v5427 = vld [vmem:[%s10 + $0x100] sm:$0xff]
      %v5428 = vld [vmem:[%s10 + $0x108] sm:$0xff]
      %v5429 = vld [vmem:[%s10 + $0x110] sm:$0xff]
      %v5430 = vld [vmem:[%s10 + $0x118] sm:$0xff]
      %v5431 = vld [vmem:[%s10 + $0x120] sm:$0xff]
      %v5432 = vld [vmem:[%s10 + $0x128] sm:$0xff]
      %v5433 = vld [vmem:[%s10 + $0x130] sm:$0xff]
      %v5434 = vld [vmem:[%s10 + $0x138] sm:$0xff]
      %v5435 = vld [vmem:[%s10 + $0x140] sm:$0xff]
      %v5436 = vld [vmem:[%s10 + $0x148] sm:$0xff]
      %v5437 = vld [vmem:[%s10 + $0x150] sm:$0xff]
      %v5438 = vld [vmem:[%s10 + $0x158] sm:$0xff]
      %v5439 = vld [vmem:[%s10 + $0x160] sm:$0xff]
      %v5440 = vld [vmem:[%s10 + $0x168] sm:$0xff]
      %v5441 = vld [vmem:[%s10 + $0x170] sm:$0xff]
      %v5442 = vld [vmem:[%s10 + $0x178] sm:$0xff]
      %v5443 = vld [vmem:[%s10 + $0x180] sm:$0xff]
      %v5444 = vld [vmem:[%s10 + $0x188] sm:$0xff]
      %v5445 = vld [vmem:[%s10 + $0x190] sm:$0xff]
      %v5446 = vld [vmem:[%s10 + $0x198] sm:$0xff]
      %v5447 = vld [vmem:[%s10 + $0x1a0] sm:$0xff]
      %v5448 = vld [vmem:[%s10 + $0x1a8] sm:$0xff]
      %v5449 = vld [vmem:[%s10 + $0x1b0] sm:$0xff]
      %v5450 = vld [vmem:[%s10 + $0x1b8] sm:$0xff]
      %v5451 = vld [vmem:[%s10 + $0x1c0] sm:$0xff]
      %v5452 = vld [vmem:[%s10 + $0x1c8] sm:$0xff]
      %v5453 = vld [vmem:[%s10 + $0x1d0] sm:$0xff]
      %v5454 = vld [vmem:[%s10 + $0x1d8] sm:$0xff]
      %v5455 = vld [vmem:[%s10 + $0x1e0] sm:$0xff]
      %v5456 = vld [vmem:[%s10 + $0x1e8] sm:$0xff]
      %v5457 = vld [vmem:[%s10 + $0x1f0] sm:$0xff]
      %v5458 = vld [vmem:[%s10 + $0x1f8] sm:$0xff]
      %v5459 = vpack.c.bf16 %v5141, %v5139
      %v5460 = vpack.c.bf16 %v5142, %v5140
      %v5461 = vpack.c.bf16 %v5145, %v5143
      %v5462 = vpack.c.bf16 %v5146, %v5144
      %v5463 = vpack.c.bf16 %v5149, %v5147
      %v5464 = vpack.c.bf16 %v5150, %v5148
      %v5465 = vpack.c.bf16 %v5153, %v5151
      %v5466 = vpack.c.bf16 %v5154, %v5152
      %v5467 = vpack.c.bf16 %v5157, %v5155
      %v5468 = vpack.c.bf16 %v5158, %v5156
      %v5469 = vpack.c.bf16 %v5161, %v5159
      %v5470 = vpack.c.bf16 %v5162, %v5160
      %v5471 = vpack.c.bf16 %v5165, %v5163
      %v5472 = vpack.c.bf16 %v5166, %v5164
      %v5473 = vpack.c.bf16 %v5169, %v5167
      %v5474 = vpack.c.bf16 %v5170, %v5168
      %v5475 = vpack.c.bf16 %v5173, %v5171
      %v5476 = vpack.c.bf16 %v5174, %v5172
      %v5477 = vpack.c.bf16 %v5177, %v5175
      %v5478 = vpack.c.bf16 %v5178, %v5176
      %v5479 = vpack.c.bf16 %v5181, %v5179
      %v5480 = vpack.c.bf16 %v5182, %v5180
      %v5481 = vpack.c.bf16 %v5185, %v5183
      %v5482 = vpack.c.bf16 %v5186, %v5184
      %v5483 = vpack.c.bf16 %v5189, %v5187
      %v5484 = vpack.c.bf16 %v5190, %v5188
      %v5485 = vpack.c.bf16 %v5193, %v5191
      %v5486 = vpack.c.bf16 %v5194, %v5192
      %v5487 = vpack.c.bf16 %v5197, %v5195
      %v5488 = vpack.c.bf16 %v5198, %v5196
      %v5489 = vpack.c.bf16 %v5201, %v5199
      %v5490 = vpack.c.bf16 %v5202, %v5200
      %v5491 = vpack.c.bf16 %v5205, %v5203
      %v5492 = vpack.c.bf16 %v5206, %v5204
      %v5493 = vpack.c.bf16 %v5209, %v5207
      %v5494 = vpack.c.bf16 %v5210, %v5208
      %v5495 = vpack.c.bf16 %v5213, %v5211
      %v5496 = vpack.c.bf16 %v5214, %v5212
      %v5497 = vpack.c.bf16 %v5217, %v5215
      %v5498 = vpack.c.bf16 %v5218, %v5216
      %v5499 = vpack.c.bf16 %v5221, %v5219
      %v5500 = vpack.c.bf16 %v5222, %v5220
      %v5501 = vpack.c.bf16 %v5225, %v5223
      %v5502 = vpack.c.bf16 %v5226, %v5224
      %v5503 = vpack.c.bf16 %v5229, %v5227
      %v5504 = vpack.c.bf16 %v5230, %v5228
      %v5505 = vpack.c.bf16 %v5233, %v5231
      %v5506 = vpack.c.bf16 %v5234, %v5232
      %v5507 = vpack.c.bf16 %v5237, %v5235
      %v5508 = vpack.c.bf16 %v5238, %v5236
      %v5509 = vpack.c.bf16 %v5241, %v5239
      %v5510 = vpack.c.bf16 %v5242, %v5240
      %v5511 = vpack.c.bf16 %v5245, %v5243
      %v5512 = vpack.c.bf16 %v5246, %v5244
      %v5513 = vpack.c.bf16 %v5249, %v5247
      %v5514 = vpack.c.bf16 %v5250, %v5248
      %v5515 = vpack.c.bf16 %v5253, %v5251
      %v5516 = vpack.c.bf16 %v5254, %v5252
      %v5517 = vpack.c.bf16 %v5257, %v5255
      %v5518 = vpack.c.bf16 %v5258, %v5256
      %v5519 = vpack.c.bf16 %v5261, %v5259
      %v5520 = vpack.c.bf16 %v5262, %v5260
      %v5521 = vpack.c.bf16 %v5265, %v5263
      %v5522 = vpack.c.bf16 %v5266, %v5264
      %v5523 = vpack.c.bf16 %v5269, %v5267
      %v5524 = vpack.c.bf16 %v5270, %v5268
      %v5525 = vpack.c.bf16 %v5273, %v5271
      %v5526 = vpack.c.bf16 %v5274, %v5272
      %v5527 = vpack.c.bf16 %v5277, %v5275
      %v5528 = vpack.c.bf16 %v5278, %v5276
      %v5529 = vpack.c.bf16 %v5281, %v5279
      %v5530 = vpack.c.bf16 %v5282, %v5280
      %v5531 = vpack.c.bf16 %v5285, %v5283
      %v5532 = vpack.c.bf16 %v5286, %v5284
      %v5533 = vpack.c.bf16 %v5289, %v5287
      %v5534 = vpack.c.bf16 %v5290, %v5288
      %v5535 = vpack.c.bf16 %v5293, %v5291
      %v5536 = vpack.c.bf16 %v5294, %v5292
      %v5537 = vpack.c.bf16 %v5297, %v5295
      %v5538 = vpack.c.bf16 %v5298, %v5296
      %v5539 = vpack.c.bf16 %v5301, %v5299
      %v5540 = vpack.c.bf16 %v5302, %v5300
      %v5541 = vpack.c.bf16 %v5305, %v5303
      %v5542 = vpack.c.bf16 %v5306, %v5304
      %v5543 = vpack.c.bf16 %v5309, %v5307
      %v5544 = vpack.c.bf16 %v5310, %v5308
      %v5545 = vpack.c.bf16 %v5313, %v5311
      %v5546 = vpack.c.bf16 %v5314, %v5312
      %v5547 = vpack.c.bf16 %v5317, %v5315
      %v5548 = vpack.c.bf16 %v5318, %v5316
      %v5549 = vpack.c.bf16 %v5321, %v5319
      %v5550 = vpack.c.bf16 %v5322, %v5320
      %v5551 = vpack.c.bf16 %v5325, %v5323
      %v5552 = vpack.c.bf16 %v5326, %v5324
      %v5553 = vpack.c.bf16 %v5329, %v5327
      %v5554 = vpack.c.bf16 %v5330, %v5328
      %v5555 = vpack.c.bf16 %v5333, %v5331
      %v5556 = vpack.c.bf16 %v5334, %v5332
      %v5557 = vpack.c.bf16 %v5337, %v5335
      %v5558 = vpack.c.bf16 %v5338, %v5336
      %v5559 = vpack.c.bf16 %v5341, %v5339
      %v5560 = vpack.c.bf16 %v5342, %v5340
      %v5561 = vpack.c.bf16 %v5345, %v5343
      %v5562 = vpack.c.bf16 %v5346, %v5344
      %v5563 = vpack.c.bf16 %v5349, %v5347
      %v5564 = vpack.c.bf16 %v5350, %v5348
      %v5565 = vpack.c.bf16 %v5353, %v5351
      %v5566 = vpack.c.bf16 %v5354, %v5352
      %v5567 = vpack.c.bf16 %v5357, %v5355
      %v5568 = vpack.c.bf16 %v5358, %v5356
      %v5569 = vpack.c.bf16 %v5361, %v5359
      %v5570 = vpack.c.bf16 %v5362, %v5360
      %v5571 = vpack.c.bf16 %v5365, %v5363
      %v5572 = vpack.c.bf16 %v5366, %v5364
      %v5573 = vpack.c.bf16 %v5369, %v5367
      %v5574 = vpack.c.bf16 %v5370, %v5368
      %v5575 = vpack.c.bf16 %v5373, %v5371
      %v5576 = vpack.c.bf16 %v5374, %v5372
      %v5577 = vpack.c.bf16 %v5377, %v5375
      %v5578 = vpack.c.bf16 %v5378, %v5376
      %v5579 = vpack.c.bf16 %v5381, %v5379
      %v5580 = vpack.c.bf16 %v5382, %v5380
      %v5581 = vpack.c.bf16 %v5385, %v5383
      %v5582 = vpack.c.bf16 %v5386, %v5384
      %v5583 = vpack.c.bf16 %v5389, %v5387
      %v5584 = vpack.c.bf16 %v5390, %v5388
      %v5585 = vpack.c.bf16 %v5393, %v5391
      %v5586 = vpack.c.bf16 %v5394, %v5392
      %v5587 = vld [vmem:[%s11] sm:$0xff]
      %v5588 = vld [vmem:[%s11 + $0x8] sm:$0xff]
      %v5589 = vld [vmem:[%s11 + $0x10] sm:$0xff]
      %v5590 = vld [vmem:[%s11 + $0x18] sm:$0xff]
      %v5591 = vld [vmem:[%s11 + $0x20] sm:$0xff]
      %v5592 = vld [vmem:[%s11 + $0x28] sm:$0xff]
      %v5593 = vld [vmem:[%s11 + $0x30] sm:$0xff]
      %v5594 = vld [vmem:[%s11 + $0x38] sm:$0xff]
      %v5595 = vld [vmem:[%s11 + $0x40] sm:$0xff]
      %v5596 = vld [vmem:[%s11 + $0x48] sm:$0xff]
      %v5597 = vld [vmem:[%s11 + $0x50] sm:$0xff]
      %v5598 = vld [vmem:[%s11 + $0x58] sm:$0xff]
      %v5599 = vld [vmem:[%s11 + $0x60] sm:$0xff]
      %v5600 = vld [vmem:[%s11 + $0x68] sm:$0xff]
      %v5601 = vld [vmem:[%s11 + $0x70] sm:$0xff]
      %v5602 = vld [vmem:[%s11 + $0x78] sm:$0xff]
      %5604 = vset.pattern.permute.xlu0 0
      %5605 = vperm.xlu0 %5604, %v5587
      %v5606 = vpop.permute.xlu0 %5605
      %5609 = vset.pattern.permute.xlu0 0
      %5610 = vperm.xlu0 %5609, %v5588
      %v5611 = vpop.permute.xlu0 %5610
      %5614 = vset.pattern.permute.xlu0 0
      %5615 = vperm.xlu0 %5614, %v5589
      %v5616 = vpop.permute.xlu0 %5615
      %5619 = vset.pattern.permute.xlu0 0
      %5620 = vperm.xlu0 %5619, %v5590
      %v5621 = vpop.permute.xlu0 %5620
      %5624 = vset.pattern.permute.xlu0 0
      %5625 = vperm.xlu0 %5624, %v5591
      %v5626 = vpop.permute.xlu0 %5625
      %5629 = vset.pattern.permute.xlu0 0
      %5630 = vperm.xlu0 %5629, %v5592
      %v5631 = vpop.permute.xlu0 %5630
      %5634 = vset.pattern.permute.xlu0 0
      %5635 = vperm.xlu0 %5634, %v5593
      %v5636 = vpop.permute.xlu0 %5635
      %5639 = vset.pattern.permute.xlu0 0
      %5640 = vperm.xlu0 %5639, %v5594
      %v5641 = vpop.permute.xlu0 %5640
      %5644 = vset.pattern.permute.xlu0 0
      %5645 = vperm.xlu0 %5644, %v5595
      %v5646 = vpop.permute.xlu0 %5645
      %5649 = vset.pattern.permute.xlu0 0
      %5650 = vperm.xlu0 %5649, %v5596
      %v5651 = vpop.permute.xlu0 %5650
      %5654 = vset.pattern.permute.xlu0 0
      %5655 = vperm.xlu0 %5654, %v5597
      %v5656 = vpop.permute.xlu0 %5655
      %5659 = vset.pattern.permute.xlu0 0
      %5660 = vperm.xlu0 %5659, %v5598
      %v5661 = vpop.permute.xlu0 %5660
      %5664 = vset.pattern.permute.xlu0 0
      %5665 = vperm.xlu0 %5664, %v5599
      %v5666 = vpop.permute.xlu0 %5665
      %5669 = vset.pattern.permute.xlu0 0
      %5670 = vperm.xlu0 %5669, %v5600
      %v5671 = vpop.permute.xlu0 %5670
      %5674 = vset.pattern.permute.xlu0 0
      %5675 = vperm.xlu0 %5674, %v5601
      %v5676 = vpop.permute.xlu0 %5675
      %5679 = vset.pattern.permute.xlu0 0
      %5680 = vperm.xlu0 %5679, %v5602
      %v5681 = vpop.permute.xlu0 %5680
      %v5747 = vunpack.c.l.b16 %v5395
      %v5748 = vunpack.c.h.b16 %v5395
      %v5749 = vunpack.c.l.b16 %v5396
      %v5750 = vunpack.c.h.b16 %v5396
      %v5751 = vunpack.c.l.b16 %v5397
      %v5752 = vunpack.c.h.b16 %v5397
      %v5753 = vunpack.c.l.b16 %v5398
      %v5754 = vunpack.c.h.b16 %v5398
      %v5755 = vunpack.c.l.b16 %v5399
      %v5756 = vunpack.c.h.b16 %v5399
      %v5757 = vunpack.c.l.b16 %v5400
      %v5758 = vunpack.c.h.b16 %v5400
      %v5759 = vunpack.c.l.b16 %v5401
      %v5760 = vunpack.c.h.b16 %v5401
      %v5761 = vunpack.c.l.b16 %v5402
      %v5762 = vunpack.c.h.b16 %v5402
      %v5763 = vunpack.c.l.b16 %v5403
      %v5764 = vunpack.c.h.b16 %v5403
      %v5765 = vunpack.c.l.b16 %v5404
      %v5766 = vunpack.c.h.b16 %v5404
      %v5767 = vunpack.c.l.b16 %v5405
      %v5768 = vunpack.c.h.b16 %v5405
      %v5769 = vunpack.c.l.b16 %v5406
      %v5770 = vunpack.c.h.b16 %v5406
      %v5771 = vunpack.c.l.b16 %v5407
      %v5772 = vunpack.c.h.b16 %v5407
      %v5773 = vunpack.c.l.b16 %v5408
      %v5774 = vunpack.c.h.b16 %v5408
      %v5775 = vunpack.c.l.b16 %v5409
      %v5776 = vunpack.c.h.b16 %v5409
      %v5777 = vunpack.c.l.b16 %v5410
      %v5778 = vunpack.c.h.b16 %v5410
      %v5779 = vunpack.c.l.b16 %v5411
      %v5780 = vunpack.c.h.b16 %v5411
      %v5781 = vunpack.c.l.b16 %v5412
      %v5782 = vunpack.c.h.b16 %v5412
      %v5783 = vunpack.c.l.b16 %v5413
      %v5784 = vunpack.c.h.b16 %v5413
      %v5785 = vunpack.c.l.b16 %v5414
      %v5786 = vunpack.c.h.b16 %v5414
      %v5787 = vunpack.c.l.b16 %v5415
      %v5788 = vunpack.c.h.b16 %v5415
      %v5789 = vunpack.c.l.b16 %v5416
      %v5790 = vunpack.c.h.b16 %v5416
      %v5791 = vunpack.c.l.b16 %v5417
      %v5792 = vunpack.c.h.b16 %v5417
      %v5793 = vunpack.c.l.b16 %v5418
      %v5794 = vunpack.c.h.b16 %v5418
      %v5795 = vunpack.c.l.b16 %v5419
      %v5796 = vunpack.c.h.b16 %v5419
      %v5797 = vunpack.c.l.b16 %v5420
      %v5798 = vunpack.c.h.b16 %v5420
      %v5799 = vunpack.c.l.b16 %v5421
      %v5800 = vunpack.c.h.b16 %v5421
      %v5801 = vunpack.c.l.b16 %v5422
      %v5802 = vunpack.c.h.b16 %v5422
      %v5803 = vunpack.c.l.b16 %v5423
      %v5804 = vunpack.c.h.b16 %v5423
      %v5805 = vunpack.c.l.b16 %v5424
      %v5806 = vunpack.c.h.b16 %v5424
      %v5807 = vunpack.c.l.b16 %v5425
      %v5808 = vunpack.c.h.b16 %v5425
      %v5809 = vunpack.c.l.b16 %v5426
      %v5810 = vunpack.c.h.b16 %v5426
      %v5811 = vunpack.c.l.b16 %v5427
      %v5812 = vunpack.c.h.b16 %v5427
      %v5813 = vunpack.c.l.b16 %v5428
      %v5814 = vunpack.c.h.b16 %v5428
      %v5815 = vunpack.c.l.b16 %v5429
      %v5816 = vunpack.c.h.b16 %v5429
      %v5817 = vunpack.c.l.b16 %v5430
      %v5818 = vunpack.c.h.b16 %v5430
      %v5819 = vunpack.c.l.b16 %v5431
      %v5820 = vunpack.c.h.b16 %v5431
      %v5821 = vunpack.c.l.b16 %v5432
      %v5822 = vunpack.c.h.b16 %v5432
      %v5823 = vunpack.c.l.b16 %v5433
      %v5824 = vunpack.c.h.b16 %v5433
      %v5825 = vunpack.c.l.b16 %v5434
      %v5826 = vunpack.c.h.b16 %v5434
      %v5827 = vunpack.c.l.b16 %v5435
      %v5828 = vunpack.c.h.b16 %v5435
      %v5829 = vunpack.c.l.b16 %v5436
      %v5830 = vunpack.c.h.b16 %v5436
      %v5831 = vunpack.c.l.b16 %v5437
      %v5832 = vunpack.c.h.b16 %v5437
      %v5833 = vunpack.c.l.b16 %v5438
      %v5834 = vunpack.c.h.b16 %v5438
      %v5835 = vunpack.c.l.b16 %v5439
      %v5836 = vunpack.c.h.b16 %v5439
      %v5837 = vunpack.c.l.b16 %v5440
      %v5838 = vunpack.c.h.b16 %v5440
      %v5839 = vunpack.c.l.b16 %v5441
      %v5840 = vunpack.c.h.b16 %v5441
      %v5841 = vunpack.c.l.b16 %v5442
      %v5842 = vunpack.c.h.b16 %v5442
      %v5843 = vunpack.c.l.b16 %v5443
      %v5844 = vunpack.c.h.b16 %v5443
      %v5845 = vunpack.c.l.b16 %v5444
      %v5846 = vunpack.c.h.b16 %v5444
      %v5847 = vunpack.c.l.b16 %v5445
      %v5848 = vunpack.c.h.b16 %v5445
      %v5849 = vunpack.c.l.b16 %v5446
      %v5850 = vunpack.c.h.b16 %v5446
      %v5851 = vunpack.c.l.b16 %v5447
      %v5852 = vunpack.c.h.b16 %v5447
      %v5853 = vunpack.c.l.b16 %v5448
      %v5854 = vunpack.c.h.b16 %v5448
      %v5855 = vunpack.c.l.b16 %v5449
      %v5856 = vunpack.c.h.b16 %v5449
      %v5857 = vunpack.c.l.b16 %v5450
      %v5858 = vunpack.c.h.b16 %v5450
      %v5859 = vunpack.c.l.b16 %v5451
      %v5860 = vunpack.c.h.b16 %v5451
      %v5861 = vunpack.c.l.b16 %v5452
      %v5862 = vunpack.c.h.b16 %v5452
      %v5863 = vunpack.c.l.b16 %v5453
      %v5864 = vunpack.c.h.b16 %v5453
      %v5865 = vunpack.c.l.b16 %v5454
      %v5866 = vunpack.c.h.b16 %v5454
      %v5867 = vunpack.c.l.b16 %v5455
      %v5868 = vunpack.c.h.b16 %v5455
      %v5869 = vunpack.c.l.b16 %v5456
      %v5870 = vunpack.c.h.b16 %v5456
      %v5871 = vunpack.c.l.b16 %v5457
      %v5872 = vunpack.c.h.b16 %v5457
      %v5873 = vunpack.c.l.b16 %v5458
      %v5874 = vunpack.c.h.b16 %v5458
      %v5875 = vpack.c.b16 %v5755, %v5747
      %v5876 = vpack.c.b16 %v5756, %v5748
      %v5877 = vpack.c.b16 %v5757, %v5749
      %v5878 = vpack.c.b16 %v5758, %v5750
      %v5879 = vpack.c.b16 %v5759, %v5751
      %v5880 = vpack.c.b16 %v5760, %v5752
      %v5881 = vpack.c.b16 %v5761, %v5753
      %v5882 = vpack.c.b16 %v5762, %v5754
      %v5883 = vpack.c.b16 %v5771, %v5763
      %v5884 = vpack.c.b16 %v5772, %v5764
      %v5885 = vpack.c.b16 %v5773, %v5765
      %v5886 = vpack.c.b16 %v5774, %v5766
      %v5887 = vpack.c.b16 %v5775, %v5767
      %v5888 = vpack.c.b16 %v5776, %v5768
      %v5889 = vpack.c.b16 %v5777, %v5769
      %v5890 = vpack.c.b16 %v5778, %v5770
      %v5891 = vpack.c.b16 %v5787, %v5779
      %v5892 = vpack.c.b16 %v5788, %v5780
      %v5893 = vpack.c.b16 %v5789, %v5781
      %v5894 = vpack.c.b16 %v5790, %v5782
      %v5895 = vpack.c.b16 %v5791, %v5783
      %v5896 = vpack.c.b16 %v5792, %v5784
      %v5897 = vpack.c.b16 %v5793, %v5785
      %v5898 = vpack.c.b16 %v5794, %v5786
      %v5899 = vpack.c.b16 %v5803, %v5795
      %v5900 = vpack.c.b16 %v5804, %v5796
      %v5901 = vpack.c.b16 %v5805, %v5797
      %v5902 = vpack.c.b16 %v5806, %v5798
      %v5903 = vpack.c.b16 %v5807, %v5799
      %v5904 = vpack.c.b16 %v5808, %v5800
      %v5905 = vpack.c.b16 %v5809, %v5801
      %v5906 = vpack.c.b16 %v5810, %v5802
      %v5907 = vpack.c.b16 %v5819, %v5811
      %v5908 = vpack.c.b16 %v5820, %v5812
      %v5909 = vpack.c.b16 %v5821, %v5813
      %v5910 = vpack.c.b16 %v5822, %v5814
      %v5911 = vpack.c.b16 %v5823, %v5815
      %v5912 = vpack.c.b16 %v5824, %v5816
      %v5913 = vpack.c.b16 %v5825, %v5817
      %v5914 = vpack.c.b16 %v5826, %v5818
      %v5915 = vpack.c.b16 %v5835, %v5827
      %v5916 = vpack.c.b16 %v5836, %v5828
      %v5917 = vpack.c.b16 %v5837, %v5829
      %v5918 = vpack.c.b16 %v5838, %v5830
      %v5919 = vpack.c.b16 %v5839, %v5831
      %v5920 = vpack.c.b16 %v5840, %v5832
      %v5921 = vpack.c.b16 %v5841, %v5833
      %v5922 = vpack.c.b16 %v5842, %v5834
      %v5923 = vpack.c.b16 %v5851, %v5843
      %v5924 = vpack.c.b16 %v5852, %v5844
      %v5925 = vpack.c.b16 %v5853, %v5845
      %v5926 = vpack.c.b16 %v5854, %v5846
      %v5927 = vpack.c.b16 %v5855, %v5847
      %v5928 = vpack.c.b16 %v5856, %v5848
      %v5929 = vpack.c.b16 %v5857, %v5849
      %v5930 = vpack.c.b16 %v5858, %v5850
      %v5931 = vpack.c.b16 %v5867, %v5859
      %v5932 = vpack.c.b16 %v5868, %v5860
      %v5933 = vpack.c.b16 %v5869, %v5861
      %v5934 = vpack.c.b16 %v5870, %v5862
      %v5935 = vpack.c.b16 %v5871, %v5863
      %v5936 = vpack.c.b16 %v5872, %v5864
      %v5937 = vpack.c.b16 %v5873, %v5865
      %v5938 = vpack.c.b16 %v5874, %v5866
      %6003 = vmatprep.subr.bf16.mxu0 %v5460
      %6004 = vmatpush1.bf16.msra.mxu0 %v5459
      %6005 = vmatprep.subr.bf16.mxu0 %v5462
      %6006 = vmatpush1.bf16.msra.mxu0 %v5461
      %6007 = vmatprep.subr.bf16.mxu0 %v5464
      %6008 = vmatpush1.bf16.msra.mxu0 %v5463
      %6009 = vmatprep.subr.bf16.mxu0 %v5466
      %6010 = vmatpush1.bf16.msra.mxu0 %v5465
      %6011 = vmatprep.subr.bf16.mxu0 %v5468
      %6012 = vmatpush1.bf16.msra.mxu0 %v5467
      %6013 = vmatprep.subr.bf16.mxu0 %v5470
      %6014 = vmatpush1.bf16.msra.mxu0 %v5469
      %6015 = vmatprep.subr.bf16.mxu0 %v5472
      %6016 = vmatpush1.bf16.msra.mxu0 %v5471
      %6017 = vmatprep.subr.bf16.mxu0 %v5474
      %6018 = vmatpush1.bf16.msra.mxu0 %v5473
      %6019 = vmatprep.subr.bf16.mxu0 %v5476
      %6020 = vmatpush1.bf16.msra.mxu0 %v5475
      %6021 = vmatprep.subr.bf16.mxu0 %v5478
      %6022 = vmatpush1.bf16.msra.mxu0 %v5477
      %6023 = vmatprep.subr.bf16.mxu0 %v5480
      %6024 = vmatpush1.bf16.msra.mxu0 %v5479
      %6025 = vmatprep.subr.bf16.mxu0 %v5482
      %6026 = vmatpush1.bf16.msra.mxu0 %v5481
      %6027 = vmatprep.subr.bf16.mxu0 %v5484
      %6028 = vmatpush1.bf16.msra.mxu0 %v5483
      %6029 = vmatprep.subr.bf16.mxu0 %v5486
      %6030 = vmatpush1.bf16.msra.mxu0 %v5485
      %6031 = vmatprep.subr.bf16.mxu0 %v5488
      %6032 = vmatpush1.bf16.msra.mxu0 %v5487
      %6033 = vmatprep.subr.bf16.mxu0 %v5490
      %6034 = vmatpush1.bf16.msra.mxu0 %v5489
      %6035 = vmatprep.mubr.bf16.mxu0 %v5876
      %6036 = vmatmul.mubr.bf16.gmra.mrb[0].mxu0 %v5875
      %v6037 = vpop.f32.mrb[0].mxu0
      %v6038 = vadd.f32 %v5606, %v6037
      %v6039 = vpop.f32.mrb[0].mxu0
      %v6040 = vadd.f32 %v5606, %v6039
      %v6041 = vpop.f32.mrb[0].mxu0
      %v6042 = vadd.f32 %v5611, %v6041
      %v6043 = vpop.f32.mrb[0].mxu0
      %v6044 = vadd.f32 %v5611, %v6043
      %6045 = vmatprep.mubr.bf16.mxu0 %v5884
      %6046 = vmatmul.mubr.bf16.gmra.mrb[0].mxu0 %v5883
      %v6047 = vpop.f32.mrb[0].mxu0
      %v6048 = vadd.f32 %v5616, %v6047
      %v6049 = vpop.f32.mrb[0].mxu0
      %v6050 = vadd.f32 %v5616, %v6049
      %v6051 = vpop.f32.mrb[0].mxu0
      %v6052 = vadd.f32 %v5621, %v6051
      %v6053 = vpop.f32.mrb[0].mxu0
      %v6054 = vadd.f32 %v5621, %v6053
      %6055 = vmatprep.mubr.bf16.mxu0 %v5892
      %6056 = vmatmul.mubr.bf16.gmra.mrb[0].mxu0 %v5891
      %v6057 = vpop.f32.mrb[0].mxu0
      %v6058 = vadd.f32 %v5626, %v6057
      %v6059 = vpop.f32.mrb[0].mxu0
      %v6060 = vadd.f32 %v5626, %v6059
      %v6061 = vpop.f32.mrb[0].mxu0
      %v6062 = vadd.f32 %v5631, %v6061
      %v6063 = vpop.f32.mrb[0].mxu0
      %v6064 = vadd.f32 %v5631, %v6063
      %6065 = vmatprep.mubr.bf16.mxu0 %v5900
      %6066 = vmatmul.mubr.bf16.gmra.mrb[0].mxu0 %v5899
      %v6067 = vpop.f32.mrb[0].mxu0
      %v6068 = vadd.f32 %v5636, %v6067
      %v6069 = vpop.f32.mrb[0].mxu0
      %v6070 = vadd.f32 %v5636, %v6069
      %v6071 = vpop.f32.mrb[0].mxu0
      %v6072 = vadd.f32 %v5641, %v6071
      %v6073 = vpop.f32.mrb[0].mxu0
      %v6074 = vadd.f32 %v5641, %v6073
      %6075 = vmatprep.mubr.bf16.mxu0 %v5908
      %6076 = vmatmul.mubr.bf16.gmra.mrb[0].mxu0 %v5907
      %v6077 = vpop.f32.mrb[0].mxu0
      %v6078 = vadd.f32 %v5646, %v6077
      %v6079 = vpop.f32.mrb[0].mxu0
      %v6080 = vadd.f32 %v5646, %v6079
      %v6081 = vpop.f32.mrb[0].mxu0
      %v6082 = vadd.f32 %v5651, %v6081
      %v6083 = vpop.f32.mrb[0].mxu0
      %v6084 = vadd.f32 %v5651, %v6083
      %6085 = vmatprep.mubr.bf16.mxu0 %v5916
      %6086 = vmatmul.mubr.bf16.gmra.mrb[0].mxu0 %v5915
      %v6087 = vpop.f32.mrb[0].mxu0
      %v6088 = vadd.f32 %v5656, %v6087
      %v6089 = vpop.f32.mrb[0].mxu0
      %v6090 = vadd.f32 %v5656, %v6089
      %v6091 = vpop.f32.mrb[0].mxu0
      %v6092 = vadd.f32 %v5661, %v6091
      %v6093 = vpop.f32.mrb[0].mxu0
      %v6094 = vadd.f32 %v5661, %v6093
      %6095 = vmatprep.mubr.bf16.mxu0 %v5924
      %6096 = vmatmul.mubr.bf16.gmra.mrb[0].mxu0 %v5923
      %v6097 = vpop.f32.mrb[0].mxu0
      %v6098 = vadd.f32 %v5666, %v6097
      %v6099 = vpop.f32.mrb[0].mxu0
      %v6100 = vadd.f32 %v5666, %v6099
      %v6101 = vpop.f32.mrb[0].mxu0
      %v6102 = vadd.f32 %v5671, %v6101
      %v6103 = vpop.f32.mrb[0].mxu0
      %v6104 = vadd.f32 %v5671, %v6103
      %6105 = vmatprep.mubr.bf16.mxu0 %v5932
      %6106 = vmatmul.mubr.bf16.gmra.mrb[0].mxu0 %v5931
      %v6107 = vpop.f32.mrb[0].mxu0
      %v6108 = vadd.f32 %v5676, %v6107
      %v6109 = vpop.f32.mrb[0].mxu0
      %v6110 = vadd.f32 %v5676, %v6109
      %v6111 = vpop.f32.mrb[0].mxu0
      %v6112 = vadd.f32 %v5681, %v6111
      %v6113 = vpop.f32.mrb[0].mxu0
      %v6114 = vadd.f32 %v5681, %v6113
      %6115 = vdwg.mxu0
      %6116 = vmatprep.subr.bf16.mxu0 %v5492
      %6117 = vmatpush1.bf16.msra.mxu0 %v5491
      %6118 = vmatprep.subr.bf16.mxu0 %v5494
      %6119 = vmatpush1.bf16.msra.mxu0 %v5493
      %6120 = vmatprep.subr.bf16.mxu0 %v5496
      %6121 = vmatpush1.bf16.msra.mxu0 %v5495
      %6122 = vmatprep.subr.bf16.mxu0 %v5498
      %6123 = vmatpush1.bf16.msra.mxu0 %v5497
      %6124 = vmatprep.subr.bf16.mxu0 %v5500
      %6125 = vmatpush1.bf16.msra.mxu0 %v5499
      %6126 = vmatprep.subr.bf16.mxu0 %v5502
      %6127 = vmatpush1.bf16.msra.mxu0 %v5501
      %6128 = vmatprep.subr.bf16.mxu0 %v5504
      %6129 = vmatpush1.bf16.msra.mxu0 %v5503
      %6130 = vmatprep.subr.bf16.mxu0 %v5506
      %6131 = vmatpush1.bf16.msra.mxu0 %v5505
      %6132 = vmatprep.subr.bf16.mxu0 %v5508
      %6133 = vmatpush1.bf16.msra.mxu0 %v5507
      %6134 = vmatprep.subr.bf16.mxu0 %v5510
      %6135 = vmatpush1.bf16.msra.mxu0 %v5509
      %6136 = vmatprep.subr.bf16.mxu0 %v5512
      %6137 = vmatpush1.bf16.msra.mxu0 %v5511
      %6138 = vmatprep.subr.bf16.mxu0 %v5514
      %6139 = vmatpush1.bf16.msra.mxu0 %v5513
      %6140 = vmatprep.subr.bf16.mxu0 %v5516
      %6141 = vmatpush1.bf16.msra.mxu0 %v5515
      %6142 = vmatprep.subr.bf16.mxu0 %v5518
      %6143 = vmatpush1.bf16.msra.mxu0 %v5517
      %6144 = vmatprep.subr.bf16.mxu0 %v5520
      %6145 = vmatpush1.bf16.msra.mxu0 %v5519
      %6146 = vmatprep.subr.bf16.mxu0 %v5522
      %6147 = vmatpush1.bf16.msra.mxu0 %v5521
      %6148 = vmatprep.mubr.bf16.mxu0 %v5878
      %6149 = vmatmul.mubr.bf16.gmra.mrb[0].mxu0 %v5877
      %v6150 = vpop.f32.mrb[0].mxu0
      %v6151 = vadd.f32 %v6038, %v6150
      %v6152 = vpop.f32.mrb[0].mxu0
      %v6153 = vadd.f32 %v6040, %v6152
      %v6154 = vpop.f32.mrb[0].mxu0
      %v6155 = vadd.f32 %v6042, %v6154
      %v6156 = vpop.f32.mrb[0].mxu0
      %v6157 = vadd.f32 %v6044, %v6156
      %6158 = vmatprep.mubr.bf16.mxu0 %v5886
      %6159 = vmatmul.mubr.bf16.gmra.mrb[0].mxu0 %v5885
      %v6160 = vpop.f32.mrb[0].mxu0
      %v6161 = vadd.f32 %v6048, %v6160
      %v6162 = vpop.f32.mrb[0].mxu0
      %v6163 = vadd.f32 %v6050, %v6162
      %v6164 = vpop.f32.mrb[0].mxu0
      %v6165 = vadd.f32 %v6052, %v6164
      %v6166 = vpop.f32.mrb[0].mxu0
      %v6167 = vadd.f32 %v6054, %v6166
      %6168 = vmatprep.mubr.bf16.mxu0 %v5894
      %6169 = vmatmul.mubr.bf16.gmra.mrb[0].mxu0 %v5893
      %v6170 = vpop.f32.mrb[0].mxu0
      %v6171 = vadd.f32 %v6058, %v6170
      %v6172 = vpop.f32.mrb[0].mxu0
      %v6173 = vadd.f32 %v6060, %v6172
      %v6174 = vpop.f32.mrb[0].mxu0
      %v6175 = vadd.f32 %v6062, %v6174
      %v6176 = vpop.f32.mrb[0].mxu0
      %v6177 = vadd.f32 %v6064, %v6176
      %6178 = vmatprep.mubr.bf16.mxu0 %v5902
      %6179 = vmatmul.mubr.bf16.gmra.mrb[0].mxu0 %v5901
      %v6180 = vpop.f32.mrb[0].mxu0
      %v6181 = vadd.f32 %v6068, %v6180
      %v6182 = vpop.f32.mrb[0].mxu0
      %v6183 = vadd.f32 %v6070, %v6182
      %v6184 = vpop.f32.mrb[0].mxu0
      %v6185 = vadd.f32 %v6072, %v6184
      %v6186 = vpop.f32.mrb[0].mxu0
      %v6187 = vadd.f32 %v6074, %v6186
      %6188 = vmatprep.mubr.bf16.mxu0 %v5910
      %6189 = vmatmul.mubr.bf16.gmra.mrb[0].mxu0 %v5909
      %v6190 = vpop.f32.mrb[0].mxu0
      %v6191 = vadd.f32 %v6078, %v6190
      %v6192 = vpop.f32.mrb[0].mxu0
      %v6193 = vadd.f32 %v6080, %v6192
      %v6194 = vpop.f32.mrb[0].mxu0
      %v6195 = vadd.f32 %v6082, %v6194
      %v6196 = vpop.f32.mrb[0].mxu0
      %v6197 = vadd.f32 %v6084, %v6196
      %6198 = vmatprep.mubr.bf16.mxu0 %v5918
      %6199 = vmatmul.mubr.bf16.gmra.mrb[0].mxu0 %v5917
      %v6200 = vpop.f32.mrb[0].mxu0
      %v6201 = vadd.f32 %v6088, %v6200
      %v6202 = vpop.f32.mrb[0].mxu0
      %v6203 = vadd.f32 %v6090, %v6202
      %v6204 = vpop.f32.mrb[0].mxu0
      %v6205 = vadd.f32 %v6092, %v6204
      %v6206 = vpop.f32.mrb[0].mxu0
      %v6207 = vadd.f32 %v6094, %v6206
      %6208 = vmatprep.mubr.bf16.mxu0 %v5926
      %6209 = vmatmul.mubr.bf16.gmra.mrb[0].mxu0 %v5925
      %v6210 = vpop.f32.mrb[0].mxu0
      %v6211 = vadd.f32 %v6098, %v6210
      %v6212 = vpop.f32.mrb[0].mxu0
      %v6213 = vadd.f32 %v6100, %v6212
      %v6214 = vpop.f32.mrb[0].mxu0
      %v6215 = vadd.f32 %v6102, %v6214
      %v6216 = vpop.f32.mrb[0].mxu0
      %v6217 = vadd.f32 %v6104, %v6216
      %6218 = vmatprep.mubr.bf16.mxu0 %v5934
      %6219 = vmatmul.mubr.bf16.gmra.mrb[0].mxu0 %v5933
      %v6220 = vpop.f32.mrb[0].mxu0
      %v6221 = vadd.f32 %v6108, %v6220
      %v6222 = vpop.f32.mrb[0].mxu0
      %v6223 = vadd.f32 %v6110, %v6222
      %v6224 = vpop.f32.mrb[0].mxu0
      %v6225 = vadd.f32 %v6112, %v6224
      %v6226 = vpop.f32.mrb[0].mxu0
      %v6227 = vadd.f32 %v6114, %v6226
      %6228 = vdwg.mxu0
      %6229 = vmatprep.subr.bf16.mxu0 %v5524
      %6230 = vmatpush1.bf16.msra.mxu0 %v5523
      %6231 = vmatprep.subr.bf16.mxu0 %v5526
      %6232 = vmatpush1.bf16.msra.mxu0 %v5525
      %6233 = vmatprep.subr.bf16.mxu0 %v5528
      %6234 = vmatpush1.bf16.msra.mxu0 %v5527
      %6235 = vmatprep.subr.bf16.mxu0 %v5530
      %6236 = vmatpush1.bf16.msra.mxu0 %v5529
      %6237 = vmatprep.subr.bf16.mxu0 %v5532
      %6238 = vmatpush1.bf16.msra.mxu0 %v5531
      %6239 = vmatprep.subr.bf16.mxu0 %v5534
      %6240 = vmatpush1.bf16.msra.mxu0 %v5533
      %6241 = vmatprep.subr.bf16.mxu0 %v5536
      %6242 = vmatpush1.bf16.msra.mxu0 %v5535
      %6243 = vmatprep.subr.bf16.mxu0 %v5538
      %6244 = vmatpush1.bf16.msra.mxu0 %v5537
      %6245 = vmatprep.subr.bf16.mxu0 %v5540
      %6246 = vmatpush1.bf16.msra.mxu0 %v5539
      %6247 = vmatprep.subr.bf16.mxu0 %v5542
      %6248 = vmatpush1.bf16.msra.mxu0 %v5541
      %6249 = vmatprep.subr.bf16.mxu0 %v5544
      %6250 = vmatpush1.bf16.msra.mxu0 %v5543
      %6251 = vmatprep.subr.bf16.mxu0 %v5546
      %6252 = vmatpush1.bf16.msra.mxu0 %v5545
      %6253 = vmatprep.subr.bf16.mxu0 %v5548
      %6254 = vmatpush1.bf16.msra.mxu0 %v5547
      %6255 = vmatprep.subr.bf16.mxu0 %v5550
      %6256 = vmatpush1.bf16.msra.mxu0 %v5549
      %6257 = vmatprep.subr.bf16.mxu0 %v5552
      %6258 = vmatpush1.bf16.msra.mxu0 %v5551
      %6259 = vmatprep.subr.bf16.mxu0 %v5554
      %6260 = vmatpush1.bf16.msra.mxu0 %v5553
      %6261 = vmatprep.mubr.bf16.mxu0 %v5880
      %6262 = vmatmul.mubr.bf16.gmra.mrb[0].mxu0 %v5879
      %v6263 = vpop.f32.mrb[0].mxu0
      %v6264 = vadd.f32 %v6151, %v6263
      %v6265 = vpop.f32.mrb[0].mxu0
      %v6266 = vadd.f32 %v6153, %v6265
      %v6267 = vpop.f32.mrb[0].mxu0
      %v6268 = vadd.f32 %v6155, %v6267
      %v6269 = vpop.f32.mrb[0].mxu0
      %v6270 = vadd.f32 %v6157, %v6269
      %6271 = vmatprep.mubr.bf16.mxu0 %v5888
      %6272 = vmatmul.mubr.bf16.gmra.mrb[0].mxu0 %v5887
      %v6273 = vpop.f32.mrb[0].mxu0
      %v6274 = vadd.f32 %v6161, %v6273
      %v6275 = vpop.f32.mrb[0].mxu0
      %v6276 = vadd.f32 %v6163, %v6275
      %v6277 = vpop.f32.mrb[0].mxu0
      %v6278 = vadd.f32 %v6165, %v6277
      %v6279 = vpop.f32.mrb[0].mxu0
      %v6280 = vadd.f32 %v6167, %v6279
      %6281 = vmatprep.mubr.bf16.mxu0 %v5896
      %6282 = vmatmul.mubr.bf16.gmra.mrb[0].mxu0 %v5895
      %v6283 = vpop.f32.mrb[0].mxu0
      %v6284 = vadd.f32 %v6171, %v6283
      %v6285 = vpop.f32.mrb[0].mxu0
      %v6286 = vadd.f32 %v6173, %v6285
      %v6287 = vpop.f32.mrb[0].mxu0
      %v6288 = vadd.f32 %v6175, %v6287
      %v6289 = vpop.f32.mrb[0].mxu0
      %v6290 = vadd.f32 %v6177, %v6289
      %6291 = vmatprep.mubr.bf16.mxu0 %v5904
      %6292 = vmatmul.mubr.bf16.gmra.mrb[0].mxu0 %v5903
      %v6293 = vpop.f32.mrb[0].mxu0
      %v6294 = vadd.f32 %v6181, %v6293
      %v6295 = vpop.f32.mrb[0].mxu0
      %v6296 = vadd.f32 %v6183, %v6295
      %v6297 = vpop.f32.mrb[0].mxu0
      %v6298 = vadd.f32 %v6185, %v6297
      %v6299 = vpop.f32.mrb[0].mxu0
      %v6300 = vadd.f32 %v6187, %v6299
      %6301 = vmatprep.mubr.bf16.mxu0 %v5912
      %6302 = vmatmul.mubr.bf16.gmra.mrb[0].mxu0 %v5911
      %v6303 = vpop.f32.mrb[0].mxu0
      %v6304 = vadd.f32 %v6191, %v6303
      %v6305 = vpop.f32.mrb[0].mxu0
      %v6306 = vadd.f32 %v6193, %v6305
      %v6307 = vpop.f32.mrb[0].mxu0
      %v6308 = vadd.f32 %v6195, %v6307
      %v6309 = vpop.f32.mrb[0].mxu0
      %v6310 = vadd.f32 %v6197, %v6309
      %6311 = vmatprep.mubr.bf16.mxu0 %v5920
      %6312 = vmatmul.mubr.bf16.gmra.mrb[0].mxu0 %v5919
      %v6313 = vpop.f32.mrb[0].mxu0
      %v6314 = vadd.f32 %v6201, %v6313
      %v6315 = vpop.f32.mrb[0].mxu0
      %v6316 = vadd.f32 %v6203, %v6315
      %v6317 = vpop.f32.mrb[0].mxu0
      %v6318 = vadd.f32 %v6205, %v6317
      %v6319 = vpop.f32.mrb[0].mxu0
      %v6320 = vadd.f32 %v6207, %v6319
      %6321 = vmatprep.mubr.bf16.mxu0 %v5928
      %6322 = vmatmul.mubr.bf16.gmra.mrb[0].mxu0 %v5927
      %v6323 = vpop.f32.mrb[0].mxu0
      %v6324 = vadd.f32 %v6211, %v6323
      %v6325 = vpop.f32.mrb[0].mxu0
      %v6326 = vadd.f32 %v6213, %v6325
      %v6327 = vpop.f32.mrb[0].mxu0
      %v6328 = vadd.f32 %v6215, %v6327
      %v6329 = vpop.f32.mrb[0].mxu0
      %v6330 = vadd.f32 %v6217, %v6329
      %6331 = vmatprep.mubr.bf16.mxu0 %v5936
      %6332 = vmatmul.mubr.bf16.gmra.mrb[0].mxu0 %v5935
      %v6333 = vpop.f32.mrb[0].mxu0
      %v6334 = vadd.f32 %v6221, %v6333
      %v6335 = vpop.f32.mrb[0].mxu0
      %v6336 = vadd.f32 %v6223, %v6335
      %v6337 = vpop.f32.mrb[0].mxu0
      %v6338 = vadd.f32 %v6225, %v6337
      %v6339 = vpop.f32.mrb[0].mxu0
      %v6340 = vadd.f32 %v6227, %v6339
      %6341 = vdwg.mxu0
      %6342 = vmatprep.subr.bf16.mxu0 %v5556
      %6343 = vmatpush1.bf16.msra.mxu0 %v5555
      %6344 = vmatprep.subr.bf16.mxu0 %v5558
      %6345 = vmatpush1.bf16.msra.mxu0 %v5557
      %6346 = vmatprep.subr.bf16.mxu0 %v5560
      %6347 = vmatpush1.bf16.msra.mxu0 %v5559
      %6348 = vmatprep.subr.bf16.mxu0 %v5562
      %6349 = vmatpush1.bf16.msra.mxu0 %v5561
      %6350 = vmatprep.subr.bf16.mxu0 %v5564
      %6351 = vmatpush1.bf16.msra.mxu0 %v5563
      %6352 = vmatprep.subr.bf16.mxu0 %v5566
      %6353 = vmatpush1.bf16.msra.mxu0 %v5565
      %6354 = vmatprep.subr.bf16.mxu0 %v5568
      %6355 = vmatpush1.bf16.msra.mxu0 %v5567
      %6356 = vmatprep.subr.bf16.mxu0 %v5570
      %6357 = vmatpush1.bf16.msra.mxu0 %v5569
      %6358 = vmatprep.subr.bf16.mxu0 %v5572
      %6359 = vmatpush1.bf16.msra.mxu0 %v5571
      %6360 = vmatprep.subr.bf16.mxu0 %v5574
      %6361 = vmatpush1.bf16.msra.mxu0 %v5573
      %6362 = vmatprep.subr.bf16.mxu0 %v5576
      %6363 = vmatpush1.bf16.msra.mxu0 %v5575
      %6364 = vmatprep.subr.bf16.mxu0 %v5578
      %6365 = vmatpush1.bf16.msra.mxu0 %v5577
      %6366 = vmatprep.subr.bf16.mxu0 %v5580
      %6367 = vmatpush1.bf16.msra.mxu0 %v5579
      %6368 = vmatprep.subr.bf16.mxu0 %v5582
      %6369 = vmatpush1.bf16.msra.mxu0 %v5581
      %6370 = vmatprep.subr.bf16.mxu0 %v5584
      %6371 = vmatpush1.bf16.msra.mxu0 %v5583
      %6372 = vmatprep.subr.bf16.mxu0 %v5586
      %6373 = vmatpush1.bf16.msra.mxu0 %v5585
      %6374 = vmatprep.mubr.bf16.mxu0 %v5882
      %6375 = vmatmul.mubr.bf16.gmra.mrb[0].mxu0 %v5881
      %v6376 = vpop.f32.mrb[0].mxu0
      %v6377 = vadd.f32 %v6264, %v6376
      %v6378 = vpop.f32.mrb[0].mxu0
      %v6379 = vadd.f32 %v6266, %v6378
      %v6380 = vpop.f32.mrb[0].mxu0
      %v6381 = vadd.f32 %v6268, %v6380
      %v6382 = vpop.f32.mrb[0].mxu0
      %v6383 = vadd.f32 %v6270, %v6382
      %6384 = vmatprep.mubr.bf16.mxu0 %v5890
      %6385 = vmatmul.mubr.bf16.gmra.mrb[0].mxu0 %v5889
      %v6386 = vpop.f32.mrb[0].mxu0
      %v6387 = vadd.f32 %v6274, %v6386
      %v6388 = vpop.f32.mrb[0].mxu0
      %v6389 = vadd.f32 %v6276, %v6388
      %v6390 = vpop.f32.mrb[0].mxu0
      %v6391 = vadd.f32 %v6278, %v6390
      %v6392 = vpop.f32.mrb[0].mxu0
      %v6393 = vadd.f32 %v6280, %v6392
      %6394 = vmatprep.mubr.bf16.mxu0 %v5898
      %6395 = vmatmul.mubr.bf16.gmra.mrb[0].mxu0 %v5897
      %v6396 = vpop.f32.mrb[0].mxu0
      %v6397 = vadd.f32 %v6284, %v6396
      %v6398 = vpop.f32.mrb[0].mxu0
      %v6399 = vadd.f32 %v6286, %v6398
      %v6400 = vpop.f32.mrb[0].mxu0
      %v6401 = vadd.f32 %v6288, %v6400
      %v6402 = vpop.f32.mrb[0].mxu0
      %v6403 = vadd.f32 %v6290, %v6402
      %6404 = vmatprep.mubr.bf16.mxu0 %v5906
      %6405 = vmatmul.mubr.bf16.gmra.mrb[0].mxu0 %v5905
      %v6406 = vpop.f32.mrb[0].mxu0
      %v6407 = vadd.f32 %v6294, %v6406
      %v6408 = vpop.f32.mrb[0].mxu0
      %v6409 = vadd.f32 %v6296, %v6408
      %v6410 = vpop.f32.mrb[0].mxu0
      %v6411 = vadd.f32 %v6298, %v6410
      %v6412 = vpop.f32.mrb[0].mxu0
      %v6413 = vadd.f32 %v6300, %v6412
      %6414 = vmatprep.mubr.bf16.mxu0 %v5914
      %6415 = vmatmul.mubr.bf16.gmra.mrb[0].mxu0 %v5913
      %v6416 = vpop.f32.mrb[0].mxu0
      %v6417 = vadd.f32 %v6304, %v6416
      %v6418 = vpop.f32.mrb[0].mxu0
      %v6419 = vadd.f32 %v6306, %v6418
      %v6420 = vpop.f32.mrb[0].mxu0
      %v6421 = vadd.f32 %v6308, %v6420
      %v6422 = vpop.f32.mrb[0].mxu0
      %v6423 = vadd.f32 %v6310, %v6422
      %6424 = vmatprep.mubr.bf16.mxu0 %v5922
      %6425 = vmatmul.mubr.bf16.gmra.mrb[0].mxu0 %v5921
      %v6426 = vpop.f32.mrb[0].mxu0
      %v6427 = vadd.f32 %v6314, %v6426
      %v6428 = vpop.f32.mrb[0].mxu0
      %v6429 = vadd.f32 %v6316, %v6428
      %v6430 = vpop.f32.mrb[0].mxu0
      %v6431 = vadd.f32 %v6318, %v6430
      %v6432 = vpop.f32.mrb[0].mxu0
      %v6433 = vadd.f32 %v6320, %v6432
      %6434 = vmatprep.mubr.bf16.mxu0 %v5930
      %6435 = vmatmul.mubr.bf16.gmra.mrb[0].mxu0 %v5929
      %v6436 = vpop.f32.mrb[0].mxu0
      %v6437 = vadd.f32 %v6324, %v6436
      %v6438 = vpop.f32.mrb[0].mxu0
      %v6439 = vadd.f32 %v6326, %v6438
      %v6440 = vpop.f32.mrb[0].mxu0
      %v6441 = vadd.f32 %v6328, %v6440
      %v6442 = vpop.f32.mrb[0].mxu0
      %v6443 = vadd.f32 %v6330, %v6442
      %6444 = vmatprep.mubr.bf16.mxu0 %v5938
      %6445 = vmatmul.mubr.bf16.gmra.mrb[0].mxu0 %v5937
      %v6446 = vpop.f32.mrb[0].mxu0
      %v6447 = vadd.f32 %v6334, %v6446
      %v6448 = vpop.f32.mrb[0].mxu0
      %v6449 = vadd.f32 %v6336, %v6448
      %v6450 = vpop.f32.mrb[0].mxu0
      %v6451 = vadd.f32 %v6338, %v6450
      %v6452 = vpop.f32.mrb[0].mxu0
      %v6453 = vadd.f32 %v6340, %v6452
      %6454 = vdwg.mxu0
      %v6455 = vmax.f32 %v6377, %v6387
      %v6456 = vmax.f32 %v6455, %v6397
      %v6457 = vmax.f32 %v6456, %v6407
      %v6458 = vmax.f32 %v6457, %v6417
      %v6459 = vmax.f32 %v6458, %v6427
      %v6460 = vmax.f32 %v6459, %v6437
      %v6461 = vmax.f32 %v6460, %v6447
      %v6462 = vmax.f32 %v6379, %v6389
      %v6463 = vmax.f32 %v6462, %v6399
      %v6464 = vmax.f32 %v6463, %v6409
      %v6465 = vmax.f32 %v6464, %v6419
      %v6466 = vmax.f32 %v6465, %v6429
      %v6467 = vmax.f32 %v6466, %v6439
      %v6468 = vmax.f32 %v6467, %v6449
      %v6469 = vmax.f32 %v6381, %v6391
      %v6470 = vmax.f32 %v6469, %v6401
      %v6471 = vmax.f32 %v6470, %v6411
      %v6472 = vmax.f32 %v6471, %v6421
      %v6473 = vmax.f32 %v6472, %v6431
      %v6474 = vmax.f32 %v6473, %v6441
      %v6475 = vmax.f32 %v6474, %v6451
      %v6476 = vmax.f32 %v6383, %v6393
      %v6477 = vmax.f32 %v6476, %v6403
      %v6478 = vmax.f32 %v6477, %v6413
      %v6479 = vmax.f32 %v6478, %v6423
      %v6480 = vmax.f32 %v6479, %v6433
      %v6481 = vmax.f32 %v6480, %v6443
      %v6482 = vmax.f32 %v6481, %v6453
      %v6483 = vsub.f32 %v6377, %v6461
      %v6484 = vsub.f32 %v6379, %v6468
      %v6485 = vsub.f32 %v6381, %v6475
      %v6486 = vsub.f32 %v6383, %v6482
      %v6487 = vsub.f32 %v6387, %v6461
      %v6488 = vsub.f32 %v6389, %v6468
      %v6489 = vsub.f32 %v6391, %v6475
      %v6490 = vsub.f32 %v6393, %v6482
      %v6491 = vsub.f32 %v6397, %v6461
      %v6492 = vsub.f32 %v6399, %v6468
      %v6493 = vsub.f32 %v6401, %v6475
      %v6494 = vsub.f32 %v6403, %v6482
      %v6495 = vsub.f32 %v6407, %v6461
      %v6496 = vsub.f32 %v6409, %v6468
      %v6497 = vsub.f32 %v6411, %v6475
      %v6498 = vsub.f32 %v6413, %v6482
      %v6499 = vsub.f32 %v6417, %v6461
      %v6500 = vsub.f32 %v6419, %v6468
      %v6501 = vsub.f32 %v6421, %v6475
      %v6502 = vsub.f32 %v6423, %v6482
      %v6503 = vsub.f32 %v6427, %v6461
      %v6504 = vsub.f32 %v6429, %v6468
      %v6505 = vsub.f32 %v6431, %v6475
      %v6506 = vsub.f32 %v6433, %v6482
      %v6507 = vsub.f32 %v6437, %v6461
      %v6508 = vsub.f32 %v6439, %v6468
      %v6509 = vsub.f32 %v6441, %v6475
      %v6510 = vsub.f32 %v6443, %v6482
      %v6511 = vsub.f32 %v6447, %v6461
      %v6512 = vsub.f32 %v6449, %v6468
      %v6513 = vsub.f32 %v6451, %v6475
      %v6514 = vsub.f32 %v6453, %v6482
      %v6515 = vmul.f32 %v6483, 1.442695
      %v6516 = vpow.pop %v6515
      %v6517 = vmul.f32 %v6484, 1.442695
      %v6518 = vpow.pop %v6517
      %v6519 = vmul.f32 %v6485, 1.442695
      %v6520 = vpow.pop %v6519
      %v6521 = vmul.f32 %v6486, 1.442695
      %v6522 = vpow.pop %v6521
      %v6523 = vmul.f32 %v6487, 1.442695
      %v6524 = vpow.pop %v6523
      %v6525 = vmul.f32 %v6488, 1.442695
      %v6526 = vpow.pop %v6525
      %v6527 = vmul.f32 %v6489, 1.442695
      %v6528 = vpow.pop %v6527
      %v6529 = vmul.f32 %v6490, 1.442695
      %v6530 = vpow.pop %v6529
      %v6531 = vmul.f32 %v6491, 1.442695
      %v6532 = vpow.pop %v6531
      %v6533 = vmul.f32 %v6492, 1.442695
      %v6534 = vpow.pop %v6533
      %v6535 = vmul.f32 %v6493, 1.442695
      %v6536 = vpow.pop %v6535
      %v6537 = vmul.f32 %v6494, 1.442695
      %v6538 = vpow.pop %v6537
      %v6539 = vmul.f32 %v6495, 1.442695
      %v6540 = vpow.pop %v6539
      %v6541 = vmul.f32 %v6496, 1.442695
      %v6542 = vpow.pop %v6541
      %v6543 = vmul.f32 %v6497, 1.442695
      %v6544 = vpow.pop %v6543
      %v6545 = vmul.f32 %v6498, 1.442695
      %v6546 = vpow.pop %v6545
      %v6547 = vmul.f32 %v6499, 1.442695
      %v6548 = vpow.pop %v6547
      %v6549 = vmul.f32 %v6500, 1.442695
      %v6550 = vpow.pop %v6549
      %v6551 = vmul.f32 %v6501, 1.442695
      %v6552 = vpow.pop %v6551
      %v6553 = vmul.f32 %v6502, 1.442695
      %v6554 = vpow.pop %v6553
      %v6555 = vmul.f32 %v6503, 1.442695
      %v6556 = vpow.pop %v6555
      %v6557 = vmul.f32 %v6504, 1.442695
      %v6558 = vpow.pop %v6557
      %v6559 = vmul.f32 %v6505, 1.442695
      %v6560 = vpow.pop %v6559
      %v6561 = vmul.f32 %v6506, 1.442695
      %v6562 = vpow.pop %v6561
      %v6563 = vmul.f32 %v6507, 1.442695
      %v6564 = vpow.pop %v6563
      %v6565 = vmul.f32 %v6508, 1.442695
      %v6566 = vpow.pop %v6565
      %v6567 = vmul.f32 %v6509, 1.442695
      %v6568 = vpow.pop %v6567
      %v6569 = vmul.f32 %v6510, 1.442695
      %v6570 = vpow.pop %v6569
      %v6571 = vmul.f32 %v6511, 1.442695
      %v6572 = vpow.pop %v6571
      %v6573 = vmul.f32 %v6512, 1.442695
      %v6574 = vpow.pop %v6573
      %v6575 = vmul.f32 %v6513, 1.442695
      %v6576 = vpow.pop %v6575
      %v6577 = vmul.f32 %v6514, 1.442695
      %v6578 = vpow.pop %v6577
      %v6579 = vadd.f32 %v6516, %v6524
      %v6580 = vadd.f32 %v6579, %v6532
      %v6581 = vadd.f32 %v6580, %v6540
      %v6582 = vadd.f32 %v6581, %v6548
      %v6583 = vadd.f32 %v6582, %v6556
      %v6584 = vadd.f32 %v6583, %v6564
      %v6585 = vadd.f32 %v6584, %v6572
      %v6586 = vadd.f32 %v6518, %v6526
      %v6587 = vadd.f32 %v6586, %v6534
      %v6588 = vadd.f32 %v6587, %v6542
      %v6589 = vadd.f32 %v6588, %v6550
      %v6590 = vadd.f32 %v6589, %v6558
      %v6591 = vadd.f32 %v6590, %v6566
      %v6592 = vadd.f32 %v6591, %v6574
      %v6593 = vadd.f32 %v6520, %v6528
      %v6594 = vadd.f32 %v6593, %v6536
      %v6595 = vadd.f32 %v6594, %v6544
      %v6596 = vadd.f32 %v6595, %v6552
      %v6597 = vadd.f32 %v6596, %v6560
      %v6598 = vadd.f32 %v6597, %v6568
      %v6599 = vadd.f32 %v6598, %v6576
      %v6600 = vadd.f32 %v6522, %v6530
      %v6601 = vadd.f32 %v6600, %v6538
      %v6602 = vadd.f32 %v6601, %v6546
      %v6603 = vadd.f32 %v6602, %v6554
      %v6604 = vadd.f32 %v6603, %v6562
      %v6605 = vadd.f32 %v6604, %v6570
      %v6606 = vadd.f32 %v6605, %v6578
      %v6607 = vrcp.pop %v6585
      %v6608 = vrcp.pop %v6592
      %v6609 = vrcp.pop %v6599
      %v6610 = vrcp.pop %v6606
      %v6611 = vmul.f32 %v6516, %v6607
      %v6612 = vmul.f32 %v6518, %v6608
      %v6613 = vmul.f32 %v6520, %v6609
      %v6614 = vmul.f32 %v6522, %v6610
      %v6615 = vmul.f32 %v6524, %v6607
      %v6616 = vmul.f32 %v6526, %v6608
      %v6617 = vmul.f32 %v6528, %v6609
      %v6618 = vmul.f32 %v6530, %v6610
      %v6619 = vmul.f32 %v6532, %v6607
      %v6620 = vmul.f32 %v6534, %v6608
      %v6621 = vmul.f32 %v6536, %v6609
      %v6622 = vmul.f32 %v6538, %v6610
      %v6623 = vmul.f32 %v6540, %v6607
      %v6624 = vmul.f32 %v6542, %v6608
      %v6625 = vmul.f32 %v6544, %v6609
      %v6626 = vmul.f32 %v6546, %v6610
      %v6627 = vmul.f32 %v6548, %v6607
      %v6628 = vmul.f32 %v6550, %v6608
      %v6629 = vmul.f32 %v6552, %v6609
      %v6630 = vmul.f32 %v6554, %v6610
      %v6631 = vmul.f32 %v6556, %v6607
      %v6632 = vmul.f32 %v6558, %v6608
      %v6633 = vmul.f32 %v6560, %v6609
      %v6634 = vmul.f32 %v6562, %v6610
      %v6635 = vmul.f32 %v6564, %v6607
      %v6636 = vmul.f32 %v6566, %v6608
      %v6637 = vmul.f32 %v6568, %v6609
      %v6638 = vmul.f32 %v6570, %v6610
      %v6639 = vmul.f32 %v6572, %v6607
      %v6640 = vmul.f32 %v6574, %v6608
      %v6641 = vmul.f32 %v6576, %v6609
      %v6642 = vmul.f32 %v6578, %v6610
      %v6643 = vld [vmem:[%s12] sm:$0xff]
      %v6644 = vld [vmem:[%s12 + $0x8] sm:$0xff]
      %v6645 = vld [vmem:[%s12 + $0x10] sm:$0xff]
      %v6646 = vld [vmem:[%s12 + $0x18] sm:$0xff]
      %v6647 = vld [vmem:[%s12 + $0x20] sm:$0xff]
      %v6648 = vld [vmem:[%s12 + $0x28] sm:$0xff]
      %v6649 = vld [vmem:[%s12 + $0x30] sm:$0xff]
      %v6650 = vld [vmem:[%s12 + $0x38] sm:$0xff]
      %v6651 = vld [vmem:[%s12 + $0x40] sm:$0xff]
      %v6652 = vld [vmem:[%s12 + $0x48] sm:$0xff]
      %v6653 = vld [vmem:[%s12 + $0x50] sm:$0xff]
      %v6654 = vld [vmem:[%s12 + $0x58] sm:$0xff]
      %v6655 = vld [vmem:[%s12 + $0x60] sm:$0xff]
      %v6656 = vld [vmem:[%s12 + $0x68] sm:$0xff]
      %v6657 = vld [vmem:[%s12 + $0x70] sm:$0xff]
      %v6658 = vld [vmem:[%s12 + $0x78] sm:$0xff]
      %v6659 = vld [vmem:[%s12 + $0x80] sm:$0xff]
      %v6660 = vld [vmem:[%s12 + $0x88] sm:$0xff]
      %v6661 = vld [vmem:[%s12 + $0x90] sm:$0xff]
      %v6662 = vld [vmem:[%s12 + $0x98] sm:$0xff]
      %v6663 = vld [vmem:[%s12 + $0xa0] sm:$0xff]
      %v6664 = vld [vmem:[%s12 + $0xa8] sm:$0xff]
      %v6665 = vld [vmem:[%s12 + $0xb0] sm:$0xff]
      %v6666 = vld [vmem:[%s12 + $0xb8] sm:$0xff]
      %v6667 = vld [vmem:[%s12 + $0xc0] sm:$0xff]
      %v6668 = vld [vmem:[%s12 + $0xc8] sm:$0xff]
      %v6669 = vld [vmem:[%s12 + $0xd0] sm:$0xff]
      %v6670 = vld [vmem:[%s12 + $0xd8] sm:$0xff]
      %v6671 = vld [vmem:[%s12 + $0xe0] sm:$0xff]
      %v6672 = vld [vmem:[%s12 + $0xe8] sm:$0xff]
      %v6673 = vld [vmem:[%s12 + $0xf0] sm:$0xff]
      %v6674 = vld [vmem:[%s12 + $0xf8] sm:$0xff]
      %v6675 = vld [vmem:[%s12 + $0x100] sm:$0xff]
      %v6676 = vld [vmem:[%s12 + $0x108] sm:$0xff]
      %v6677 = vld [vmem:[%s12 + $0x110] sm:$0xff]
      %v6678 = vld [vmem:[%s12 + $0x118] sm:$0xff]
      %v6679 = vld [vmem:[%s12 + $0x120] sm:$0xff]
      %v6680 = vld [vmem:[%s12 + $0x128] sm:$0xff]
      %v6681 = vld [vmem:[%s12 + $0x130] sm:$0xff]
      %v6682 = vld [vmem:[%s12 + $0x138] sm:$0xff]
      %v6683 = vld [vmem:[%s12 + $0x140] sm:$0xff]
      %v6684 = vld [vmem:[%s12 + $0x148] sm:$0xff]
      %v6685 = vld [vmem:[%s12 + $0x150] sm:$0xff]
      %v6686 = vld [vmem:[%s12 + $0x158] sm:$0xff]
      %v6687 = vld [vmem:[%s12 + $0x160] sm:$0xff]
      %v6688 = vld [vmem:[%s12 + $0x168] sm:$0xff]
      %v6689 = vld [vmem:[%s12 + $0x170] sm:$0xff]
      %v6690 = vld [vmem:[%s12 + $0x178] sm:$0xff]
      %v6691 = vld [vmem:[%s12 + $0x180] sm:$0xff]
      %v6692 = vld [vmem:[%s12 + $0x188] sm:$0xff]
      %v6693 = vld [vmem:[%s12 + $0x190] sm:$0xff]
      %v6694 = vld [vmem:[%s12 + $0x198] sm:$0xff]
      %v6695 = vld [vmem:[%s12 + $0x1a0] sm:$0xff]
      %v6696 = vld [vmem:[%s12 + $0x1a8] sm:$0xff]
      %v6697 = vld [vmem:[%s12 + $0x1b0] sm:$0xff]
      %v6698 = vld [vmem:[%s12 + $0x1b8] sm:$0xff]
      %v6699 = vld [vmem:[%s12 + $0x1c0] sm:$0xff]
      %v6700 = vld [vmem:[%s12 + $0x1c8] sm:$0xff]
      %v6701 = vld [vmem:[%s12 + $0x1d0] sm:$0xff]
      %v6702 = vld [vmem:[%s12 + $0x1d8] sm:$0xff]
      %v6703 = vld [vmem:[%s12 + $0x1e0] sm:$0xff]
      %v6704 = vld [vmem:[%s12 + $0x1e8] sm:$0xff]
      %v6705 = vld [vmem:[%s12 + $0x1f0] sm:$0xff]
      %v6706 = vld [vmem:[%s12 + $0x1f8] sm:$0xff]
      %v6707 = vld [vmem:[%s12 + $0x200] sm:$0xff]
      %v6708 = vld [vmem:[%s12 + $0x208] sm:$0xff]
      %v6709 = vld [vmem:[%s12 + $0x210] sm:$0xff]
      %v6710 = vld [vmem:[%s12 + $0x218] sm:$0xff]
      %v6711 = vld [vmem:[%s12 + $0x220] sm:$0xff]
      %v6712 = vld [vmem:[%s12 + $0x228] sm:$0xff]
      %v6713 = vld [vmem:[%s12 + $0x230] sm:$0xff]
      %v6714 = vld [vmem:[%s12 + $0x238] sm:$0xff]
      %v6715 = vld [vmem:[%s12 + $0x240] sm:$0xff]
      %v6716 = vld [vmem:[%s12 + $0x248] sm:$0xff]
      %v6717 = vld [vmem:[%s12 + $0x250] sm:$0xff]
      %v6718 = vld [vmem:[%s12 + $0x258] sm:$0xff]
      %v6719 = vld [vmem:[%s12 + $0x260] sm:$0xff]
      %v6720 = vld [vmem:[%s12 + $0x268] sm:$0xff]
      %v6721 = vld [vmem:[%s12 + $0x270] sm:$0xff]
      %v6722 = vld [vmem:[%s12 + $0x278] sm:$0xff]
      %v6723 = vld [vmem:[%s12 + $0x280] sm:$0xff]
      %v6724 = vld [vmem:[%s12 + $0x288] sm:$0xff]
      %v6725 = vld [vmem:[%s12 + $0x290] sm:$0xff]
      %v6726 = vld [vmem:[%s12 + $0x298] sm:$0xff]
      %v6727 = vld [vmem:[%s12 + $0x2a0] sm:$0xff]
      %v6728 = vld [vmem:[%s12 + $0x2a8] sm:$0xff]
      %v6729 = vld [vmem:[%s12 + $0x2b0] sm:$0xff]
      %v6730 = vld [vmem:[%s12 + $0x2b8] sm:$0xff]
      %v6731 = vld [vmem:[%s12 + $0x2c0] sm:$0xff]
      %v6732 = vld [vmem:[%s12 + $0x2c8] sm:$0xff]
      %v6733 = vld [vmem:[%s12 + $0x2d0] sm:$0xff]
      %v6734 = vld [vmem:[%s12 + $0x2d8] sm:$0xff]
      %v6735 = vld [vmem:[%s12 + $0x2e0] sm:$0xff]
      %v6736 = vld [vmem:[%s12 + $0x2e8] sm:$0xff]
      %v6737 = vld [vmem:[%s12 + $0x2f0] sm:$0xff]
      %v6738 = vld [vmem:[%s12 + $0x2f8] sm:$0xff]
      %v6739 = vld [vmem:[%s12 + $0x300] sm:$0xff]
      %v6740 = vld [vmem:[%s12 + $0x308] sm:$0xff]
      %v6741 = vld [vmem:[%s12 + $0x310] sm:$0xff]
      %v6742 = vld [vmem:[%s12 + $0x318] sm:$0xff]
      %v6743 = vld [vmem:[%s12 + $0x320] sm:$0xff]
      %v6744 = vld [vmem:[%s12 + $0x328] sm:$0xff]
      %v6745 = vld [vmem:[%s12 + $0x330] sm:$0xff]
      %v6746 = vld [vmem:[%s12 + $0x338] sm:$0xff]
      %v6747 = vld [vmem:[%s12 + $0x340] sm:$0xff]
      %v6748 = vld [vmem:[%s12 + $0x348] sm:$0xff]
      %v6749 = vld [vmem:[%s12 + $0x350] sm:$0xff]
      %v6750 = vld [vmem:[%s12 + $0x358] sm:$0xff]
      %v6751 = vld [vmem:[%s12 + $0x360] sm:$0xff]
      %v6752 = vld [vmem:[%s12 + $0x368] sm:$0xff]
      %v6753 = vld [vmem:[%s12 + $0x370] sm:$0xff]
      %v6754 = vld [vmem:[%s12 + $0x378] sm:$0xff]
      %v6755 = vld [vmem:[%s12 + $0x380] sm:$0xff]
      %v6756 = vld [vmem:[%s12 + $0x388] sm:$0xff]
      %v6757 = vld [vmem:[%s12 + $0x390] sm:$0xff]
      %v6758 = vld [vmem:[%s12 + $0x398] sm:$0xff]
      %v6759 = vld [vmem:[%s12 + $0x3a0] sm:$0xff]
      %v6760 = vld [vmem:[%s12 + $0x3a8] sm:$0xff]
      %v6761 = vld [vmem:[%s12 + $0x3b0] sm:$0xff]
      %v6762 = vld [vmem:[%s12 + $0x3b8] sm:$0xff]
      %v6763 = vld [vmem:[%s12 + $0x3c0] sm:$0xff]
      %v6764 = vld [vmem:[%s12 + $0x3c8] sm:$0xff]
      %v6765 = vld [vmem:[%s12 + $0x3d0] sm:$0xff]
      %v6766 = vld [vmem:[%s12 + $0x3d8] sm:$0xff]
      %v6767 = vld [vmem:[%s12 + $0x3e0] sm:$0xff]
      %v6768 = vld [vmem:[%s12 + $0x3e8] sm:$0xff]
      %v6769 = vld [vmem:[%s12 + $0x3f0] sm:$0xff]
      %v6770 = vld [vmem:[%s12 + $0x3f8] sm:$0xff]
      %6771 = vmatprep.subr.mxu0 %v6612
      %6772 = vmatpush1.msra.mxu0 %v6611
      %6773 = vmatprep.subr.mxu0 %v6614
      %6774 = vmatpush1.msra.mxu0 %v6613
      %6775 = vmatprep.subr.mxu0 %v6616
      %6776 = vmatpush1.msra.mxu0 %v6615
      %6777 = vmatprep.subr.mxu0 %v6618
      %6778 = vmatpush1.msra.mxu0 %v6617
      %6779 = vmatprep.subr.mxu0 %v6620
      %6780 = vmatpush1.msra.mxu0 %v6619
      %6781 = vmatprep.subr.mxu0 %v6622
      %6782 = vmatpush1.msra.mxu0 %v6621
      %6783 = vmatprep.subr.mxu0 %v6624
      %6784 = vmatpush1.msra.mxu0 %v6623
      %6785 = vmatprep.subr.mxu0 %v6626
      %6786 = vmatpush1.msra.mxu0 %v6625
      %6787 = vmatprep.subr.mxu0 %v6628
      %6788 = vmatpush1.msra.mxu0 %v6627
      %6789 = vmatprep.subr.mxu0 %v6630
      %6790 = vmatpush1.msra.mxu0 %v6629
      %6791 = vmatprep.subr.mxu0 %v6632
      %6792 = vmatpush1.msra.mxu0 %v6631
      %6793 = vmatprep.subr.mxu0 %v6634
      %6794 = vmatpush1.msra.mxu0 %v6633
      %6795 = vmatprep.subr.mxu0 %v6636
      %6796 = vmatpush1.msra.mxu0 %v6635
      %6797 = vmatprep.subr.mxu0 %v6638
      %6798 = vmatpush1.msra.mxu0 %v6637
      %6799 = vmatprep.subr.mxu0 %v6640
      %6800 = vmatpush1.msra.mxu0 %v6639
      %6801 = vmatprep.subr.mxu0 %v6642
      %6802 = vmatpush1.msra.mxu0 %v6641
      %6803 = vmatprep.subr.mxu0 0.0
      %6804 = vmatpush1.msra.mxu0 0.0
      %6805 = vmatprep.subr.mxu0 0.0
      %6806 = vmatpush1.msra.mxu0 0.0
      %6807 = vmatprep.subr.mxu0 0.0
      %6808 = vmatpush1.msra.mxu0 0.0
      %6809 = vmatprep.subr.mxu0 0.0
      %6810 = vmatpush1.msra.mxu0 0.0
      %6811 = vmatprep.subr.mxu0 0.0
      %6812 = vmatpush1.msra.mxu0 0.0
      %6813 = vmatprep.subr.mxu0 0.0
      %6814 = vmatpush1.msra.mxu0 0.0
      %6815 = vmatprep.subr.mxu0 0.0
      %6816 = vmatpush1.msra.mxu0 0.0
      %6817 = vmatprep.subr.mxu0 0.0
      %6818 = vmatpush1.msra.mxu0 0.0
      %6819 = vmatprep.subr.mxu0 0.0
      %6820 = vmatpush1.msra.mxu0 0.0
      %6821 = vmatprep.subr.mxu0 0.0
      %6822 = vmatpush1.msra.mxu0 0.0
      %6823 = vmatprep.subr.mxu0 0.0
      %6824 = vmatpush1.msra.mxu0 0.0
      %6825 = vmatprep.subr.mxu0 0.0
      %6826 = vmatpush1.msra.mxu0 0.0
      %6827 = vmatprep.subr.mxu0 0.0
      %6828 = vmatpush1.msra.mxu0 0.0
      %6829 = vmatprep.subr.mxu0 0.0
      %6830 = vmatpush1.msra.mxu0 0.0
      %6831 = vmatprep.subr.mxu0 0.0
      %6832 = vmatpush1.msra.mxu0 0.0
      %6833 = vmatprep.subr.mxu0 0.0
      %6834 = vmatpush1.msra.mxu0 0.0
      %6835 = vmatprep.mubr.f32.mxu0 0.0
      %6836 = vmatmul.mubr.f32.gmra.mrb[0].mxu0 %v6643
      %v6837 = vpop.f32.mrb[0].mxu0
      %v6838 = vadd.f32 0.0, %v6837
      %v6839 = vpop.f32.mrb[0].mxu0
      %v6840 = vadd.f32 0.0, %v6839
      %6841 = vmatprep.mubr.f32.mxu0 0.0
      %6842 = vmatmul.mubr.f32.gmra.mrb[0].mxu0 %v6644
      %v6843 = vpop.f32.mrb[0].mxu0
      %v6844 = vadd.f32 0.0, %v6843
      %v6845 = vpop.f32.mrb[0].mxu0
      %v6846 = vadd.f32 0.0, %v6845
      %6847 = vmatprep.mubr.f32.mxu0 0.0
      %6848 = vmatmul.mubr.f32.gmra.mrb[0].mxu0 %v6645
      %v6849 = vpop.f32.mrb[0].mxu0
      %v6850 = vadd.f32 0.0, %v6849
      %v6851 = vpop.f32.mrb[0].mxu0
      %v6852 = vadd.f32 0.0, %v6851
      %6853 = vmatprep.mubr.f32.mxu0 0.0
      %6854 = vmatmul.mubr.f32.gmra.mrb[0].mxu0 %v6646
      %v6855 = vpop.f32.mrb[0].mxu0
      %v6856 = vadd.f32 0.0, %v6855
      %v6857 = vpop.f32.mrb[0].mxu0
      %v6858 = vadd.f32 0.0, %v6857
      %6859 = vmatprep.mubr.f32.mxu0 0.0
      %6860 = vmatmul.mubr.f32.gmra.mrb[0].mxu0 %v6647
      %v6861 = vpop.f32.mrb[0].mxu0
      %v6862 = vadd.f32 0.0, %v6861
      %v6863 = vpop.f32.mrb[0].mxu0
      %v6864 = vadd.f32 0.0, %v6863
      %6865 = vmatprep.mubr.f32.mxu0 0.0
      %6866 = vmatmul.mubr.f32.gmra.mrb[0].mxu0 %v6648
      %v6867 = vpop.f32.mrb[0].mxu0
      %v6868 = vadd.f32 0.0, %v6867
      %v6869 = vpop.f32.mrb[0].mxu0
      %v6870 = vadd.f32 0.0, %v6869
      %6871 = vmatprep.mubr.f32.mxu0 0.0
      %6872 = vmatmul.mubr.f32.gmra.mrb[0].mxu0 %v6649
      %v6873 = vpop.f32.mrb[0].mxu0
      %v6874 = vadd.f32 0.0, %v6873
      %v6875 = vpop.f32.mrb[0].mxu0
      %v6876 = vadd.f32 0.0, %v6875
      %6877 = vmatprep.mubr.f32.mxu0 0.0
      %6878 = vmatmul.mubr.f32.gmra.mrb[0].mxu0 %v6650
      %v6879 = vpop.f32.mrb[0].mxu0
      %v6880 = vadd.f32 0.0, %v6879
      %v6881 = vpop.f32.mrb[0].mxu0
      %v6882 = vadd.f32 0.0, %v6881
      %6883 = vmatprep.mubr.f32.mxu0 0.0
      %6884 = vmatmul.mubr.f32.gmra.mrb[0].mxu0 %v6651
      %v6885 = vpop.f32.mrb[0].mxu0
      %v6886 = vadd.f32 0.0, %v6885
      %v6887 = vpop.f32.mrb[0].mxu0
      %v6888 = vadd.f32 0.0, %v6887
      %6889 = vmatprep.mubr.f32.mxu0 0.0
      %6890 = vmatmul.mubr.f32.gmra.mrb[0].mxu0 %v6652
      %v6891 = vpop.f32.mrb[0].mxu0
      %v6892 = vadd.f32 0.0, %v6891
      %v6893 = vpop.f32.mrb[0].mxu0
      %v6894 = vadd.f32 0.0, %v6893
      %6895 = vmatprep.mubr.f32.mxu0 0.0
      %6896 = vmatmul.mubr.f32.gmra.mrb[0].mxu0 %v6653
      %v6897 = vpop.f32.mrb[0].mxu0
      %v6898 = vadd.f32 0.0, %v6897
      %v6899 = vpop.f32.mrb[0].mxu0
      %v6900 = vadd.f32 0.0, %v6899
      %6901 = vmatprep.mubr.f32.mxu0 0.0
      %6902 = vmatmul.mubr.f32.gmra.mrb[0].mxu0 %v6654
      %v6903 = vpop.f32.mrb[0].mxu0
      %v6904 = vadd.f32 0.0, %v6903
      %v6905 = vpop.f32.mrb[0].mxu0
      %v6906 = vadd.f32 0.0, %v6905
      %6907 = vmatprep.mubr.f32.mxu0 0.0
      %6908 = vmatmul.mubr.f32.gmra.mrb[0].mxu0 %v6655
      %v6909 = vpop.f32.mrb[0].mxu0
      %v6910 = vadd.f32 0.0, %v6909
      %v6911 = vpop.f32.mrb[0].mxu0
      %v6912 = vadd.f32 0.0, %v6911
      %6913 = vmatprep.mubr.f32.mxu0 0.0
      %6914 = vmatmul.mubr.f32.gmra.mrb[0].mxu0 %v6656
      %v6915 = vpop.f32.mrb[0].mxu0
      %v6916 = vadd.f32 0.0, %v6915
      %v6917 = vpop.f32.mrb[0].mxu0
      %v6918 = vadd.f32 0.0, %v6917
      %6919 = vmatprep.mubr.f32.mxu0 0.0
      %6920 = vmatmul.mubr.f32.gmra.mrb[0].mxu0 %v6657
      %v6921 = vpop.f32.mrb[0].mxu0
      %v6922 = vadd.f32 0.0, %v6921
      %v6923 = vpop.f32.mrb[0].mxu0
      %v6924 = vadd.f32 0.0, %v6923
      %6925 = vmatprep.mubr.f32.mxu0 0.0
      %6926 = vmatmul.mubr.f32.gmra.mrb[0].mxu0 %v6658
      %v6927 = vpop.f32.mrb[0].mxu0
      %v6928 = vadd.f32 0.0, %v6927
      %v6929 = vpop.f32.mrb[0].mxu0
      %v6930 = vadd.f32 0.0, %v6929
      %6931 = vmatprep.mubr.f32.mxu0 0.0
      %6932 = vmatmul.mubr.f32.gmra.mrb[0].mxu0 %v6659
      %v6933 = vpop.f32.mrb[0].mxu0
      %v6934 = vadd.f32 0.0, %v6933
      %v6935 = vpop.f32.mrb[0].mxu0
      %v6936 = vadd.f32 0.0, %v6935
      %6937 = vmatprep.mubr.f32.mxu0 0.0
      %6938 = vmatmul.mubr.f32.gmra.mrb[0].mxu0 %v6660
      %v6939 = vpop.f32.mrb[0].mxu0
      %v6940 = vadd.f32 0.0, %v6939
      %v6941 = vpop.f32.mrb[0].mxu0
      %v6942 = vadd.f32 0.0, %v6941
      %6943 = vmatprep.mubr.f32.mxu0 0.0
      %6944 = vmatmul.mubr.f32.gmra.mrb[0].mxu0 %v6661
      %v6945 = vpop.f32.mrb[0].mxu0
      %v6946 = vadd.f32 0.0, %v6945
      %v6947 = vpop.f32.mrb[0].mxu0
      %v6948 = vadd.f32 0.0, %v6947
      %6949 = vmatprep.mubr.f32.mxu0 0.0
      %6950 = vmatmul.mubr.f32.gmra.mrb[0].mxu0 %v6662
      %v6951 = vpop.f32.mrb[0].mxu0
      %v6952 = vadd.f32 0.0, %v6951
      %v6953 = vpop.f32.mrb[0].mxu0
      %v6954 = vadd.f32 0.0, %v6953
      %6955 = vmatprep.mubr.f32.mxu0 0.0
      %6956 = vmatmul.mubr.f32.gmra.mrb[0].mxu0 %v6663
      %v6957 = vpop.f32.mrb[0].mxu0
      %v6958 = vadd.f32 0.0, %v6957
      %v6959 = vpop.f32.mrb[0].mxu0
      %v6960 = vadd.f32 0.0, %v6959
      %6961 = vmatprep.mubr.f32.mxu0 0.0
      %6962 = vmatmul.mubr.f32.gmra.mrb[0].mxu0 %v6664
      %v6963 = vpop.f32.mrb[0].mxu0
      %v6964 = vadd.f32 0.0, %v6963
      %v6965 = vpop.f32.mrb[0].mxu0
      %v6966 = vadd.f32 0.0, %v6965
      %6967 = vmatprep.mubr.f32.mxu0 0.0
      %6968 = vmatmul.mubr.f32.gmra.mrb[0].mxu0 %v6665
      %v6969 = vpop.f32.mrb[0].mxu0
      %v6970 = vadd.f32 0.0, %v6969
      %v6971 = vpop.f32.mrb[0].mxu0
      %v6972 = vadd.f32 0.0, %v6971
      %6973 = vmatprep.mubr.f32.mxu0 0.0
      %6974 = vmatmul.mubr.f32.gmra.mrb[0].mxu0 %v6666
      %v6975 = vpop.f32.mrb[0].mxu0
      %v6976 = vadd.f32 0.0, %v6975
      %v6977 = vpop.f32.mrb[0].mxu0
      %v6978 = vadd.f32 0.0, %v6977
      %6979 = vmatprep.mubr.f32.mxu0 0.0
      %6980 = vmatmul.mubr.f32.gmra.mrb[0].mxu0 %v6667
      %v6981 = vpop.f32.mrb[0].mxu0
      %v6982 = vadd.f32 0.0, %v6981
      %v6983 = vpop.f32.mrb[0].mxu0
      %v6984 = vadd.f32 0.0, %v6983
      %6985 = vmatprep.mubr.f32.mxu0 0.0
      %6986 = vmatmul.mubr.f32.gmra.mrb[0].mxu0 %v6668
      %v6987 = vpop.f32.mrb[0].mxu0
      %v6988 = vadd.f32 0.0, %v6987
      %v6989 = vpop.f32.mrb[0].mxu0
      %v6990 = vadd.f32 0.0, %v6989
      %6991 = vmatprep.mubr.f32.mxu0 0.0
      %6992 = vmatmul.mubr.f32.gmra.mrb[0].mxu0 %v6669
      %v6993 = vpop.f32.mrb[0].mxu0
      %v6994 = vadd.f32 0.0, %v6993
      %v6995 = vpop.f32.mrb[0].mxu0
      %v6996 = vadd.f32 0.0, %v6995
      %6997 = vmatprep.mubr.f32.mxu0 0.0
      %6998 = vmatmul.mubr.f32.gmra.mrb[0].mxu0 %v6670
      %v6999 = vpop.f32.mrb[0].mxu0
      %v7000 = vadd.f32 0.0, %v6999
      %v7001 = vpop.f32.mrb[0].mxu0
      %v7002 = vadd.f32 0.0, %v7001
      %7003 = vmatprep.mubr.f32.mxu0 0.0
      %7004 = vmatmul.mubr.f32.gmra.mrb[0].mxu0 %v6671
      %v7005 = vpop.f32.mrb[0].mxu0
      %v7006 = vadd.f32 0.0, %v7005
      %v7007 = vpop.f32.mrb[0].mxu0
      %v7008 = vadd.f32 0.0, %v7007
      %7009 = vmatprep.mubr.f32.mxu0 0.0
      %7010 = vmatmul.mubr.f32.gmra.mrb[0].mxu0 %v6672
      %v7011 = vpop.f32.mrb[0].mxu0
      %v7012 = vadd.f32 0.0, %v7011
      %v7013 = vpop.f32.mrb[0].mxu0
      %v7014 = vadd.f32 0.0, %v7013
      %7015 = vmatprep.mubr.f32.mxu0 0.0
      %7016 = vmatmul.mubr.f32.gmra.mrb[0].mxu0 %v6673
      %v7017 = vpop.f32.mrb[0].mxu0
      %v7018 = vadd.f32 0.0, %v7017
      %v7019 = vpop.f32.mrb[0].mxu0
      %v7020 = vadd.f32 0.0, %v7019
      %7021 = vmatprep.mubr.f32.mxu0 0.0
      %7022 = vmatmul.mubr.f32.gmra.mrb[0].mxu0 %v6674
      %v7023 = vpop.f32.mrb[0].mxu0
      %v7024 = vadd.f32 0.0, %v7023
      %v7025 = vpop.f32.mrb[0].mxu0
      %v7026 = vadd.f32 0.0, %v7025
      %7027 = vmatprep.mubr.f32.mxu0 0.0
      %7028 = vmatmul.mubr.f32.gmra.mrb[0].mxu0 %v6675
      %v7029 = vpop.f32.mrb[0].mxu0
      %v7030 = vadd.f32 0.0, %v7029
      %v7031 = vpop.f32.mrb[0].mxu0
      %v7032 = vadd.f32 0.0, %v7031
      %7033 = vmatprep.mubr.f32.mxu0 0.0
      %7034 = vmatmul.mubr.f32.gmra.mrb[0].mxu0 %v6676
      %v7035 = vpop.f32.mrb[0].mxu0
      %v7036 = vadd.f32 0.0, %v7035
      %v7037 = vpop.f32.mrb[0].mxu0
      %v7038 = vadd.f32 0.0, %v7037
      %7039 = vmatprep.mubr.f32.mxu0 0.0
      %7040 = vmatmul.mubr.f32.gmra.mrb[0].mxu0 %v6677
      %v7041 = vpop.f32.mrb[0].mxu0
      %v7042 = vadd.f32 0.0, %v7041
      %v7043 = vpop.f32.mrb[0].mxu0
      %v7044 = vadd.f32 0.0, %v7043
      %7045 = vmatprep.mubr.f32.mxu0 0.0
      %7046 = vmatmul.mubr.f32.gmra.mrb[0].mxu0 %v6678
      %v7047 = vpop.f32.mrb[0].mxu0
      %v7048 = vadd.f32 0.0, %v7047
      %v7049 = vpop.f32.mrb[0].mxu0
      %v7050 = vadd.f32 0.0, %v7049
      %7051 = vmatprep.mubr.f32.mxu0 0.0
      %7052 = vmatmul.mubr.f32.gmra.mrb[0].mxu0 %v6679
      %v7053 = vpop.f32.mrb[0].mxu0
      %v7054 = vadd.f32 0.0, %v7053
      %v7055 = vpop.f32.mrb[0].mxu0
      %v7056 = vadd.f32 0.0, %v7055
      %7057 = vmatprep.mubr.f32.mxu0 0.0
      %7058 = vmatmul.mubr.f32.gmra.mrb[0].mxu0 %v6680
      %v7059 = vpop.f32.mrb[0].mxu0
      %v7060 = vadd.f32 0.0, %v7059
      %v7061 = vpop.f32.mrb[0].mxu0
      %v7062 = vadd.f32 0.0, %v7061
      %7063 = vmatprep.mubr.f32.mxu0 0.0
      %7064 = vmatmul.mubr.f32.gmra.mrb[0].mxu0 %v6681
      %v7065 = vpop.f32.mrb[0].mxu0
      %v7066 = vadd.f32 0.0, %v7065
      %v7067 = vpop.f32.mrb[0].mxu0
      %v7068 = vadd.f32 0.0, %v7067
      %7069 = vmatprep.mubr.f32.mxu0 0.0
      %7070 = vmatmul.mubr.f32.gmra.mrb[0].mxu0 %v6682
      %v7071 = vpop.f32.mrb[0].mxu0
      %v7072 = vadd.f32 0.0, %v7071
      %v7073 = vpop.f32.mrb[0].mxu0
      %v7074 = vadd.f32 0.0, %v7073
      %7075 = vmatprep.mubr.f32.mxu0 0.0
      %7076 = vmatmul.mubr.f32.gmra.mrb[0].mxu0 %v6683
      %v7077 = vpop.f32.mrb[0].mxu0
      %v7078 = vadd.f32 0.0, %v7077
      %v7079 = vpop.f32.mrb[0].mxu0
      %v7080 = vadd.f32 0.0, %v7079
      %7081 = vmatprep.mubr.f32.mxu0 0.0
      %7082 = vmatmul.mubr.f32.gmra.mrb[0].mxu0 %v6684
      %v7083 = vpop.f32.mrb[0].mxu0
      %v7084 = vadd.f32 0.0, %v7083
      %v7085 = vpop.f32.mrb[0].mxu0
      %v7086 = vadd.f32 0.0, %v7085
      %7087 = vmatprep.mubr.f32.mxu0 0.0
      %7088 = vmatmul.mubr.f32.gmra.mrb[0].mxu0 %v6685
      %v7089 = vpop.f32.mrb[0].mxu0
      %v7090 = vadd.f32 0.0, %v7089
      %v7091 = vpop.f32.mrb[0].mxu0
      %v7092 = vadd.f32 0.0, %v7091
      %7093 = vmatprep.mubr.f32.mxu0 0.0
      %7094 = vmatmul.mubr.f32.gmra.mrb[0].mxu0 %v6686
      %v7095 = vpop.f32.mrb[0].mxu0
      %v7096 = vadd.f32 0.0, %v7095
      %v7097 = vpop.f32.mrb[0].mxu0
      %v7098 = vadd.f32 0.0, %v7097
      %7099 = vmatprep.mubr.f32.mxu0 0.0
      %7100 = vmatmul.mubr.f32.gmra.mrb[0].mxu0 %v6687
      %v7101 = vpop.f32.mrb[0].mxu0
      %v7102 = vadd.f32 0.0, %v7101
      %v7103 = vpop.f32.mrb[0].mxu0
      %v7104 = vadd.f32 0.0, %v7103
      %7105 = vmatprep.mubr.f32.mxu0 0.0
      %7106 = vmatmul.mubr.f32.gmra.mrb[0].mxu0 %v6688
      %v7107 = vpop.f32.mrb[0].mxu0
      %v7108 = vadd.f32 0.0, %v7107
      %v7109 = vpop.f32.mrb[0].mxu0
      %v7110 = vadd.f32 0.0, %v7109
      %7111 = vmatprep.mubr.f32.mxu0 0.0
      %7112 = vmatmul.mubr.f32.gmra.mrb[0].mxu0 %v6689
      %v7113 = vpop.f32.mrb[0].mxu0
      %v7114 = vadd.f32 0.0, %v7113
      %v7115 = vpop.f32.mrb[0].mxu0
      %v7116 = vadd.f32 0.0, %v7115
      %7117 = vmatprep.mubr.f32.mxu0 0.0
      %7118 = vmatmul.mubr.f32.gmra.mrb[0].mxu0 %v6690
      %v7119 = vpop.f32.mrb[0].mxu0
      %v7120 = vadd.f32 0.0, %v7119
      %v7121 = vpop.f32.mrb[0].mxu0
      %v7122 = vadd.f32 0.0, %v7121
      %7123 = vmatprep.mubr.f32.mxu0 0.0
      %7124 = vmatmul.mubr.f32.gmra.mrb[0].mxu0 %v6691
      %v7125 = vpop.f32.mrb[0].mxu0
      %v7126 = vadd.f32 0.0, %v7125
      %v7127 = vpop.f32.mrb[0].mxu0
      %v7128 = vadd.f32 0.0, %v7127
      %7129 = vmatprep.mubr.f32.mxu0 0.0
      %7130 = vmatmul.mubr.f32.gmra.mrb[0].mxu0 %v6692
      %v7131 = vpop.f32.mrb[0].mxu0
      %v7132 = vadd.f32 0.0, %v7131
      %v7133 = vpop.f32.mrb[0].mxu0
      %v7134 = vadd.f32 0.0, %v7133
      %7135 = vmatprep.mubr.f32.mxu0 0.0
      %7136 = vmatmul.mubr.f32.gmra.mrb[0].mxu0 %v6693
      %v7137 = vpop.f32.mrb[0].mxu0
      %v7138 = vadd.f32 0.0, %v7137
      %v7139 = vpop.f32.mrb[0].mxu0
      %v7140 = vadd.f32 0.0, %v7139
      %7141 = vmatprep.mubr.f32.mxu0 0.0
      %7142 = vmatmul.mubr.f32.gmra.mrb[0].mxu0 %v6694
      %v7143 = vpop.f32.mrb[0].mxu0
      %v7144 = vadd.f32 0.0, %v7143
      %v7145 = vpop.f32.mrb[0].mxu0
      %v7146 = vadd.f32 0.0, %v7145
      %7147 = vmatprep.mubr.f32.mxu0 0.0
      %7148 = vmatmul.mubr.f32.gmra.mrb[0].mxu0 %v6695
      %v7149 = vpop.f32.mrb[0].mxu0
      %v7150 = vadd.f32 0.0, %v7149
      %v7151 = vpop.f32.mrb[0].mxu0
      %v7152 = vadd.f32 0.0, %v7151
      %7153 = vmatprep.mubr.f32.mxu0 0.0
      %7154 = vmatmul.mubr.f32.gmra.mrb[0].mxu0 %v6696
      %v7155 = vpop.f32.mrb[0].mxu0
      %v7156 = vadd.f32 0.0, %v7155
      %v7157 = vpop.f32.mrb[0].mxu0
      %v7158 = vadd.f32 0.0, %v7157
      %7159 = vmatprep.mubr.f32.mxu0 0.0
      %7160 = vmatmul.mubr.f32.gmra.mrb[0].mxu0 %v6697
      %v7161 = vpop.f32.mrb[0].mxu0
      %v7162 = vadd.f32 0.0, %v7161
      %v7163 = vpop.f32.mrb[0].mxu0
      %v7164 = vadd.f32 0.0, %v7163
      %7165 = vmatprep.mubr.f32.mxu0 0.0
      %7166 = vmatmul.mubr.f32.gmra.mrb[0].mxu0 %v6698
      %v7167 = vpop.f32.mrb[0].mxu0
      %v7168 = vadd.f32 0.0, %v7167
      %v7169 = vpop.f32.mrb[0].mxu0
      %v7170 = vadd.f32 0.0, %v7169
      %7171 = vmatprep.mubr.f32.mxu0 0.0
      %7172 = vmatmul.mubr.f32.gmra.mrb[0].mxu0 %v6699
      %v7173 = vpop.f32.mrb[0].mxu0
      %v7174 = vadd.f32 0.0, %v7173
      %v7175 = vpop.f32.mrb[0].mxu0
      %v7176 = vadd.f32 0.0, %v7175
      %7177 = vmatprep.mubr.f32.mxu0 0.0
      %7178 = vmatmul.mubr.f32.gmra.mrb[0].mxu0 %v6700
      %v7179 = vpop.f32.mrb[0].mxu0
      %v7180 = vadd.f32 0.0, %v7179
      %v7181 = vpop.f32.mrb[0].mxu0
      %v7182 = vadd.f32 0.0, %v7181
      %7183 = vmatprep.mubr.f32.mxu0 0.0
      %7184 = vmatmul.mubr.f32.gmra.mrb[0].mxu0 %v6701
      %v7185 = vpop.f32.mrb[0].mxu0
      %v7186 = vadd.f32 0.0, %v7185
      %v7187 = vpop.f32.mrb[0].mxu0
      %v7188 = vadd.f32 0.0, %v7187
      %7189 = vmatprep.mubr.f32.mxu0 0.0
      %7190 = vmatmul.mubr.f32.gmra.mrb[0].mxu0 %v6702
      %v7191 = vpop.f32.mrb[0].mxu0
      %v7192 = vadd.f32 0.0, %v7191
      %v7193 = vpop.f32.mrb[0].mxu0
      %v7194 = vadd.f32 0.0, %v7193
      %7195 = vmatprep.mubr.f32.mxu0 0.0
      %7196 = vmatmul.mubr.f32.gmra.mrb[0].mxu0 %v6703
      %v7197 = vpop.f32.mrb[0].mxu0
      %v7198 = vadd.f32 0.0, %v7197
      %v7199 = vpop.f32.mrb[0].mxu0
      %v7200 = vadd.f32 0.0, %v7199
      %7201 = vmatprep.mubr.f32.mxu0 0.0
      %7202 = vmatmul.mubr.f32.gmra.mrb[0].mxu0 %v6704
      %v7203 = vpop.f32.mrb[0].mxu0
      %v7204 = vadd.f32 0.0, %v7203
      %v7205 = vpop.f32.mrb[0].mxu0
      %v7206 = vadd.f32 0.0, %v7205
      %7207 = vmatprep.mubr.f32.mxu0 0.0
      %7208 = vmatmul.mubr.f32.gmra.mrb[0].mxu0 %v6705
      %v7209 = vpop.f32.mrb[0].mxu0
      %v7210 = vadd.f32 0.0, %v7209
      %v7211 = vpop.f32.mrb[0].mxu0
      %v7212 = vadd.f32 0.0, %v7211
      %7213 = vmatprep.mubr.f32.mxu0 0.0
      %7214 = vmatmul.mubr.f32.gmra.mrb[0].mxu0 %v6706
      %v7215 = vpop.f32.mrb[0].mxu0
      %v7216 = vadd.f32 0.0, %v7215
      %v7217 = vpop.f32.mrb[0].mxu0
      %v7218 = vadd.f32 0.0, %v7217
      %7219 = vmatprep.mubr.f32.mxu0 0.0
      %7220 = vmatmul.mubr.f32.gmra.mrb[0].mxu0 %v6707
      %v7221 = vpop.f32.mrb[0].mxu0
      %v7222 = vadd.f32 0.0, %v7221
      %v7223 = vpop.f32.mrb[0].mxu0
      %v7224 = vadd.f32 0.0, %v7223
      %7225 = vmatprep.mubr.f32.mxu0 0.0
      %7226 = vmatmul.mubr.f32.gmra.mrb[0].mxu0 %v6708
      %v7227 = vpop.f32.mrb[0].mxu0
      %v7228 = vadd.f32 0.0, %v7227
      %v7229 = vpop.f32.mrb[0].mxu0
      %v7230 = vadd.f32 0.0, %v7229
      %7231 = vmatprep.mubr.f32.mxu0 0.0
      %7232 = vmatmul.mubr.f32.gmra.mrb[0].mxu0 %v6709
      %v7233 = vpop.f32.mrb[0].mxu0
      %v7234 = vadd.f32 0.0, %v7233
      %v7235 = vpop.f32.mrb[0].mxu0
      %v7236 = vadd.f32 0.0, %v7235
      %7237 = vmatprep.mubr.f32.mxu0 0.0
      %7238 = vmatmul.mubr.f32.gmra.mrb[0].mxu0 %v6710
      %v7239 = vpop.f32.mrb[0].mxu0
      %v7240 = vadd.f32 0.0, %v7239
      %v7241 = vpop.f32.mrb[0].mxu0
      %v7242 = vadd.f32 0.0, %v7241
      %7243 = vmatprep.mubr.f32.mxu0 0.0
      %7244 = vmatmul.mubr.f32.gmra.mrb[0].mxu0 %v6711
      %v7245 = vpop.f32.mrb[0].mxu0
      %v7246 = vadd.f32 0.0, %v7245
      %v7247 = vpop.f32.mrb[0].mxu0
      %v7248 = vadd.f32 0.0, %v7247
      %7249 = vmatprep.mubr.f32.mxu0 0.0
      %7250 = vmatmul.mubr.f32.gmra.mrb[0].mxu0 %v6712
      %v7251 = vpop.f32.mrb[0].mxu0
      %v7252 = vadd.f32 0.0, %v7251
      %v7253 = vpop.f32.mrb[0].mxu0
      %v7254 = vadd.f32 0.0, %v7253
      %7255 = vmatprep.mubr.f32.mxu0 0.0
      %7256 = vmatmul.mubr.f32.gmra.mrb[0].mxu0 %v6713
      %v7257 = vpop.f32.mrb[0].mxu0
      %v7258 = vadd.f32 0.0, %v7257
      %v7259 = vpop.f32.mrb[0].mxu0
      %v7260 = vadd.f32 0.0, %v7259
      %7261 = vmatprep.mubr.f32.mxu0 0.0
      %7262 = vmatmul.mubr.f32.gmra.mrb[0].mxu0 %v6714
      %v7263 = vpop.f32.mrb[0].mxu0
      %v7264 = vadd.f32 0.0, %v7263
      %v7265 = vpop.f32.mrb[0].mxu0
      %v7266 = vadd.f32 0.0, %v7265
      %7267 = vmatprep.mubr.f32.mxu0 0.0
      %7268 = vmatmul.mubr.f32.gmra.mrb[0].mxu0 %v6715
      %v7269 = vpop.f32.mrb[0].mxu0
      %v7270 = vadd.f32 0.0, %v7269
      %v7271 = vpop.f32.mrb[0].mxu0
      %v7272 = vadd.f32 0.0, %v7271
      %7273 = vmatprep.mubr.f32.mxu0 0.0
      %7274 = vmatmul.mubr.f32.gmra.mrb[0].mxu0 %v6716
      %v7275 = vpop.f32.mrb[0].mxu0
      %v7276 = vadd.f32 0.0, %v7275
      %v7277 = vpop.f32.mrb[0].mxu0
      %v7278 = vadd.f32 0.0, %v7277
      %7279 = vmatprep.mubr.f32.mxu0 0.0
      %7280 = vmatmul.mubr.f32.gmra.mrb[0].mxu0 %v6717
      %v7281 = vpop.f32.mrb[0].mxu0
      %v7282 = vadd.f32 0.0, %v7281
      %v7283 = vpop.f32.mrb[0].mxu0
      %v7284 = vadd.f32 0.0, %v7283
      %7285 = vmatprep.mubr.f32.mxu0 0.0
      %7286 = vmatmul.mubr.f32.gmra.mrb[0].mxu0 %v6718
      %v7287 = vpop.f32.mrb[0].mxu0
      %v7288 = vadd.f32 0.0, %v7287
      %v7289 = vpop.f32.mrb[0].mxu0
      %v7290 = vadd.f32 0.0, %v7289
      %7291 = vmatprep.mubr.f32.mxu0 0.0
      %7292 = vmatmul.mubr.f32.gmra.mrb[0].mxu0 %v6719
      %v7293 = vpop.f32.mrb[0].mxu0
      %v7294 = vadd.f32 0.0, %v7293
      %v7295 = vpop.f32.mrb[0].mxu0
      %v7296 = vadd.f32 0.0, %v7295
      %7297 = vmatprep.mubr.f32.mxu0 0.0
      %7298 = vmatmul.mubr.f32.gmra.mrb[0].mxu0 %v6720
      %v7299 = vpop.f32.mrb[0].mxu0
      %v7300 = vadd.f32 0.0, %v7299
      %v7301 = vpop.f32.mrb[0].mxu0
      %v7302 = vadd.f32 0.0, %v7301
      %7303 = vmatprep.mubr.f32.mxu0 0.0
      %7304 = vmatmul.mubr.f32.gmra.mrb[0].mxu0 %v6721
      %v7305 = vpop.f32.mrb[0].mxu0
      %v7306 = vadd.f32 0.0, %v7305
      %v7307 = vpop.f32.mrb[0].mxu0
      %v7308 = vadd.f32 0.0, %v7307
      %7309 = vmatprep.mubr.f32.mxu0 0.0
      %7310 = vmatmul.mubr.f32.gmra.mrb[0].mxu0 %v6722
      %v7311 = vpop.f32.mrb[0].mxu0
      %v7312 = vadd.f32 0.0, %v7311
      %v7313 = vpop.f32.mrb[0].mxu0
      %v7314 = vadd.f32 0.0, %v7313
      %7315 = vmatprep.mubr.f32.mxu0 0.0
      %7316 = vmatmul.mubr.f32.gmra.mrb[0].mxu0 %v6723
      %v7317 = vpop.f32.mrb[0].mxu0
      %v7318 = vadd.f32 0.0, %v7317
      %v7319 = vpop.f32.mrb[0].mxu0
      %v7320 = vadd.f32 0.0, %v7319
      %7321 = vmatprep.mubr.f32.mxu0 0.0
      %7322 = vmatmul.mubr.f32.gmra.mrb[0].mxu0 %v6724
      %v7323 = vpop.f32.mrb[0].mxu0
      %v7324 = vadd.f32 0.0, %v7323
      %v7325 = vpop.f32.mrb[0].mxu0
      %v7326 = vadd.f32 0.0, %v7325
      %7327 = vmatprep.mubr.f32.mxu0 0.0
      %7328 = vmatmul.mubr.f32.gmra.mrb[0].mxu0 %v6725
      %v7329 = vpop.f32.mrb[0].mxu0
      %v7330 = vadd.f32 0.0, %v7329
      %v7331 = vpop.f32.mrb[0].mxu0
      %v7332 = vadd.f32 0.0, %v7331
      %7333 = vmatprep.mubr.f32.mxu0 0.0
      %7334 = vmatmul.mubr.f32.gmra.mrb[0].mxu0 %v6726
      %v7335 = vpop.f32.mrb[0].mxu0
      %v7336 = vadd.f32 0.0, %v7335
      %v7337 = vpop.f32.mrb[0].mxu0
      %v7338 = vadd.f32 0.0, %v7337
      %7339 = vmatprep.mubr.f32.mxu0 0.0
      %7340 = vmatmul.mubr.f32.gmra.mrb[0].mxu0 %v6727
      %v7341 = vpop.f32.mrb[0].mxu0
      %v7342 = vadd.f32 0.0, %v7341
      %v7343 = vpop.f32.mrb[0].mxu0
      %v7344 = vadd.f32 0.0, %v7343
      %7345 = vmatprep.mubr.f32.mxu0 0.0
      %7346 = vmatmul.mubr.f32.gmra.mrb[0].mxu0 %v6728
      %v7347 = vpop.f32.mrb[0].mxu0
      %v7348 = vadd.f32 0.0, %v7347
      %v7349 = vpop.f32.mrb[0].mxu0
      %v7350 = vadd.f32 0.0, %v7349
      %7351 = vmatprep.mubr.f32.mxu0 0.0
      %7352 = vmatmul.mubr.f32.gmra.mrb[0].mxu0 %v6729
      %v7353 = vpop.f32.mrb[0].mxu0
      %v7354 = vadd.f32 0.0, %v7353
      %v7355 = vpop.f32.mrb[0].mxu0
      %v7356 = vadd.f32 0.0, %v7355
      %7357 = vmatprep.mubr.f32.mxu0 0.0
      %7358 = vmatmul.mubr.f32.gmra.mrb[0].mxu0 %v6730
      %v7359 = vpop.f32.mrb[0].mxu0
      %v7360 = vadd.f32 0.0, %v7359
      %v7361 = vpop.f32.mrb[0].mxu0
      %v7362 = vadd.f32 0.0, %v7361
      %7363 = vmatprep.mubr.f32.mxu0 0.0
      %7364 = vmatmul.mubr.f32.gmra.mrb[0].mxu0 %v6731
      %v7365 = vpop.f32.mrb[0].mxu0
      %v7366 = vadd.f32 0.0, %v7365
      %v7367 = vpop.f32.mrb[0].mxu0
      %v7368 = vadd.f32 0.0, %v7367
      %7369 = vmatprep.mubr.f32.mxu0 0.0
      %7370 = vmatmul.mubr.f32.gmra.mrb[0].mxu0 %v6732
      %v7371 = vpop.f32.mrb[0].mxu0
      %v7372 = vadd.f32 0.0, %v7371
      %v7373 = vpop.f32.mrb[0].mxu0
      %v7374 = vadd.f32 0.0, %v7373
      %7375 = vmatprep.mubr.f32.mxu0 0.0
      %7376 = vmatmul.mubr.f32.gmra.mrb[0].mxu0 %v6733
      %v7377 = vpop.f32.mrb[0].mxu0
      %v7378 = vadd.f32 0.0, %v7377
      %v7379 = vpop.f32.mrb[0].mxu0
      %v7380 = vadd.f32 0.0, %v7379
      %7381 = vmatprep.mubr.f32.mxu0 0.0
      %7382 = vmatmul.mubr.f32.gmra.mrb[0].mxu0 %v6734
      %v7383 = vpop.f32.mrb[0].mxu0
      %v7384 = vadd.f32 0.0, %v7383
      %v7385 = vpop.f32.mrb[0].mxu0
      %v7386 = vadd.f32 0.0, %v7385
      %7387 = vmatprep.mubr.f32.mxu0 0.0
      %7388 = vmatmul.mubr.f32.gmra.mrb[0].mxu0 %v6735
      %v7389 = vpop.f32.mrb[0].mxu0
      %v7390 = vadd.f32 0.0, %v7389
      %v7391 = vpop.f32.mrb[0].mxu0
      %v7392 = vadd.f32 0.0, %v7391
      %7393 = vmatprep.mubr.f32.mxu0 0.0
      %7394 = vmatmul.mubr.f32.gmra.mrb[0].mxu0 %v6736
      %v7395 = vpop.f32.mrb[0].mxu0
      %v7396 = vadd.f32 0.0, %v7395
      %v7397 = vpop.f32.mrb[0].mxu0
      %v7398 = vadd.f32 0.0, %v7397
      %7399 = vmatprep.mubr.f32.mxu0 0.0
      %7400 = vmatmul.mubr.f32.gmra.mrb[0].mxu0 %v6737
      %v7401 = vpop.f32.mrb[0].mxu0
      %v7402 = vadd.f32 0.0, %v7401
      %v7403 = vpop.f32.mrb[0].mxu0
      %v7404 = vadd.f32 0.0, %v7403
      %7405 = vmatprep.mubr.f32.mxu0 0.0
      %7406 = vmatmul.mubr.f32.gmra.mrb[0].mxu0 %v6738
      %v7407 = vpop.f32.mrb[0].mxu0
      %v7408 = vadd.f32 0.0, %v7407
      %v7409 = vpop.f32.mrb[0].mxu0
      %v7410 = vadd.f32 0.0, %v7409
      %7411 = vmatprep.mubr.f32.mxu0 0.0
      %7412 = vmatmul.mubr.f32.gmra.mrb[0].mxu0 %v6739
      %v7413 = vpop.f32.mrb[0].mxu0
      %v7414 = vadd.f32 0.0, %v7413
      %v7415 = vpop.f32.mrb[0].mxu0
      %v7416 = vadd.f32 0.0, %v7415
      %7417 = vmatprep.mubr.f32.mxu0 0.0
      %7418 = vmatmul.mubr.f32.gmra.mrb[0].mxu0 %v6740
      %v7419 = vpop.f32.mrb[0].mxu0
      %v7420 = vadd.f32 0.0, %v7419
      %v7421 = vpop.f32.mrb[0].mxu0
      %v7422 = vadd.f32 0.0, %v7421
      %7423 = vmatprep.mubr.f32.mxu0 0.0
      %7424 = vmatmul.mubr.f32.gmra.mrb[0].mxu0 %v6741
      %v7425 = vpop.f32.mrb[0].mxu0
      %v7426 = vadd.f32 0.0, %v7425
      %v7427 = vpop.f32.mrb[0].mxu0
      %v7428 = vadd.f32 0.0, %v7427
      %7429 = vmatprep.mubr.f32.mxu0 0.0
      %7430 = vmatmul.mubr.f32.gmra.mrb[0].mxu0 %v6742
      %v7431 = vpop.f32.mrb[0].mxu0
      %v7432 = vadd.f32 0.0, %v7431
      %v7433 = vpop.f32.mrb[0].mxu0
      %v7434 = vadd.f32 0.0, %v7433
      %7435 = vmatprep.mubr.f32.mxu0 0.0
      %7436 = vmatmul.mubr.f32.gmra.mrb[0].mxu0 %v6743
      %v7437 = vpop.f32.mrb[0].mxu0
      %v7438 = vadd.f32 0.0, %v7437
      %v7439 = vpop.f32.mrb[0].mxu0
      %v7440 = vadd.f32 0.0, %v7439
      %7441 = vmatprep.mubr.f32.mxu0 0.0
      %7442 = vmatmul.mubr.f32.gmra.mrb[0].mxu0 %v6744
      %v7443 = vpop.f32.mrb[0].mxu0
      %v7444 = vadd.f32 0.0, %v7443
      %v7445 = vpop.f32.mrb[0].mxu0
      %v7446 = vadd.f32 0.0, %v7445
      %7447 = vmatprep.mubr.f32.mxu0 0.0
      %7448 = vmatmul.mubr.f32.gmra.mrb[0].mxu0 %v6745
      %v7449 = vpop.f32.mrb[0].mxu0
      %v7450 = vadd.f32 0.0, %v7449
      %v7451 = vpop.f32.mrb[0].mxu0
      %v7452 = vadd.f32 0.0, %v7451
      %7453 = vmatprep.mubr.f32.mxu0 0.0
      %7454 = vmatmul.mubr.f32.gmra.mrb[0].mxu0 %v6746
      %v7455 = vpop.f32.mrb[0].mxu0
      %v7456 = vadd.f32 0.0, %v7455
      %v7457 = vpop.f32.mrb[0].mxu0
      %v7458 = vadd.f32 0.0, %v7457
      %7459 = vmatprep.mubr.f32.mxu0 0.0
      %7460 = vmatmul.mubr.f32.gmra.mrb[0].mxu0 %v6747
      %v7461 = vpop.f32.mrb[0].mxu0
      %v7462 = vadd.f32 0.0, %v7461
      %v7463 = vpop.f32.mrb[0].mxu0
      %v7464 = vadd.f32 0.0, %v7463
      %7465 = vmatprep.mubr.f32.mxu0 0.0
      %7466 = vmatmul.mubr.f32.gmra.mrb[0].mxu0 %v6748
      %v7467 = vpop.f32.mrb[0].mxu0
      %v7468 = vadd.f32 0.0, %v7467
      %v7469 = vpop.f32.mrb[0].mxu0
      %v7470 = vadd.f32 0.0, %v7469
      %7471 = vmatprep.mubr.f32.mxu0 0.0
      %7472 = vmatmul.mubr.f32.gmra.mrb[0].mxu0 %v6749
      %v7473 = vpop.f32.mrb[0].mxu0
      %v7474 = vadd.f32 0.0, %v7473
      %v7475 = vpop.f32.mrb[0].mxu0
      %v7476 = vadd.f32 0.0, %v7475
      %7477 = vmatprep.mubr.f32.mxu0 0.0
      %7478 = vmatmul.mubr.f32.gmra.mrb[0].mxu0 %v6750
      %v7479 = vpop.f32.mrb[0].mxu0
      %v7480 = vadd.f32 0.0, %v7479
      %v7481 = vpop.f32.mrb[0].mxu0
      %v7482 = vadd.f32 0.0, %v7481
      %7483 = vmatprep.mubr.f32.mxu0 0.0
      %7484 = vmatmul.mubr.f32.gmra.mrb[0].mxu0 %v6751
      %v7485 = vpop.f32.mrb[0].mxu0
      %v7486 = vadd.f32 0.0, %v7485
      %v7487 = vpop.f32.mrb[0].mxu0
      %v7488 = vadd.f32 0.0, %v7487
      %7489 = vmatprep.mubr.f32.mxu0 0.0
      %7490 = vmatmul.mubr.f32.gmra.mrb[0].mxu0 %v6752
      %v7491 = vpop.f32.mrb[0].mxu0
      %v7492 = vadd.f32 0.0, %v7491
      %v7493 = vpop.f32.mrb[0].mxu0
      %v7494 = vadd.f32 0.0, %v7493
      %7495 = vmatprep.mubr.f32.mxu0 0.0
      %7496 = vmatmul.mubr.f32.gmra.mrb[0].mxu0 %v6753
      %v7497 = vpop.f32.mrb[0].mxu0
      %v7498 = vadd.f32 0.0, %v7497
      %v7499 = vpop.f32.mrb[0].mxu0
      %v7500 = vadd.f32 0.0, %v7499
      %7501 = vmatprep.mubr.f32.mxu0 0.0
      %7502 = vmatmul.mubr.f32.gmra.mrb[0].mxu0 %v6754
      %v7503 = vpop.f32.mrb[0].mxu0
      %v7504 = vadd.f32 0.0, %v7503
      %v7505 = vpop.f32.mrb[0].mxu0
      %v7506 = vadd.f32 0.0, %v7505
      %7507 = vmatprep.mubr.f32.mxu0 0.0
      %7508 = vmatmul.mubr.f32.gmra.mrb[0].mxu0 %v6755
      %v7509 = vpop.f32.mrb[0].mxu0
      %v7510 = vadd.f32 0.0, %v7509
      %v7511 = vpop.f32.mrb[0].mxu0
      %v7512 = vadd.f32 0.0, %v7511
      %7513 = vmatprep.mubr.f32.mxu0 0.0
      %7514 = vmatmul.mubr.f32.gmra.mrb[0].mxu0 %v6756
      %v7515 = vpop.f32.mrb[0].mxu0
      %v7516 = vadd.f32 0.0, %v7515
      %v7517 = vpop.f32.mrb[0].mxu0
      %v7518 = vadd.f32 0.0, %v7517
      %7519 = vmatprep.mubr.f32.mxu0 0.0
      %7520 = vmatmul.mubr.f32.gmra.mrb[0].mxu0 %v6757
      %v7521 = vpop.f32.mrb[0].mxu0
      %v7522 = vadd.f32 0.0, %v7521
      %v7523 = vpop.f32.mrb[0].mxu0
      %v7524 = vadd.f32 0.0, %v7523
      %7525 = vmatprep.mubr.f32.mxu0 0.0
      %7526 = vmatmul.mubr.f32.gmra.mrb[0].mxu0 %v6758
      %v7527 = vpop.f32.mrb[0].mxu0
      %v7528 = vadd.f32 0.0, %v7527
      %v7529 = vpop.f32.mrb[0].mxu0
      %v7530 = vadd.f32 0.0, %v7529
      %7531 = vmatprep.mubr.f32.mxu0 0.0
      %7532 = vmatmul.mubr.f32.gmra.mrb[0].mxu0 %v6759
      %v7533 = vpop.f32.mrb[0].mxu0
      %v7534 = vadd.f32 0.0, %v7533
      %v7535 = vpop.f32.mrb[0].mxu0
      %v7536 = vadd.f32 0.0, %v7535
      %7537 = vmatprep.mubr.f32.mxu0 0.0
      %7538 = vmatmul.mubr.f32.gmra.mrb[0].mxu0 %v6760
      %v7539 = vpop.f32.mrb[0].mxu0
      %v7540 = vadd.f32 0.0, %v7539
      %v7541 = vpop.f32.mrb[0].mxu0
      %v7542 = vadd.f32 0.0, %v7541
      %7543 = vmatprep.mubr.f32.mxu0 0.0
      %7544 = vmatmul.mubr.f32.gmra.mrb[0].mxu0 %v6761
      %v7545 = vpop.f32.mrb[0].mxu0
      %v7546 = vadd.f32 0.0, %v7545
      %v7547 = vpop.f32.mrb[0].mxu0
      %v7548 = vadd.f32 0.0, %v7547
      %7549 = vmatprep.mubr.f32.mxu0 0.0
      %7550 = vmatmul.mubr.f32.gmra.mrb[0].mxu0 %v6762
      %v7551 = vpop.f32.mrb[0].mxu0
      %v7552 = vadd.f32 0.0, %v7551
      %v7553 = vpop.f32.mrb[0].mxu0
      %v7554 = vadd.f32 0.0, %v7553
      %7555 = vmatprep.mubr.f32.mxu0 0.0
      %7556 = vmatmul.mubr.f32.gmra.mrb[0].mxu0 %v6763
      %v7557 = vpop.f32.mrb[0].mxu0
      %v7558 = vadd.f32 0.0, %v7557
      %v7559 = vpop.f32.mrb[0].mxu0
      %v7560 = vadd.f32 0.0, %v7559
      %7561 = vmatprep.mubr.f32.mxu0 0.0
      %7562 = vmatmul.mubr.f32.gmra.mrb[0].mxu0 %v6764
      %v7563 = vpop.f32.mrb[0].mxu0
      %v7564 = vadd.f32 0.0, %v7563
      %v7565 = vpop.f32.mrb[0].mxu0
      %v7566 = vadd.f32 0.0, %v7565
      %7567 = vmatprep.mubr.f32.mxu0 0.0
      %7568 = vmatmul.mubr.f32.gmra.mrb[0].mxu0 %v6765
      %v7569 = vpop.f32.mrb[0].mxu0
      %v7570 = vadd.f32 0.0, %v7569
      %v7571 = vpop.f32.mrb[0].mxu0
      %v7572 = vadd.f32 0.0, %v7571
      %7573 = vmatprep.mubr.f32.mxu0 0.0
      %7574 = vmatmul.mubr.f32.gmra.mrb[0].mxu0 %v6766
      %v7575 = vpop.f32.mrb[0].mxu0
      %v7576 = vadd.f32 0.0, %v7575
      %v7577 = vpop.f32.mrb[0].mxu0
      %v7578 = vadd.f32 0.0, %v7577
      %7579 = vmatprep.mubr.f32.mxu0 0.0
      %7580 = vmatmul.mubr.f32.gmra.mrb[0].mxu0 %v6767
      %v7581 = vpop.f32.mrb[0].mxu0
      %v7582 = vadd.f32 0.0, %v7581
      %v7583 = vpop.f32.mrb[0].mxu0
      %v7584 = vadd.f32 0.0, %v7583
      %7585 = vmatprep.mubr.f32.mxu0 0.0
      %7586 = vmatmul.mubr.f32.gmra.mrb[0].mxu0 %v6768
      %v7587 = vpop.f32.mrb[0].mxu0
      %v7588 = vadd.f32 0.0, %v7587
      %v7589 = vpop.f32.mrb[0].mxu0
      %v7590 = vadd.f32 0.0, %v7589
      %7591 = vmatprep.mubr.f32.mxu0 0.0
      %7592 = vmatmul.mubr.f32.gmra.mrb[0].mxu0 %v6769
      %v7593 = vpop.f32.mrb[0].mxu0
      %v7594 = vadd.f32 0.0, %v7593
      %v7595 = vpop.f32.mrb[0].mxu0
      %v7596 = vadd.f32 0.0, %v7595
      %7597 = vmatprep.mubr.f32.mxu0 0.0
      %7598 = vmatmul.mubr.f32.gmra.mrb[0].mxu0 %v6770
      %v7599 = vpop.f32.mrb[0].mxu0
      %v7600 = vadd.f32 0.0, %v7599
      %v7601 = vpop.f32.mrb[0].mxu0
      %v7602 = vadd.f32 0.0, %v7601
      %7603 = vdwg.mxu0
      %v7604 = vmul.f32 %v6838, %v5139
      %v7605 = vmul.f32 %v6840, %v5140
      %v7606 = vmul.f32 %v6844, %v5141
      %v7607 = vmul.f32 %v6846, %v5142
      %v7608 = vmul.f32 %v6850, %v5143
      %v7609 = vmul.f32 %v6852, %v5144
      %v7610 = vmul.f32 %v6856, %v5145
      %v7611 = vmul.f32 %v6858, %v5146
      %v7612 = vmul.f32 %v6862, %v5147
      %v7613 = vmul.f32 %v6864, %v5148
      %v7614 = vmul.f32 %v6868, %v5149
      %v7615 = vmul.f32 %v6870, %v5150
      %v7616 = vmul.f32 %v6874, %v5151
      %v7617 = vmul.f32 %v6876, %v5152
      %v7618 = vmul.f32 %v6880, %v5153
      %v7619 = vmul.f32 %v6882, %v5154
      %v7620 = vmul.f32 %v6886, %v5155
      %v7621 = vmul.f32 %v6888, %v5156
      %v7622 = vmul.f32 %v6892, %v5157
      %v7623 = vmul.f32 %v6894, %v5158
      %v7624 = vmul.f32 %v6898, %v5159
      %v7625 = vmul.f32 %v6900, %v5160
      %v7626 = vmul.f32 %v6904, %v5161
      %v7627 = vmul.f32 %v6906, %v5162
      %v7628 = vmul.f32 %v6910, %v5163
      %v7629 = vmul.f32 %v6912, %v5164
      %v7630 = vmul.f32 %v6916, %v5165
      %v7631 = vmul.f32 %v6918, %v5166
      %v7632 = vmul.f32 %v6922, %v5167
      %v7633 = vmul.f32 %v6924, %v5168
      %v7634 = vmul.f32 %v6928, %v5169
      %v7635 = vmul.f32 %v6930, %v5170
      %v7636 = vmul.f32 %v6934, %v5171
      %v7637 = vmul.f32 %v6936, %v5172
      %v7638 = vmul.f32 %v6940, %v5173
      %v7639 = vmul.f32 %v6942, %v5174
      %v7640 = vmul.f32 %v6946, %v5175
      %v7641 = vmul.f32 %v6948, %v5176
      %v7642 = vmul.f32 %v6952, %v5177
      %v7643 = vmul.f32 %v6954, %v5178
      %v7644 = vmul.f32 %v6958, %v5179
      %v7645 = vmul.f32 %v6960, %v5180
      %v7646 = vmul.f32 %v6964, %v5181
      %v7647 = vmul.f32 %v6966, %v5182
      %v7648 = vmul.f32 %v6970, %v5183
      %v7649 = vmul.f32 %v6972, %v5184
      %v7650 = vmul.f32 %v6976, %v5185
      %v7651 = vmul.f32 %v6978, %v5186
      %v7652 = vmul.f32 %v6982, %v5187
      %v7653 = vmul.f32 %v6984, %v5188
      %v7654 = vmul.f32 %v6988, %v5189
      %v7655 = vmul.f32 %v6990, %v5190
      %v7656 = vmul.f32 %v6994, %v5191
      %v7657 = vmul.f32 %v6996, %v5192
      %v7658 = vmul.f32 %v7000, %v5193
      %v7659 = vmul.f32 %v7002, %v5194
      %v7660 = vmul.f32 %v7006, %v5195
      %v7661 = vmul.f32 %v7008, %v5196
      %v7662 = vmul.f32 %v7012, %v5197
      %v7663 = vmul.f32 %v7014, %v5198
      %v7664 = vmul.f32 %v7018, %v5199
      %v7665 = vmul.f32 %v7020, %v5200
      %v7666 = vmul.f32 %v7024, %v5201
      %v7667 = vmul.f32 %v7026, %v5202
      %v7668 = vmul.f32 %v7030, %v5203
      %v7669 = vmul.f32 %v7032, %v5204
      %v7670 = vmul.f32 %v7036, %v5205
      %v7671 = vmul.f32 %v7038, %v5206
      %v7672 = vmul.f32 %v7042, %v5207
      %v7673 = vmul.f32 %v7044, %v5208
      %v7674 = vmul.f32 %v7048, %v5209
      %v7675 = vmul.f32 %v7050, %v5210
      %v7676 = vmul.f32 %v7054, %v5211
      %v7677 = vmul.f32 %v7056, %v5212
      %v7678 = vmul.f32 %v7060, %v5213
      %v7679 = vmul.f32 %v7062, %v5214
      %v7680 = vmul.f32 %v7066, %v5215
      %v7681 = vmul.f32 %v7068, %v5216
      %v7682 = vmul.f32 %v7072, %v5217
      %v7683 = vmul.f32 %v7074, %v5218
      %v7684 = vmul.f32 %v7078, %v5219
      %v7685 = vmul.f32 %v7080, %v5220
      %v7686 = vmul.f32 %v7084, %v5221
      %v7687 = vmul.f32 %v7086, %v5222
      %v7688 = vmul.f32 %v7090, %v5223
      %v7689 = vmul.f32 %v7092, %v5224
      %v7690 = vmul.f32 %v7096, %v5225
      %v7691 = vmul.f32 %v7098, %v5226
      %v7692 = vmul.f32 %v7102, %v5227
      %v7693 = vmul.f32 %v7104, %v5228
      %v7694 = vmul.f32 %v7108, %v5229
      %v7695 = vmul.f32 %v7110, %v5230
      %v7696 = vmul.f32 %v7114, %v5231
      %v7697 = vmul.f32 %v7116, %v5232
      %v7698 = vmul.f32 %v7120, %v5233
      %v7699 = vmul.f32 %v7122, %v5234
      %v7700 = vmul.f32 %v7126, %v5235
      %v7701 = vmul.f32 %v7128, %v5236
      %v7702 = vmul.f32 %v7132, %v5237
      %v7703 = vmul.f32 %v7134, %v5238
      %v7704 = vmul.f32 %v7138, %v5239
      %v7705 = vmul.f32 %v7140, %v5240
      %v7706 = vmul.f32 %v7144, %v5241
      %v7707 = vmul.f32 %v7146, %v5242
      %v7708 = vmul.f32 %v7150, %v5243
      %v7709 = vmul.f32 %v7152, %v5244
      %v7710 = vmul.f32 %v7156, %v5245
      %v7711 = vmul.f32 %v7158, %v5246
      %v7712 = vmul.f32 %v7162, %v5247
      %v7713 = vmul.f32 %v7164, %v5248
      %v7714 = vmul.f32 %v7168, %v5249
      %v7715 = vmul.f32 %v7170, %v5250
      %v7716 = vmul.f32 %v7174, %v5251
      %v7717 = vmul.f32 %v7176, %v5252
      %v7718 = vmul.f32 %v7180, %v5253
      %v7719 = vmul.f32 %v7182, %v5254
      %v7720 = vmul.f32 %v7186, %v5255
      %v7721 = vmul.f32 %v7188, %v5256
      %v7722 = vmul.f32 %v7192, %v5257
      %v7723 = vmul.f32 %v7194, %v5258
      %v7724 = vmul.f32 %v7198, %v5259
      %v7725 = vmul.f32 %v7200, %v5260
      %v7726 = vmul.f32 %v7204, %v5261
      %v7727 = vmul.f32 %v7206, %v5262
      %v7728 = vmul.f32 %v7210, %v5263
      %v7729 = vmul.f32 %v7212, %v5264
      %v7730 = vmul.f32 %v7216, %v5265
      %v7731 = vmul.f32 %v7218, %v5266
      %v7732 = vmul.f32 %v7222, %v5267
      %v7733 = vmul.f32 %v7224, %v5268
      %v7734 = vmul.f32 %v7228, %v5269
      %v7735 = vmul.f32 %v7230, %v5270
      %v7736 = vmul.f32 %v7234, %v5271
      %v7737 = vmul.f32 %v7236, %v5272
      %v7738 = vmul.f32 %v7240, %v5273
      %v7739 = vmul.f32 %v7242, %v5274
      %v7740 = vmul.f32 %v7246, %v5275
      %v7741 = vmul.f32 %v7248, %v5276
      %v7742 = vmul.f32 %v7252, %v5277
      %v7743 = vmul.f32 %v7254, %v5278
      %v7744 = vmul.f32 %v7258, %v5279
      %v7745 = vmul.f32 %v7260, %v5280
      %v7746 = vmul.f32 %v7264, %v5281
      %v7747 = vmul.f32 %v7266, %v5282
      %v7748 = vmul.f32 %v7270, %v5283
      %v7749 = vmul.f32 %v7272, %v5284
      %v7750 = vmul.f32 %v7276, %v5285
      %v7751 = vmul.f32 %v7278, %v5286
      %v7752 = vmul.f32 %v7282, %v5287
      %v7753 = vmul.f32 %v7284, %v5288
      %v7754 = vmul.f32 %v7288, %v5289
      %v7755 = vmul.f32 %v7290, %v5290
      %v7756 = vmul.f32 %v7294, %v5291
      %v7757 = vmul.f32 %v7296, %v5292
      %v7758 = vmul.f32 %v7300, %v5293
      %v7759 = vmul.f32 %v7302, %v5294
      %v7760 = vmul.f32 %v7306, %v5295
      %v7761 = vmul.f32 %v7308, %v5296
      %v7762 = vmul.f32 %v7312, %v5297
      %v7763 = vmul.f32 %v7314, %v5298
      %v7764 = vmul.f32 %v7318, %v5299
      %v7765 = vmul.f32 %v7320, %v5300
      %v7766 = vmul.f32 %v7324, %v5301
      %v7767 = vmul.f32 %v7326, %v5302
      %v7768 = vmul.f32 %v7330, %v5303
      %v7769 = vmul.f32 %v7332, %v5304
      %v7770 = vmul.f32 %v7336, %v5305
      %v7771 = vmul.f32 %v7338, %v5306
      %v7772 = vmul.f32 %v7342, %v5307
      %v7773 = vmul.f32 %v7344, %v5308
      %v7774 = vmul.f32 %v7348, %v5309
      %v7775 = vmul.f32 %v7350, %v5310
      %v7776 = vmul.f32 %v7354, %v5311
      %v7777 = vmul.f32 %v7356, %v5312
      %v7778 = vmul.f32 %v7360, %v5313
      %v7779 = vmul.f32 %v7362, %v5314
      %v7780 = vmul.f32 %v7366, %v5315
      %v7781 = vmul.f32 %v7368, %v5316
      %v7782 = vmul.f32 %v7372, %v5317
      %v7783 = vmul.f32 %v7374, %v5318
      %v7784 = vmul.f32 %v7378, %v5319
      %v7785 = vmul.f32 %v7380, %v5320
      %v7786 = vmul.f32 %v7384, %v5321
      %v7787 = vmul.f32 %v7386, %v5322
      %v7788 = vmul.f32 %v7390, %v5323
      %v7789 = vmul.f32 %v7392, %v5324
      %v7790 = vmul.f32 %v7396, %v5325
      %v7791 = vmul.f32 %v7398, %v5326
      %v7792 = vmul.f32 %v7402, %v5327
      %v7793 = vmul.f32 %v7404, %v5328
      %v7794 = vmul.f32 %v7408, %v5329
      %v7795 = vmul.f32 %v7410, %v5330
      %v7796 = vmul.f32 %v7414, %v5331
      %v7797 = vmul.f32 %v7416, %v5332
      %v7798 = vmul.f32 %v7420, %v5333
      %v7799 = vmul.f32 %v7422, %v5334
      %v7800 = vmul.f32 %v7426, %v5335
      %v7801 = vmul.f32 %v7428, %v5336
      %v7802 = vmul.f32 %v7432, %v5337
      %v7803 = vmul.f32 %v7434, %v5338
      %v7804 = vmul.f32 %v7438, %v5339
      %v7805 = vmul.f32 %v7440, %v5340
      %v7806 = vmul.f32 %v7444, %v5341
      %v7807 = vmul.f32 %v7446, %v5342
      %v7808 = vmul.f32 %v7450, %v5343
      %v7809 = vmul.f32 %v7452, %v5344
      %v7810 = vmul.f32 %v7456, %v5345
      %v7811 = vmul.f32 %v7458, %v5346
      %v7812 = vmul.f32 %v7462, %v5347
      %v7813 = vmul.f32 %v7464, %v5348
      %v7814 = vmul.f32 %v7468, %v5349
      %v7815 = vmul.f32 %v7470, %v5350
      %v7816 = vmul.f32 %v7474, %v5351
      %v7817 = vmul.f32 %v7476, %v5352
      %v7818 = vmul.f32 %v7480, %v5353
      %v7819 = vmul.f32 %v7482, %v5354
      %v7820 = vmul.f32 %v7486, %v5355
      %v7821 = vmul.f32 %v7488, %v5356
      %v7822 = vmul.f32 %v7492, %v5357
      %v7823 = vmul.f32 %v7494, %v5358
      %v7824 = vmul.f32 %v7498, %v5359
      %v7825 = vmul.f32 %v7500, %v5360
      %v7826 = vmul.f32 %v7504, %v5361
      %v7827 = vmul.f32 %v7506, %v5362
      %v7828 = vmul.f32 %v7510, %v5363
      %v7829 = vmul.f32 %v7512, %v5364
      %v7830 = vmul.f32 %v7516, %v5365
      %v7831 = vmul.f32 %v7518, %v5366
      %v7832 = vmul.f32 %v7522, %v5367
      %v7833 = vmul.f32 %v7524, %v5368
      %v7834 = vmul.f32 %v7528, %v5369
      %v7835 = vmul.f32 %v7530, %v5370
      %v7836 = vmul.f32 %v7534, %v5371
      %v7837 = vmul.f32 %v7536, %v5372
      %v7838 = vmul.f32 %v7540, %v5373
      %v7839 = vmul.f32 %v7542, %v5374
      %v7840 = vmul.f32 %v7546, %v5375
      %v7841 = vmul.f32 %v7548, %v5376
      %v7842 = vmul.f32 %v7552, %v5377
      %v7843 = vmul.f32 %v7554, %v5378
      %v7844 = vmul.f32 %v7558, %v5379
      %v7845 = vmul.f32 %v7560, %v5380
      %v7846 = vmul.f32 %v7564, %v5381
      %v7847 = vmul.f32 %v7566, %v5382
      %v7848 = vmul.f32 %v7570, %v5383
      %v7849 = vmul.f32 %v7572, %v5384
      %v7850 = vmul.f32 %v7576, %v5385
      %v7851 = vmul.f32 %v7578, %v5386
      %v7852 = vmul.f32 %v7582, %v5387
      %v7853 = vmul.f32 %v7584, %v5388
      %v7854 = vmul.f32 %v7588, %v5389
      %v7855 = vmul.f32 %v7590, %v5390
      %v7856 = vmul.f32 %v7594, %v5391
      %v7857 = vmul.f32 %v7596, %v5392
      %v7858 = vmul.f32 %v7600, %v5393
      %v7859 = vmul.f32 %v7602, %v5394
      %v7860 = vadd.f32 %v7604, %v7636
      %v7861 = vadd.f32 %v7860, %v7668
      %v7862 = vadd.f32 %v7861, %v7700
      %v7863 = vadd.f32 %v7862, %v7732
      %v7864 = vadd.f32 %v7863, %v7764
      %v7865 = vadd.f32 %v7864, %v7796
      %v7866 = vadd.f32 %v7865, %v7828
      %v7867 = vadd.f32 %v7605, %v7637
      %v7868 = vadd.f32 %v7867, %v7669
      %v7869 = vadd.f32 %v7868, %v7701
      %v7870 = vadd.f32 %v7869, %v7733
      %v7871 = vadd.f32 %v7870, %v7765
      %v7872 = vadd.f32 %v7871, %v7797
      %v7873 = vadd.f32 %v7872, %v7829
      %v7874 = vadd.f32 %v7606, %v7638
      %v7875 = vadd.f32 %v7874, %v7670
      %v7876 = vadd.f32 %v7875, %v7702
      %v7877 = vadd.f32 %v7876, %v7734
      %v7878 = vadd.f32 %v7877, %v7766
      %v7879 = vadd.f32 %v7878, %v7798
      %v7880 = vadd.f32 %v7879, %v7830
      %v7881 = vadd.f32 %v7607, %v7639
      %v7882 = vadd.f32 %v7881, %v7671
      %v7883 = vadd.f32 %v7882, %v7703
      %v7884 = vadd.f32 %v7883, %v7735
      %v7885 = vadd.f32 %v7884, %v7767
      %v7886 = vadd.f32 %v7885, %v7799
      %v7887 = vadd.f32 %v7886, %v7831
      %v7888 = vadd.f32 %v7608, %v7640
      %v7889 = vadd.f32 %v7888, %v7672
      %v7890 = vadd.f32 %v7889, %v7704
      %v7891 = vadd.f32 %v7890, %v7736
      %v7892 = vadd.f32 %v7891, %v7768
      %v7893 = vadd.f32 %v7892, %v7800
      %v7894 = vadd.f32 %v7893, %v7832
      %v7895 = vadd.f32 %v7609, %v7641
      %v7896 = vadd.f32 %v7895, %v7673
      %v7897 = vadd.f32 %v7896, %v7705
      %v7898 = vadd.f32 %v7897, %v7737
      %v7899 = vadd.f32 %v7898, %v7769
      %v7900 = vadd.f32 %v7899, %v7801
      %v7901 = vadd.f32 %v7900, %v7833
      %v7902 = vadd.f32 %v7610, %v7642
      %v7903 = vadd.f32 %v7902, %v7674
      %v7904 = vadd.f32 %v7903, %v7706
      %v7905 = vadd.f32 %v7904, %v7738
      %v7906 = vadd.f32 %v7905, %v7770
      %v7907 = vadd.f32 %v7906, %v7802
      %v7908 = vadd.f32 %v7907, %v7834
      %v7909 = vadd.f32 %v7611, %v7643
      %v7910 = vadd.f32 %v7909, %v7675
      %v7911 = vadd.f32 %v7910, %v7707
      %v7912 = vadd.f32 %v7911, %v7739
      %v7913 = vadd.f32 %v7912, %v7771
      %v7914 = vadd.f32 %v7913, %v7803
      %v7915 = vadd.f32 %v7914, %v7835
      %v7916 = vadd.f32 %v7612, %v7644
      %v7917 = vadd.f32 %v7916, %v7676
      %v7918 = vadd.f32 %v7917, %v7708
      %v7919 = vadd.f32 %v7918, %v7740
      %v7920 = vadd.f32 %v7919, %v7772
      %v7921 = vadd.f32 %v7920, %v7804
      %v7922 = vadd.f32 %v7921, %v7836
      %v7923 = vadd.f32 %v7613, %v7645
      %v7924 = vadd.f32 %v7923, %v7677
      %v7925 = vadd.f32 %v7924, %v7709
      %v7926 = vadd.f32 %v7925, %v7741
      %v7927 = vadd.f32 %v7926, %v7773
      %v7928 = vadd.f32 %v7927, %v7805
      %v7929 = vadd.f32 %v7928, %v7837
      %v7930 = vadd.f32 %v7614, %v7646
      %v7931 = vadd.f32 %v7930, %v7678
      %v7932 = vadd.f32 %v7931, %v7710
      %v7933 = vadd.f32 %v7932, %v7742
      %v7934 = vadd.f32 %v7933, %v7774
      %v7935 = vadd.f32 %v7934, %v7806
      %v7936 = vadd.f32 %v7935, %v7838
      %v7937 = vadd.f32 %v7615, %v7647
      %v7938 = vadd.f32 %v7937, %v7679
      %v7939 = vadd.f32 %v7938, %v7711
      %v7940 = vadd.f32 %v7939, %v7743
      %v7941 = vadd.f32 %v7940, %v7775
      %v7942 = vadd.f32 %v7941, %v7807
      %v7943 = vadd.f32 %v7942, %v7839
      %v7944 = vadd.f32 %v7616, %v7648
      %v7945 = vadd.f32 %v7944, %v7680
      %v7946 = vadd.f32 %v7945, %v7712
      %v7947 = vadd.f32 %v7946, %v7744
      %v7948 = vadd.f32 %v7947, %v7776
      %v7949 = vadd.f32 %v7948, %v7808
      %v7950 = vadd.f32 %v7949, %v7840
      %v7951 = vadd.f32 %v7617, %v7649
      %v7952 = vadd.f32 %v7951, %v7681
      %v7953 = vadd.f32 %v7952, %v7713
      %v7954 = vadd.f32 %v7953, %v7745
      %v7955 = vadd.f32 %v7954, %v7777
      %v7956 = vadd.f32 %v7955, %v7809
      %v7957 = vadd.f32 %v7956, %v7841
      %v7958 = vadd.f32 %v7618, %v7650
      %v7959 = vadd.f32 %v7958, %v7682
      %v7960 = vadd.f32 %v7959, %v7714
      %v7961 = vadd.f32 %v7960, %v7746
      %v7962 = vadd.f32 %v7961, %v7778
      %v7963 = vadd.f32 %v7962, %v7810
      %v7964 = vadd.f32 %v7963, %v7842
      %v7965 = vadd.f32 %v7619, %v7651
      %v7966 = vadd.f32 %v7965, %v7683
      %v7967 = vadd.f32 %v7966, %v7715
      %v7968 = vadd.f32 %v7967, %v7747
      %v7969 = vadd.f32 %v7968, %v7779
      %v7970 = vadd.f32 %v7969, %v7811
      %v7971 = vadd.f32 %v7970, %v7843
      %v7972 = vadd.f32 %v7620, %v7652
      %v7973 = vadd.f32 %v7972, %v7684
      %v7974 = vadd.f32 %v7973, %v7716
      %v7975 = vadd.f32 %v7974, %v7748
      %v7976 = vadd.f32 %v7975, %v7780
      %v7977 = vadd.f32 %v7976, %v7812
      %v7978 = vadd.f32 %v7977, %v7844
      %v7979 = vadd.f32 %v7621, %v7653
      %v7980 = vadd.f32 %v7979, %v7685
      %v7981 = vadd.f32 %v7980, %v7717
      %v7982 = vadd.f32 %v7981, %v7749
      %v7983 = vadd.f32 %v7982, %v7781
      %v7984 = vadd.f32 %v7983, %v7813
      %v7985 = vadd.f32 %v7984, %v7845
      %v7986 = vadd.f32 %v7622, %v7654
      %v7987 = vadd.f32 %v7986, %v7686
      %v7988 = vadd.f32 %v7987, %v7718
      %v7989 = vadd.f32 %v7988, %v7750
      %v7990 = vadd.f32 %v7989, %v7782
      %v7991 = vadd.f32 %v7990, %v7814
      %v7992 = vadd.f32 %v7991, %v7846
      %v7993 = vadd.f32 %v7623, %v7655
      %v7994 = vadd.f32 %v7993, %v7687
      %v7995 = vadd.f32 %v7994, %v7719
      %v7996 = vadd.f32 %v7995, %v7751
      %v7997 = vadd.f32 %v7996, %v7783
      %v7998 = vadd.f32 %v7997, %v7815
      %v7999 = vadd.f32 %v7998, %v7847
      %v8000 = vadd.f32 %v7624, %v7656
      %v8001 = vadd.f32 %v8000, %v7688
      %v8002 = vadd.f32 %v8001, %v7720
      %v8003 = vadd.f32 %v8002, %v7752
      %v8004 = vadd.f32 %v8003, %v7784
      %v8005 = vadd.f32 %v8004, %v7816
      %v8006 = vadd.f32 %v8005, %v7848
      %v8007 = vadd.f32 %v7625, %v7657
      %v8008 = vadd.f32 %v8007, %v7689
      %v8009 = vadd.f32 %v8008, %v7721
      %v8010 = vadd.f32 %v8009, %v7753
      %v8011 = vadd.f32 %v8010, %v7785
      %v8012 = vadd.f32 %v8011, %v7817
      %v8013 = vadd.f32 %v8012, %v7849
      %v8014 = vadd.f32 %v7626, %v7658
      %v8015 = vadd.f32 %v8014, %v7690
      %v8016 = vadd.f32 %v8015, %v7722
      %v8017 = vadd.f32 %v8016, %v7754
      %v8018 = vadd.f32 %v8017, %v7786
      %v8019 = vadd.f32 %v8018, %v7818
      %v8020 = vadd.f32 %v8019, %v7850
      %v8021 = vadd.f32 %v7627, %v7659
      %v8022 = vadd.f32 %v8021, %v7691
      %v8023 = vadd.f32 %v8022, %v7723
      %v8024 = vadd.f32 %v8023, %v7755
      %v8025 = vadd.f32 %v8024, %v7787
      %v8026 = vadd.f32 %v8025, %v7819
      %v8027 = vadd.f32 %v8026, %v7851
      %v8028 = vadd.f32 %v7628, %v7660
      %v8029 = vadd.f32 %v8028, %v7692
      %v8030 = vadd.f32 %v8029, %v7724
      %v8031 = vadd.f32 %v8030, %v7756
      %v8032 = vadd.f32 %v8031, %v7788
      %v8033 = vadd.f32 %v8032, %v7820
      %v8034 = vadd.f32 %v8033, %v7852
      %v8035 = vadd.f32 %v7629, %v7661
      %v8036 = vadd.f32 %v8035, %v7693
      %v8037 = vadd.f32 %v8036, %v7725
      %v8038 = vadd.f32 %v8037, %v7757
      %v8039 = vadd.f32 %v8038, %v7789
      %v8040 = vadd.f32 %v8039, %v7821
      %v8041 = vadd.f32 %v8040, %v7853
      %v8042 = vadd.f32 %v7630, %v7662
      %v8043 = vadd.f32 %v8042, %v7694
      %v8044 = vadd.f32 %v8043, %v7726
      %v8045 = vadd.f32 %v8044, %v7758
      %v8046 = vadd.f32 %v8045, %v7790
      %v8047 = vadd.f32 %v8046, %v7822
      %v8048 = vadd.f32 %v8047, %v7854
      %v8049 = vadd.f32 %v7631, %v7663
      %v8050 = vadd.f32 %v8049, %v7695
      %v8051 = vadd.f32 %v8050, %v7727
      %v8052 = vadd.f32 %v8051, %v7759
      %v8053 = vadd.f32 %v8052, %v7791
      %v8054 = vadd.f32 %v8053, %v7823
      %v8055 = vadd.f32 %v8054, %v7855
      %v8056 = vadd.f32 %v7632, %v7664
      %v8057 = vadd.f32 %v8056, %v7696
      %v8058 = vadd.f32 %v8057, %v7728
      %v8059 = vadd.f32 %v8058, %v7760
      %v8060 = vadd.f32 %v8059, %v7792
      %v8061 = vadd.f32 %v8060, %v7824
      %v8062 = vadd.f32 %v8061, %v7856
      %v8063 = vadd.f32 %v7633, %v7665
      %v8064 = vadd.f32 %v8063, %v7697
      %v8065 = vadd.f32 %v8064, %v7729
      %v8066 = vadd.f32 %v8065, %v7761
      %v8067 = vadd.f32 %v8066, %v7793
      %v8068 = vadd.f32 %v8067, %v7825
      %v8069 = vadd.f32 %v8068, %v7857
      %v8070 = vadd.f32 %v7634, %v7666
      %v8071 = vadd.f32 %v8070, %v7698
      %v8072 = vadd.f32 %v8071, %v7730
      %v8073 = vadd.f32 %v8072, %v7762
      %v8074 = vadd.f32 %v8073, %v7794
      %v8075 = vadd.f32 %v8074, %v7826
      %v8076 = vadd.f32 %v8075, %v7858
      %v8077 = vadd.f32 %v7635, %v7667
      %v8078 = vadd.f32 %v8077, %v7699
      %v8079 = vadd.f32 %v8078, %v7731
      %v8080 = vadd.f32 %v8079, %v7763
      %v8081 = vadd.f32 %v8080, %v7795
      %v8082 = vadd.f32 %v8081, %v7827
      %v8083 = vadd.f32 %v8082, %v7859
      %v8084 = vld [vmem:[%s13] sm:$0xf]
      %v8085 = vld [vmem:[%s13 + $0x4] sm:$0xf]
      %v8086 = vld [vmem:[%s13 + $0x8] sm:$0xf]
      %v8087 = vld [vmem:[%s13 + $0xc] sm:$0xf]
      %v8088 = vpack.c.bf16 %v7880, %v7866
      %v8089 = vpack.c.bf16 %v7887, %v7873
      %v8090 = vpack.c.bf16 %v7908, %v7894
      %v8091 = vpack.c.bf16 %v7915, %v7901
      %v8092 = vpack.c.bf16 %v7936, %v7922
      %v8093 = vpack.c.bf16 %v7943, %v7929
      %v8094 = vpack.c.bf16 %v7964, %v7950
      %v8095 = vpack.c.bf16 %v7971, %v7957
      %v8096 = vpack.c.bf16 %v7992, %v7978
      %v8097 = vpack.c.bf16 %v7999, %v7985
      %v8098 = vpack.c.bf16 %v8020, %v8006
      %v8099 = vpack.c.bf16 %v8027, %v8013
      %v8100 = vpack.c.bf16 %v8048, %v8034
      %v8101 = vpack.c.bf16 %v8055, %v8041
      %v8102 = vpack.c.bf16 %v8076, %v8062
      %v8103 = vpack.c.bf16 %v8083, %v8069
      %v8104 = vld [vmem:[%s14] sm:$0xff]
      %v8105 = vld [vmem:[%s14 + $0x8] sm:$0xff]
      %v8106 = vld [vmem:[%s14 + $0x10] sm:$0xff]
      %v8107 = vld [vmem:[%s14 + $0x18] sm:$0xff]
      %8109 = vset.pattern.permute.xlu0 0
      %8110 = vperm.xlu0 %8109, %v8104
      %v8111 = vpop.permute.xlu0 %8110
      %8114 = vset.pattern.permute.xlu0 0
      %8115 = vperm.xlu0 %8114, %v8105
      %v8116 = vpop.permute.xlu0 %8115
      %8119 = vset.pattern.permute.xlu0 0
      %8120 = vperm.xlu0 %8119, %v8106
      %v8121 = vpop.permute.xlu0 %8120
      %8124 = vset.pattern.permute.xlu0 0
      %8125 = vperm.xlu0 %8124, %v8107
      %v8126 = vpop.permute.xlu0 %8125
      %v8132 = vunpack.c.l.b16 %v8084
      %v8133 = vunpack.c.l.b16 %v8085
      %v8134 = vunpack.c.l.b16 %v8086
      %v8135 = vunpack.c.l.b16 %v8087
      %v8136 = vpack.c.b16 %v8133, %v8132
      %v8137 = vpack.c.b16 %v8135, %v8134
      %8140 = vmatprep.subr.bf16.mxu0 %v8089
      %8141 = vmatpush1.bf16.msra.mxu0 %v8088
      %8142 = vmatprep.subr.bf16.mxu0 %v8091
      %8143 = vmatpush1.bf16.msra.mxu0 %v8090
      %8144 = vmatprep.subr.bf16.mxu0 %v8093
      %8145 = vmatpush1.bf16.msra.mxu0 %v8092
      %8146 = vmatprep.subr.bf16.mxu0 %v8095
      %8147 = vmatpush1.bf16.msra.mxu0 %v8094
      %8148 = vmatprep.subr.bf16.mxu0 %v8097
      %8149 = vmatpush1.bf16.msra.mxu0 %v8096
      %8150 = vmatprep.subr.bf16.mxu0 %v8099
      %8151 = vmatpush1.bf16.msra.mxu0 %v8098
      %8152 = vmatprep.subr.bf16.mxu0 %v8101
      %8153 = vmatpush1.bf16.msra.mxu0 %v8100
      %8154 = vmatprep.subr.bf16.mxu0 %v8103
      %8155 = vmatpush1.bf16.msra.mxu0 %v8102
      %8156 = vmatprep.subr.bf16.mxu0 0
      %8157 = vmatpush1.bf16.msra.mxu0 0
      %8158 = vmatprep.subr.bf16.mxu0 0
      %8159 = vmatpush1.bf16.msra.mxu0 0
      %8160 = vmatprep.subr.bf16.mxu0 0
      %8161 = vmatpush1.bf16.msra.mxu0 0
      %8162 = vmatprep.subr.bf16.mxu0 0
      %8163 = vmatpush1.bf16.msra.mxu0 0
      %8164 = vmatprep.subr.bf16.mxu0 0
      %8165 = vmatpush1.bf16.msra.mxu0 0
      %8166 = vmatprep.subr.bf16.mxu0 0
      %8167 = vmatpush1.bf16.msra.mxu0 0
      %8168 = vmatprep.subr.bf16.mxu0 0
      %8169 = vmatpush1.bf16.msra.mxu0 0
      %8170 = vmatprep.subr.bf16.mxu0 0
      %8171 = vmatpush1.bf16.msra.mxu0 0
      %8172 = vmatprep.mubr.bf16.mxu0 0
      %8173 = vmatmul.mubr.bf16.gmra.mrb[0].mxu0 %v8136
      %v8174 = vpop.f32.mrb[0].mxu0
      %v8175 = vadd.f32 %v8111, %v8174
      %v8176 = vpop.f32.mrb[0].mxu0
      %v8177 = vadd.f32 %v8111, %v8176
      %v8178 = vpop.f32.mrb[0].mxu0
      %v8179 = vadd.f32 %v8116, %v8178
      %v8180 = vpop.f32.mrb[0].mxu0
      %v8181 = vadd.f32 %v8116, %v8180
      %8182 = vmatprep.mubr.bf16.mxu0 0
      %8183 = vmatmul.mubr.bf16.gmra.mrb[0].mxu0 %v8137
      %v8184 = vpop.f32.mrb[0].mxu0
      %v8185 = vadd.f32 %v8121, %v8184
      %v8186 = vpop.f32.mrb[0].mxu0
      %v8187 = vadd.f32 %v8121, %v8186
      %v8188 = vpop.f32.mrb[0].mxu0
      %v8189 = vadd.f32 %v8126, %v8188
      %v8190 = vpop.f32.mrb[0].mxu0
      %v8191 = vadd.f32 %v8126, %v8190
      %8192 = vdwg.mxu0
      %v8193 = vmax.f32 %v8175, 0.0
      %v8194 = vmax.f32 %v8177, 0.0
      %v8195 = vmax.f32 %v8179, 0.0
      %v8196 = vmax.f32 %v8181, 0.0
      %v8197 = vmax.f32 %v8185, 0.0
      %v8198 = vmax.f32 %v8187, 0.0
      %v8199 = vmax.f32 %v8189, 0.0
      %v8200 = vmax.f32 %v8191, 0.0
      %v8201 = vld [vmem:[%s15] sm:$0xf]
      %v8202 = vld [vmem:[%s15 + $0x4] sm:$0xf]
      %v8203 = vld [vmem:[%s15 + $0x8] sm:$0xf]
      %v8204 = vld [vmem:[%s15 + $0xc] sm:$0xf]
      %v8205 = vld [vmem:[%s15 + $0x10] sm:$0xf]
      %v8206 = vld [vmem:[%s15 + $0x14] sm:$0xf]
      %v8207 = vld [vmem:[%s15 + $0x18] sm:$0xf]
      %v8208 = vld [vmem:[%s15 + $0x1c] sm:$0xf]
      %v8209 = vld [vmem:[%s15 + $0x20] sm:$0xf]
      %v8210 = vld [vmem:[%s15 + $0x24] sm:$0xf]
      %v8211 = vld [vmem:[%s15 + $0x28] sm:$0xf]
      %v8212 = vld [vmem:[%s15 + $0x2c] sm:$0xf]
      %v8213 = vld [vmem:[%s15 + $0x30] sm:$0xf]
      %v8214 = vld [vmem:[%s15 + $0x34] sm:$0xf]
      %v8215 = vld [vmem:[%s15 + $0x38] sm:$0xf]
      %v8216 = vld [vmem:[%s15 + $0x3c] sm:$0xf]
      %v8217 = vpack.c.bf16 %v8195, %v8193
      %v8218 = vpack.c.bf16 %v8196, %v8194
      %v8219 = vpack.c.bf16 %v8199, %v8197
      %v8220 = vpack.c.bf16 %v8200, %v8198
      %v8221 = vld [vmem:[%s16] sm:$0xff]
      %v8222 = vld [vmem:[%s16 + $0x8] sm:$0xff]
      %v8223 = vld [vmem:[%s16 + $0x10] sm:$0xff]
      %v8224 = vld [vmem:[%s16 + $0x18] sm:$0xff]
      %v8225 = vld [vmem:[%s16 + $0x20] sm:$0xff]
      %v8226 = vld [vmem:[%s16 + $0x28] sm:$0xff]
      %v8227 = vld [vmem:[%s16 + $0x30] sm:$0xff]
      %v8228 = vld [vmem:[%s16 + $0x38] sm:$0xff]
      %v8229 = vld [vmem:[%s16 + $0x40] sm:$0xff]
      %v8230 = vld [vmem:[%s16 + $0x48] sm:$0xff]
      %v8231 = vld [vmem:[%s16 + $0x50] sm:$0xff]
      %v8232 = vld [vmem:[%s16 + $0x58] sm:$0xff]
      %v8233 = vld [vmem:[%s16 + $0x60] sm:$0xff]
      %v8234 = vld [vmem:[%s16 + $0x68] sm:$0xff]
      %v8235 = vld [vmem:[%s16 + $0x70] sm:$0xff]
      %v8236 = vld [vmem:[%s16 + $0x78] sm:$0xff]
      %8238 = vset.pattern.permute.xlu0 0
      %8239 = vperm.xlu0 %8238, %v8221
      %v8240 = vpop.permute.xlu0 %8239
      %8243 = vset.pattern.permute.xlu0 0
      %8244 = vperm.xlu0 %8243, %v8222
      %v8245 = vpop.permute.xlu0 %8244
      %8248 = vset.pattern.permute.xlu0 0
      %8249 = vperm.xlu0 %8248, %v8223
      %v8250 = vpop.permute.xlu0 %8249
      %8253 = vset.pattern.permute.xlu0 0
      %8254 = vperm.xlu0 %8253, %v8224
      %v8255 = vpop.permute.xlu0 %8254
      %8258 = vset.pattern.permute.xlu0 0
      %8259 = vperm.xlu0 %8258, %v8225
      %v8260 = vpop.permute.xlu0 %8259
      %8263 = vset.pattern.permute.xlu0 0
      %8264 = vperm.xlu0 %8263, %v8226
      %v8265 = vpop.permute.xlu0 %8264
      %8268 = vset.pattern.permute.xlu0 0
      %8269 = vperm.xlu0 %8268, %v8227
      %v8270 = vpop.permute.xlu0 %8269
      %8273 = vset.pattern.permute.xlu0 0
      %8274 = vperm.xlu0 %8273, %v8228
      %v8275 = vpop.permute.xlu0 %8274
      %8278 = vset.pattern.permute.xlu0 0
      %8279 = vperm.xlu0 %8278, %v8229
      %v8280 = vpop.permute.xlu0 %8279
      %8283 = vset.pattern.permute.xlu0 0
      %8284 = vperm.xlu0 %8283, %v8230
      %v8285 = vpop.permute.xlu0 %8284
      %8288 = vset.pattern.permute.xlu0 0
      %8289 = vperm.xlu0 %8288, %v8231
      %v8290 = vpop.permute.xlu0 %8289
      %8293 = vset.pattern.permute.xlu0 0
      %8294 = vperm.xlu0 %8293, %v8232
      %v8295 = vpop.permute.xlu0 %8294
      %8298 = vset.pattern.permute.xlu0 0
      %8299 = vperm.xlu0 %8298, %v8233
      %v8300 = vpop.permute.xlu0 %8299
      %8303 = vset.pattern.permute.xlu0 0
      %8304 = vperm.xlu0 %8303, %v8234
      %v8305 = vpop.permute.xlu0 %8304
      %8308 = vset.pattern.permute.xlu0 0
      %8309 = vperm.xlu0 %8308, %v8235
      %v8310 = vpop.permute.xlu0 %8309
      %8313 = vset.pattern.permute.xlu0 0
      %8314 = vperm.xlu0 %8313, %v8236
      %v8315 = vpop.permute.xlu0 %8314
      %v8333 = vunpack.c.l.b16 %v8201
      %v8334 = vunpack.c.l.b16 %v8202
      %v8335 = vunpack.c.l.b16 %v8203
      %v8336 = vunpack.c.l.b16 %v8204
      %v8337 = vunpack.c.l.b16 %v8205
      %v8338 = vunpack.c.l.b16 %v8206
      %v8339 = vunpack.c.l.b16 %v8207
      %v8340 = vunpack.c.l.b16 %v8208
      %v8341 = vunpack.c.l.b16 %v8209
      %v8342 = vunpack.c.l.b16 %v8210
      %v8343 = vunpack.c.l.b16 %v8211
      %v8344 = vunpack.c.l.b16 %v8212
      %v8345 = vunpack.c.l.b16 %v8213
      %v8346 = vunpack.c.l.b16 %v8214
      %v8347 = vunpack.c.l.b16 %v8215
      %v8348 = vunpack.c.l.b16 %v8216
      %v8349 = vpack.c.b16 %v8334, %v8333
      %v8350 = vpack.c.b16 %v8336, %v8335
      %v8351 = vpack.c.b16 %v8338, %v8337
      %v8352 = vpack.c.b16 %v8340, %v8339
      %v8353 = vpack.c.b16 %v8342, %v8341
      %v8354 = vpack.c.b16 %v8344, %v8343
      %v8355 = vpack.c.b16 %v8346, %v8345
      %v8356 = vpack.c.b16 %v8348, %v8347
      %v8358 = vsel %vm779, %v8349, 0
      %v8361 = vsel %vm779, %v8350, 0
      %v8364 = vsel %vm779, %v8351, 0
      %v8367 = vsel %vm779, %v8352, 0
      %v8370 = vsel %vm779, %v8353, 0
      %v8373 = vsel %vm779, %v8354, 0
      %v8376 = vsel %vm779, %v8355, 0
      %v8379 = vsel %vm779, %v8356, 0
      %8381 = vmatprep.subr.bf16.mxu0 %v8218
      %8382 = vmatpush1.bf16.msra.mxu0 %v8217
      %8383 = vmatprep.subr.bf16.mxu0 %v8220
      %8384 = vmatpush1.bf16.msra.mxu0 %v8219
      %8385 = vmatprep.subr.bf16.mxu0 0
      %8386 = vmatpush1.bf16.msra.mxu0 0
      %8387 = vmatprep.subr.bf16.mxu0 0
      %8388 = vmatpush1.bf16.msra.mxu0 0
      %8389 = vmatprep.subr.bf16.mxu0 0
      %8390 = vmatpush1.bf16.msra.mxu0 0
      %8391 = vmatprep.subr.bf16.mxu0 0
      %8392 = vmatpush1.bf16.msra.mxu0 0
      %8393 = vmatprep.subr.bf16.mxu0 0
      %8394 = vmatpush1.bf16.msra.mxu0 0
      %8395 = vmatprep.subr.bf16.mxu0 0
      %8396 = vmatpush1.bf16.msra.mxu0 0
      %8397 = vmatprep.subr.bf16.mxu0 0
      %8398 = vmatpush1.bf16.msra.mxu0 0
      %8399 = vmatprep.subr.bf16.mxu0 0
      %8400 = vmatpush1.bf16.msra.mxu0 0
      %8401 = vmatprep.subr.bf16.mxu0 0
      %8402 = vmatpush1.bf16.msra.mxu0 0
      %8403 = vmatprep.subr.bf16.mxu0 0
      %8404 = vmatpush1.bf16.msra.mxu0 0
      %8405 = vmatprep.subr.bf16.mxu0 0
      %8406 = vmatpush1.bf16.msra.mxu0 0
      %8407 = vmatprep.subr.bf16.mxu0 0
      %8408 = vmatpush1.bf16.msra.mxu0 0
      %8409 = vmatprep.subr.bf16.mxu0 0
      %8410 = vmatpush1.bf16.msra.mxu0 0
      %8411 = vmatprep.subr.bf16.mxu0 0
      %8412 = vmatpush1.bf16.msra.mxu0 0
      %8413 = vmatprep.mubr.bf16.mxu0 0
      %8414 = vmatmul.mubr.bf16.gmra.mrb[0].mxu0 %v8358
      %v8415 = vpop.f32.mrb[0].mxu0
      %v8416 = vadd.f32 %v8240, %v8415
      %v8417 = vpop.f32.mrb[0].mxu0
      %v8418 = vadd.f32 %v8240, %v8417
      %v8419 = vpop.f32.mrb[0].mxu0
      %v8420 = vadd.f32 %v8245, %v8419
      %v8421 = vpop.f32.mrb[0].mxu0
      %v8422 = vadd.f32 %v8245, %v8421
      %8423 = vmatprep.mubr.bf16.mxu0 0
      %8424 = vmatmul.mubr.bf16.gmra.mrb[0].mxu0 %v8361
      %v8425 = vpop.f32.mrb[0].mxu0
      %v8426 = vadd.f32 %v8250, %v8425
      %v8427 = vpop.f32.mrb[0].mxu0
      %v8428 = vadd.f32 %v8250, %v8427
      %v8429 = vpop.f32.mrb[0].mxu0
      %v8430 = vadd.f32 %v8255, %v8429
      %v8431 = vpop.f32.mrb[0].mxu0
      %v8432 = vadd.f32 %v8255, %v8431
      %8433 = vmatprep.mubr.bf16.mxu0 0
      %8434 = vmatmul.mubr.bf16.gmra.mrb[0].mxu0 %v8364
      %v8435 = vpop.f32.mrb[0].mxu0
      %v8436 = vadd.f32 %v8260, %v8435
      %v8437 = vpop.f32.mrb[0].mxu0
      %v8438 = vadd.f32 %v8260, %v8437
      %v8439 = vpop.f32.mrb[0].mxu0
      %v8440 = vadd.f32 %v8265, %v8439
      %v8441 = vpop.f32.mrb[0].mxu0
      %v8442 = vadd.f32 %v8265, %v8441
      %8443 = vmatprep.mubr.bf16.mxu0 0
      %8444 = vmatmul.mubr.bf16.gmra.mrb[0].mxu0 %v8367
      %v8445 = vpop.f32.mrb[0].mxu0
      %v8446 = vadd.f32 %v8270, %v8445
      %v8447 = vpop.f32.mrb[0].mxu0
      %v8448 = vadd.f32 %v8270, %v8447
      %v8449 = vpop.f32.mrb[0].mxu0
      %v8450 = vadd.f32 %v8275, %v8449
      %v8451 = vpop.f32.mrb[0].mxu0
      %v8452 = vadd.f32 %v8275, %v8451
      %8453 = vmatprep.mubr.bf16.mxu0 0
      %8454 = vmatmul.mubr.bf16.gmra.mrb[0].mxu0 %v8370
      %v8455 = vpop.f32.mrb[0].mxu0
      %v8456 = vadd.f32 %v8280, %v8455
      %v8457 = vpop.f32.mrb[0].mxu0
      %v8458 = vadd.f32 %v8280, %v8457
      %v8459 = vpop.f32.mrb[0].mxu0
      %v8460 = vadd.f32 %v8285, %v8459
      %v8461 = vpop.f32.mrb[0].mxu0
      %v8462 = vadd.f32 %v8285, %v8461
      %8463 = vmatprep.mubr.bf16.mxu0 0
      %8464 = vmatmul.mubr.bf16.gmra.mrb[0].mxu0 %v8373
      %v8465 = vpop.f32.mrb[0].mxu0
      %v8466 = vadd.f32 %v8290, %v8465
      %v8467 = vpop.f32.mrb[0].mxu0
      %v8468 = vadd.f32 %v8290, %v8467
      %v8469 = vpop.f32.mrb[0].mxu0
      %v8470 = vadd.f32 %v8295, %v8469
      %v8471 = vpop.f32.mrb[0].mxu0
      %v8472 = vadd.f32 %v8295, %v8471
      %8473 = vmatprep.mubr.bf16.mxu0 0
      %8474 = vmatmul.mubr.bf16.gmra.mrb[0].mxu0 %v8376
      %v8475 = vpop.f32.mrb[0].mxu0
      %v8476 = vadd.f32 %v8300, %v8475
      %v8477 = vpop.f32.mrb[0].mxu0
      %v8478 = vadd.f32 %v8300, %v8477
      %v8479 = vpop.f32.mrb[0].mxu0
      %v8480 = vadd.f32 %v8305, %v8479
      %v8481 = vpop.f32.mrb[0].mxu0
      %v8482 = vadd.f32 %v8305, %v8481
      %8483 = vmatprep.mubr.bf16.mxu0 0
      %8484 = vmatmul.mubr.bf16.gmra.mrb[0].mxu0 %v8379
      %v8485 = vpop.f32.mrb[0].mxu0
      %v8486 = vadd.f32 %v8310, %v8485
      %v8487 = vpop.f32.mrb[0].mxu0
      %v8488 = vadd.f32 %v8310, %v8487
      %v8489 = vpop.f32.mrb[0].mxu0
      %v8490 = vadd.f32 %v8315, %v8489
      %v8491 = vpop.f32.mrb[0].mxu0
      %v8492 = vadd.f32 %v8315, %v8491
      %8493 = vdwg.mxu0
      %v8494 = vmax.f32 %v8416, 0.0
      %v8495 = vmax.f32 %v8418, 0.0
      %v8496 = vmax.f32 %v8420, 0.0
      %v8497 = vmax.f32 %v8422, 0.0
      %v8498 = vmax.f32 %v8426, 0.0
      %v8499 = vmax.f32 %v8428, 0.0
      %v8500 = vmax.f32 %v8430, 0.0
      %v8501 = vmax.f32 %v8432, 0.0
      %v8502 = vmax.f32 %v8436, 0.0
      %v8503 = vmax.f32 %v8438, 0.0
      %v8504 = vmax.f32 %v8440, 0.0
      %v8505 = vmax.f32 %v8442, 0.0
      %v8506 = vmax.f32 %v8446, 0.0
      %v8507 = vmax.f32 %v8448, 0.0
      %v8508 = vmax.f32 %v8450, 0.0
      %v8509 = vmax.f32 %v8452, 0.0
      %v8510 = vmax.f32 %v8456, 0.0
      %v8511 = vmax.f32 %v8458, 0.0
      %v8512 = vmax.f32 %v8460, 0.0
      %v8513 = vmax.f32 %v8462, 0.0
      %v8514 = vmax.f32 %v8466, 0.0
      %v8515 = vmax.f32 %v8468, 0.0
      %v8516 = vmax.f32 %v8470, 0.0
      %v8517 = vmax.f32 %v8472, 0.0
      %v8518 = vmax.f32 %v8476, 0.0
      %v8519 = vmax.f32 %v8478, 0.0
      %v8520 = vmax.f32 %v8480, 0.0
      %v8521 = vmax.f32 %v8482, 0.0
      %v8522 = vmax.f32 %v8486, 0.0
      %v8523 = vmax.f32 %v8488, 0.0
      %v8524 = vmax.f32 %v8490, 0.0
      %v8525 = vmax.f32 %v8492, 0.0
      %v8526 = vld [vmem:[%s17] sm:$0xf]
      %v8527 = vld [vmem:[%s17 + $0x4] sm:$0xf]
      %v8528 = vld [vmem:[%s17 + $0x8] sm:$0xf]
      %v8529 = vld [vmem:[%s17 + $0xc] sm:$0xf]
      %v8530 = vld [vmem:[%s17 + $0x10] sm:$0xf]
      %v8531 = vld [vmem:[%s17 + $0x14] sm:$0xf]
      %v8532 = vld [vmem:[%s17 + $0x18] sm:$0xf]
      %v8533 = vld [vmem:[%s17 + $0x1c] sm:$0xf]
      %v8534 = vld [vmem:[%s17 + $0x20] sm:$0xf]
      %v8535 = vld [vmem:[%s17 + $0x24] sm:$0xf]
      %v8536 = vld [vmem:[%s17 + $0x28] sm:$0xf]
      %v8537 = vld [vmem:[%s17 + $0x2c] sm:$0xf]
      %v8538 = vld [vmem:[%s17 + $0x30] sm:$0xf]
      %v8539 = vld [vmem:[%s17 + $0x34] sm:$0xf]
      %v8540 = vld [vmem:[%s17 + $0x38] sm:$0xf]
      %v8541 = vld [vmem:[%s17 + $0x3c] sm:$0xf]
      %v8542 = vpack.c.bf16 %v8496, %v8494
      %v8543 = vpack.c.bf16 %v8497, %v8495
      %v8544 = vpack.c.bf16 %v8500, %v8498
      %v8545 = vpack.c.bf16 %v8501, %v8499
      %v8546 = vpack.c.bf16 %v8504, %v8502
      %v8547 = vpack.c.bf16 %v8505, %v8503
      %v8548 = vpack.c.bf16 %v8508, %v8506
      %v8549 = vpack.c.bf16 %v8509, %v8507
      %v8550 = vpack.c.bf16 %v8512, %v8510
      %v8551 = vpack.c.bf16 %v8513, %v8511
      %v8552 = vpack.c.bf16 %v8516, %v8514
      %v8553 = vpack.c.bf16 %v8517, %v8515
      %v8554 = vpack.c.bf16 %v8520, %v8518
      %v8555 = vpack.c.bf16 %v8521, %v8519
      %v8556 = vpack.c.bf16 %v8524, %v8522
      %v8557 = vpack.c.bf16 %v8525, %v8523
      %v8558 = vld [vmem:[%s18] sm:$0xff]
      %v8559 = vld [vmem:[%s18 + $0x8] sm:$0xff]
      %v8560 = vld [vmem:[%s18 + $0x10] sm:$0xff]
      %v8561 = vld [vmem:[%s18 + $0x18] sm:$0xff]
      %v8562 = vld [vmem:[%s18 + $0x20] sm:$0xff]
      %v8563 = vld [vmem:[%s18 + $0x28] sm:$0xff]
      %v8564 = vld [vmem:[%s18 + $0x30] sm:$0xff]
      %v8565 = vld [vmem:[%s18 + $0x38] sm:$0xff]
      %v8566 = vld [vmem:[%s18 + $0x40] sm:$0xff]
      %v8567 = vld [vmem:[%s18 + $0x48] sm:$0xff]
      %v8568 = vld [vmem:[%s18 + $0x50] sm:$0xff]
      %v8569 = vld [vmem:[%s18 + $0x58] sm:$0xff]
      %v8570 = vld [vmem:[%s18 + $0x60] sm:$0xff]
      %v8571 = vld [vmem:[%s18 + $0x68] sm:$0xff]
      %v8572 = vld [vmem:[%s18 + $0x70] sm:$0xff]
      %v8573 = vld [vmem:[%s18 + $0x78] sm:$0xff]
      %8575 = vset.pattern.permute.xlu0 0
      %8576 = vperm.xlu0 %8575, %v8558
      %v8577 = vpop.permute.xlu0 %8576
      %8580 = vset.pattern.permute.xlu0 0
      %8581 = vperm.xlu0 %8580, %v8559
      %v8582 = vpop.permute.xlu0 %8581
      %8585 = vset.pattern.permute.xlu0 0
      %8586 = vperm.xlu0 %8585, %v8560
      %v8587 = vpop.permute.xlu0 %8586
      %8590 = vset.pattern.permute.xlu0 0
      %8591 = vperm.xlu0 %8590, %v8561
      %v8592 = vpop.permute.xlu0 %8591
      %8595 = vset.pattern.permute.xlu0 0
      %8596 = vperm.xlu0 %8595, %v8562
      %v8597 = vpop.permute.xlu0 %8596
      %8600 = vset.pattern.permute.xlu0 0
      %8601 = vperm.xlu0 %8600, %v8563
      %v8602 = vpop.permute.xlu0 %8601
      %8605 = vset.pattern.permute.xlu0 0
      %8606 = vperm.xlu0 %8605, %v8564
      %v8607 = vpop.permute.xlu0 %8606
      %8610 = vset.pattern.permute.xlu0 0
      %8611 = vperm.xlu0 %8610, %v8565
      %v8612 = vpop.permute.xlu0 %8611
      %8615 = vset.pattern.permute.xlu0 0
      %8616 = vperm.xlu0 %8615, %v8566
      %v8617 = vpop.permute.xlu0 %8616
      %8620 = vset.pattern.permute.xlu0 0
      %8621 = vperm.xlu0 %8620, %v8567
      %v8622 = vpop.permute.xlu0 %8621
      %8625 = vset.pattern.permute.xlu0 0
      %8626 = vperm.xlu0 %8625, %v8568
      %v8627 = vpop.permute.xlu0 %8626
      %8630 = vset.pattern.permute.xlu0 0
      %8631 = vperm.xlu0 %8630, %v8569
      %v8632 = vpop.permute.xlu0 %8631
      %8635 = vset.pattern.permute.xlu0 0
      %8636 = vperm.xlu0 %8635, %v8570
      %v8637 = vpop.permute.xlu0 %8636
      %8640 = vset.pattern.permute.xlu0 0
      %8641 = vperm.xlu0 %8640, %v8571
      %v8642 = vpop.permute.xlu0 %8641
      %8645 = vset.pattern.permute.xlu0 0
      %8646 = vperm.xlu0 %8645, %v8572
      %v8647 = vpop.permute.xlu0 %8646
      %8650 = vset.pattern.permute.xlu0 0
      %8651 = vperm.xlu0 %8650, %v8573
      %v8652 = vpop.permute.xlu0 %8651
      %v8670 = vunpack.c.l.b16 %v8526
      %v8671 = vunpack.c.l.b16 %v8527
      %v8672 = vunpack.c.l.b16 %v8528
      %v8673 = vunpack.c.l.b16 %v8529
      %v8674 = vunpack.c.l.b16 %v8530
      %v8675 = vunpack.c.l.b16 %v8531
      %v8676 = vunpack.c.l.b16 %v8532
      %v8677 = vunpack.c.l.b16 %v8533
      %v8678 = vunpack.c.l.b16 %v8534
      %v8679 = vunpack.c.l.b16 %v8535
      %v8680 = vunpack.c.l.b16 %v8536
      %v8681 = vunpack.c.l.b16 %v8537
      %v8682 = vunpack.c.l.b16 %v8538
      %v8683 = vunpack.c.l.b16 %v8539
      %v8684 = vunpack.c.l.b16 %v8540
      %v8685 = vunpack.c.l.b16 %v8541
      %v8686 = vpack.c.b16 %v8671, %v8670
      %v8687 = vpack.c.b16 %v8673, %v8672
      %v8688 = vpack.c.b16 %v8675, %v8674
      %v8689 = vpack.c.b16 %v8677, %v8676
      %v8690 = vpack.c.b16 %v8679, %v8678
      %v8691 = vpack.c.b16 %v8681, %v8680
      %v8692 = vpack.c.b16 %v8683, %v8682
      %v8693 = vpack.c.b16 %v8685, %v8684
      %8702 = vmatprep.subr.bf16.mxu0 %v8543
      %8703 = vmatpush1.bf16.msra.mxu0 %v8542
      %8704 = vmatprep.subr.bf16.mxu0 %v8545
      %8705 = vmatpush1.bf16.msra.mxu0 %v8544
      %8706 = vmatprep.subr.bf16.mxu0 %v8547
      %8707 = vmatpush1.bf16.msra.mxu0 %v8546
      %8708 = vmatprep.subr.bf16.mxu0 %v8549
      %8709 = vmatpush1.bf16.msra.mxu0 %v8548
      %8710 = vmatprep.subr.bf16.mxu0 %v8551
      %8711 = vmatpush1.bf16.msra.mxu0 %v8550
      %8712 = vmatprep.subr.bf16.mxu0 %v8553
      %8713 = vmatpush1.bf16.msra.mxu0 %v8552
      %8714 = vmatprep.subr.bf16.mxu0 %v8555
      %8715 = vmatpush1.bf16.msra.mxu0 %v8554
      %8716 = vmatprep.subr.bf16.mxu0 %v8557
      %8717 = vmatpush1.bf16.msra.mxu0 %v8556
      %8718 = vmatprep.subr.bf16.mxu0 0
      %8719 = vmatpush1.bf16.msra.mxu0 0
      %8720 = vmatprep.subr.bf16.mxu0 0
      %8721 = vmatpush1.bf16.msra.mxu0 0
      %8722 = vmatprep.subr.bf16.mxu0 0
      %8723 = vmatpush1.bf16.msra.mxu0 0
      %8724 = vmatprep.subr.bf16.mxu0 0
      %8725 = vmatpush1.bf16.msra.mxu0 0
      %8726 = vmatprep.subr.bf16.mxu0 0
      %8727 = vmatpush1.bf16.msra.mxu0 0
      %8728 = vmatprep.subr.bf16.mxu0 0
      %8729 = vmatpush1.bf16.msra.mxu0 0
      %8730 = vmatprep.subr.bf16.mxu0 0
      %8731 = vmatpush1.bf16.msra.mxu0 0
      %8732 = vmatprep.subr.bf16.mxu0 0
      %8733 = vmatpush1.bf16.msra.mxu0 0
      %8734 = vmatprep.mubr.bf16.mxu0 0
      %8735 = vmatmul.mubr.bf16.gmra.mrb[0].mxu0 %v8686
      %v8736 = vpop.f32.mrb[0].mxu0
      %v8737 = vadd.f32 %v8577, %v8736
      %v8738 = vpop.f32.mrb[0].mxu0
      %v8739 = vadd.f32 %v8577, %v8738
      %v8740 = vpop.f32.mrb[0].mxu0
      %v8741 = vadd.f32 %v8582, %v8740
      %v8742 = vpop.f32.mrb[0].mxu0
      %v8743 = vadd.f32 %v8582, %v8742
      %8744 = vmatprep.mubr.bf16.mxu0 0
      %8745 = vmatmul.mubr.bf16.gmra.mrb[0].mxu0 %v8687
      %v8746 = vpop.f32.mrb[0].mxu0
      %v8747 = vadd.f32 %v8587, %v8746
      %v8748 = vpop.f32.mrb[0].mxu0
      %v8749 = vadd.f32 %v8587, %v8748
      %v8750 = vpop.f32.mrb[0].mxu0
      %v8751 = vadd.f32 %v8592, %v8750
      %v8752 = vpop.f32.mrb[0].mxu0
      %v8753 = vadd.f32 %v8592, %v8752
      %8754 = vmatprep.mubr.bf16.mxu0 0
      %8755 = vmatmul.mubr.bf16.gmra.mrb[0].mxu0 %v8688
      %v8756 = vpop.f32.mrb[0].mxu0
      %v8757 = vadd.f32 %v8597, %v8756
      %v8758 = vpop.f32.mrb[0].mxu0
      %v8759 = vadd.f32 %v8597, %v8758
      %v8760 = vpop.f32.mrb[0].mxu0
      %v8761 = vadd.f32 %v8602, %v8760
      %v8762 = vpop.f32.mrb[0].mxu0
      %v8763 = vadd.f32 %v8602, %v8762
      %8764 = vmatprep.mubr.bf16.mxu0 0
      %8765 = vmatmul.mubr.bf16.gmra.mrb[0].mxu0 %v8689
      %v8766 = vpop.f32.mrb[0].mxu0
      %v8767 = vadd.f32 %v8607, %v8766
      %v8768 = vpop.f32.mrb[0].mxu0
      %v8769 = vadd.f32 %v8607, %v8768
      %v8770 = vpop.f32.mrb[0].mxu0
      %v8771 = vadd.f32 %v8612, %v8770
      %v8772 = vpop.f32.mrb[0].mxu0
      %v8773 = vadd.f32 %v8612, %v8772
      %8774 = vmatprep.mubr.bf16.mxu0 0
      %8775 = vmatmul.mubr.bf16.gmra.mrb[0].mxu0 %v8690
      %v8776 = vpop.f32.mrb[0].mxu0
      %v8777 = vadd.f32 %v8617, %v8776
      %v8778 = vpop.f32.mrb[0].mxu0
      %v8779 = vadd.f32 %v8617, %v8778
      %v8780 = vpop.f32.mrb[0].mxu0
      %v8781 = vadd.f32 %v8622, %v8780
      %v8782 = vpop.f32.mrb[0].mxu0
      %v8783 = vadd.f32 %v8622, %v8782
      %8784 = vmatprep.mubr.bf16.mxu0 0
      %8785 = vmatmul.mubr.bf16.gmra.mrb[0].mxu0 %v8691
      %v8786 = vpop.f32.mrb[0].mxu0
      %v8787 = vadd.f32 %v8627, %v8786
      %v8788 = vpop.f32.mrb[0].mxu0
      %v8789 = vadd.f32 %v8627, %v8788
      %v8790 = vpop.f32.mrb[0].mxu0
      %v8791 = vadd.f32 %v8632, %v8790
      %v8792 = vpop.f32.mrb[0].mxu0
      %v8793 = vadd.f32 %v8632, %v8792
      %8794 = vmatprep.mubr.bf16.mxu0 0
      %8795 = vmatmul.mubr.bf16.gmra.mrb[0].mxu0 %v8692
      %v8796 = vpop.f32.mrb[0].mxu0
      %v8797 = vadd.f32 %v8637, %v8796
      %v8798 = vpop.f32.mrb[0].mxu0
      %v8799 = vadd.f32 %v8637, %v8798
      %v8800 = vpop.f32.mrb[0].mxu0
      %v8801 = vadd.f32 %v8642, %v8800
      %v8802 = vpop.f32.mrb[0].mxu0
      %v8803 = vadd.f32 %v8642, %v8802
      %8804 = vmatprep.mubr.bf16.mxu0 0
      %8805 = vmatmul.mubr.bf16.gmra.mrb[0].mxu0 %v8693
      %v8806 = vpop.f32.mrb[0].mxu0
      %v8807 = vadd.f32 %v8647, %v8806
      %v8808 = vpop.f32.mrb[0].mxu0
      %v8809 = vadd.f32 %v8647, %v8808
      %v8810 = vpop.f32.mrb[0].mxu0
      %v8811 = vadd.f32 %v8652, %v8810
      %v8812 = vpop.f32.mrb[0].mxu0
      %v8813 = vadd.f32 %v8652, %v8812
      %8814 = vdwg.mxu0
      %v8815 = vmax.f32 %v8737, 0.0
      %v8816 = vmax.f32 %v8739, 0.0
      %v8817 = vmax.f32 %v8741, 0.0
      %v8818 = vmax.f32 %v8743, 0.0
      %v8819 = vmax.f32 %v8747, 0.0
      %v8820 = vmax.f32 %v8749, 0.0
      %v8821 = vmax.f32 %v8751, 0.0
      %v8822 = vmax.f32 %v8753, 0.0
      %v8823 = vmax.f32 %v8757, 0.0
      %v8824 = vmax.f32 %v8759, 0.0
      %v8825 = vmax.f32 %v8761, 0.0
      %v8826 = vmax.f32 %v8763, 0.0
      %v8827 = vmax.f32 %v8767, 0.0
      %v8828 = vmax.f32 %v8769, 0.0
      %v8829 = vmax.f32 %v8771, 0.0
      %v8830 = vmax.f32 %v8773, 0.0
      %v8831 = vmax.f32 %v8777, 0.0
      %v8832 = vmax.f32 %v8779, 0.0
      %v8833 = vmax.f32 %v8781, 0.0
      %v8834 = vmax.f32 %v8783, 0.0
      %v8835 = vmax.f32 %v8787, 0.0
      %v8836 = vmax.f32 %v8789, 0.0
      %v8837 = vmax.f32 %v8791, 0.0
      %v8838 = vmax.f32 %v8793, 0.0
      %v8839 = vmax.f32 %v8797, 0.0
      %v8840 = vmax.f32 %v8799, 0.0
      %v8841 = vmax.f32 %v8801, 0.0
      %v8842 = vmax.f32 %v8803, 0.0
      %v8843 = vmax.f32 %v8807, 0.0
      %v8844 = vmax.f32 %v8809, 0.0
      %v8845 = vmax.f32 %v8811, 0.0
      %v8846 = vmax.f32 %v8813, 0.0
      %v8847 = vld [vmem:[%s19] sm:$0xff]
      %v8848 = vld [vmem:[%s19 + $0x8] sm:$0xff]
      %8849 = vmatprep.subr.mxu0 %v8816
      %8850 = vmatpush1.msra.mxu0 %v8815
      %8851 = vmatprep.subr.mxu0 %v8818
      %8852 = vmatpush1.msra.mxu0 %v8817
      %8853 = vmatprep.subr.mxu0 %v8820
      %8854 = vmatpush1.msra.mxu0 %v8819
      %8855 = vmatprep.subr.mxu0 %v8822
      %8856 = vmatpush1.msra.mxu0 %v8821
      %8857 = vmatprep.subr.mxu0 %v8824
      %8858 = vmatpush1.msra.mxu0 %v8823
      %8859 = vmatprep.subr.mxu0 %v8826
      %8860 = vmatpush1.msra.mxu0 %v8825
      %8861 = vmatprep.subr.mxu0 %v8828
      %8862 = vmatpush1.msra.mxu0 %v8827
      %8863 = vmatprep.subr.mxu0 %v8830
      %8864 = vmatpush1.msra.mxu0 %v8829
      %8865 = vmatprep.subr.mxu0 %v8832
      %8866 = vmatpush1.msra.mxu0 %v8831
      %8867 = vmatprep.subr.mxu0 %v8834
      %8868 = vmatpush1.msra.mxu0 %v8833
      %8869 = vmatprep.subr.mxu0 %v8836
      %8870 = vmatpush1.msra.mxu0 %v8835
      %8871 = vmatprep.subr.mxu0 %v8838
      %8872 = vmatpush1.msra.mxu0 %v8837
      %8873 = vmatprep.subr.mxu0 %v8840
      %8874 = vmatpush1.msra.mxu0 %v8839
      %8875 = vmatprep.subr.mxu0 %v8842
      %8876 = vmatpush1.msra.mxu0 %v8841
      %8877 = vmatprep.subr.mxu0 %v8844
      %8878 = vmatpush1.msra.mxu0 %v8843
      %8879 = vmatprep.subr.mxu0 %v8846
      %8880 = vmatpush1.msra.mxu0 %v8845
      %8881 = vmatprep.subr.mxu0 0.0
      %8882 = vmatpush1.msra.mxu0 0.0
      %8883 = vmatprep.subr.mxu0 0.0
      %8884 = vmatpush1.msra.mxu0 0.0
      %8885 = vmatprep.subr.mxu0 0.0
      %8886 = vmatpush1.msra.mxu0 0.0
      %8887 = vmatprep.subr.mxu0 0.0
      %8888 = vmatpush1.msra.mxu0 0.0
      %8889 = vmatprep.subr.mxu0 0.0
      %8890 = vmatpush1.msra.mxu0 0.0
      %8891 = vmatprep.subr.mxu0 0.0
      %8892 = vmatpush1.msra.mxu0 0.0
      %8893 = vmatprep.subr.mxu0 0.0
      %8894 = vmatpush1.msra.mxu0 0.0
      %8895 = vmatprep.subr.mxu0 0.0
      %8896 = vmatpush1.msra.mxu0 0.0
      %8897 = vmatprep.subr.mxu0 0.0
      %8898 = vmatpush1.msra.mxu0 0.0
      %8899 = vmatprep.subr.mxu0 0.0
      %8900 = vmatpush1.msra.mxu0 0.0
      %8901 = vmatprep.subr.mxu0 0.0
      %8902 = vmatpush1.msra.mxu0 0.0
      %8903 = vmatprep.subr.mxu0 0.0
      %8904 = vmatpush1.msra.mxu0 0.0
      %8905 = vmatprep.subr.mxu0 0.0
      %8906 = vmatpush1.msra.mxu0 0.0
      %8907 = vmatprep.subr.mxu0 0.0
      %8908 = vmatpush1.msra.mxu0 0.0
      %8909 = vmatprep.subr.mxu0 0.0
      %8910 = vmatpush1.msra.mxu0 0.0
      %8911 = vmatprep.subr.mxu0 0.0
      %8912 = vmatpush1.msra.mxu0 0.0
      %8913 = vmatprep.mubr.f32.mxu0 0.0
      %8914 = vmatmul.mubr.f32.gmra.mrb[0].mxu0 %v8847
      %v8915 = vpop.f32.mrb[0].mxu0
      %v8916 = vadd.f32 0.0, %v8915
      %v8917 = vpop.f32.mrb[0].mxu0
      %v8918 = vadd.f32 0.0, %v8917
      %8919 = vmatprep.mubr.f32.mxu0 0.0
      %8920 = vmatmul.mubr.f32.gmra.mrb[0].mxu0 %v8848
      %v8921 = vpop.f32.mrb[0].mxu0
      %v8922 = vadd.f32 0.0, %v8921
      %v8923 = vpop.f32.mrb[0].mxu0
      %v8924 = vadd.f32 0.0, %v8923
      %8925 = vdwg.mxu0
      %v8926 = vmul.f32 %v8916, 0.125
      %v8927 = vmul.f32 %v8918, 0.125
      %v8928 = vmul.f32 %v8922, 0.125
      %v8929 = vmul.f32 %v8924, 0.125
      %v8930 = vld [vmem:[%s20] sm:$0xff]
      %v8931 = vld [vmem:[%s20 + $0x8] sm:$0xff]
      %v8932 = vld [vmem:[%s20 + $0x10] sm:$0xff]
      %v8933 = vld [vmem:[%s20 + $0x18] sm:$0xff]
      %v8934 = vld [vmem:[%s20 + $0x20] sm:$0xff]
      %v8935 = vld [vmem:[%s20 + $0x28] sm:$0xff]
      %v8936 = vld [vmem:[%s20 + $0x30] sm:$0xff]
      %v8937 = vld [vmem:[%s20 + $0x38] sm:$0xff]
      %v8938 = vld [vmem:[%s20 + $0x40] sm:$0xff]
      %v8939 = vld [vmem:[%s20 + $0x48] sm:$0xff]
      %v8940 = vld [vmem:[%s20 + $0x50] sm:$0xff]
      %v8941 = vld [vmem:[%s20 + $0x58] sm:$0xff]
      %v8942 = vld [vmem:[%s20 + $0x60] sm:$0xff]
      %v8943 = vld [vmem:[%s20 + $0x68] sm:$0xff]
      %v8944 = vld [vmem:[%s20 + $0x70] sm:$0xff]
      %v8945 = vld [vmem:[%s20 + $0x78] sm:$0xff]
      %vm8946 = vcmask 130048
      %v8948 = vsel %vm8946, %v8930, 0
      %v8951 = vsel %vm8946, %v8931, 0
      %v8954 = vsel %vm8946, %v8932, 0
      %v8957 = vsel %vm8946, %v8933, 0
      %v8960 = vsel %vm8946, %v8934, 0
      %v8963 = vsel %vm8946, %v8935, 0
      %v8966 = vsel %vm8946, %v8936, 0
      %v8969 = vsel %vm8946, %v8937, 0
      %v8972 = vsel %vm8946, %v8938, 0
      %v8975 = vsel %vm8946, %v8939, 0
      %v8978 = vsel %vm8946, %v8940, 0
      %v8981 = vsel %vm8946, %v8941, 0
      %v8984 = vsel %vm8946, %v8942, 0
      %v8987 = vsel %vm8946, %v8943, 0
      %v8990 = vsel %vm8946, %v8944, 0
      %v8993 = vsel %vm8946, %v8945, 0
      %8995 = vmatprep.subr.mxu0 %v8927
      %8996 = vmatpush1.msra.mxu0 %v8926
      %8997 = vmatprep.subr.mxu0 %v8929
      %8998 = vmatpush1.msra.mxu0 %v8928
      %8999 = vmatprep.subr.mxu0 0.0
      %9000 = vmatpush1.msra.mxu0 0.0
      %9001 = vmatprep.subr.mxu0 0.0
      %9002 = vmatpush1.msra.mxu0 0.0
      %9003 = vmatprep.subr.mxu0 0.0
      %9004 = vmatpush1.msra.mxu0 0.0
      %9005 = vmatprep.subr.mxu0 0.0
      %9006 = vmatpush1.msra.mxu0 0.0
      %9007 = vmatprep.subr.mxu0 0.0
      %9008 = vmatpush1.msra.mxu0 0.0
      %9009 = vmatprep.subr.mxu0 0.0
      %9010 = vmatpush1.msra.mxu0 0.0
      %9011 = vmatprep.subr.mxu0 0.0
      %9012 = vmatpush1.msra.mxu0 0.0
      %9013 = vmatprep.subr.mxu0 0.0
      %9014 = vmatpush1.msra.mxu0 0.0
      %9015 = vmatprep.subr.mxu0 0.0
      %9016 = vmatpush1.msra.mxu0 0.0
      %9017 = vmatprep.subr.mxu0 0.0
      %9018 = vmatpush1.msra.mxu0 0.0
      %9019 = vmatprep.subr.mxu0 0.0
      %9020 = vmatpush1.msra.mxu0 0.0
      %9021 = vmatprep.subr.mxu0 0.0
      %9022 = vmatpush1.msra.mxu0 0.0
      %9023 = vmatprep.subr.mxu0 0.0
      %9024 = vmatpush1.msra.mxu0 0.0
      %9025 = vmatprep.subr.mxu0 0.0
      %9026 = vmatpush1.msra.mxu0 0.0
      %9027 = vmatprep.subr.mxu0 0.0
      %9028 = vmatpush1.msra.mxu0 0.0
      %9029 = vmatprep.subr.mxu0 0.0
      %9030 = vmatpush1.msra.mxu0 0.0
      %9031 = vmatprep.subr.mxu0 0.0
      %9032 = vmatpush1.msra.mxu0 0.0
      %9033 = vmatprep.subr.mxu0 0.0
      %9034 = vmatpush1.msra.mxu0 0.0
      %9035 = vmatprep.subr.mxu0 0.0
      %9036 = vmatpush1.msra.mxu0 0.0
      %9037 = vmatprep.subr.mxu0 0.0
      %9038 = vmatpush1.msra.mxu0 0.0
      %9039 = vmatprep.subr.mxu0 0.0
      %9040 = vmatpush1.msra.mxu0 0.0
      %9041 = vmatprep.subr.mxu0 0.0
      %9042 = vmatpush1.msra.mxu0 0.0
      %9043 = vmatprep.subr.mxu0 0.0
      %9044 = vmatpush1.msra.mxu0 0.0
      %9045 = vmatprep.subr.mxu0 0.0
      %9046 = vmatpush1.msra.mxu0 0.0
      %9047 = vmatprep.subr.mxu0 0.0
      %9048 = vmatpush1.msra.mxu0 0.0
      %9049 = vmatprep.subr.mxu0 0.0
      %9050 = vmatpush1.msra.mxu0 0.0
      %9051 = vmatprep.subr.mxu0 0.0
      %9052 = vmatpush1.msra.mxu0 0.0
      %9053 = vmatprep.subr.mxu0 0.0
      %9054 = vmatpush1.msra.mxu0 0.0
      %9055 = vmatprep.subr.mxu0 0.0
      %9056 = vmatpush1.msra.mxu0 0.0
      %9057 = vmatprep.subr.mxu0 0.0
      %9058 = vmatpush1.msra.mxu0 0.0
      %9059 = vmatprep.mubr.f32.mxu0 0.0
      %9060 = vmatmul.mubr.f32.gmra.mrb[0].mxu0 %v8948
      %v9061 = vpop.f32.mrb[0].mxu0
      %v9062 = vadd.f32 0.0, %v9061
      %v9063 = vpop.f32.mrb[0].mxu0
      %v9064 = vadd.f32 0.0, %v9063
      %9065 = vmatprep.mubr.f32.mxu0 0.0
      %9066 = vmatmul.mubr.f32.gmra.mrb[0].mxu0 %v8951
      %v9067 = vpop.f32.mrb[0].mxu0
      %v9068 = vadd.f32 0.0, %v9067
      %v9069 = vpop.f32.mrb[0].mxu0
      %v9070 = vadd.f32 0.0, %v9069
      %9071 = vmatprep.mubr.f32.mxu0 0.0
      %9072 = vmatmul.mubr.f32.gmra.mrb[0].mxu0 %v8954
      %v9073 = vpop.f32.mrb[0].mxu0
      %v9074 = vadd.f32 0.0, %v9073
      %v9075 = vpop.f32.mrb[0].mxu0
      %v9076 = vadd.f32 0.0, %v9075
      %9077 = vmatprep.mubr.f32.mxu0 0.0
      %9078 = vmatmul.mubr.f32.gmra.mrb[0].mxu0 %v8957
      %v9079 = vpop.f32.mrb[0].mxu0
      %v9080 = vadd.f32 0.0, %v9079
      %v9081 = vpop.f32.mrb[0].mxu0
      %v9082 = vadd.f32 0.0, %v9081
      %9083 = vmatprep.mubr.f32.mxu0 0.0
      %9084 = vmatmul.mubr.f32.gmra.mrb[0].mxu0 %v8960
      %v9085 = vpop.f32.mrb[0].mxu0
      %v9086 = vadd.f32 0.0, %v9085
      %v9087 = vpop.f32.mrb[0].mxu0
      %v9088 = vadd.f32 0.0, %v9087
      %9089 = vmatprep.mubr.f32.mxu0 0.0
      %9090 = vmatmul.mubr.f32.gmra.mrb[0].mxu0 %v8963
      %v9091 = vpop.f32.mrb[0].mxu0
      %v9092 = vadd.f32 0.0, %v9091
      %v9093 = vpop.f32.mrb[0].mxu0
      %v9094 = vadd.f32 0.0, %v9093
      %9095 = vmatprep.mubr.f32.mxu0 0.0
      %9096 = vmatmul.mubr.f32.gmra.mrb[0].mxu0 %v8966
      %v9097 = vpop.f32.mrb[0].mxu0
      %v9098 = vadd.f32 0.0, %v9097
      %v9099 = vpop.f32.mrb[0].mxu0
      %v9100 = vadd.f32 0.0, %v9099
      %9101 = vmatprep.mubr.f32.mxu0 0.0
      %9102 = vmatmul.mubr.f32.gmra.mrb[0].mxu0 %v8969
      %v9103 = vpop.f32.mrb[0].mxu0
      %v9104 = vadd.f32 0.0, %v9103
      %v9105 = vpop.f32.mrb[0].mxu0
      %v9106 = vadd.f32 0.0, %v9105
      %9107 = vmatprep.mubr.f32.mxu0 0.0
      %9108 = vmatmul.mubr.f32.gmra.mrb[0].mxu0 %v8972
      %v9109 = vpop.f32.mrb[0].mxu0
      %v9110 = vadd.f32 0.0, %v9109
      %v9111 = vpop.f32.mrb[0].mxu0
      %v9112 = vadd.f32 0.0, %v9111
      %9113 = vmatprep.mubr.f32.mxu0 0.0
      %9114 = vmatmul.mubr.f32.gmra.mrb[0].mxu0 %v8975
      %v9115 = vpop.f32.mrb[0].mxu0
      %v9116 = vadd.f32 0.0, %v9115
      %v9117 = vpop.f32.mrb[0].mxu0
      %v9118 = vadd.f32 0.0, %v9117
      %9119 = vmatprep.mubr.f32.mxu0 0.0
      %9120 = vmatmul.mubr.f32.gmra.mrb[0].mxu0 %v8978
      %v9121 = vpop.f32.mrb[0].mxu0
      %v9122 = vadd.f32 0.0, %v9121
      %v9123 = vpop.f32.mrb[0].mxu0
      %v9124 = vadd.f32 0.0, %v9123
      %9125 = vmatprep.mubr.f32.mxu0 0.0
      %9126 = vmatmul.mubr.f32.gmra.mrb[0].mxu0 %v8981
      %v9127 = vpop.f32.mrb[0].mxu0
      %v9128 = vadd.f32 0.0, %v9127
      %v9129 = vpop.f32.mrb[0].mxu0
      %v9130 = vadd.f32 0.0, %v9129
      %9131 = vmatprep.mubr.f32.mxu0 0.0
      %9132 = vmatmul.mubr.f32.gmra.mrb[0].mxu0 %v8984
      %v9133 = vpop.f32.mrb[0].mxu0
      %v9134 = vadd.f32 0.0, %v9133
      %v9135 = vpop.f32.mrb[0].mxu0
      %v9136 = vadd.f32 0.0, %v9135
      %9137 = vmatprep.mubr.f32.mxu0 0.0
      %9138 = vmatmul.mubr.f32.gmra.mrb[0].mxu0 %v8987
      %v9139 = vpop.f32.mrb[0].mxu0
      %v9140 = vadd.f32 0.0, %v9139
      %v9141 = vpop.f32.mrb[0].mxu0
      %v9142 = vadd.f32 0.0, %v9141
      %9143 = vmatprep.mubr.f32.mxu0 0.0
      %9144 = vmatmul.mubr.f32.gmra.mrb[0].mxu0 %v8990
      %v9145 = vpop.f32.mrb[0].mxu0
      %v9146 = vadd.f32 0.0, %v9145
      %v9147 = vpop.f32.mrb[0].mxu0
      %v9148 = vadd.f32 0.0, %v9147
      %9149 = vmatprep.mubr.f32.mxu0 0.0
      %9150 = vmatmul.mubr.f32.gmra.mrb[0].mxu0 %v8993
      %v9151 = vpop.f32.mrb[0].mxu0
      %v9152 = vadd.f32 0.0, %v9151
      %v9153 = vpop.f32.mrb[0].mxu0
      %v9154 = vadd.f32 0.0, %v9153
      %9155 = vdwg.mxu0
      %v9156 = vsub.f32 %v8815, %v9062
      %v9157 = vsub.f32 %v8816, %v9064
      %v9158 = vsub.f32 %v8817, %v9068
      %v9159 = vsub.f32 %v8818, %v9070
      %v9160 = vsub.f32 %v8819, %v9074
      %v9161 = vsub.f32 %v8820, %v9076
      %v9162 = vsub.f32 %v8821, %v9080
      %v9163 = vsub.f32 %v8822, %v9082
      %v9164 = vsub.f32 %v8823, %v9086
      %v9165 = vsub.f32 %v8824, %v9088
      %v9166 = vsub.f32 %v8825, %v9092
      %v9167 = vsub.f32 %v8826, %v9094
      %v9168 = vsub.f32 %v8827, %v9098
      %v9169 = vsub.f32 %v8828, %v9100
      %v9170 = vsub.f32 %v8829, %v9104
      %v9171 = vsub.f32 %v8830, %v9106
      %v9172 = vsub.f32 %v8831, %v9110
      %v9173 = vsub.f32 %v8832, %v9112
      %v9174 = vsub.f32 %v8833, %v9116
      %v9175 = vsub.f32 %v8834, %v9118
      %v9176 = vsub.f32 %v8835, %v9122
      %v9177 = vsub.f32 %v8836, %v9124
      %v9178 = vsub.f32 %v8837, %v9128
      %v9179 = vsub.f32 %v8838, %v9130
      %v9180 = vsub.f32 %v8839, %v9134
      %v9181 = vsub.f32 %v8840, %v9136
      %v9182 = vsub.f32 %v8841, %v9140
      %v9183 = vsub.f32 %v8842, %v9142
      %v9184 = vsub.f32 %v8843, %v9146
      %v9185 = vsub.f32 %v8844, %v9148
      %v9186 = vsub.f32 %v8845, %v9152
      %v9187 = vsub.f32 %v8846, %v9154
      %v9188 = vmul.f32 %v9156, %v9156
      %v9189 = vmul.f32 %v9157, %v9157
      %v9190 = vmul.f32 %v9158, %v9158
      %v9191 = vmul.f32 %v9159, %v9159
      %v9192 = vmul.f32 %v9160, %v9160
      %v9193 = vmul.f32 %v9161, %v9161
      %v9194 = vmul.f32 %v9162, %v9162
      %v9195 = vmul.f32 %v9163, %v9163
      %v9196 = vmul.f32 %v9164, %v9164
      %v9197 = vmul.f32 %v9165, %v9165
      %v9198 = vmul.f32 %v9166, %v9166
      %v9199 = vmul.f32 %v9167, %v9167
      %v9200 = vmul.f32 %v9168, %v9168
      %v9201 = vmul.f32 %v9169, %v9169
      %v9202 = vmul.f32 %v9170, %v9170
      %v9203 = vmul.f32 %v9171, %v9171
      %v9204 = vmul.f32 %v9172, %v9172
      %v9205 = vmul.f32 %v9173, %v9173
      %v9206 = vmul.f32 %v9174, %v9174
      %v9207 = vmul.f32 %v9175, %v9175
      %v9208 = vmul.f32 %v9176, %v9176
      %v9209 = vmul.f32 %v9177, %v9177
      %v9210 = vmul.f32 %v9178, %v9178
      %v9211 = vmul.f32 %v9179, %v9179
      %v9212 = vmul.f32 %v9180, %v9180
      %v9213 = vmul.f32 %v9181, %v9181
      %v9214 = vmul.f32 %v9182, %v9182
      %v9215 = vmul.f32 %v9183, %v9183
      %v9216 = vmul.f32 %v9184, %v9184
      %v9217 = vmul.f32 %v9185, %v9185
      %v9218 = vmul.f32 %v9186, %v9186
      %v9219 = vmul.f32 %v9187, %v9187
      %9220 = vmatprep.subr.mxu0 %v9189
      %9221 = vmatpush1.msra.mxu0 %v9188
      %9222 = vmatprep.subr.mxu0 %v9191
      %9223 = vmatpush1.msra.mxu0 %v9190
      %9224 = vmatprep.subr.mxu0 %v9193
      %9225 = vmatpush1.msra.mxu0 %v9192
      %9226 = vmatprep.subr.mxu0 %v9195
      %9227 = vmatpush1.msra.mxu0 %v9194
      %9228 = vmatprep.subr.mxu0 %v9197
      %9229 = vmatpush1.msra.mxu0 %v9196
      %9230 = vmatprep.subr.mxu0 %v9199
      %9231 = vmatpush1.msra.mxu0 %v9198
      %9232 = vmatprep.subr.mxu0 %v9201
      %9233 = vmatpush1.msra.mxu0 %v9200
      %9234 = vmatprep.subr.mxu0 %v9203
      %9235 = vmatpush1.msra.mxu0 %v9202
      %9236 = vmatprep.subr.mxu0 %v9205
      %9237 = vmatpush1.msra.mxu0 %v9204
      %9238 = vmatprep.subr.mxu0 %v9207
      %9239 = vmatpush1.msra.mxu0 %v9206
      %9240 = vmatprep.subr.mxu0 %v9209
      %9241 = vmatpush1.msra.mxu0 %v9208
      %9242 = vmatprep.subr.mxu0 %v9211
      %9243 = vmatpush1.msra.mxu0 %v9210
      %9244 = vmatprep.subr.mxu0 %v9213
      %9245 = vmatpush1.msra.mxu0 %v9212
      %9246 = vmatprep.subr.mxu0 %v9215
      %9247 = vmatpush1.msra.mxu0 %v9214
      %9248 = vmatprep.subr.mxu0 %v9217
      %9249 = vmatpush1.msra.mxu0 %v9216
      %9250 = vmatprep.subr.mxu0 %v9219
      %9251 = vmatpush1.msra.mxu0 %v9218
      %9252 = vmatprep.subr.mxu0 0.0
      %9253 = vmatpush1.msra.mxu0 0.0
      %9254 = vmatprep.subr.mxu0 0.0
      %9255 = vmatpush1.msra.mxu0 0.0
      %9256 = vmatprep.subr.mxu0 0.0
      %9257 = vmatpush1.msra.mxu0 0.0
      %9258 = vmatprep.subr.mxu0 0.0
      %9259 = vmatpush1.msra.mxu0 0.0
      %9260 = vmatprep.subr.mxu0 0.0
      %9261 = vmatpush1.msra.mxu0 0.0
      %9262 = vmatprep.subr.mxu0 0.0
      %9263 = vmatpush1.msra.mxu0 0.0
      %9264 = vmatprep.subr.mxu0 0.0
      %9265 = vmatpush1.msra.mxu0 0.0
      %9266 = vmatprep.subr.mxu0 0.0
      %9267 = vmatpush1.msra.mxu0 0.0
      %9268 = vmatprep.subr.mxu0 0.0
      %9269 = vmatpush1.msra.mxu0 0.0
      %9270 = vmatprep.subr.mxu0 0.0
      %9271 = vmatpush1.msra.mxu0 0.0
      %9272 = vmatprep.subr.mxu0 0.0
      %9273 = vmatpush1.msra.mxu0 0.0
      %9274 = vmatprep.subr.mxu0 0.0
      %9275 = vmatpush1.msra.mxu0 0.0
      %9276 = vmatprep.subr.mxu0 0.0
      %9277 = vmatpush1.msra.mxu0 0.0
      %9278 = vmatprep.subr.mxu0 0.0
      %9279 = vmatpush1.msra.mxu0 0.0
      %9280 = vmatprep.subr.mxu0 0.0
      %9281 = vmatpush1.msra.mxu0 0.0
      %9282 = vmatprep.subr.mxu0 0.0
      %9283 = vmatpush1.msra.mxu0 0.0
      %9284 = vmatprep.mubr.f32.mxu0 0.0
      %9285 = vmatmul.mubr.f32.gmra.mrb[0].mxu0 %v8847
      %v9286 = vpop.f32.mrb[0].mxu0
      %v9287 = vadd.f32 0.0, %v9286
      %v9288 = vpop.f32.mrb[0].mxu0
      %v9289 = vadd.f32 0.0, %v9288
      %9290 = vmatprep.mubr.f32.mxu0 0.0
      %9291 = vmatmul.mubr.f32.gmra.mrb[0].mxu0 %v8848
      %v9292 = vpop.f32.mrb[0].mxu0
      %v9293 = vadd.f32 0.0, %v9292
      %v9294 = vpop.f32.mrb[0].mxu0
      %v9295 = vadd.f32 0.0, %v9294
      %9296 = vdwg.mxu0
      %v9297 = vmul.f32 %v9287, 0.125
      %v9298 = vmul.f32 %v9289, 0.125
      %v9299 = vmul.f32 %v9293, 0.125
      %v9300 = vmul.f32 %v9295, 0.125
      %9301 = vmatprep.subr.mxu0 %v9298
      %9302 = vmatpush1.msra.mxu0 %v9297
      %9303 = vmatprep.subr.mxu0 %v9300
      %9304 = vmatpush1.msra.mxu0 %v9299
      %9305 = vmatprep.subr.mxu0 0.0
      %9306 = vmatpush1.msra.mxu0 0.0
      %9307 = vmatprep.subr.mxu0 0.0
      %9308 = vmatpush1.msra.mxu0 0.0
      %9309 = vmatprep.subr.mxu0 0.0
      %9310 = vmatpush1.msra.mxu0 0.0
      %9311 = vmatprep.subr.mxu0 0.0
      %9312 = vmatpush1.msra.mxu0 0.0
      %9313 = vmatprep.subr.mxu0 0.0
      %9314 = vmatpush1.msra.mxu0 0.0
      %9315 = vmatprep.subr.mxu0 0.0
      %9316 = vmatpush1.msra.mxu0 0.0
      %9317 = vmatprep.subr.mxu0 0.0
      %9318 = vmatpush1.msra.mxu0 0.0
      %9319 = vmatprep.subr.mxu0 0.0
      %9320 = vmatpush1.msra.mxu0 0.0
      %9321 = vmatprep.subr.mxu0 0.0
      %9322 = vmatpush1.msra.mxu0 0.0
      %9323 = vmatprep.subr.mxu0 0.0
      %9324 = vmatpush1.msra.mxu0 0.0
      %9325 = vmatprep.subr.mxu0 0.0
      %9326 = vmatpush1.msra.mxu0 0.0
      %9327 = vmatprep.subr.mxu0 0.0
      %9328 = vmatpush1.msra.mxu0 0.0
      %9329 = vmatprep.subr.mxu0 0.0
      %9330 = vmatpush1.msra.mxu0 0.0
      %9331 = vmatprep.subr.mxu0 0.0
      %9332 = vmatpush1.msra.mxu0 0.0
      %9333 = vmatprep.subr.mxu0 0.0
      %9334 = vmatpush1.msra.mxu0 0.0
      %9335 = vmatprep.subr.mxu0 0.0
      %9336 = vmatpush1.msra.mxu0 0.0
      %9337 = vmatprep.subr.mxu0 0.0
      %9338 = vmatpush1.msra.mxu0 0.0
      %9339 = vmatprep.subr.mxu0 0.0
      %9340 = vmatpush1.msra.mxu0 0.0
      %9341 = vmatprep.subr.mxu0 0.0
      %9342 = vmatpush1.msra.mxu0 0.0
      %9343 = vmatprep.subr.mxu0 0.0
      %9344 = vmatpush1.msra.mxu0 0.0
      %9345 = vmatprep.subr.mxu0 0.0
      %9346 = vmatpush1.msra.mxu0 0.0
      %9347 = vmatprep.subr.mxu0 0.0
      %9348 = vmatpush1.msra.mxu0 0.0
      %9349 = vmatprep.subr.mxu0 0.0
      %9350 = vmatpush1.msra.mxu0 0.0
      %9351 = vmatprep.subr.mxu0 0.0
      %9352 = vmatpush1.msra.mxu0 0.0
      %9353 = vmatprep.subr.mxu0 0.0
      %9354 = vmatpush1.msra.mxu0 0.0
      %9355 = vmatprep.subr.mxu0 0.0
      %9356 = vmatpush1.msra.mxu0 0.0
      %9357 = vmatprep.subr.mxu0 0.0
      %9358 = vmatpush1.msra.mxu0 0.0
      %9359 = vmatprep.subr.mxu0 0.0
      %9360 = vmatpush1.msra.mxu0 0.0
      %9361 = vmatprep.subr.mxu0 0.0
      %9362 = vmatpush1.msra.mxu0 0.0
      %9363 = vmatprep.subr.mxu0 0.0
      %9364 = vmatpush1.msra.mxu0 0.0
      %9365 = vmatprep.mubr.f32.mxu0 0.0
      %9366 = vmatmul.mubr.f32.gmra.mrb[0].mxu0 %v8948
      %v9367 = vpop.f32.mrb[0].mxu0
      %v9368 = vadd.f32 1e-05, %v9367
      %v9369 = vpop.f32.mrb[0].mxu0
      %v9370 = vadd.f32 1e-05, %v9369
      %9371 = vmatprep.mubr.f32.mxu0 0.0
      %9372 = vmatmul.mubr.f32.gmra.mrb[0].mxu0 %v8951
      %v9373 = vpop.f32.mrb[0].mxu0
      %v9374 = vadd.f32 1e-05, %v9373
      %v9375 = vpop.f32.mrb[0].mxu0
      %v9376 = vadd.f32 1e-05, %v9375
      %9377 = vmatprep.mubr.f32.mxu0 0.0
      %9378 = vmatmul.mubr.f32.gmra.mrb[0].mxu0 %v8954
      %v9379 = vpop.f32.mrb[0].mxu0
      %v9380 = vadd.f32 1e-05, %v9379
      %v9381 = vpop.f32.mrb[0].mxu0
      %v9382 = vadd.f32 1e-05, %v9381
      %9383 = vmatprep.mubr.f32.mxu0 0.0
      %9384 = vmatmul.mubr.f32.gmra.mrb[0].mxu0 %v8957
      %v9385 = vpop.f32.mrb[0].mxu0
      %v9386 = vadd.f32 1e-05, %v9385
      %v9387 = vpop.f32.mrb[0].mxu0
      %v9388 = vadd.f32 1e-05, %v9387
      %9389 = vmatprep.mubr.f32.mxu0 0.0
      %9390 = vmatmul.mubr.f32.gmra.mrb[0].mxu0 %v8960
      %v9391 = vpop.f32.mrb[0].mxu0
      %v9392 = vadd.f32 1e-05, %v9391
      %v9393 = vpop.f32.mrb[0].mxu0
      %v9394 = vadd.f32 1e-05, %v9393
      %9395 = vmatprep.mubr.f32.mxu0 0.0
      %9396 = vmatmul.mubr.f32.gmra.mrb[0].mxu0 %v8963
      %v9397 = vpop.f32.mrb[0].mxu0
      %v9398 = vadd.f32 1e-05, %v9397
      %v9399 = vpop.f32.mrb[0].mxu0
      %v9400 = vadd.f32 1e-05, %v9399
      %9401 = vmatprep.mubr.f32.mxu0 0.0
      %9402 = vmatmul.mubr.f32.gmra.mrb[0].mxu0 %v8966
      %v9403 = vpop.f32.mrb[0].mxu0
      %v9404 = vadd.f32 1e-05, %v9403
      %v9405 = vpop.f32.mrb[0].mxu0
      %v9406 = vadd.f32 1e-05, %v9405
      %9407 = vmatprep.mubr.f32.mxu0 0.0
      %9408 = vmatmul.mubr.f32.gmra.mrb[0].mxu0 %v8969
      %v9409 = vpop.f32.mrb[0].mxu0
      %v9410 = vadd.f32 1e-05, %v9409
      %v9411 = vpop.f32.mrb[0].mxu0
      %v9412 = vadd.f32 1e-05, %v9411
      %9413 = vmatprep.mubr.f32.mxu0 0.0
      %9414 = vmatmul.mubr.f32.gmra.mrb[0].mxu0 %v8972
      %v9415 = vpop.f32.mrb[0].mxu0
      %v9416 = vadd.f32 1e-05, %v9415
      %v9417 = vpop.f32.mrb[0].mxu0
      %v9418 = vadd.f32 1e-05, %v9417
      %9419 = vmatprep.mubr.f32.mxu0 0.0
      %9420 = vmatmul.mubr.f32.gmra.mrb[0].mxu0 %v8975
      %v9421 = vpop.f32.mrb[0].mxu0
      %v9422 = vadd.f32 1e-05, %v9421
      %v9423 = vpop.f32.mrb[0].mxu0
      %v9424 = vadd.f32 1e-05, %v9423
      %9425 = vmatprep.mubr.f32.mxu0 0.0
      %9426 = vmatmul.mubr.f32.gmra.mrb[0].mxu0 %v8978
      %v9427 = vpop.f32.mrb[0].mxu0
      %v9428 = vadd.f32 1e-05, %v9427
      %v9429 = vpop.f32.mrb[0].mxu0
      %v9430 = vadd.f32 1e-05, %v9429
      %9431 = vmatprep.mubr.f32.mxu0 0.0
      %9432 = vmatmul.mubr.f32.gmra.mrb[0].mxu0 %v8981
      %v9433 = vpop.f32.mrb[0].mxu0
      %v9434 = vadd.f32 1e-05, %v9433
      %v9435 = vpop.f32.mrb[0].mxu0
      %v9436 = vadd.f32 1e-05, %v9435
      %9437 = vmatprep.mubr.f32.mxu0 0.0
      %9438 = vmatmul.mubr.f32.gmra.mrb[0].mxu0 %v8984
      %v9439 = vpop.f32.mrb[0].mxu0
      %v9440 = vadd.f32 1e-05, %v9439
      %v9441 = vpop.f32.mrb[0].mxu0
      %v9442 = vadd.f32 1e-05, %v9441
      %9443 = vmatprep.mubr.f32.mxu0 0.0
      %9444 = vmatmul.mubr.f32.gmra.mrb[0].mxu0 %v8987
      %v9445 = vpop.f32.mrb[0].mxu0
      %v9446 = vadd.f32 1e-05, %v9445
      %v9447 = vpop.f32.mrb[0].mxu0
      %v9448 = vadd.f32 1e-05, %v9447
      %9449 = vmatprep.mubr.f32.mxu0 0.0
      %9450 = vmatmul.mubr.f32.gmra.mrb[0].mxu0 %v8990
      %v9451 = vpop.f32.mrb[0].mxu0
      %v9452 = vadd.f32 1e-05, %v9451
      %v9453 = vpop.f32.mrb[0].mxu0
      %v9454 = vadd.f32 1e-05, %v9453
      %9455 = vmatprep.mubr.f32.mxu0 0.0
      %9456 = vmatmul.mubr.f32.gmra.mrb[0].mxu0 %v8993
      %v9457 = vpop.f32.mrb[0].mxu0
      %v9458 = vadd.f32 1e-05, %v9457
      %v9459 = vpop.f32.mrb[0].mxu0
      %v9460 = vadd.f32 1e-05, %v9459
      %9461 = vdwg.mxu0
      %v9462 = vrsqrt.pop %v9368
      %v9463 = vrsqrt.pop %v9370
      %v9464 = vrsqrt.pop %v9374
      %v9465 = vrsqrt.pop %v9376
      %v9466 = vrsqrt.pop %v9380
      %v9467 = vrsqrt.pop %v9382
      %v9468 = vrsqrt.pop %v9386
      %v9469 = vrsqrt.pop %v9388
      %v9470 = vrsqrt.pop %v9392
      %v9471 = vrsqrt.pop %v9394
      %v9472 = vrsqrt.pop %v9398
      %v9473 = vrsqrt.pop %v9400
      %v9474 = vrsqrt.pop %v9404
      %v9475 = vrsqrt.pop %v9406
      %v9476 = vrsqrt.pop %v9410
      %v9477 = vrsqrt.pop %v9412
      %v9478 = vrsqrt.pop %v9416
      %v9479 = vrsqrt.pop %v9418
      %v9480 = vrsqrt.pop %v9422
      %v9481 = vrsqrt.pop %v9424
      %v9482 = vrsqrt.pop %v9428
      %v9483 = vrsqrt.pop %v9430
      %v9484 = vrsqrt.pop %v9434
      %v9485 = vrsqrt.pop %v9436
      %v9486 = vrsqrt.pop %v9440
      %v9487 = vrsqrt.pop %v9442
      %v9488 = vrsqrt.pop %v9446
      %v9489 = vrsqrt.pop %v9448
      %v9490 = vrsqrt.pop %v9452
      %v9491 = vrsqrt.pop %v9454
      %v9492 = vrsqrt.pop %v9458
      %v9493 = vrsqrt.pop %v9460
      %v9494 = vmul.f32 %v9156, %v9462
      %v9495 = vmul.f32 %v9157, %v9463
      %v9496 = vmul.f32 %v9158, %v9464
      %v9497 = vmul.f32 %v9159, %v9465
      %v9498 = vmul.f32 %v9160, %v9466
      %v9499 = vmul.f32 %v9161, %v9467
      %v9500 = vmul.f32 %v9162, %v9468
      %v9501 = vmul.f32 %v9163, %v9469
      %v9502 = vmul.f32 %v9164, %v9470
      %v9503 = vmul.f32 %v9165, %v9471
      %v9504 = vmul.f32 %v9166, %v9472
      %v9505 = vmul.f32 %v9167, %v9473
      %v9506 = vmul.f32 %v9168, %v9474
      %v9507 = vmul.f32 %v9169, %v9475
      %v9508 = vmul.f32 %v9170, %v9476
      %v9509 = vmul.f32 %v9171, %v9477
      %v9510 = vmul.f32 %v9172, %v9478
      %v9511 = vmul.f32 %v9173, %v9479
      %v9512 = vmul.f32 %v9174, %v9480
      %v9513 = vmul.f32 %v9175, %v9481
      %v9514 = vmul.f32 %v9176, %v9482
      %v9515 = vmul.f32 %v9177, %v9483
      %v9516 = vmul.f32 %v9178, %v9484
      %v9517 = vmul.f32 %v9179, %v9485
      %v9518 = vmul.f32 %v9180, %v9486
      %v9519 = vmul.f32 %v9181, %v9487
      %v9520 = vmul.f32 %v9182, %v9488
      %v9521 = vmul.f32 %v9183, %v9489
      %v9522 = vmul.f32 %v9184, %v9490
      %v9523 = vmul.f32 %v9185, %v9491
      %v9524 = vmul.f32 %v9186, %v9492
      %v9525 = vmul.f32 %v9187, %v9493
      %v9526 = vld [vmem:[%s21] sm:$0xff]
      %v9527 = vld [vmem:[%s21 + $0x8] sm:$0xff]
      %v9528 = vld [vmem:[%s21 + $0x10] sm:$0xff]
      %v9529 = vld [vmem:[%s21 + $0x18] sm:$0xff]
      %v9530 = vld [vmem:[%s21 + $0x20] sm:$0xff]
      %v9531 = vld [vmem:[%s21 + $0x28] sm:$0xff]
      %v9532 = vld [vmem:[%s21 + $0x30] sm:$0xff]
      %v9533 = vld [vmem:[%s21 + $0x38] sm:$0xff]
      %v9534 = vld [vmem:[%s21 + $0x40] sm:$0xff]
      %v9535 = vld [vmem:[%s21 + $0x48] sm:$0xff]
      %v9536 = vld [vmem:[%s21 + $0x50] sm:$0xff]
      %v9537 = vld [vmem:[%s21 + $0x58] sm:$0xff]
      %v9538 = vld [vmem:[%s21 + $0x60] sm:$0xff]
      %v9539 = vld [vmem:[%s21 + $0x68] sm:$0xff]
      %v9540 = vld [vmem:[%s21 + $0x70] sm:$0xff]
      %v9541 = vld [vmem:[%s21 + $0x78] sm:$0xff]
      %9543 = vset.pattern.permute.xlu0 0
      %9544 = vperm.xlu0 %9543, %v9526
      %v9545 = vpop.permute.xlu0 %9544
      %9548 = vset.pattern.permute.xlu0 0
      %9549 = vperm.xlu0 %9548, %v9527
      %v9550 = vpop.permute.xlu0 %9549
      %9553 = vset.pattern.permute.xlu0 0
      %9554 = vperm.xlu0 %9553, %v9528
      %v9555 = vpop.permute.xlu0 %9554
      %9558 = vset.pattern.permute.xlu0 0
      %9559 = vperm.xlu0 %9558, %v9529
      %v9560 = vpop.permute.xlu0 %9559
      %9563 = vset.pattern.permute.xlu0 0
      %9564 = vperm.xlu0 %9563, %v9530
      %v9565 = vpop.permute.xlu0 %9564
      %9568 = vset.pattern.permute.xlu0 0
      %9569 = vperm.xlu0 %9568, %v9531
      %v9570 = vpop.permute.xlu0 %9569
      %9573 = vset.pattern.permute.xlu0 0
      %9574 = vperm.xlu0 %9573, %v9532
      %v9575 = vpop.permute.xlu0 %9574
      %9578 = vset.pattern.permute.xlu0 0
      %9579 = vperm.xlu0 %9578, %v9533
      %v9580 = vpop.permute.xlu0 %9579
      %9583 = vset.pattern.permute.xlu0 0
      %9584 = vperm.xlu0 %9583, %v9534
      %v9585 = vpop.permute.xlu0 %9584
      %9588 = vset.pattern.permute.xlu0 0
      %9589 = vperm.xlu0 %9588, %v9535
      %v9590 = vpop.permute.xlu0 %9589
      %9593 = vset.pattern.permute.xlu0 0
      %9594 = vperm.xlu0 %9593, %v9536
      %v9595 = vpop.permute.xlu0 %9594
      %9598 = vset.pattern.permute.xlu0 0
      %9599 = vperm.xlu0 %9598, %v9537
      %v9600 = vpop.permute.xlu0 %9599
      %9603 = vset.pattern.permute.xlu0 0
      %9604 = vperm.xlu0 %9603, %v9538
      %v9605 = vpop.permute.xlu0 %9604
      %9608 = vset.pattern.permute.xlu0 0
      %9609 = vperm.xlu0 %9608, %v9539
      %v9610 = vpop.permute.xlu0 %9609
      %9613 = vset.pattern.permute.xlu0 0
      %9614 = vperm.xlu0 %9613, %v9540
      %v9615 = vpop.permute.xlu0 %9614
      %9618 = vset.pattern.permute.xlu0 0
      %9619 = vperm.xlu0 %9618, %v9541
      %v9620 = vpop.permute.xlu0 %9619
      %v9622 = vmul.f32 %v9494, %v9545
      %v9623 = vmul.f32 %v9495, %v9545
      %v9624 = vmul.f32 %v9496, %v9550
      %v9625 = vmul.f32 %v9497, %v9550
      %v9626 = vmul.f32 %v9498, %v9555
      %v9627 = vmul.f32 %v9499, %v9555
      %v9628 = vmul.f32 %v9500, %v9560
      %v9629 = vmul.f32 %v9501, %v9560
      %v9630 = vmul.f32 %v9502, %v9565
      %v9631 = vmul.f32 %v9503, %v9565
      %v9632 = vmul.f32 %v9504, %v9570
      %v9633 = vmul.f32 %v9505, %v9570
      %v9634 = vmul.f32 %v9506, %v9575
      %v9635 = vmul.f32 %v9507, %v9575
      %v9636 = vmul.f32 %v9508, %v9580
      %v9637 = vmul.f32 %v9509, %v9580
      %v9638 = vmul.f32 %v9510, %v9585
      %v9639 = vmul.f32 %v9511, %v9585
      %v9640 = vmul.f32 %v9512, %v9590
      %v9641 = vmul.f32 %v9513, %v9590
      %v9642 = vmul.f32 %v9514, %v9595
      %v9643 = vmul.f32 %v9515, %v9595
      %v9644 = vmul.f32 %v9516, %v9600
      %v9645 = vmul.f32 %v9517, %v9600
      %v9646 = vmul.f32 %v9518, %v9605
      %v9647 = vmul.f32 %v9519, %v9605
      %v9648 = vmul.f32 %v9520, %v9610
      %v9649 = vmul.f32 %v9521, %v9610
      %v9650 = vmul.f32 %v9522, %v9615
      %v9651 = vmul.f32 %v9523, %v9615
      %v9652 = vmul.f32 %v9524, %v9620
      %v9653 = vmul.f32 %v9525, %v9620
      %v9654 = vld [vmem:[%s22] sm:$0xff]
      %v9655 = vld [vmem:[%s22 + $0x8] sm:$0xff]
      %v9656 = vld [vmem:[%s22 + $0x10] sm:$0xff]
      %v9657 = vld [vmem:[%s22 + $0x18] sm:$0xff]
      %v9658 = vld [vmem:[%s22 + $0x20] sm:$0xff]
      %v9659 = vld [vmem:[%s22 + $0x28] sm:$0xff]
      %v9660 = vld [vmem:[%s22 + $0x30] sm:$0xff]
      %v9661 = vld [vmem:[%s22 + $0x38] sm:$0xff]
      %v9662 = vld [vmem:[%s22 + $0x40] sm:$0xff]
      %v9663 = vld [vmem:[%s22 + $0x48] sm:$0xff]
      %v9664 = vld [vmem:[%s22 + $0x50] sm:$0xff]
      %v9665 = vld [vmem:[%s22 + $0x58] sm:$0xff]
      %v9666 = vld [vmem:[%s22 + $0x60] sm:$0xff]
      %v9667 = vld [vmem:[%s22 + $0x68] sm:$0xff]
      %v9668 = vld [vmem:[%s22 + $0x70] sm:$0xff]
      %v9669 = vld [vmem:[%s22 + $0x78] sm:$0xff]
      %9671 = vset.pattern.permute.xlu0 0
      %9672 = vperm.xlu0 %9671, %v9654
      %v9673 = vpop.permute.xlu0 %9672
      %9676 = vset.pattern.permute.xlu0 0
      %9677 = vperm.xlu0 %9676, %v9655
      %v9678 = vpop.permute.xlu0 %9677
      %9681 = vset.pattern.permute.xlu0 0
      %9682 = vperm.xlu0 %9681, %v9656
      %v9683 = vpop.permute.xlu0 %9682
      %9686 = vset.pattern.permute.xlu0 0
      %9687 = vperm.xlu0 %9686, %v9657
      %v9688 = vpop.permute.xlu0 %9687
      %9691 = vset.pattern.permute.xlu0 0
      %9692 = vperm.xlu0 %9691, %v9658
      %v9693 = vpop.permute.xlu0 %9692
      %9696 = vset.pattern.permute.xlu0 0
      %9697 = vperm.xlu0 %9696, %v9659
      %v9698 = vpop.permute.xlu0 %9697
      %9701 = vset.pattern.permute.xlu0 0
      %9702 = vperm.xlu0 %9701, %v9660
      %v9703 = vpop.permute.xlu0 %9702
      %9706 = vset.pattern.permute.xlu0 0
      %9707 = vperm.xlu0 %9706, %v9661
      %v9708 = vpop.permute.xlu0 %9707
      %9711 = vset.pattern.permute.xlu0 0
      %9712 = vperm.xlu0 %9711, %v9662
      %v9713 = vpop.permute.xlu0 %9712
      %9716 = vset.pattern.permute.xlu0 0
      %9717 = vperm.xlu0 %9716, %v9663
      %v9718 = vpop.permute.xlu0 %9717
      %9721 = vset.pattern.permute.xlu0 0
      %9722 = vperm.xlu0 %9721, %v9664
      %v9723 = vpop.permute.xlu0 %9722
      %9726 = vset.pattern.permute.xlu0 0
      %9727 = vperm.xlu0 %9726, %v9665
      %v9728 = vpop.permute.xlu0 %9727
      %9731 = vset.pattern.permute.xlu0 0
      %9732 = vperm.xlu0 %9731, %v9666
      %v9733 = vpop.permute.xlu0 %9732
      %9736 = vset.pattern.permute.xlu0 0
      %9737 = vperm.xlu0 %9736, %v9667
      %v9738 = vpop.permute.xlu0 %9737
      %9741 = vset.pattern.permute.xlu0 0
      %9742 = vperm.xlu0 %9741, %v9668
      %v9743 = vpop.permute.xlu0 %9742
      %9746 = vset.pattern.permute.xlu0 0
      %9747 = vperm.xlu0 %9746, %v9669
      %v9748 = vpop.permute.xlu0 %9747
      %v9750 = vadd.f32 %v9622, %v9673
      %v9751 = vadd.f32 %v9623, %v9673
      %v9752 = vadd.f32 %v9624, %v9678
      %v9753 = vadd.f32 %v9625, %v9678
      %v9754 = vadd.f32 %v9626, %v9683
      %v9755 = vadd.f32 %v9627, %v9683
      %v9756 = vadd.f32 %v9628, %v9688
      %v9757 = vadd.f32 %v9629, %v9688
      %v9758 = vadd.f32 %v9630, %v9693
      %v9759 = vadd.f32 %v9631, %v9693
      %v9760 = vadd.f32 %v9632, %v9698
      %v9761 = vadd.f32 %v9633, %v9698
      %v9762 = vadd.f32 %v9634, %v9703
      %v9763 = vadd.f32 %v9635, %v9703
      %v9764 = vadd.f32 %v9636, %v9708
      %v9765 = vadd.f32 %v9637, %v9708
      %v9766 = vadd.f32 %v9638, %v9713
      %v9767 = vadd.f32 %v9639, %v9713
      %v9768 = vadd.f32 %v9640, %v9718
      %v9769 = vadd.f32 %v9641, %v9718
      %v9770 = vadd.f32 %v9642, %v9723
      %v9771 = vadd.f32 %v9643, %v9723
      %v9772 = vadd.f32 %v9644, %v9728
      %v9773 = vadd.f32 %v9645, %v9728
      %v9774 = vadd.f32 %v9646, %v9733
      %v9775 = vadd.f32 %v9647, %v9733
      %v9776 = vadd.f32 %v9648, %v9738
      %v9777 = vadd.f32 %v9649, %v9738
      %v9778 = vadd.f32 %v9650, %v9743
      %v9779 = vadd.f32 %v9651, %v9743
      %v9780 = vadd.f32 %v9652, %v9748
      %v9781 = vadd.f32 %v9653, %v9748
      %v9782 = vadd.f32 %v9750, %v9751
      %9783 = vadd.xlane.f32.xlu0 %v9782
      %v9784 = vpop.xlane.xlu0 %9783
      %v9785 = vadd.f32 %v9752, %v9753
      %9786 = vadd.xlane.f32.xlu0 %v9785
      %v9787 = vpop.xlane.xlu0 %9786
      %v9788 = vadd.f32 %v9754, %v9755
      %9789 = vadd.xlane.f32.xlu0 %v9788
      %v9790 = vpop.xlane.xlu0 %9789
      %v9791 = vadd.f32 %v9756, %v9757
      %9792 = vadd.xlane.f32.xlu0 %v9791
      %v9793 = vpop.xlane.xlu0 %9792
      %v9794 = vadd.f32 %v9758, %v9759
      %9795 = vadd.xlane.f32.xlu0 %v9794
      %v9796 = vpop.xlane.xlu0 %9795
      %v9797 = vadd.f32 %v9760, %v9761
      %9798 = vadd.xlane.f32.xlu0 %v9797
      %v9799 = vpop.xlane.xlu0 %9798
      %v9800 = vadd.f32 %v9762, %v9763
      %9801 = vadd.xlane.f32.xlu0 %v9800
      %v9802 = vpop.xlane.xlu0 %9801
      %v9803 = vadd.f32 %v9764, %v9765
      %9804 = vadd.xlane.f32.xlu0 %v9803
      %v9805 = vpop.xlane.xlu0 %9804
      %v9806 = vadd.f32 %v9766, %v9767
      %9807 = vadd.xlane.f32.xlu0 %v9806
      %v9808 = vpop.xlane.xlu0 %9807
      %v9809 = vadd.f32 %v9768, %v9769
      %9810 = vadd.xlane.f32.xlu0 %v9809
      %v9811 = vpop.xlane.xlu0 %9810
      %v9812 = vadd.f32 %v9770, %v9771
      %9813 = vadd.xlane.f32.xlu0 %v9812
      %v9814 = vpop.xlane.xlu0 %9813
      %v9815 = vadd.f32 %v9772, %v9773
      %9816 = vadd.xlane.f32.xlu0 %v9815
      %v9817 = vpop.xlane.xlu0 %9816
      %v9818 = vadd.f32 %v9774, %v9775
      %9819 = vadd.xlane.f32.xlu0 %v9818
      %v9820 = vpop.xlane.xlu0 %9819
      %v9821 = vadd.f32 %v9776, %v9777
      %9822 = vadd.xlane.f32.xlu0 %v9821
      %v9823 = vpop.xlane.xlu0 %9822
      %v9824 = vadd.f32 %v9778, %v9779
      %9825 = vadd.xlane.f32.xlu0 %v9824
      %v9826 = vpop.xlane.xlu0 %9825
      %v9827 = vadd.f32 %v9780, %v9781
      %9828 = vadd.xlane.f32.xlu0 %v9827
      %v9829 = vpop.xlane.xlu0 %9828
      %vm9830 = vcmask 7168
      %9831 = vst.msk [vmem:[%s768] sm:$0xff] %vm9830, %v9784
      %9832 = vst.msk [vmem:[%s768 + $0x8] sm:$0xff] %vm9830, %v9787
      %9833 = vst.msk [vmem:[%s768 + $0x10] sm:$0xff] %vm9830, %v9790
      %9834 = vst.msk [vmem:[%s768 + $0x18] sm:$0xff] %vm9830, %v9793
      %9835 = vst.msk [vmem:[%s768 + $0x20] sm:$0xff] %vm9830, %v9796
      %9836 = vst.msk [vmem:[%s768 + $0x28] sm:$0xff] %vm9830, %v9799
      %9837 = vst.msk [vmem:[%s768 + $0x30] sm:$0xff] %vm9830, %v9802
      %9838 = vst.msk [vmem:[%s768 + $0x38] sm:$0xff] %vm9830, %v9805
      %9839 = vst.msk [vmem:[%s768 + $0x40] sm:$0xff] %vm9830, %v9808
      %9840 = vst.msk [vmem:[%s768 + $0x48] sm:$0xff] %vm9830, %v9811
      %9841 = vst.msk [vmem:[%s768 + $0x50] sm:$0xff] %vm9830, %v9814
      %9842 = vst.msk [vmem:[%s768 + $0x58] sm:$0xff] %vm9830, %v9817
      %9843 = vst.msk [vmem:[%s768 + $0x60] sm:$0xff] %vm9830, %v9820
      %9844 = vst.msk [vmem:[%s768 + $0x68] sm:$0xff] %vm9830, %v9823
      %9845 = vst.msk [vmem:[%s768 + $0x70] sm:$0xff] %vm9830, %v9826
      %9846 = vst.msk [vmem:[%s768 + $0x78] sm:$0xff] %vm9830, %v9829
      %p9847 = scmp.lt.s32.totalorder %s38, 1
      %s9848 = scalar_select %p9847, %s38, 1
      %p9849 = scmp.lt.s32.totalorder %s39, 0
      %s9850 = scalar_select %p9849, %s39, 0
      %s9851 = smul.addr %s9850, 16
      %s9852 = smul.addr %s9848, 16
      %s9853 = sadd.s32 %s9851, %s9852
      %s9854 = smul.addr %s9853, 8
      %s9855 = scalar_lea.vmem %s23, %s9854
      // Predicated region
      $region113: #{ltae_forward.1} parent=111 // pred_check
        %p9856 = pneg %p561
      $region114: #{ltae_forward.1} parent=111 // pred_check_branch
        %9858 = sbr.rel (%p9856) target = $region116
      $region115: #{ltae_forward.1} parent=111 // pred_region
        _
      $region116: #{ltae_forward.1} parent=111 // pred_fallthru
        _
    $region112: #{ltae_forward.1} parent=5 // pred_fallthru
      _
    %p9859 = scmp.le.s32.totalorder 2, %s29
    // Predicated region
    $region117: #{ltae_forward.1} parent=5 // pred_check
      %p9860 = pneg %p9859
    $region118: #{ltae_forward.1} parent=5 // pred_check_branch
      %9862 = sbr.rel (%p9860) target = $region120
    $region119: #{ltae_forward.1} parent=5 // pred_region
      %s9863 = ssub.s32 %s29, 2
      // Predicated region
      $region121: #{ltae_forward.1} parent=119 // pred_check
        %p9864 = pneg %p567
      $region122: #{ltae_forward.1} parent=119 // pred_check_branch
        %9866 = sbr.rel (%p9864) target = $region124
      $region123: #{ltae_forward.1} parent=119 // pred_region
        %p9867 = scmp.lt.s32.totalorder %s40, 1
        %s9868 = scalar_select %p9867, %s40, 1
        %p9869 = scmp.lt.s32.totalorder %s41, 0
        %s9870 = scalar_select %p9869, %s41, 0
        %s9871 = smul.addr %s9870, 16
        %s9872 = smul.addr %s9868, 16
        %s9873 = sadd.s32 %s9871, %s9872
        %s9874 = smul.addr %s9873, 8
        %s9875 = scalar_lea.vmem %s23, %s9874
      $region124: #{ltae_forward.1} parent=119 // pred_fallthru
        _
    $region120: #{ltae_forward.1} parent=5 // pred_fallthru
      _
  $region6: #{ltae_forward.1} parent=0 // loop_footer
    %s33 = sadd.s32 1, %s29
  $region7: #{ltae_forward.1} parent=0 // loop_footer_branch
    %28 = sbr.rel target = $region3
  $region8: #{ltae_forward.1} parent=0 // loop_exit
    _

</llo_original>
